<compile_context>
chip_gen: v5e
topology: v5e:2x2
jax: 0.10.0
libtpu: 0.0.40
codegen_flags: <defaults>
</compile_context>

<pallas_src>
import functools

import jax
import jax.numpy as jnp
import numpy as np
from jax import lax
from jax.experimental import pallas as pl
from jax.experimental.pallas import tpu as pltpu

KW = 4            # kernel size used everywhere in DCGANDiscriminator
BN_EPS = 1e-5     # PyTorch BatchNorm2d default
CPAD = 128        # lane-dense output width
LRELU_SLOPE = 0.2


# ----------------------------- Pallas kernels -----------------------------

def _conv_lrelu_kernel(p_ref, w_ref, o_ref):
    """Conv (im2col matmul, bf16 in / f32 acc) + LeakyReLU(0.2); bf16 lane-dense out."""
    y = jnp.dot(p_ref[...], w_ref[...], preferred_element_type=jnp.float32)
    o_ref[...] = jnp.maximum(y, LRELU_SLOPE * y).astype(o_ref.dtype)


def _bn_lrelu(y, g, b):
    """Train-mode BatchNorm2d (biased batch var, single stats pass) + LeakyReLU, f32.

    NOTE: batch statistics are computed over *all* rows of `y`; callers must keep the
    whole (M, CPAD) activation in one un-gridded block (see _check_bn_block).  Adding
    an M grid requires cross-block sum / sum-of-squares accumulation in scratch.
    """
    m1 = jnp.mean(y, axis=0, keepdims=True)
    m2 = jnp.mean(y * y, axis=0, keepdims=True)
    var = jnp.maximum(m2 - m1 * m1, 0.0)            # guard tiny negative from rounding
    scale = g * lax.rsqrt(var + BN_EPS)             # fold BN into one FMA
    shift = b - m1 * scale
    z = y * scale + shift
    return jnp.maximum(z, LRELU_SLOPE * z)


def _conv_bn_lrelu_kernel(p_ref, w_ref, g_ref, b_ref, o_ref):
    """Conv matmul + BatchNorm2d (train-mode batch stats) + LeakyReLU(0.2), bf16 out."""
    y = jnp.dot(p_ref[...], w_ref[...], preferred_element_type=jnp.float32)
    o_ref[...] = _bn_lrelu(y, g_ref[...], b_ref[...]).astype(o_ref.dtype)


def _conv_bn_lrelu_head_kernel(p_ref, w_ref, g_ref, b_ref, w6_ref, o_ref, *, nb, hw):
    """Fused layers 5+6: conv + BN + LeakyReLU, then final 4x4 VALID conv + Sigmoid.

    The head conv consumes the whole 4x4 spatial extent of the layer-5 activation, so
    it reduces to an elementwise multiply with a per-(row,tap) weight matrix followed
    by a per-batch-element full reduction (all f32), then Sigmoid.
    """
    y = jnp.dot(p_ref[...], w_ref[...], preferred_element_type=jnp.float32)
    z = _bn_lrelu(y, g_ref[...], b_ref[...])            # (nb*hw, CPAD) f32
    prod = z * w6_ref[...]                              # head-conv partial products
    for n in range(nb):                                 # tiny static loop (nb = batch)
        blk = prod[n * hw:(n + 1) * hw, :]
        s = jnp.sum(jnp.sum(blk, axis=1, keepdims=True), axis=0, keepdims=True)  # (1,1)
        o_ref[n:n + 1, :] = pl.reciprocal(1.0 + jnp.exp(-s), approx=True)


def _conv_sigmoid_kernel(p_ref, w_ref, o_ref):
    """Standalone final conv matmul + Sigmoid (fallback when 5+6 fusion doesn't apply)."""
    y = jnp.dot(p_ref[...], w_ref[...], preferred_element_type=jnp.float32)
    o_ref[...] = pl.reciprocal(1.0 + jnp.exp(-y), approx=True)


def _vmem_specs(n):
    return [pl.BlockSpec(memory_space=pltpu.MemorySpace.VMEM) for _ in range(n)]


# ------------------------------- glue (JAX) --------------------------------

def _round_up(x, m):
    return ((x + m - 1) // m) * m


def _im2col(x_nhwc, k, stride, pad):
    """Strided-conv im2col: (N*Ho*Wo, k*k*C) patches, contraction order (kh,kw,ci)."""
    N, H, W, C = x_nhwc.shape
    Ho = (H + 2 * pad - k) // stride + 1
    Wo = (W + 2 * pad - k) // stride + 1
    xp = jnp.pad(x_nhwc, ((0, 0), (pad, pad), (pad, pad), (0, 0))) if pad else x_nhwc
    slices = [xp[:, kh:kh + stride * (Ho - 1) + 1:stride,
                  kw:kw + stride * (Wo - 1) + 1:stride, :]
              for kh in range(k) for kw in range(k)]
    patches = jnp.stack(slices, axis=3).reshape(N * Ho * Wo, k * k * C)
    return patches, (N, Ho, Wo)


def _matmul_operands(x_nhwc, w_pt, stride, pad):
    """bf16 (patches, wmat) with K padded to a multiple of 128 and Cout padded to 128."""
    cout, cin, k, _ = w_pt.shape
    patches, dims = _im2col(x_nhwc, k, stride, pad)
    K = patches.shape[1]
    Kp = _round_up(K, 128)
    patches = jnp.pad(patches, ((0, 0), (0, Kp - K))).astype(jnp.bfloat16)
    wmat = jnp.transpose(w_pt, (2, 3, 1, 0)).reshape(K, cout)       # (kh,kw,ci) x cout
    wmat = jnp.pad(wmat, ((0, Kp - K), (0, CPAD - cout))).astype(jnp.bfloat16)
    return patches, wmat, dims, cout


def _pad_vec(v, cout):
    return jnp.pad(v, (0, CPAD - cout)).reshape(1, CPAD).astype(jnp.float32)


def _pick_m_tile(M):
    """Largest M tile that divides M while keeping >=2 grid steps (v7x: 2 TCs)."""
    for t in (4096, 2048, 1024, 512, 256, 128):
        if M % t == 0 and M // t >= 2:
            return t
    return M


_BN_VMEM_BUDGET = 24 * 1024 * 1024   # conservative; fits scoped VMEM on v5e/v6e/v7x


def _check_bn_block(M, Kp):
    # Train-mode BN needs every row in a single un-gridded block.  Rough per-call VMEM:
    # bf16 patches + bf16 weight + bf16 out + f32 y and y*y intermediates.
    need = M * Kp * 2 + Kp * CPAD * 2 + M * CPAD * (2 + 4 + 4)
    assert need <= _BN_VMEM_BUDGET, (
        f"BN layer block needs ~{need >> 20} MiB VMEM (> {_BN_VMEM_BUDGET >> 20} MiB); "
        "add an M grid ('arbitrary' axis) with cross-block sum/sumsq accumulation.")


def dcgan_discriminator_forward(x_nchw, layers):
    """Pallas forward. x_nchw: (N, nc, 128, 128); returns (N,) sigmoid scores."""
    # NCHW -> NHWC and straight to bf16 so all im2col glue is half-width.
    x = jnp.transpose(x_nchw, (0, 2, 3, 1)).astype(jnp.bfloat16)

    # ---- layer 1: Conv(4, s2, p1) + LeakyReLU ----  (largest M: tiled, parallel grid)
    lyr = layers[0]
    patches, wmat, (N, Ho, Wo), cout = _matmul_operands(x, lyr["weight"], 2, 1)
    M, Kp = patches.shape
    tm = _pick_m_tile(M)
    # tm=4096: 2 * (tm*Kp + Kp*CPAD + tm*CPAD) * 2B ~= 4.2 MiB double-buffered,
    # well under the 32 MiB default scoped VMEM on all generations.
    out = pl.pallas_call(
        _conv_lrelu_kernel,
        out_shape=jax.ShapeDtypeStruct((M, CPAD), jnp.bfloat16),
        grid_spec=pltpu.PrefetchScalarGridSpec(
            num_scalar_prefetch=0,
            grid=(M // tm,),
            in_specs=[pl.BlockSpec((tm, Kp), lambda i: (i, 0)),
                      pl.BlockSpec((Kp, CPAD), lambda i: (0, 0))],
            out_specs=pl.BlockSpec((tm, CPAD), lambda i: (i, 0))),
        compiler_params=pltpu.CompilerParams(dimension_semantics=("parallel",)),
    )(patches, wmat)
    x = out[:, :cout].reshape(N, Ho, Wo, cout)

    # ---- layers 2..4: Conv(4, s2, p1) + BatchNorm2d(train) + LeakyReLU ----
    for lyr in layers[1:-2]:
        patches, wmat, (N, Ho, Wo), cout = _matmul_operands(x, lyr["weight"], 2, 1)
        M, Kp = patches.shape
        _check_bn_block(M, Kp)
        out = pl.pallas_call(
            _conv_bn_lrelu_kernel,
            out_shape=jax.ShapeDtypeStruct((M, CPAD), jnp.bfloat16),
            in_specs=_vmem_specs(4),
            out_specs=pl.BlockSpec(memory_space=pltpu.MemorySpace.VMEM),
        )(patches, wmat, _pad_vec(lyr["gamma"], cout), _pad_vec(lyr["beta"], cout))
        x = out[:, :cout].reshape(N, Ho, Wo, cout)

    # ---- layer 5 (+ fused final layer 6 when shapes allow) ----
    lyr5, lyr6 = layers[-2], layers[-1]
    patches, wmat, (N, Ho, Wo), cout5 = _matmul_operands(x, lyr5["weight"], 2, 1)
    M, Kp = patches.shape
    _check_bn_block(M, Kp)
    cout6 = lyr6["weight"].shape[0]
    if Ho == KW and Wo == KW and cout5 <= CPAD and cout6 == 1:
        hw = KW * KW
        # Head-conv weight per layer-5 output row m = n*16 + kh*4 + kw: W6[0, :, kh, kw].
        w6rows = jnp.transpose(lyr6["weight"][0], (1, 2, 0)).reshape(hw, cout5)
        w6rows = jnp.pad(w6rows, ((0, 0), (0, CPAD - cout5))).astype(jnp.float32)
        w6full = jnp.tile(w6rows, (N, 1))                              # (M, CPAD) f32
        out = pl.pallas_call(
            functools.partial(_conv_bn_lrelu_head_kernel, nb=N, hw=hw),
            out_shape=jax.ShapeDtypeStruct((N, 1), jnp.float32),
            in_specs=_vmem_specs(5),
            out_specs=pl.BlockSpec(memory_space=pltpu.MemorySpace.VMEM),
        )(patches, wmat, _pad_vec(lyr5["gamma"], cout5),
          _pad_vec(lyr5["beta"], cout5), w6full)
        return out.reshape(-1)               # == output.view(-1, 1).squeeze(1)

    # Fallback: un-fused layer 5 then standalone final conv + sigmoid.
    out = pl.pallas_call(
        _conv_bn_lrelu_kernel,
        out_shape=jax.ShapeDtypeStruct((M, CPAD), jnp.bfloat16),
        in_specs=_vmem_specs(4),
        out_specs=pl.BlockSpec(memory_space=pltpu.MemorySpace.VMEM),
    )(patches, wmat, _pad_vec(lyr5["gamma"], cout5), _pad_vec(lyr5["beta"], cout5))
    x = out[:, :cout5].reshape(N, Ho, Wo, cout5)

    patches, wmat, (N, Ho, Wo), cout = _matmul_operands(x, lyr6["weight"], 1, 0)
    M = patches.shape[0]
    out = pl.pallas_call(
        _conv_sigmoid_kernel,
        out_shape=jax.ShapeDtypeStruct((M, CPAD), jnp.float32),
        in_specs=_vmem_specs(2),
        out_specs=pl.BlockSpec(memory_space=pltpu.MemorySpace.VMEM),
    )(patches, wmat)
    return out[:, :cout].reshape(-1)


# --------------------------- parameters (synthetic) -------------------------

def init_dcgan_disc_params(key, nc=3, ndf=16):
    """Deterministic synthetic parameters matching DCGANDiscriminator layer shapes
    (all convs bias=False; BatchNorm on layers 2..5)."""
    specs = [
        dict(cin=nc,        cout=ndf // 2, has_bn=False),
        dict(cin=ndf // 2,  cout=ndf,      has_bn=True),
        dict(cin=ndf,       cout=ndf * 2,  has_bn=True),
        dict(cin=ndf * 2,   cout=ndf * 4,  has_bn=True),
        dict(cin=ndf * 4,   cout=ndf * 8,  has_bn=True),
        dict(cin=ndf * 8,   cout=1,        has_bn=False),
    ]
    layers = []
    keys = jax.random.split(key, len(specs))
    for k_i, sp in zip(keys, specs):
        kw_, kg, kb = jax.random.split(k_i, 3)
        w = 0.05 * jax.random.normal(kw_, (sp["cout"], sp["cin"], KW, KW), jnp.float32)
        if sp["has_bn"]:
            g = 1.0 + 0.05 * jax.random.normal(kg, (sp["cout"],), jnp.float32)
            b = 0.05 * jax.random.normal(kb, (sp["cout"],), jnp.float32)
        else:
            g = jnp.ones((sp["cout"],), jnp.float32)
            b = jnp.zeros((sp["cout"],), jnp.float32)
        layers.append(dict(weight=w, gamma=g, beta=b, has_bn=sp["has_bn"]))
    return layers


# ------------------------------ pure-JAX reference ---------------------------

def _ref_conv(x_nhwc, w_pt, stride, pad):
    w_hwio = jnp.transpose(w_pt, (2, 3, 1, 0))                  # (kH,kW,Cin,Cout)
    return lax.conv_general_dilated(
        x_nhwc, w_hwio, window_strides=(stride, stride),
        padding=[(pad, pad), (pad, pad)],
        dimension_numbers=("NHWC", "HWIO", "NHWC"),
        precision=lax.Precision.HIGHEST)


def dcgan_discriminator_reference(x_nchw, layers):
    x = jnp.transpose(x_nchw, (0, 2, 3, 1)).astype(jnp.float32)
    y = _ref_conv(x, layers[0]["weight"], 2, 1)
    x = jnp.maximum(y, LRELU_SLOPE * y)
    for lyr in layers[1:-1]:
        y = _ref_conv(x, lyr["weight"], 2, 1)
        mean = jnp.mean(y, axis=(0, 1, 2), keepdims=True)
        var = jnp.mean((y - mean) ** 2, axis=(0, 1, 2), keepdims=True)
        y = (y - mean) * lax.rsqrt(var + BN_EPS)
        y = y * lyr["gamma"].reshape(1, 1, 1, -1) + lyr["beta"].reshape(1, 1, 1, -1)
        x = jnp.maximum(y, LRELU_SLOPE * y)
    y = _ref_conv(x, layers[-1]["weight"], 1, 0)
    return jax.nn.sigmoid(y).reshape(-1)


# ----------------------------------- main ------------------------------------

if __name__ == "__main__":
    nc, ndf = 3, 16                      # small width; channel stack 8/16/32/64/128/1
    key = jax.random.PRNGKey(0)
    k_params, k_x = jax.random.split(key)
    layers = init_dcgan_disc_params(k_params, nc, ndf)

    # DCGAN-128 discriminator: five stride-2 convs (128->4) + final 4x4 valid conv -> 1x1.
    x = jax.random.normal(k_x, (2, nc, 128, 128), dtype=jnp.float32)

    fwd = jax.jit(lambda xx: dcgan_discriminator_forward(xx, layers))
    y = jax.block_until_ready(fwd(x))
    assert y.shape == (2,), y.shape

    y_ref = jax.block_until_ready(dcgan_discriminator_reference(x, layers))
    # bf16 MXU inputs / bf16 inter-layer activations (f32 accumulation & BN stats),
    # four compounding BN layers and an approx-reciprocal sigmoid -> GAN-scale tolerance.
    np.testing.assert_allclose(np.asarray(y), np.asarray(y_ref), atol=2.5e-2, rtol=2.5e-2)

    print("KERNEL_OK")
</pallas_src>

<mosaic_0001>
module attributes {stable_mosaic.version = 11 : i64} {
  func.func @_conv_lrelu_kernel(%arg0: i32, %arg1: memref<4096x128xbf16, #tpu.memory_space<vmem>>, %arg2: memref<128x128xbf16, #tpu.memory_space<vmem>>, %arg3: memref<4096x128xbf16, #tpu.memory_space<vmem>>) attributes {dimension_semantics = [#tpu.dimension_semantics<parallel>], iteration_bounds = array<i64: 2>, scalar_prefetch = 0 : i64, scratch_operands = 0 : i64, tpu.core_type = #tpu.core_type<tc>, window_params = [{transform_indices = @transform_0, window_bounds = array<i64: 4096, 128>}, {pipeline_mode = #tpu.pipeline_mode<synchronous>, transform_indices = @transform_1, window_bounds = array<i64: 128, 128>}, {transform_indices = @transform_2, window_bounds = array<i64: 4096, 128>}]} {
    %c0 = arith.constant 0 : index
    %c0_0 = arith.constant 0 : index
    %0 = vector.load %arg1[%c0, %c0_0] : memref<4096x128xbf16, #tpu.memory_space<vmem>>, vector<4096x128xbf16>
    %c0_1 = arith.constant 0 : index
    %c0_2 = arith.constant 0 : index
    %1 = vector.load %arg2[%c0_1, %c0_2] : memref<128x128xbf16, #tpu.memory_space<vmem>>, vector<128x128xbf16>
    %cst = arith.constant dense<0.000000e+00> : vector<4096x128xf32>
    %2 = tpu.matmul %0, %1, %cst {dimension_numbers = #tpu.dot_dimension_numbers<[1], [0], [0], [1], [0, 0, 1, 1], [], []>} : vector<4096x128xbf16>, vector<128x128xbf16>, vector<4096x128xf32> -> vector<4096x128xf32>
    %cst_3 = arith.constant 2.000000e-01 : f32
    %3 = vector.broadcast %cst_3 : f32 to vector<4096x128xf32>
    %4 = arith.mulf %3, %2 : vector<4096x128xf32>
    %5 = arith.maximumf %2, %4 : vector<4096x128xf32>
    %6 = arith.truncf %5 : vector<4096x128xf32> to vector<4096x128xbf16>
    %c0_4 = arith.constant 0 : index
    %c0_5 = arith.constant 0 : index
    %7 = vector.load %arg3[%c0_4, %c0_5] : memref<4096x128xbf16, #tpu.memory_space<vmem>>, vector<4096x128xbf16>
    tpu.vector_store %arg3[%c0_4, %c0_5], %6 {strides = array<i32>} : memref<4096x128xbf16, #tpu.memory_space<vmem>>, vector<4096x128xbf16>,
    return
  }
  func.func @transform_0(%arg0: i32) -> (i32, i32) {
    %c0_i32 = arith.constant 0 : i32
    %c0_i32_0 = arith.constant 0 : i32
    return %arg0, %c0_i32 : i32, i32
  }
  func.func @transform_1(%arg0: i32) -> (i32, i32) {
    %c0_i32 = arith.constant 0 : i32
    %c0_i32_0 = arith.constant 0 : i32
    %c0_i32_1 = arith.constant 0 : i32
    return %c0_i32, %c0_i32_0 : i32, i32
  }
  func.func @transform_2(%arg0: i32) -> (i32, i32) {
    %c0_i32 = arith.constant 0 : i32
    %c0_i32_0 = arith.constant 0 : i32
    return %arg0, %c0_i32 : i32, i32
  }
}

module attributes {stable_mosaic.version = 11 : i64} {
  func.func @_conv_bn_lrelu_kernel(%arg0: memref<2048x128xbf16, #tpu.memory_space<vmem>>, %arg1: memref<128x128xbf16, #tpu.memory_space<vmem>>, %arg2: memref<1x128xf32, #tpu.memory_space<vmem>>, %arg3: memref<1x128xf32, #tpu.memory_space<vmem>>, %arg4: memref<2048x128xbf16, #tpu.memory_space<vmem>>) attributes {dimension_semantics = [], scalar_prefetch = 0 : i64, scratch_operands = 0 : i64, tpu.core_type = #tpu.core_type<tc>} {
    %c0 = arith.constant 0 : index
    %c0_0 = arith.constant 0 : index
    %0 = vector.load %arg0[%c0, %c0_0] : memref<2048x128xbf16, #tpu.memory_space<vmem>>, vector<2048x128xbf16>
    %c0_1 = arith.constant 0 : index
    %c0_2 = arith.constant 0 : index
    %1 = vector.load %arg1[%c0_1, %c0_2] : memref<128x128xbf16, #tpu.memory_space<vmem>>, vector<128x128xbf16>
    %cst = arith.constant dense<0.000000e+00> : vector<2048x128xf32>
    %2 = tpu.matmul %0, %1, %cst {dimension_numbers = #tpu.dot_dimension_numbers<[1], [0], [0], [1], [0, 0, 1, 1], [], []>} : vector<2048x128xbf16>, vector<128x128xbf16>, vector<2048x128xf32> -> vector<2048x128xf32>
    %c0_3 = arith.constant 0 : index
    %c0_4 = arith.constant 0 : index
    %3 = vector.load %arg2[%c0_3, %c0_4] : memref<1x128xf32, #tpu.memory_space<vmem>>, vector<1x128xf32>
    %c0_5 = arith.constant 0 : index
    %c0_6 = arith.constant 0 : index
    %4 = vector.load %arg3[%c0_5, %c0_6] : memref<1x128xf32, #tpu.memory_space<vmem>>, vector<1x128xf32>
    %cst_7 = arith.constant dense<0.000000e+00> : vector<128xf32>
    %5 = vector.multi_reduction <add>, %2, %cst_7 [0] : vector<2048x128xf32> to vector<128xf32>
    %6 = vector.shape_cast %5 : vector<128xf32> to vector<1x128xf32>
    %cst_8 = arith.constant 2.048000e+03 : f32
    %7 = vector.broadcast %cst_8 : f32 to vector<1x128xf32>
    %8 = arith.divf %6, %7 : vector<1x128xf32>
    %9 = arith.mulf %2, %2 : vector<2048x128xf32>
    %cst_9 = arith.constant dense<0.000000e+00> : vector<128xf32>
    %10 = vector.multi_reduction <add>, %9, %cst_9 [0] : vector<2048x128xf32> to vector<128xf32>
    %11 = vector.shape_cast %10 : vector<128xf32> to vector<1x128xf32>
    %cst_10 = arith.constant 2.048000e+03 : f32
    %12 = vector.broadcast %cst_10 : f32 to vector<1x128xf32>
    %13 = arith.divf %11, %12 : vector<1x128xf32>
    %14 = arith.mulf %8, %8 : vector<1x128xf32>
    %15 = arith.subf %13, %14 : vector<1x128xf32>
    %cst_11 = arith.constant 0.000000e+00 : f32
    %16 = vector.broadcast %cst_11 : f32 to vector<1x128xf32>
    %17 = arith.maximumf %15, %16 : vector<1x128xf32>
    %cst_12 = arith.constant 9.99999974E-6 : f32
    %18 = vector.broadcast %cst_12 : f32 to vector<1x128xf32>
    %19 = arith.addf %17, %18 : vector<1x128xf32>
    %20 = math.rsqrt %19 : vector<1x128xf32>
    %21 = arith.mulf %3, %20 : vector<1x128xf32>
    %22 = arith.mulf %8, %21 : vector<1x128xf32>
    %23 = arith.subf %4, %22 : vector<1x128xf32>
    %24 = vector.broadcast %21 : vector<1x128xf32> to vector<2048x128xf32>
    %25 = arith.mulf %2, %24 : vector<2048x128xf32>
    %26 = vector.broadcast %23 : vector<1x128xf32> to vector<2048x128xf32>
    %27 = arith.addf %25, %26 : vector<2048x128xf32>
    %cst_13 = arith.constant 2.000000e-01 : f32
    %28 = vector.broadcast %cst_13 : f32 to vector<2048x128xf32>
    %29 = arith.mulf %28, %27 : vector<2048x128xf32>
    %30 = arith.maximumf %27, %29 : vector<2048x128xf32>
    %31 = arith.truncf %30 : vector<2048x128xf32> to vector<2048x128xbf16>
    %c0_14 = arith.constant 0 : index
    %c0_15 = arith.constant 0 : index
    %32 = vector.load %arg4[%c0_14, %c0_15] : memref<2048x128xbf16, #tpu.memory_space<vmem>>, vector<2048x128xbf16>
    tpu.vector_store %arg4[%c0_14, %c0_15], %31 {strides = array<i32>} : memref<2048x128xbf16, #tpu.memory_space<vmem>>, vector<2048x128xbf16>,
    return
  }
}

module attributes {stable_mosaic.version = 11 : i64} {
  func.func @_conv_bn_lrelu_kernel(%arg0: memref<512x256xbf16, #tpu.memory_space<vmem>>, %arg1: memref<256x128xbf16, #tpu.memory_space<vmem>>, %arg2: memref<1x128xf32, #tpu.memory_space<vmem>>, %arg3: memref<1x128xf32, #tpu.memory_space<vmem>>, %arg4: memref<512x128xbf16, #tpu.memory_space<vmem>>) attributes {dimension_semantics = [], scalar_prefetch = 0 : i64, scratch_operands = 0 : i64, tpu.core_type = #tpu.core_type<tc>} {
    %c0 = arith.constant 0 : index
    %c0_0 = arith.constant 0 : index
    %0 = vector.load %arg0[%c0, %c0_0] : memref<512x256xbf16, #tpu.memory_space<vmem>>, vector<512x256xbf16>
    %c0_1 = arith.constant 0 : index
    %c0_2 = arith.constant 0 : index
    %1 = vector.load %arg1[%c0_1, %c0_2] : memref<256x128xbf16, #tpu.memory_space<vmem>>, vector<256x128xbf16>
    %cst = arith.constant dense<0.000000e+00> : vector<512x128xf32>
    %2 = tpu.matmul %0, %1, %cst {dimension_numbers = #tpu.dot_dimension_numbers<[1], [0], [0], [1], [0, 0, 1, 1], [], []>} : vector<512x256xbf16>, vector<256x128xbf16>, vector<512x128xf32> -> vector<512x128xf32>
    %c0_3 = arith.constant 0 : index
    %c0_4 = arith.constant 0 : index
    %3 = vector.load %arg2[%c0_3, %c0_4] : memref<1x128xf32, #tpu.memory_space<vmem>>, vector<1x128xf32>
    %c0_5 = arith.constant 0 : index
    %c0_6 = arith.constant 0 : index
    %4 = vector.load %arg3[%c0_5, %c0_6] : memref<1x128xf32, #tpu.memory_space<vmem>>, vector<1x128xf32>
    %cst_7 = arith.constant dense<0.000000e+00> : vector<128xf32>
    %5 = vector.multi_reduction <add>, %2, %cst_7 [0] : vector<512x128xf32> to vector<128xf32>
    %6 = vector.shape_cast %5 : vector<128xf32> to vector<1x128xf32>
    %cst_8 = arith.constant 5.120000e+02 : f32
    %7 = vector.broadcast %cst_8 : f32 to vector<1x128xf32>
    %8 = arith.divf %6, %7 : vector<1x128xf32>
    %9 = arith.mulf %2, %2 : vector<512x128xf32>
    %cst_9 = arith.constant dense<0.000000e+00> : vector<128xf32>
    %10 = vector.multi_reduction <add>, %9, %cst_9 [0] : vector<512x128xf32> to vector<128xf32>
    %11 = vector.shape_cast %10 : vector<128xf32> to vector<1x128xf32>
    %cst_10 = arith.constant 5.120000e+02 : f32
    %12 = vector.broadcast %cst_10 : f32 to vector<1x128xf32>
    %13 = arith.divf %11, %12 : vector<1x128xf32>
    %14 = arith.mulf %8, %8 : vector<1x128xf32>
    %15 = arith.subf %13, %14 : vector<1x128xf32>
    %cst_11 = arith.constant 0.000000e+00 : f32
    %16 = vector.broadcast %cst_11 : f32 to vector<1x128xf32>
    %17 = arith.maximumf %15, %16 : vector<1x128xf32>
    %cst_12 = arith.constant 9.99999974E-6 : f32
    %18 = vector.broadcast %cst_12 : f32 to vector<1x128xf32>
    %19 = arith.addf %17, %18 : vector<1x128xf32>
    %20 = math.rsqrt %19 : vector<1x128xf32>
    %21 = arith.mulf %3, %20 : vector<1x128xf32>
    %22 = arith.mulf %8, %21 : vector<1x128xf32>
    %23 = arith.subf %4, %22 : vector<1x128xf32>
    %24 = vector.broadcast %21 : vector<1x128xf32> to vector<512x128xf32>
    %25 = arith.mulf %2, %24 : vector<512x128xf32>
    %26 = vector.broadcast %23 : vector<1x128xf32> to vector<512x128xf32>
    %27 = arith.addf %25, %26 : vector<512x128xf32>
    %cst_13 = arith.constant 2.000000e-01 : f32
    %28 = vector.broadcast %cst_13 : f32 to vector<512x128xf32>
    %29 = arith.mulf %28, %27 : vector<512x128xf32>
    %30 = arith.maximumf %27, %29 : vector<512x128xf32>
    %31 = arith.truncf %30 : vector<512x128xf32> to vector<512x128xbf16>
    %c0_14 = arith.constant 0 : index
    %c0_15 = arith.constant 0 : index
    %32 = vector.load %arg4[%c0_14, %c0_15] : memref<512x128xbf16, #tpu.memory_space<vmem>>, vector<512x128xbf16>
    tpu.vector_store %arg4[%c0_14, %c0_15], %31 {strides = array<i32>} : memref<512x128xbf16, #tpu.memory_space<vmem>>, vector<512x128xbf16>,
    return
  }
}

module attributes {stable_mosaic.version = 11 : i64} {
  func.func @_conv_bn_lrelu_kernel(%arg0: memref<128x512xbf16, #tpu.memory_space<vmem>>, %arg1: memref<512x128xbf16, #tpu.memory_space<vmem>>, %arg2: memref<1x128xf32, #tpu.memory_space<vmem>>, %arg3: memref<1x128xf32, #tpu.memory_space<vmem>>, %arg4: memref<128x128xbf16, #tpu.memory_space<vmem>>) attributes {dimension_semantics = [], scalar_prefetch = 0 : i64, scratch_operands = 0 : i64, tpu.core_type = #tpu.core_type<tc>} {
    %c0 = arith.constant 0 : index
    %c0_0 = arith.constant 0 : index
    %0 = vector.load %arg0[%c0, %c0_0] : memref<128x512xbf16, #tpu.memory_space<vmem>>, vector<128x512xbf16>
    %c0_1 = arith.constant 0 : index
    %c0_2 = arith.constant 0 : index
    %1 = vector.load %arg1[%c0_1, %c0_2] : memref<512x128xbf16, #tpu.memory_space<vmem>>, vector<512x128xbf16>
    %cst = arith.constant dense<0.000000e+00> : vector<128x128xf32>
    %2 = tpu.matmul %0, %1, %cst {dimension_numbers = #tpu.dot_dimension_numbers<[1], [0], [0], [1], [0, 0, 1, 1], [], []>} : vector<128x512xbf16>, vector<512x128xbf16>, vector<128x128xf32> -> vector<128x128xf32>
    %c0_3 = arith.constant 0 : index
    %c0_4 = arith.constant 0 : index
    %3 = vector.load %arg2[%c0_3, %c0_4] : memref<1x128xf32, #tpu.memory_space<vmem>>, vector<1x128xf32>
    %c0_5 = arith.constant 0 : index
    %c0_6 = arith.constant 0 : index
    %4 = vector.load %arg3[%c0_5, %c0_6] : memref<1x128xf32, #tpu.memory_space<vmem>>, vector<1x128xf32>
    %cst_7 = arith.constant dense<0.000000e+00> : vector<128xf32>
    %5 = vector.multi_reduction <add>, %2, %cst_7 [0] : vector<128x128xf32> to vector<128xf32>
    %6 = vector.shape_cast %5 : vector<128xf32> to vector<1x128xf32>
    %cst_8 = arith.constant 1.280000e+02 : f32
    %7 = vector.broadcast %cst_8 : f32 to vector<1x128xf32>
    %8 = arith.divf %6, %7 : vector<1x128xf32>
    %9 = arith.mulf %2, %2 : vector<128x128xf32>
    %cst_9 = arith.constant dense<0.000000e+00> : vector<128xf32>
    %10 = vector.multi_reduction <add>, %9, %cst_9 [0] : vector<128x128xf32> to vector<128xf32>
    %11 = vector.shape_cast %10 : vector<128xf32> to vector<1x128xf32>
    %cst_10 = arith.constant 1.280000e+02 : f32
    %12 = vector.broadcast %cst_10 : f32 to vector<1x128xf32>
    %13 = arith.divf %11, %12 : vector<1x128xf32>
    %14 = arith.mulf %8, %8 : vector<1x128xf32>
    %15 = arith.subf %13, %14 : vector<1x128xf32>
    %cst_11 = arith.constant 0.000000e+00 : f32
    %16 = vector.broadcast %cst_11 : f32 to vector<1x128xf32>
    %17 = arith.maximumf %15, %16 : vector<1x128xf32>
    %cst_12 = arith.constant 9.99999974E-6 : f32
    %18 = vector.broadcast %cst_12 : f32 to vector<1x128xf32>
    %19 = arith.addf %17, %18 : vector<1x128xf32>
    %20 = math.rsqrt %19 : vector<1x128xf32>
    %21 = arith.mulf %3, %20 : vector<1x128xf32>
    %22 = arith.mulf %8, %21 : vector<1x128xf32>
    %23 = arith.subf %4, %22 : vector<1x128xf32>
    %24 = vector.broadcast %21 : vector<1x128xf32> to vector<128x128xf32>
    %25 = arith.mulf %2, %24 : vector<128x128xf32>
    %26 = vector.broadcast %23 : vector<1x128xf32> to vector<128x128xf32>
    %27 = arith.addf %25, %26 : vector<128x128xf32>
    %cst_13 = arith.constant 2.000000e-01 : f32
    %28 = vector.broadcast %cst_13 : f32 to vector<128x128xf32>
    %29 = arith.mulf %28, %27 : vector<128x128xf32>
    %30 = arith.maximumf %27, %29 : vector<128x128xf32>
    %31 = arith.truncf %30 : vector<128x128xf32> to vector<128x128xbf16>
    %c0_14 = arith.constant 0 : index
    %c0_15 = arith.constant 0 : index
    %32 = vector.load %arg4[%c0_14, %c0_15] : memref<128x128xbf16, #tpu.memory_space<vmem>>, vector<128x128xbf16>
    tpu.vector_store %arg4[%c0_14, %c0_15], %31 {strides = array<i32>} : memref<128x128xbf16, #tpu.memory_space<vmem>>, vector<128x128xbf16>,
    return
  }
}

module attributes {stable_mosaic.version = 11 : i64} {
  func.func @_conv_bn_lrelu_head_kernel(%arg0: memref<32x1024xbf16, #tpu.memory_space<vmem>>, %arg1: memref<1024x128xbf16, #tpu.memory_space<vmem>>, %arg2: memref<1x128xf32, #tpu.memory_space<vmem>>, %arg3: memref<1x128xf32, #tpu.memory_space<vmem>>, %arg4: memref<32x128xf32, #tpu.memory_space<vmem>>, %arg5: memref<2x1xf32, #tpu.memory_space<vmem>>) attributes {dimension_semantics = [], scalar_prefetch = 0 : i64, scratch_operands = 0 : i64, tpu.core_type = #tpu.core_type<tc>} {
    %c0 = arith.constant 0 : index
    %c0_0 = arith.constant 0 : index
    %0 = vector.load %arg0[%c0, %c0_0] : memref<32x1024xbf16, #tpu.memory_space<vmem>>, vector<32x1024xbf16>
    %c0_1 = arith.constant 0 : index
    %c0_2 = arith.constant 0 : index
    %1 = vector.load %arg1[%c0_1, %c0_2] : memref<1024x128xbf16, #tpu.memory_space<vmem>>, vector<1024x128xbf16>
    %cst = arith.constant dense<0.000000e+00> : vector<32x128xf32>
    %2 = tpu.matmul %0, %1, %cst {dimension_numbers = #tpu.dot_dimension_numbers<[1], [0], [0], [1], [0, 0, 1, 1], [], []>} : vector<32x1024xbf16>, vector<1024x128xbf16>, vector<32x128xf32> -> vector<32x128xf32>
    %c0_3 = arith.constant 0 : index
    %c0_4 = arith.constant 0 : index
    %3 = vector.load %arg2[%c0_3, %c0_4] : memref<1x128xf32, #tpu.memory_space<vmem>>, vector<1x128xf32>
    %c0_5 = arith.constant 0 : index
    %c0_6 = arith.constant 0 : index
    %4 = vector.load %arg3[%c0_5, %c0_6] : memref<1x128xf32, #tpu.memory_space<vmem>>, vector<1x128xf32>
    %cst_7 = arith.constant dense<0.000000e+00> : vector<128xf32>
    %5 = vector.multi_reduction <add>, %2, %cst_7 [0] : vector<32x128xf32> to vector<128xf32>
    %6 = vector.shape_cast %5 : vector<128xf32> to vector<1x128xf32>
    %cst_8 = arith.constant 3.200000e+01 : f32
    %7 = vector.broadcast %cst_8 : f32 to vector<1x128xf32>
    %8 = arith.divf %6, %7 : vector<1x128xf32>
    %9 = arith.mulf %2, %2 : vector<32x128xf32>
    %cst_9 = arith.constant dense<0.000000e+00> : vector<128xf32>
    %10 = vector.multi_reduction <add>, %9, %cst_9 [0] : vector<32x128xf32> to vector<128xf32>
    %11 = vector.shape_cast %10 : vector<128xf32> to vector<1x128xf32>
    %cst_10 = arith.constant 3.200000e+01 : f32
    %12 = vector.broadcast %cst_10 : f32 to vector<1x128xf32>
    %13 = arith.divf %11, %12 : vector<1x128xf32>
    %14 = arith.mulf %8, %8 : vector<1x128xf32>
    %15 = arith.subf %13, %14 : vector<1x128xf32>
    %cst_11 = arith.constant 0.000000e+00 : f32
    %16 = vector.broadcast %cst_11 : f32 to vector<1x128xf32>
    %17 = arith.maximumf %15, %16 : vector<1x128xf32>
    %cst_12 = arith.constant 9.99999974E-6 : f32
    %18 = vector.broadcast %cst_12 : f32 to vector<1x128xf32>
    %19 = arith.addf %17, %18 : vector<1x128xf32>
    %20 = math.rsqrt %19 : vector<1x128xf32>
    %21 = arith.mulf %3, %20 : vector<1x128xf32>
    %22 = arith.mulf %8, %21 : vector<1x128xf32>
    %23 = arith.subf %4, %22 : vector<1x128xf32>
    %24 = vector.broadcast %21 : vector<1x128xf32> to vector<32x128xf32>
    %25 = arith.mulf %2, %24 : vector<32x128xf32>
    %26 = vector.broadcast %23 : vector<1x128xf32> to vector<32x128xf32>
    %27 = arith.addf %25, %26 : vector<32x128xf32>
    %cst_13 = arith.constant 2.000000e-01 : f32
    %28 = vector.broadcast %cst_13 : f32 to vector<32x128xf32>
    %29 = arith.mulf %28, %27 : vector<32x128xf32>
    %30 = arith.maximumf %27, %29 : vector<32x128xf32>
    %c0_14 = arith.constant 0 : index
    %c0_15 = arith.constant 0 : index
    %31 = vector.load %arg4[%c0_14, %c0_15] : memref<32x128xf32, #tpu.memory_space<vmem>>, vector<32x128xf32>
    %32 = arith.mulf %30, %31 : vector<32x128xf32>
    %33 = vector.extract_strided_slice %32 {offsets = [0, 0], sizes = [16, 128], strides = [1, 1]} : vector<32x128xf32> to vector<16x128xf32>
    %cst_16 = arith.constant dense<0.000000e+00> : vector<16xf32>
    %34 = vector.multi_reduction <add>, %33, %cst_16 [1] : vector<16x128xf32> to vector<16xf32>
    %35 = vector.shape_cast %34 : vector<16xf32> to vector<16x1xf32>
    %cst_17 = arith.constant dense<0.000000e+00> : vector<1xf32>
    %36 = vector.multi_reduction <add>, %35, %cst_17 [0] : vector<16x1xf32> to vector<1xf32>
    %37 = vector.shape_cast %36 : vector<1xf32> to vector<1x1xf32>
    %cst_18 = arith.constant 0.000000e+00 : f32
    %38 = vector.broadcast %cst_18 : f32 to vector<1x1xf32>
    %39 = arith.subf %38, %37 : vector<1x1xf32>
    %40 = math.exp %39 : vector<1x1xf32>
    %cst_19 = arith.constant 1.000000e+00 : f32
    %41 = vector.broadcast %cst_19 : f32 to vector<1x1xf32>
    %42 = arith.addf %41, %40 : vector<1x1xf32>
    %43 = tpu.reciprocal %42 {approx = true} : vector<1x1xf32> -> vector<1x1xf32>
    %c0_20 = arith.constant 0 : index
    %c0_21 = arith.constant 0 : index
    %44 = vector.load %arg5[%c0_20, %c0_21] : memref<2x1xf32, #tpu.memory_space<vmem>>, vector<1x1xf32>
    tpu.vector_store %arg5[%c0_20, %c0_21], %43 {strides = array<i32>} : memref<2x1xf32, #tpu.memory_space<vmem>>, vector<1x1xf32>,
    %45 = vector.extract_strided_slice %32 {offsets = [16, 0], sizes = [16, 128], strides = [1, 1]} : vector<32x128xf32> to vector<16x128xf32>
    %cst_22 = arith.constant dense<0.000000e+00> : vector<16xf32>
    %46 = vector.multi_reduction <add>, %45, %cst_22 [1] : vector<16x128xf32> to vector<16xf32>
    %47 = vector.shape_cast %46 : vector<16xf32> to vector<16x1xf32>
    %cst_23 = arith.constant dense<0.000000e+00> : vector<1xf32>
    %48 = vector.multi_reduction <add>, %47, %cst_23 [0] : vector<16x1xf32> to vector<1xf32>
    %49 = vector.shape_cast %48 : vector<1xf32> to vector<1x1xf32>
    %cst_24 = arith.constant 0.000000e+00 : f32
    %50 = vector.broadcast %cst_24 : f32 to vector<1x1xf32>
    %51 = arith.subf %50, %49 : vector<1x1xf32>
    %52 = math.exp %51 : vector<1x1xf32>
    %cst_25 = arith.constant 1.000000e+00 : f32
    %53 = vector.broadcast %cst_25 : f32 to vector<1x1xf32>
    %54 = arith.addf %53, %52 : vector<1x1xf32>
    %55 = tpu.reciprocal %54 {approx = true} : vector<1x1xf32> -> vector<1x1xf32>
    %c1 = arith.constant 1 : index
    %c0_26 = arith.constant 0 : index
    %56 = vector.load %arg5[%c1, %c0_26] : memref<2x1xf32, #tpu.memory_space<vmem>>, vector<1x1xf32>
    tpu.vector_store %arg5[%c1, %c0_26], %55 {strides = array<i32>} : memref<2x1xf32, #tpu.memory_space<vmem>>, vector<1x1xf32>,
    return
  }
}

</mosaic_0001>

<llo_original>
// kernel: _lambda_.5
$region0: #{_lambda_.5}
  #allocation0 [shape = 'u32[]', space=smem, size = 0x4, offset = 0x4, fixed_abs, tag = 'smem constant byte address 0x4 - core index']
  #allocation1 [shape = 'u32[72,128]{1,0:T(1,128)}', space=vmem, size = 0x9000, scoped, tag = 'internal scratch']
  %s0 = inlined_call_operand.vmem [shape: bf16[8192,128], index: 0, kind: input, shape index: {}]
  %s1 = inlined_call_operand.vmem [shape: bf16[128,128], index: 1, kind: input, shape index: {}]
  %s2 = inlined_call_operand.vmem [shape: bf16[8192,128], index: 2, kind: output, shape index: {}]
  %s3 = sld [smem:[#allocation0]]
  $region41: #{_lambda_.5} parent=0
    _
  %s5 = ssub.s32 1, %s3
  %s6 = scalar_select 0, %s5, %s3
  loop: start=0, step=1, limit=4
  $region2: #{_lambda_.5} parent=0 // loop_pre_header
    _
  $region3: #{_lambda_.5} parent=0 // loop_header
    %s8 = sphi 0, %s12
    %p9 = scmp.ge.s32.totalorder %s8, 4
    %s18 = sphi 0, %s20
    %s21 = sphi 0, %s18
    %s22 = sphi 0, %s21
    %s38 = sphi 0, %s22
    %s42 = sphi 0, %s42
    %s44 = sphi 0, %s42
    %s45 = sphi 0, %s44
    %s59 = sphi 0, %s45
    %s65 = sphi 0, %s67
    %s68 = sphi 0, %s65
    %s69 = sphi 0, %s68
    %s85 = sphi 0, %s69
  $region4: #{_lambda_.5} parent=0 // loop_header_branch
    %11 = sbr.rel (%p9) target = $region8
  $region5: #{_lambda_.5} parent=0 // loop_body
    %s13 = ssub.s32 %s8, 1
    %s14 = ssub.s32 %s8, 2
    %s15 = sadd.s32 %s8, 1
    %s16 = ssub.s32 %s8, %s15
    %p17 = scmp.eq.s32.totalorder %s16, 0
    %s19 = sadd.s32 %s18, 1
    %s20 = scalar_select %p17, %s18, %s19
    %p23 = pneg %p17
    %p24 = scmp.eq.s32.totalorder %s8, 1
    %p25 = por %p23, %p24
    %p26 = scmp.ne.s32.totalorder %s18, %s21
    %p27 = scmp.eq.s32.totalorder %s8, 0
    %p28 = por %p26, %p27
    %p29 = scmp.ne.s32.totalorder %s18, %s21
    %p30 = scmp.eq.s32.totalorder %s13, 1
    %p31 = por %p29, %p30
    %p32 = scmp.ne.s32.totalorder %s21, %s22
    %p33 = scmp.eq.s32.totalorder %s13, 0
    %p34 = por %p32, %p33
    %p35 = scmp.ne.s32.totalorder %s21, %s22
    %p36 = scmp.eq.s32.totalorder %s14, 1
    %p37 = por %p35, %p36
    %p39 = scmp.ne.s32.totalorder %s22, %s38
    %p40 = scmp.eq.s32.totalorder %s14, 0
    %p41 = por %p39, %p40
    %s43 = sadd.s32 %s42, 1
    %p46 = scmp.eq.s32.totalorder %s8, 1
    %p47 = scmp.ne.s32.totalorder %s42, %s44
    %p48 = scmp.eq.s32.totalorder %s8, 0
    %p49 = por %p47, %p48
    %p50 = scmp.ne.s32.totalorder %s42, %s44
    %p51 = scmp.eq.s32.totalorder %s13, 1
    %p52 = por %p50, %p51
    %p53 = scmp.ne.s32.totalorder %s44, %s45
    %p54 = scmp.eq.s32.totalorder %s13, 0
    %p55 = por %p53, %p54
    %p56 = scmp.ne.s32.totalorder %s44, %s45
    %p57 = scmp.eq.s32.totalorder %s14, 1
    %p58 = por %p56, %p57
    %p60 = scmp.ne.s32.totalorder %s45, %s59
    %p61 = scmp.eq.s32.totalorder %s14, 0
    %p62 = por %p60, %p61
    %s63 = ssub.s32 %s8, %s15
    %p64 = scmp.eq.s32.totalorder %s63, 0
    %s66 = sadd.s32 %s65, 1
    %s67 = scalar_select %p64, %s65, %s66
    %p70 = pneg %p64
    %p71 = scmp.eq.s32.totalorder %s8, 1
    %p72 = por %p70, %p71
    %p73 = scmp.ne.s32.totalorder %s65, %s68
    %p74 = scmp.eq.s32.totalorder %s8, 0
    %p75 = por %p73, %p74
    %p76 = scmp.ne.s32.totalorder %s65, %s68
    %p77 = scmp.eq.s32.totalorder %s13, 1
    %p78 = por %p76, %p77
    %p79 = scmp.ne.s32.totalorder %s68, %s69
    %p80 = scmp.eq.s32.totalorder %s13, 0
    %p81 = por %p79, %p80
    %p82 = scmp.ne.s32.totalorder %s68, %s69
    %p83 = scmp.eq.s32.totalorder %s14, 1
    %p84 = por %p82, %p83
    %p86 = scmp.ne.s32.totalorder %s69, %s85
    %p87 = scmp.eq.s32.totalorder %s14, 0
    %p88 = por %p86, %p87
    %p89 = scmp.le.s32.totalorder 1, %s8
    %p90 = scmp.lt.s32.totalorder %s8, 3
    %p91 = pnand %p89, %p90
    %p92 = pneg %p91
    // Predicated region
    $region9: #{_lambda_.5} parent=5 // pred_check
      _
    $region10: #{_lambda_.5} parent=5 // pred_check_branch
      %94 = sbr.rel (%p91) target = $region12
    $region11: #{_lambda_.5} parent=5 // pred_region
      %s95 = ssub.s32 %s8, 1
      // Predicated region
      $region13: #{_lambda_.5} parent=11 // pred_check
        %p96 = pneg %p55
      $region14: #{_lambda_.5} parent=11 // pred_check_branch
        %98 = sbr.rel (%p96) target = $region16
      $region15: #{_lambda_.5} parent=11 // pred_region
        _
      $region16: #{_lambda_.5} parent=11 // pred_fallthru
        _
    $region12: #{_lambda_.5} parent=5 // pred_fallthru
      _
    %p99 = scmp.lt.s32.totalorder %s8, 2
    // Predicated region
    $region17: #{_lambda_.5} parent=5 // pred_check
      %p100 = pneg %p99
    $region18: #{_lambda_.5} parent=5 // pred_check_branch
      %102 = sbr.rel (%p100) target = $region20
    $region19: #{_lambda_.5} parent=5 // pred_region
      // Predicated region
      $region21: #{_lambda_.5} parent=19 // pred_check
        %p103 = pneg %p28
      $region22: #{_lambda_.5} parent=19 // pred_check_branch
        %105 = sbr.rel (%p103) target = $region24
      $region23: #{_lambda_.5} parent=19 // pred_region
        %s106 = smul.u32 512, %s8
        %p107 = scmp.lt.s32.totalorder %s106, 1023
        %s108 = scalar_select %p107, %s106, 1023
        %s109 = smul.addr %s108, 4
        %s110 = scalar_lea.vmem %s0, %s109
        %s111 = smul.u32 512, %s8
      $region24: #{_lambda_.5} parent=19 // pred_fallthru
        _
    $region20: #{_lambda_.5} parent=5 // pred_fallthru
      _
    %p112 = scmp.le.s32.totalorder 1, %s8
    %p113 = scmp.lt.s32.totalorder %s8, 3
    %p114 = pnand %p112, %p113
    %p115 = pneg %p114
    // Predicated region
    $region25: #{_lambda_.5} parent=5 // pred_check
      _
    $region26: #{_lambda_.5} parent=5 // pred_check_branch
      %117 = sbr.rel (%p114) target = $region28
    $region27: #{_lambda_.5} parent=5 // pred_region
      %s118 = ssub.s32 %s8, 1
      %s119 = smul.u32 512, %s13
      %p120 = scmp.lt.s32.totalorder %s119, 1023
      %s121 = scalar_select %p120, %s119, 1023
      %s122 = smul.addr %s121, 4
      %s123 = scalar_lea.vmem %s0, %s122
      %p124 = pneg %p34
      %p125 = pneg %p31
      %p126 = pneg %p55
      %p127 = pneg %p52
      %p128 = pneg %p81
      %p129 = pneg %p78
      %s130 = smul.u32 512, %s13
      %p131 = scmp.lt.s32.totalorder %s130, 1023
      %s132 = scalar_select %p131, %s130, 1023
      %s133 = smul.addr %s132, 4
      %s134 = scalar_lea.vmem %s2, %s133
      %s135 = smul.u32 512, %s13
      %p136 = scmp.lt.s32.totalorder %s135, 1023
      %s137 = scalar_select %p136, %s135, 1023
      %s138 = smul.addr %s137, 4
      %s139 = scalar_lea.vmem %s0, %s138
      %s140 = smul.u32 512, %s13
      %s141 = smul.u32 512, %s13
      %p142 = scmp.lt.s32.totalorder %s141, 1023
      %s143 = scalar_select %p142, %s141, 1023
      %s144 = smul.addr %s143, 4
      %s145 = scalar_lea.vmem %s2, %s144
      %s146 = smul.u32 512, %s13
      %v147 = vld [vmem:[%s139] sm:$0xf]
      %v148 = vld [vmem:[%s139 + $0x4] sm:$0xf]
      %v149 = vld [vmem:[%s139 + $0x8] sm:$0xf]
      %v150 = vld [vmem:[%s139 + $0xc] sm:$0xf]
      %v151 = vld [vmem:[%s139 + $0x10] sm:$0xf]
      %v152 = vld [vmem:[%s139 + $0x14] sm:$0xf]
      %v153 = vld [vmem:[%s139 + $0x18] sm:$0xf]
      %v154 = vld [vmem:[%s139 + $0x1c] sm:$0xf]
      %v155 = vld [vmem:[%s139 + $0x20] sm:$0xf]
      %v156 = vld [vmem:[%s139 + $0x24] sm:$0xf]
      %v157 = vld [vmem:[%s139 + $0x28] sm:$0xf]
      %v158 = vld [vmem:[%s139 + $0x2c] sm:$0xf]
      %v159 = vld [vmem:[%s139 + $0x30] sm:$0xf]
      %v160 = vld [vmem:[%s139 + $0x34] sm:$0xf]
      %v161 = vld [vmem:[%s139 + $0x38] sm:$0xf]
      %v162 = vld [vmem:[%s139 + $0x3c] sm:$0xf]
      %v163 = vld [vmem:[%s139 + $0x40] sm:$0xf]
      %v164 = vld [vmem:[%s139 + $0x44] sm:$0xf]
      %v165 = vld [vmem:[%s139 + $0x48] sm:$0xf]
      %v166 = vld [vmem:[%s139 + $0x4c] sm:$0xf]
      %v167 = vld [vmem:[%s139 + $0x50] sm:$0xf]
      %v168 = vld [vmem:[%s139 + $0x54] sm:$0xf]
      %v169 = vld [vmem:[%s139 + $0x58] sm:$0xf]
      %v170 = vld [vmem:[%s139 + $0x5c] sm:$0xf]
      %v171 = vld [vmem:[%s139 + $0x60] sm:$0xf]
      %v172 = vld [vmem:[%s139 + $0x64] sm:$0xf]
      %v173 = vld [vmem:[%s139 + $0x68] sm:$0xf]
      %v174 = vld [vmem:[%s139 + $0x6c] sm:$0xf]
      %v175 = vld [vmem:[%s139 + $0x70] sm:$0xf]
      %v176 = vld [vmem:[%s139 + $0x74] sm:$0xf]
      %v177 = vld [vmem:[%s139 + $0x78] sm:$0xf]
      %v178 = vld [vmem:[%s139 + $0x7c] sm:$0xf]
      %v179 = vld [vmem:[%s139 + $0x80] sm:$0xf]
      %v180 = vld [vmem:[%s139 + $0x84] sm:$0xf]
      %v181 = vld [vmem:[%s139 + $0x88] sm:$0xf]
      %v182 = vld [vmem:[%s139 + $0x8c] sm:$0xf]
      %v183 = vld [vmem:[%s139 + $0x90] sm:$0xf]
      %v184 = vld [vmem:[%s139 + $0x94] sm:$0xf]
      %v185 = vld [vmem:[%s139 + $0x98] sm:$0xf]
      %v186 = vld [vmem:[%s139 + $0x9c] sm:$0xf]
      %v187 = vld [vmem:[%s139 + $0xa0] sm:$0xf]
      %v188 = vld [vmem:[%s139 + $0xa4] sm:$0xf]
      %v189 = vld [vmem:[%s139 + $0xa8] sm:$0xf]
      %v190 = vld [vmem:[%s139 + $0xac] sm:$0xf]
      %v191 = vld [vmem:[%s139 + $0xb0] sm:$0xf]
      %v192 = vld [vmem:[%s139 + $0xb4] sm:$0xf]
      %v193 = vld [vmem:[%s139 + $0xb8] sm:$0xf]
      %v194 = vld [vmem:[%s139 + $0xbc] sm:$0xf]
      %v195 = vld [vmem:[%s139 + $0xc0] sm:$0xf]
      %v196 = vld [vmem:[%s139 + $0xc4] sm:$0xf]
      %v197 = vld [vmem:[%s139 + $0xc8] sm:$0xf]
      %v198 = vld [vmem:[%s139 + $0xcc] sm:$0xf]
      %v199 = vld [vmem:[%s139 + $0xd0] sm:$0xf]
      %v200 = vld [vmem:[%s139 + $0xd4] sm:$0xf]
      %v201 = vld [vmem:[%s139 + $0xd8] sm:$0xf]
      %v202 = vld [vmem:[%s139 + $0xdc] sm:$0xf]
      %v203 = vld [vmem:[%s139 + $0xe0] sm:$0xf]
      %v204 = vld [vmem:[%s139 + $0xe4] sm:$0xf]
      %v205 = vld [vmem:[%s139 + $0xe8] sm:$0xf]
      %v206 = vld [vmem:[%s139 + $0xec] sm:$0xf]
      %v207 = vld [vmem:[%s139 + $0xf0] sm:$0xf]
      %v208 = vld [vmem:[%s139 + $0xf4] sm:$0xf]
      %v209 = vld [vmem:[%s139 + $0xf8] sm:$0xf]
      %v210 = vld [vmem:[%s139 + $0xfc] sm:$0xf]
      %v211 = vld [vmem:[%s139 + $0x100] sm:$0xf]
      %v212 = vld [vmem:[%s139 + $0x104] sm:$0xf]
      %v213 = vld [vmem:[%s139 + $0x108] sm:$0xf]
      %v214 = vld [vmem:[%s139 + $0x10c] sm:$0xf]
      %v215 = vld [vmem:[%s139 + $0x110] sm:$0xf]
      %v216 = vld [vmem:[%s139 + $0x114] sm:$0xf]
      %v217 = vld [vmem:[%s139 + $0x118] sm:$0xf]
      %v218 = vld [vmem:[%s139 + $0x11c] sm:$0xf]
      %v219 = vld [vmem:[%s139 + $0x120] sm:$0xf]
      %v220 = vld [vmem:[%s139 + $0x124] sm:$0xf]
      %v221 = vld [vmem:[%s139 + $0x128] sm:$0xf]
      %v222 = vld [vmem:[%s139 + $0x12c] sm:$0xf]
      %v223 = vld [vmem:[%s139 + $0x130] sm:$0xf]
      %v224 = vld [vmem:[%s139 + $0x134] sm:$0xf]
      %v225 = vld [vmem:[%s139 + $0x138] sm:$0xf]
      %v226 = vld [vmem:[%s139 + $0x13c] sm:$0xf]
      %v227 = vld [vmem:[%s139 + $0x140] sm:$0xf]
      %v228 = vld [vmem:[%s139 + $0x144] sm:$0xf]
      %v229 = vld [vmem:[%s139 + $0x148] sm:$0xf]
      %v230 = vld [vmem:[%s139 + $0x14c] sm:$0xf]
      %v231 = vld [vmem:[%s139 + $0x150] sm:$0xf]
      %v232 = vld [vmem:[%s139 + $0x154] sm:$0xf]
      %v233 = vld [vmem:[%s139 + $0x158] sm:$0xf]
      %v234 = vld [vmem:[%s139 + $0x15c] sm:$0xf]
      %v235 = vld [vmem:[%s139 + $0x160] sm:$0xf]
      %v236 = vld [vmem:[%s139 + $0x164] sm:$0xf]
      %v237 = vld [vmem:[%s139 + $0x168] sm:$0xf]
      %v238 = vld [vmem:[%s139 + $0x16c] sm:$0xf]
      %v239 = vld [vmem:[%s139 + $0x170] sm:$0xf]
      %v240 = vld [vmem:[%s139 + $0x174] sm:$0xf]
      %v241 = vld [vmem:[%s139 + $0x178] sm:$0xf]
      %v242 = vld [vmem:[%s139 + $0x17c] sm:$0xf]
      %v243 = vld [vmem:[%s139 + $0x180] sm:$0xf]
      %v244 = vld [vmem:[%s139 + $0x184] sm:$0xf]
      %v245 = vld [vmem:[%s139 + $0x188] sm:$0xf]
      %v246 = vld [vmem:[%s139 + $0x18c] sm:$0xf]
      %v247 = vld [vmem:[%s139 + $0x190] sm:$0xf]
      %v248 = vld [vmem:[%s139 + $0x194] sm:$0xf]
      %v249 = vld [vmem:[%s139 + $0x198] sm:$0xf]
      %v250 = vld [vmem:[%s139 + $0x19c] sm:$0xf]
      %v251 = vld [vmem:[%s139 + $0x1a0] sm:$0xf]
      %v252 = vld [vmem:[%s139 + $0x1a4] sm:$0xf]
      %v253 = vld [vmem:[%s139 + $0x1a8] sm:$0xf]
      %v254 = vld [vmem:[%s139 + $0x1ac] sm:$0xf]
      %v255 = vld [vmem:[%s139 + $0x1b0] sm:$0xf]
      %v256 = vld [vmem:[%s139 + $0x1b4] sm:$0xf]
      %v257 = vld [vmem:[%s139 + $0x1b8] sm:$0xf]
      %v258 = vld [vmem:[%s139 + $0x1bc] sm:$0xf]
      %v259 = vld [vmem:[%s139 + $0x1c0] sm:$0xf]
      %v260 = vld [vmem:[%s139 + $0x1c4] sm:$0xf]
      %v261 = vld [vmem:[%s139 + $0x1c8] sm:$0xf]
      %v262 = vld [vmem:[%s139 + $0x1cc] sm:$0xf]
      %v263 = vld [vmem:[%s139 + $0x1d0] sm:$0xf]
      %v264 = vld [vmem:[%s139 + $0x1d4] sm:$0xf]
      %v265 = vld [vmem:[%s139 + $0x1d8] sm:$0xf]
      %v266 = vld [vmem:[%s139 + $0x1dc] sm:$0xf]
      %v267 = vld [vmem:[%s139 + $0x1e0] sm:$0xf]
      %v268 = vld [vmem:[%s139 + $0x1e4] sm:$0xf]
      %v269 = vld [vmem:[%s139 + $0x1e8] sm:$0xf]
      %v270 = vld [vmem:[%s139 + $0x1ec] sm:$0xf]
      %v271 = vld [vmem:[%s139 + $0x1f0] sm:$0xf]
      %v272 = vld [vmem:[%s139 + $0x1f4] sm:$0xf]
      %v273 = vld [vmem:[%s139 + $0x1f8] sm:$0xf]
      %v274 = vld [vmem:[%s139 + $0x1fc] sm:$0xf]
      %v275 = vld [vmem:[%s139 + $0x200] sm:$0xf]
      %v276 = vld [vmem:[%s139 + $0x204] sm:$0xf]
      %v277 = vld [vmem:[%s139 + $0x208] sm:$0xf]
      %v278 = vld [vmem:[%s139 + $0x20c] sm:$0xf]
      %v279 = vld [vmem:[%s139 + $0x210] sm:$0xf]
      %v280 = vld [vmem:[%s139 + $0x214] sm:$0xf]
      %v281 = vld [vmem:[%s139 + $0x218] sm:$0xf]
      %v282 = vld [vmem:[%s139 + $0x21c] sm:$0xf]
      %v283 = vld [vmem:[%s139 + $0x220] sm:$0xf]
      %v284 = vld [vmem:[%s139 + $0x224] sm:$0xf]
      %v285 = vld [vmem:[%s139 + $0x228] sm:$0xf]
      %v286 = vld [vmem:[%s139 + $0x22c] sm:$0xf]
      %v287 = vld [vmem:[%s139 + $0x230] sm:$0xf]
      %v288 = vld [vmem:[%s139 + $0x234] sm:$0xf]
      %v289 = vld [vmem:[%s139 + $0x238] sm:$0xf]
      %v290 = vld [vmem:[%s139 + $0x23c] sm:$0xf]
      %v291 = vld [vmem:[%s139 + $0x240] sm:$0xf]
      %v292 = vld [vmem:[%s139 + $0x244] sm:$0xf]
      %v293 = vld [vmem:[%s139 + $0x248] sm:$0xf]
      %v294 = vld [vmem:[%s139 + $0x24c] sm:$0xf]
      %v295 = vld [vmem:[%s139 + $0x250] sm:$0xf]
      %v296 = vld [vmem:[%s139 + $0x254] sm:$0xf]
      %v297 = vld [vmem:[%s139 + $0x258] sm:$0xf]
      %v298 = vld [vmem:[%s139 + $0x25c] sm:$0xf]
      %v299 = vld [vmem:[%s139 + $0x260] sm:$0xf]
      %v300 = vld [vmem:[%s139 + $0x264] sm:$0xf]
      %v301 = vld [vmem:[%s139 + $0x268] sm:$0xf]
      %v302 = vld [vmem:[%s139 + $0x26c] sm:$0xf]
      %v303 = vld [vmem:[%s139 + $0x270] sm:$0xf]
      %v304 = vld [vmem:[%s139 + $0x274] sm:$0xf]
      %v305 = vld [vmem:[%s139 + $0x278] sm:$0xf]
      %v306 = vld [vmem:[%s139 + $0x27c] sm:$0xf]
      %v307 = vld [vmem:[%s139 + $0x280] sm:$0xf]
      %v308 = vld [vmem:[%s139 + $0x284] sm:$0xf]
      %v309 = vld [vmem:[%s139 + $0x288] sm:$0xf]
      %v310 = vld [vmem:[%s139 + $0x28c] sm:$0xf]
      %v311 = vld [vmem:[%s139 + $0x290] sm:$0xf]
      %v312 = vld [vmem:[%s139 + $0x294] sm:$0xf]
      %v313 = vld [vmem:[%s139 + $0x298] sm:$0xf]
      %v314 = vld [vmem:[%s139 + $0x29c] sm:$0xf]
      %v315 = vld [vmem:[%s139 + $0x2a0] sm:$0xf]
      %v316 = vld [vmem:[%s139 + $0x2a4] sm:$0xf]
      %v317 = vld [vmem:[%s139 + $0x2a8] sm:$0xf]
      %v318 = vld [vmem:[%s139 + $0x2ac] sm:$0xf]
      %v319 = vld [vmem:[%s139 + $0x2b0] sm:$0xf]
      %v320 = vld [vmem:[%s139 + $0x2b4] sm:$0xf]
      %v321 = vld [vmem:[%s139 + $0x2b8] sm:$0xf]
      %v322 = vld [vmem:[%s139 + $0x2bc] sm:$0xf]
      %v323 = vld [vmem:[%s139 + $0x2c0] sm:$0xf]
      %v324 = vld [vmem:[%s139 + $0x2c4] sm:$0xf]
      %v325 = vld [vmem:[%s139 + $0x2c8] sm:$0xf]
      %v326 = vld [vmem:[%s139 + $0x2cc] sm:$0xf]
      %v327 = vld [vmem:[%s139 + $0x2d0] sm:$0xf]
      %v328 = vld [vmem:[%s139 + $0x2d4] sm:$0xf]
      %v329 = vld [vmem:[%s139 + $0x2d8] sm:$0xf]
      %v330 = vld [vmem:[%s139 + $0x2dc] sm:$0xf]
      %v331 = vld [vmem:[%s139 + $0x2e0] sm:$0xf]
      %v332 = vld [vmem:[%s139 + $0x2e4] sm:$0xf]
      %v333 = vld [vmem:[%s139 + $0x2e8] sm:$0xf]
      %v334 = vld [vmem:[%s139 + $0x2ec] sm:$0xf]
      %v335 = vld [vmem:[%s139 + $0x2f0] sm:$0xf]
      %v336 = vld [vmem:[%s139 + $0x2f4] sm:$0xf]
      %v337 = vld [vmem:[%s139 + $0x2f8] sm:$0xf]
      %v338 = vld [vmem:[%s139 + $0x2fc] sm:$0xf]
      %v339 = vld [vmem:[%s139 + $0x300] sm:$0xf]
      %v340 = vld [vmem:[%s139 + $0x304] sm:$0xf]
      %v341 = vld [vmem:[%s139 + $0x308] sm:$0xf]
      %v342 = vld [vmem:[%s139 + $0x30c] sm:$0xf]
      %v343 = vld [vmem:[%s139 + $0x310] sm:$0xf]
      %v344 = vld [vmem:[%s139 + $0x314] sm:$0xf]
      %v345 = vld [vmem:[%s139 + $0x318] sm:$0xf]
      %v346 = vld [vmem:[%s139 + $0x31c] sm:$0xf]
      %v347 = vld [vmem:[%s139 + $0x320] sm:$0xf]
      %v348 = vld [vmem:[%s139 + $0x324] sm:$0xf]
      %v349 = vld [vmem:[%s139 + $0x328] sm:$0xf]
      %v350 = vld [vmem:[%s139 + $0x32c] sm:$0xf]
      %v351 = vld [vmem:[%s139 + $0x330] sm:$0xf]
      %v352 = vld [vmem:[%s139 + $0x334] sm:$0xf]
      %v353 = vld [vmem:[%s139 + $0x338] sm:$0xf]
      %v354 = vld [vmem:[%s139 + $0x33c] sm:$0xf]
      %v355 = vld [vmem:[%s139 + $0x340] sm:$0xf]
      %v356 = vld [vmem:[%s139 + $0x344] sm:$0xf]
      %v357 = vld [vmem:[%s139 + $0x348] sm:$0xf]
      %v358 = vld [vmem:[%s139 + $0x34c] sm:$0xf]
      %v359 = vld [vmem:[%s139 + $0x350] sm:$0xf]
      %v360 = vld [vmem:[%s139 + $0x354] sm:$0xf]
      %v361 = vld [vmem:[%s139 + $0x358] sm:$0xf]
      %v362 = vld [vmem:[%s139 + $0x35c] sm:$0xf]
      %v363 = vld [vmem:[%s139 + $0x360] sm:$0xf]
      %v364 = vld [vmem:[%s139 + $0x364] sm:$0xf]
      %v365 = vld [vmem:[%s139 + $0x368] sm:$0xf]
      %v366 = vld [vmem:[%s139 + $0x36c] sm:$0xf]
      %v367 = vld [vmem:[%s139 + $0x370] sm:$0xf]
      %v368 = vld [vmem:[%s139 + $0x374] sm:$0xf]
      %v369 = vld [vmem:[%s139 + $0x378] sm:$0xf]
      %v370 = vld [vmem:[%s139 + $0x37c] sm:$0xf]
      %v371 = vld [vmem:[%s139 + $0x380] sm:$0xf]
      %v372 = vld [vmem:[%s139 + $0x384] sm:$0xf]
      %v373 = vld [vmem:[%s139 + $0x388] sm:$0xf]
      %v374 = vld [vmem:[%s139 + $0x38c] sm:$0xf]
      %v375 = vld [vmem:[%s139 + $0x390] sm:$0xf]
      %v376 = vld [vmem:[%s139 + $0x394] sm:$0xf]
      %v377 = vld [vmem:[%s139 + $0x398] sm:$0xf]
      %v378 = vld [vmem:[%s139 + $0x39c] sm:$0xf]
      %v379 = vld [vmem:[%s139 + $0x3a0] sm:$0xf]
      %v380 = vld [vmem:[%s139 + $0x3a4] sm:$0xf]
      %v381 = vld [vmem:[%s139 + $0x3a8] sm:$0xf]
      %v382 = vld [vmem:[%s139 + $0x3ac] sm:$0xf]
      %v383 = vld [vmem:[%s139 + $0x3b0] sm:$0xf]
      %v384 = vld [vmem:[%s139 + $0x3b4] sm:$0xf]
      %v385 = vld [vmem:[%s139 + $0x3b8] sm:$0xf]
      %v386 = vld [vmem:[%s139 + $0x3bc] sm:$0xf]
      %v387 = vld [vmem:[%s139 + $0x3c0] sm:$0xf]
      %v388 = vld [vmem:[%s139 + $0x3c4] sm:$0xf]
      %v389 = vld [vmem:[%s139 + $0x3c8] sm:$0xf]
      %v390 = vld [vmem:[%s139 + $0x3cc] sm:$0xf]
      %v391 = vld [vmem:[%s139 + $0x3d0] sm:$0xf]
      %v392 = vld [vmem:[%s139 + $0x3d4] sm:$0xf]
      %v393 = vld [vmem:[%s139 + $0x3d8] sm:$0xf]
      %v394 = vld [vmem:[%s139 + $0x3dc] sm:$0xf]
      %v395 = vld [vmem:[%s139 + $0x3e0] sm:$0xf]
      %v396 = vld [vmem:[%s139 + $0x3e4] sm:$0xf]
      %v397 = vld [vmem:[%s139 + $0x3e8] sm:$0xf]
      %v398 = vld [vmem:[%s139 + $0x3ec] sm:$0xf]
      %v399 = vld [vmem:[%s139 + $0x3f0] sm:$0xf]
      %v400 = vld [vmem:[%s139 + $0x3f4] sm:$0xf]
      %v401 = vld [vmem:[%s139 + $0x3f8] sm:$0xf]
      %v402 = vld [vmem:[%s139 + $0x3fc] sm:$0xf]
      %v403 = vld [vmem:[%s139 + $0x400] sm:$0xf]
      %v404 = vld [vmem:[%s139 + $0x404] sm:$0xf]
      %v405 = vld [vmem:[%s139 + $0x408] sm:$0xf]
      %v406 = vld [vmem:[%s139 + $0x40c] sm:$0xf]
      %v407 = vld [vmem:[%s139 + $0x410] sm:$0xf]
      %v408 = vld [vmem:[%s139 + $0x414] sm:$0xf]
      %v409 = vld [vmem:[%s139 + $0x418] sm:$0xf]
      %v410 = vld [vmem:[%s139 + $0x41c] sm:$0xf]
      %v411 = vld [vmem:[%s139 + $0x420] sm:$0xf]
      %v412 = vld [vmem:[%s139 + $0x424] sm:$0xf]
      %v413 = vld [vmem:[%s139 + $0x428] sm:$0xf]
      %v414 = vld [vmem:[%s139 + $0x42c] sm:$0xf]
      %v415 = vld [vmem:[%s139 + $0x430] sm:$0xf]
      %v416 = vld [vmem:[%s139 + $0x434] sm:$0xf]
      %v417 = vld [vmem:[%s139 + $0x438] sm:$0xf]
      %v418 = vld [vmem:[%s139 + $0x43c] sm:$0xf]
      %v419 = vld [vmem:[%s139 + $0x440] sm:$0xf]
      %v420 = vld [vmem:[%s139 + $0x444] sm:$0xf]
      %v421 = vld [vmem:[%s139 + $0x448] sm:$0xf]
      %v422 = vld [vmem:[%s139 + $0x44c] sm:$0xf]
      %v423 = vld [vmem:[%s139 + $0x450] sm:$0xf]
      %v424 = vld [vmem:[%s139 + $0x454] sm:$0xf]
      %v425 = vld [vmem:[%s139 + $0x458] sm:$0xf]
      %v426 = vld [vmem:[%s139 + $0x45c] sm:$0xf]
      %v427 = vld [vmem:[%s139 + $0x460] sm:$0xf]
      %v428 = vld [vmem:[%s139 + $0x464] sm:$0xf]
      %v429 = vld [vmem:[%s139 + $0x468] sm:$0xf]
      %v430 = vld [vmem:[%s139 + $0x46c] sm:$0xf]
      %v431 = vld [vmem:[%s139 + $0x470] sm:$0xf]
      %v432 = vld [vmem:[%s139 + $0x474] sm:$0xf]
      %v433 = vld [vmem:[%s139 + $0x478] sm:$0xf]
      %v434 = vld [vmem:[%s139 + $0x47c] sm:$0xf]
      %v435 = vld [vmem:[%s139 + $0x480] sm:$0xf]
      %v436 = vld [vmem:[%s139 + $0x484] sm:$0xf]
      %v437 = vld [vmem:[%s139 + $0x488] sm:$0xf]
      %v438 = vld [vmem:[%s139 + $0x48c] sm:$0xf]
      %v439 = vld [vmem:[%s139 + $0x490] sm:$0xf]
      %v440 = vld [vmem:[%s139 + $0x494] sm:$0xf]
      %v441 = vld [vmem:[%s139 + $0x498] sm:$0xf]
      %v442 = vld [vmem:[%s139 + $0x49c] sm:$0xf]
      %v443 = vld [vmem:[%s139 + $0x4a0] sm:$0xf]
      %v444 = vld [vmem:[%s139 + $0x4a4] sm:$0xf]
      %v445 = vld [vmem:[%s139 + $0x4a8] sm:$0xf]
      %v446 = vld [vmem:[%s139 + $0x4ac] sm:$0xf]
      %v447 = vld [vmem:[%s139 + $0x4b0] sm:$0xf]
      %v448 = vld [vmem:[%s139 + $0x4b4] sm:$0xf]
      %v449 = vld [vmem:[%s139 + $0x4b8] sm:$0xf]
      %v450 = vld [vmem:[%s139 + $0x4bc] sm:$0xf]
      %v451 = vld [vmem:[%s139 + $0x4c0] sm:$0xf]
      %v452 = vld [vmem:[%s139 + $0x4c4] sm:$0xf]
      %v453 = vld [vmem:[%s139 + $0x4c8] sm:$0xf]
      %v454 = vld [vmem:[%s139 + $0x4cc] sm:$0xf]
      %v455 = vld [vmem:[%s139 + $0x4d0] sm:$0xf]
      %v456 = vld [vmem:[%s139 + $0x4d4] sm:$0xf]
      %v457 = vld [vmem:[%s139 + $0x4d8] sm:$0xf]
      %v458 = vld [vmem:[%s139 + $0x4dc] sm:$0xf]
      %v459 = vld [vmem:[%s139 + $0x4e0] sm:$0xf]
      %v460 = vld [vmem:[%s139 + $0x4e4] sm:$0xf]
      %v461 = vld [vmem:[%s139 + $0x4e8] sm:$0xf]
      %v462 = vld [vmem:[%s139 + $0x4ec] sm:$0xf]
      %v463 = vld [vmem:[%s139 + $0x4f0] sm:$0xf]
      %v464 = vld [vmem:[%s139 + $0x4f4] sm:$0xf]
      %v465 = vld [vmem:[%s139 + $0x4f8] sm:$0xf]
      %v466 = vld [vmem:[%s139 + $0x4fc] sm:$0xf]
      %v467 = vld [vmem:[%s139 + $0x500] sm:$0xf]
      %v468 = vld [vmem:[%s139 + $0x504] sm:$0xf]
      %v469 = vld [vmem:[%s139 + $0x508] sm:$0xf]
      %v470 = vld [vmem:[%s139 + $0x50c] sm:$0xf]
      %v471 = vld [vmem:[%s139 + $0x510] sm:$0xf]
      %v472 = vld [vmem:[%s139 + $0x514] sm:$0xf]
      %v473 = vld [vmem:[%s139 + $0x518] sm:$0xf]
      %v474 = vld [vmem:[%s139 + $0x51c] sm:$0xf]
      %v475 = vld [vmem:[%s139 + $0x520] sm:$0xf]
      %v476 = vld [vmem:[%s139 + $0x524] sm:$0xf]
      %v477 = vld [vmem:[%s139 + $0x528] sm:$0xf]
      %v478 = vld [vmem:[%s139 + $0x52c] sm:$0xf]
      %v479 = vld [vmem:[%s139 + $0x530] sm:$0xf]
      %v480 = vld [vmem:[%s139 + $0x534] sm:$0xf]
      %v481 = vld [vmem:[%s139 + $0x538] sm:$0xf]
      %v482 = vld [vmem:[%s139 + $0x53c] sm:$0xf]
      %v483 = vld [vmem:[%s139 + $0x540] sm:$0xf]
      %v484 = vld [vmem:[%s139 + $0x544] sm:$0xf]
      %v485 = vld [vmem:[%s139 + $0x548] sm:$0xf]
      %v486 = vld [vmem:[%s139 + $0x54c] sm:$0xf]
      %v487 = vld [vmem:[%s139 + $0x550] sm:$0xf]
      %v488 = vld [vmem:[%s139 + $0x554] sm:$0xf]
      %v489 = vld [vmem:[%s139 + $0x558] sm:$0xf]
      %v490 = vld [vmem:[%s139 + $0x55c] sm:$0xf]
      %v491 = vld [vmem:[%s139 + $0x560] sm:$0xf]
      %v492 = vld [vmem:[%s139 + $0x564] sm:$0xf]
      %v493 = vld [vmem:[%s139 + $0x568] sm:$0xf]
      %v494 = vld [vmem:[%s139 + $0x56c] sm:$0xf]
      %v495 = vld [vmem:[%s139 + $0x570] sm:$0xf]
      %v496 = vld [vmem:[%s139 + $0x574] sm:$0xf]
      %v497 = vld [vmem:[%s139 + $0x578] sm:$0xf]
      %v498 = vld [vmem:[%s139 + $0x57c] sm:$0xf]
      %v499 = vld [vmem:[%s139 + $0x580] sm:$0xf]
      %v500 = vld [vmem:[%s139 + $0x584] sm:$0xf]
      %v501 = vld [vmem:[%s139 + $0x588] sm:$0xf]
      %v502 = vld [vmem:[%s139 + $0x58c] sm:$0xf]
      %v503 = vld [vmem:[%s139 + $0x590] sm:$0xf]
      %v504 = vld [vmem:[%s139 + $0x594] sm:$0xf]
      %v505 = vld [vmem:[%s139 + $0x598] sm:$0xf]
      %v506 = vld [vmem:[%s139 + $0x59c] sm:$0xf]
      %v507 = vld [vmem:[%s139 + $0x5a0] sm:$0xf]
      %v508 = vld [vmem:[%s139 + $0x5a4] sm:$0xf]
      %v509 = vld [vmem:[%s139 + $0x5a8] sm:$0xf]
      %v510 = vld [vmem:[%s139 + $0x5ac] sm:$0xf]
      %v511 = vld [vmem:[%s139 + $0x5b0] sm:$0xf]
      %v512 = vld [vmem:[%s139 + $0x5b4] sm:$0xf]
      %v513 = vld [vmem:[%s139 + $0x5b8] sm:$0xf]
      %v514 = vld [vmem:[%s139 + $0x5bc] sm:$0xf]
      %v515 = vld [vmem:[%s139 + $0x5c0] sm:$0xf]
      %v516 = vld [vmem:[%s139 + $0x5c4] sm:$0xf]
      %v517 = vld [vmem:[%s139 + $0x5c8] sm:$0xf]
      %v518 = vld [vmem:[%s139 + $0x5cc] sm:$0xf]
      %v519 = vld [vmem:[%s139 + $0x5d0] sm:$0xf]
      %v520 = vld [vmem:[%s139 + $0x5d4] sm:$0xf]
      %v521 = vld [vmem:[%s139 + $0x5d8] sm:$0xf]
      %v522 = vld [vmem:[%s139 + $0x5dc] sm:$0xf]
      %v523 = vld [vmem:[%s139 + $0x5e0] sm:$0xf]
      %v524 = vld [vmem:[%s139 + $0x5e4] sm:$0xf]
      %v525 = vld [vmem:[%s139 + $0x5e8] sm:$0xf]
      %v526 = vld [vmem:[%s139 + $0x5ec] sm:$0xf]
      %v527 = vld [vmem:[%s139 + $0x5f0] sm:$0xf]
      %v528 = vld [vmem:[%s139 + $0x5f4] sm:$0xf]
      %v529 = vld [vmem:[%s139 + $0x5f8] sm:$0xf]
      %v530 = vld [vmem:[%s139 + $0x5fc] sm:$0xf]
      %v531 = vld [vmem:[%s139 + $0x600] sm:$0xf]
      %v532 = vld [vmem:[%s139 + $0x604] sm:$0xf]
      %v533 = vld [vmem:[%s139 + $0x608] sm:$0xf]
      %v534 = vld [vmem:[%s139 + $0x60c] sm:$0xf]
      %v535 = vld [vmem:[%s139 + $0x610] sm:$0xf]
      %v536 = vld [vmem:[%s139 + $0x614] sm:$0xf]
      %v537 = vld [vmem:[%s139 + $0x618] sm:$0xf]
      %v538 = vld [vmem:[%s139 + $0x61c] sm:$0xf]
      %v539 = vld [vmem:[%s139 + $0x620] sm:$0xf]
      %v540 = vld [vmem:[%s139 + $0x624] sm:$0xf]
      %v541 = vld [vmem:[%s139 + $0x628] sm:$0xf]
      %v542 = vld [vmem:[%s139 + $0x62c] sm:$0xf]
      %v543 = vld [vmem:[%s139 + $0x630] sm:$0xf]
      %v544 = vld [vmem:[%s139 + $0x634] sm:$0xf]
      %v545 = vld [vmem:[%s139 + $0x638] sm:$0xf]
      %v546 = vld [vmem:[%s139 + $0x63c] sm:$0xf]
      %v547 = vld [vmem:[%s139 + $0x640] sm:$0xf]
      %v548 = vld [vmem:[%s139 + $0x644] sm:$0xf]
      %v549 = vld [vmem:[%s139 + $0x648] sm:$0xf]
      %v550 = vld [vmem:[%s139 + $0x64c] sm:$0xf]
      %v551 = vld [vmem:[%s139 + $0x650] sm:$0xf]
      %v552 = vld [vmem:[%s139 + $0x654] sm:$0xf]
      %v553 = vld [vmem:[%s139 + $0x658] sm:$0xf]
      %v554 = vld [vmem:[%s139 + $0x65c] sm:$0xf]
      %v555 = vld [vmem:[%s139 + $0x660] sm:$0xf]
      %v556 = vld [vmem:[%s139 + $0x664] sm:$0xf]
      %v557 = vld [vmem:[%s139 + $0x668] sm:$0xf]
      %v558 = vld [vmem:[%s139 + $0x66c] sm:$0xf]
      %v559 = vld [vmem:[%s139 + $0x670] sm:$0xf]
      %v560 = vld [vmem:[%s139 + $0x674] sm:$0xf]
      %v561 = vld [vmem:[%s139 + $0x678] sm:$0xf]
      %v562 = vld [vmem:[%s139 + $0x67c] sm:$0xf]
      %v563 = vld [vmem:[%s139 + $0x680] sm:$0xf]
      %v564 = vld [vmem:[%s139 + $0x684] sm:$0xf]
      %v565 = vld [vmem:[%s139 + $0x688] sm:$0xf]
      %v566 = vld [vmem:[%s139 + $0x68c] sm:$0xf]
      %v567 = vld [vmem:[%s139 + $0x690] sm:$0xf]
      %v568 = vld [vmem:[%s139 + $0x694] sm:$0xf]
      %v569 = vld [vmem:[%s139 + $0x698] sm:$0xf]
      %v570 = vld [vmem:[%s139 + $0x69c] sm:$0xf]
      %v571 = vld [vmem:[%s139 + $0x6a0] sm:$0xf]
      %v572 = vld [vmem:[%s139 + $0x6a4] sm:$0xf]
      %v573 = vld [vmem:[%s139 + $0x6a8] sm:$0xf]
      %v574 = vld [vmem:[%s139 + $0x6ac] sm:$0xf]
      %v575 = vld [vmem:[%s139 + $0x6b0] sm:$0xf]
      %v576 = vld [vmem:[%s139 + $0x6b4] sm:$0xf]
      %v577 = vld [vmem:[%s139 + $0x6b8] sm:$0xf]
      %v578 = vld [vmem:[%s139 + $0x6bc] sm:$0xf]
      %v579 = vld [vmem:[%s139 + $0x6c0] sm:$0xf]
      %v580 = vld [vmem:[%s139 + $0x6c4] sm:$0xf]
      %v581 = vld [vmem:[%s139 + $0x6c8] sm:$0xf]
      %v582 = vld [vmem:[%s139 + $0x6cc] sm:$0xf]
      %v583 = vld [vmem:[%s139 + $0x6d0] sm:$0xf]
      %v584 = vld [vmem:[%s139 + $0x6d4] sm:$0xf]
      %v585 = vld [vmem:[%s139 + $0x6d8] sm:$0xf]
      %v586 = vld [vmem:[%s139 + $0x6dc] sm:$0xf]
      %v587 = vld [vmem:[%s139 + $0x6e0] sm:$0xf]
      %v588 = vld [vmem:[%s139 + $0x6e4] sm:$0xf]
      %v589 = vld [vmem:[%s139 + $0x6e8] sm:$0xf]
      %v590 = vld [vmem:[%s139 + $0x6ec] sm:$0xf]
      %v591 = vld [vmem:[%s139 + $0x6f0] sm:$0xf]
      %v592 = vld [vmem:[%s139 + $0x6f4] sm:$0xf]
      %v593 = vld [vmem:[%s139 + $0x6f8] sm:$0xf]
      %v594 = vld [vmem:[%s139 + $0x6fc] sm:$0xf]
      %v595 = vld [vmem:[%s139 + $0x700] sm:$0xf]
      %v596 = vld [vmem:[%s139 + $0x704] sm:$0xf]
      %v597 = vld [vmem:[%s139 + $0x708] sm:$0xf]
      %v598 = vld [vmem:[%s139 + $0x70c] sm:$0xf]
      %v599 = vld [vmem:[%s139 + $0x710] sm:$0xf]
      %v600 = vld [vmem:[%s139 + $0x714] sm:$0xf]
      %v601 = vld [vmem:[%s139 + $0x718] sm:$0xf]
      %v602 = vld [vmem:[%s139 + $0x71c] sm:$0xf]
      %v603 = vld [vmem:[%s139 + $0x720] sm:$0xf]
      %v604 = vld [vmem:[%s139 + $0x724] sm:$0xf]
      %v605 = vld [vmem:[%s139 + $0x728] sm:$0xf]
      %v606 = vld [vmem:[%s139 + $0x72c] sm:$0xf]
      %v607 = vld [vmem:[%s139 + $0x730] sm:$0xf]
      %v608 = vld [vmem:[%s139 + $0x734] sm:$0xf]
      %v609 = vld [vmem:[%s139 + $0x738] sm:$0xf]
      %v610 = vld [vmem:[%s139 + $0x73c] sm:$0xf]
      %v611 = vld [vmem:[%s139 + $0x740] sm:$0xf]
      %v612 = vld [vmem:[%s139 + $0x744] sm:$0xf]
      %v613 = vld [vmem:[%s139 + $0x748] sm:$0xf]
      %v614 = vld [vmem:[%s139 + $0x74c] sm:$0xf]
      %v615 = vld [vmem:[%s139 + $0x750] sm:$0xf]
      %v616 = vld [vmem:[%s139 + $0x754] sm:$0xf]
      %v617 = vld [vmem:[%s139 + $0x758] sm:$0xf]
      %v618 = vld [vmem:[%s139 + $0x75c] sm:$0xf]
      %v619 = vld [vmem:[%s139 + $0x760] sm:$0xf]
      %v620 = vld [vmem:[%s139 + $0x764] sm:$0xf]
      %v621 = vld [vmem:[%s139 + $0x768] sm:$0xf]
      %v622 = vld [vmem:[%s139 + $0x76c] sm:$0xf]
      %v623 = vld [vmem:[%s139 + $0x770] sm:$0xf]
      %v624 = vld [vmem:[%s139 + $0x774] sm:$0xf]
      %v625 = vld [vmem:[%s139 + $0x778] sm:$0xf]
      %v626 = vld [vmem:[%s139 + $0x77c] sm:$0xf]
      %v627 = vld [vmem:[%s139 + $0x780] sm:$0xf]
      %v628 = vld [vmem:[%s139 + $0x784] sm:$0xf]
      %v629 = vld [vmem:[%s139 + $0x788] sm:$0xf]
      %v630 = vld [vmem:[%s139 + $0x78c] sm:$0xf]
      %v631 = vld [vmem:[%s139 + $0x790] sm:$0xf]
      %v632 = vld [vmem:[%s139 + $0x794] sm:$0xf]
      %v633 = vld [vmem:[%s139 + $0x798] sm:$0xf]
      %v634 = vld [vmem:[%s139 + $0x79c] sm:$0xf]
      %v635 = vld [vmem:[%s139 + $0x7a0] sm:$0xf]
      %v636 = vld [vmem:[%s139 + $0x7a4] sm:$0xf]
      %v637 = vld [vmem:[%s139 + $0x7a8] sm:$0xf]
      %v638 = vld [vmem:[%s139 + $0x7ac] sm:$0xf]
      %v639 = vld [vmem:[%s139 + $0x7b0] sm:$0xf]
      %v640 = vld [vmem:[%s139 + $0x7b4] sm:$0xf]
      %v641 = vld [vmem:[%s139 + $0x7b8] sm:$0xf]
      %v642 = vld [vmem:[%s139 + $0x7bc] sm:$0xf]
      %v643 = vld [vmem:[%s139 + $0x7c0] sm:$0xf]
      %v644 = vld [vmem:[%s139 + $0x7c4] sm:$0xf]
      %v645 = vld [vmem:[%s139 + $0x7c8] sm:$0xf]
      %v646 = vld [vmem:[%s139 + $0x7cc] sm:$0xf]
      %v647 = vld [vmem:[%s139 + $0x7d0] sm:$0xf]
      %v648 = vld [vmem:[%s139 + $0x7d4] sm:$0xf]
      %v649 = vld [vmem:[%s139 + $0x7d8] sm:$0xf]
      %v650 = vld [vmem:[%s139 + $0x7dc] sm:$0xf]
      %v651 = vld [vmem:[%s139 + $0x7e0] sm:$0xf]
      %v652 = vld [vmem:[%s139 + $0x7e4] sm:$0xf]
      %v653 = vld [vmem:[%s139 + $0x7e8] sm:$0xf]
      %v654 = vld [vmem:[%s139 + $0x7ec] sm:$0xf]
      %v655 = vld [vmem:[%s139 + $0x7f0] sm:$0xf]
      %v656 = vld [vmem:[%s139 + $0x7f4] sm:$0xf]
      %v657 = vld [vmem:[%s139 + $0x7f8] sm:$0xf]
      %v658 = vld [vmem:[%s139 + $0x7fc] sm:$0xf]
      %v659 = vld [vmem:[%s1] sm:$0xf]
      %v660 = vld [vmem:[%s1 + $0x4] sm:$0xf]
      %v661 = vld [vmem:[%s1 + $0x8] sm:$0xf]
      %v662 = vld [vmem:[%s1 + $0xc] sm:$0xf]
      %v663 = vld [vmem:[%s1 + $0x10] sm:$0xf]
      %v664 = vld [vmem:[%s1 + $0x14] sm:$0xf]
      %v665 = vld [vmem:[%s1 + $0x18] sm:$0xf]
      %v666 = vld [vmem:[%s1 + $0x1c] sm:$0xf]
      %v667 = vld [vmem:[%s1 + $0x20] sm:$0xf]
      %v668 = vld [vmem:[%s1 + $0x24] sm:$0xf]
      %v669 = vld [vmem:[%s1 + $0x28] sm:$0xf]
      %v670 = vld [vmem:[%s1 + $0x2c] sm:$0xf]
      %v671 = vld [vmem:[%s1 + $0x30] sm:$0xf]
      %v672 = vld [vmem:[%s1 + $0x34] sm:$0xf]
      %v673 = vld [vmem:[%s1 + $0x38] sm:$0xf]
      %v674 = vld [vmem:[%s1 + $0x3c] sm:$0xf]
      %v1187 = vunpack.c.l.b16 %v147
      %v1188 = vunpack.c.l.b16 %v148
      %v1189 = vunpack.c.l.b16 %v149
      %v1190 = vunpack.c.l.b16 %v150
      %v1191 = vunpack.c.l.b16 %v151
      %v1192 = vunpack.c.l.b16 %v152
      %v1193 = vunpack.c.l.b16 %v153
      %v1194 = vunpack.c.l.b16 %v154
      %v1195 = vunpack.c.l.b16 %v155
      %v1196 = vunpack.c.l.b16 %v156
      %v1197 = vunpack.c.l.b16 %v157
      %v1198 = vunpack.c.l.b16 %v158
      %v1199 = vunpack.c.l.b16 %v159
      %v1200 = vunpack.c.l.b16 %v160
      %v1201 = vunpack.c.l.b16 %v161
      %v1202 = vunpack.c.l.b16 %v162
      %v1203 = vunpack.c.l.b16 %v163
      %v1204 = vunpack.c.l.b16 %v164
      %v1205 = vunpack.c.l.b16 %v165
      %v1206 = vunpack.c.l.b16 %v166
      %v1207 = vunpack.c.l.b16 %v167
      %v1208 = vunpack.c.l.b16 %v168
      %v1209 = vunpack.c.l.b16 %v169
      %v1210 = vunpack.c.l.b16 %v170
      %v1211 = vunpack.c.l.b16 %v171
      %v1212 = vunpack.c.l.b16 %v172
      %v1213 = vunpack.c.l.b16 %v173
      %v1214 = vunpack.c.l.b16 %v174
      %v1215 = vunpack.c.l.b16 %v175
      %v1216 = vunpack.c.l.b16 %v176
      %v1217 = vunpack.c.l.b16 %v177
      %v1218 = vunpack.c.l.b16 %v178
      %v1219 = vunpack.c.l.b16 %v179
      %v1220 = vunpack.c.l.b16 %v180
      %v1221 = vunpack.c.l.b16 %v181
      %v1222 = vunpack.c.l.b16 %v182
      %v1223 = vunpack.c.l.b16 %v183
      %v1224 = vunpack.c.l.b16 %v184
      %v1225 = vunpack.c.l.b16 %v185
      %v1226 = vunpack.c.l.b16 %v186
      %v1227 = vunpack.c.l.b16 %v187
      %v1228 = vunpack.c.l.b16 %v188
      %v1229 = vunpack.c.l.b16 %v189
      %v1230 = vunpack.c.l.b16 %v190
      %v1231 = vunpack.c.l.b16 %v191
      %v1232 = vunpack.c.l.b16 %v192
      %v1233 = vunpack.c.l.b16 %v193
      %v1234 = vunpack.c.l.b16 %v194
      %v1235 = vunpack.c.l.b16 %v195
      %v1236 = vunpack.c.l.b16 %v196
      %v1237 = vunpack.c.l.b16 %v197
      %v1238 = vunpack.c.l.b16 %v198
      %v1239 = vunpack.c.l.b16 %v199
      %v1240 = vunpack.c.l.b16 %v200
      %v1241 = vunpack.c.l.b16 %v201
      %v1242 = vunpack.c.l.b16 %v202
      %v1243 = vunpack.c.l.b16 %v203
      %v1244 = vunpack.c.l.b16 %v204
      %v1245 = vunpack.c.l.b16 %v205
      %v1246 = vunpack.c.l.b16 %v206
      %v1247 = vunpack.c.l.b16 %v207
      %v1248 = vunpack.c.l.b16 %v208
      %v1249 = vunpack.c.l.b16 %v209
      %v1250 = vunpack.c.l.b16 %v210
      %v1251 = vunpack.c.l.b16 %v211
      %v1252 = vunpack.c.l.b16 %v212
      %v1253 = vunpack.c.l.b16 %v213
      %v1254 = vunpack.c.l.b16 %v214
      %v1255 = vunpack.c.l.b16 %v215
      %v1256 = vunpack.c.l.b16 %v216
      %v1257 = vunpack.c.l.b16 %v217
      %v1258 = vunpack.c.l.b16 %v218
      %v1259 = vunpack.c.l.b16 %v219
      %v1260 = vunpack.c.l.b16 %v220
      %v1261 = vunpack.c.l.b16 %v221
      %v1262 = vunpack.c.l.b16 %v222
      %v1263 = vunpack.c.l.b16 %v223
      %v1264 = vunpack.c.l.b16 %v224
      %v1265 = vunpack.c.l.b16 %v225
      %v1266 = vunpack.c.l.b16 %v226
      %v1267 = vunpack.c.l.b16 %v227
      %v1268 = vunpack.c.l.b16 %v228
      %v1269 = vunpack.c.l.b16 %v229
      %v1270 = vunpack.c.l.b16 %v230
      %v1271 = vunpack.c.l.b16 %v231
      %v1272 = vunpack.c.l.b16 %v232
      %v1273 = vunpack.c.l.b16 %v233
      %v1274 = vunpack.c.l.b16 %v234
      %v1275 = vunpack.c.l.b16 %v235
      %v1276 = vunpack.c.l.b16 %v236
      %v1277 = vunpack.c.l.b16 %v237
      %v1278 = vunpack.c.l.b16 %v238
      %v1279 = vunpack.c.l.b16 %v239
      %v1280 = vunpack.c.l.b16 %v240
      %v1281 = vunpack.c.l.b16 %v241
      %v1282 = vunpack.c.l.b16 %v242
      %v1283 = vunpack.c.l.b16 %v243
      %v1284 = vunpack.c.l.b16 %v244
      %v1285 = vunpack.c.l.b16 %v245
      %v1286 = vunpack.c.l.b16 %v246
      %v1287 = vunpack.c.l.b16 %v247
      %v1288 = vunpack.c.l.b16 %v248
      %v1289 = vunpack.c.l.b16 %v249
      %v1290 = vunpack.c.l.b16 %v250
      %v1291 = vunpack.c.l.b16 %v251
      %v1292 = vunpack.c.l.b16 %v252
      %v1293 = vunpack.c.l.b16 %v253
      %v1294 = vunpack.c.l.b16 %v254
      %v1295 = vunpack.c.l.b16 %v255
      %v1296 = vunpack.c.l.b16 %v256
      %v1297 = vunpack.c.l.b16 %v257
      %v1298 = vunpack.c.l.b16 %v258
      %v1299 = vunpack.c.l.b16 %v259
      %v1300 = vunpack.c.l.b16 %v260
      %v1301 = vunpack.c.l.b16 %v261
      %v1302 = vunpack.c.l.b16 %v262
      %v1303 = vunpack.c.l.b16 %v263
      %v1304 = vunpack.c.l.b16 %v264
      %v1305 = vunpack.c.l.b16 %v265
      %v1306 = vunpack.c.l.b16 %v266
      %v1307 = vunpack.c.l.b16 %v267
      %v1308 = vunpack.c.l.b16 %v268
      %v1309 = vunpack.c.l.b16 %v269
      %v1310 = vunpack.c.l.b16 %v270
      %v1311 = vunpack.c.l.b16 %v271
      %v1312 = vunpack.c.l.b16 %v272
      %v1313 = vunpack.c.l.b16 %v273
      %v1314 = vunpack.c.l.b16 %v274
      %v1315 = vunpack.c.l.b16 %v275
      %v1316 = vunpack.c.l.b16 %v276
      %v1317 = vunpack.c.l.b16 %v277
      %v1318 = vunpack.c.l.b16 %v278
      %v1319 = vunpack.c.l.b16 %v279
      %v1320 = vunpack.c.l.b16 %v280
      %v1321 = vunpack.c.l.b16 %v281
      %v1322 = vunpack.c.l.b16 %v282
      %v1323 = vunpack.c.l.b16 %v283
      %v1324 = vunpack.c.l.b16 %v284
      %v1325 = vunpack.c.l.b16 %v285
      %v1326 = vunpack.c.l.b16 %v286
      %v1327 = vunpack.c.l.b16 %v287
      %v1328 = vunpack.c.l.b16 %v288
      %v1329 = vunpack.c.l.b16 %v289
      %v1330 = vunpack.c.l.b16 %v290
      %v1331 = vunpack.c.l.b16 %v291
      %v1332 = vunpack.c.l.b16 %v292
      %v1333 = vunpack.c.l.b16 %v293
      %v1334 = vunpack.c.l.b16 %v294
      %v1335 = vunpack.c.l.b16 %v295
      %v1336 = vunpack.c.l.b16 %v296
      %v1337 = vunpack.c.l.b16 %v297
      %v1338 = vunpack.c.l.b16 %v298
      %v1339 = vunpack.c.l.b16 %v299
      %v1340 = vunpack.c.l.b16 %v300
      %v1341 = vunpack.c.l.b16 %v301
      %v1342 = vunpack.c.l.b16 %v302
      %v1343 = vunpack.c.l.b16 %v303
      %v1344 = vunpack.c.l.b16 %v304
      %v1345 = vunpack.c.l.b16 %v305
      %v1346 = vunpack.c.l.b16 %v306
      %v1347 = vunpack.c.l.b16 %v307
      %v1348 = vunpack.c.l.b16 %v308
      %v1349 = vunpack.c.l.b16 %v309
      %v1350 = vunpack.c.l.b16 %v310
      %v1351 = vunpack.c.l.b16 %v311
      %v1352 = vunpack.c.l.b16 %v312
      %v1353 = vunpack.c.l.b16 %v313
      %v1354 = vunpack.c.l.b16 %v314
      %v1355 = vunpack.c.l.b16 %v315
      %v1356 = vunpack.c.l.b16 %v316
      %v1357 = vunpack.c.l.b16 %v317
      %v1358 = vunpack.c.l.b16 %v318
      %v1359 = vunpack.c.l.b16 %v319
      %v1360 = vunpack.c.l.b16 %v320
      %v1361 = vunpack.c.l.b16 %v321
      %v1362 = vunpack.c.l.b16 %v322
      %v1363 = vunpack.c.l.b16 %v323
      %v1364 = vunpack.c.l.b16 %v324
      %v1365 = vunpack.c.l.b16 %v325
      %v1366 = vunpack.c.l.b16 %v326
      %v1367 = vunpack.c.l.b16 %v327
      %v1368 = vunpack.c.l.b16 %v328
      %v1369 = vunpack.c.l.b16 %v329
      %v1370 = vunpack.c.l.b16 %v330
      %v1371 = vunpack.c.l.b16 %v331
      %v1372 = vunpack.c.l.b16 %v332
      %v1373 = vunpack.c.l.b16 %v333
      %v1374 = vunpack.c.l.b16 %v334
      %v1375 = vunpack.c.l.b16 %v335
      %v1376 = vunpack.c.l.b16 %v336
      %v1377 = vunpack.c.l.b16 %v337
      %v1378 = vunpack.c.l.b16 %v338
      %v1379 = vunpack.c.l.b16 %v339
      %v1380 = vunpack.c.l.b16 %v340
      %v1381 = vunpack.c.l.b16 %v341
      %v1382 = vunpack.c.l.b16 %v342
      %v1383 = vunpack.c.l.b16 %v343
      %v1384 = vunpack.c.l.b16 %v344
      %v1385 = vunpack.c.l.b16 %v345
      %v1386 = vunpack.c.l.b16 %v346
      %v1387 = vunpack.c.l.b16 %v347
      %v1388 = vunpack.c.l.b16 %v348
      %v1389 = vunpack.c.l.b16 %v349
      %v1390 = vunpack.c.l.b16 %v350
      %v1391 = vunpack.c.l.b16 %v351
      %v1392 = vunpack.c.l.b16 %v352
      %v1393 = vunpack.c.l.b16 %v353
      %v1394 = vunpack.c.l.b16 %v354
      %v1395 = vunpack.c.l.b16 %v355
      %v1396 = vunpack.c.l.b16 %v356
      %v1397 = vunpack.c.l.b16 %v357
      %v1398 = vunpack.c.l.b16 %v358
      %v1399 = vunpack.c.l.b16 %v359
      %v1400 = vunpack.c.l.b16 %v360
      %v1401 = vunpack.c.l.b16 %v361
      %v1402 = vunpack.c.l.b16 %v362
      %v1403 = vunpack.c.l.b16 %v363
      %v1404 = vunpack.c.l.b16 %v364
      %v1405 = vunpack.c.l.b16 %v365
      %v1406 = vunpack.c.l.b16 %v366
      %v1407 = vunpack.c.l.b16 %v367
      %v1408 = vunpack.c.l.b16 %v368
      %v1409 = vunpack.c.l.b16 %v369
      %v1410 = vunpack.c.l.b16 %v370
      %v1411 = vunpack.c.l.b16 %v371
      %v1412 = vunpack.c.l.b16 %v372
      %v1413 = vunpack.c.l.b16 %v373
      %v1414 = vunpack.c.l.b16 %v374
      %v1415 = vunpack.c.l.b16 %v375
      %v1416 = vunpack.c.l.b16 %v376
      %v1417 = vunpack.c.l.b16 %v377
      %v1418 = vunpack.c.l.b16 %v378
      %v1419 = vunpack.c.l.b16 %v379
      %v1420 = vunpack.c.l.b16 %v380
      %v1421 = vunpack.c.l.b16 %v381
      %v1422 = vunpack.c.l.b16 %v382
      %v1423 = vunpack.c.l.b16 %v383
      %v1424 = vunpack.c.l.b16 %v384
      %v1425 = vunpack.c.l.b16 %v385
      %v1426 = vunpack.c.l.b16 %v386
      %v1427 = vunpack.c.l.b16 %v387
      %v1428 = vunpack.c.l.b16 %v388
      %v1429 = vunpack.c.l.b16 %v389
      %v1430 = vunpack.c.l.b16 %v390
      %v1431 = vunpack.c.l.b16 %v391
      %v1432 = vunpack.c.l.b16 %v392
      %v1433 = vunpack.c.l.b16 %v393
      %v1434 = vunpack.c.l.b16 %v394
      %v1435 = vunpack.c.l.b16 %v395
      %v1436 = vunpack.c.l.b16 %v396
      %v1437 = vunpack.c.l.b16 %v397
      %v1438 = vunpack.c.l.b16 %v398
      %v1439 = vunpack.c.l.b16 %v399
      %v1440 = vunpack.c.l.b16 %v400
      %v1441 = vunpack.c.l.b16 %v401
      %v1442 = vunpack.c.l.b16 %v402
      %v1443 = vunpack.c.l.b16 %v403
      %v1444 = vunpack.c.l.b16 %v404
      %v1445 = vunpack.c.l.b16 %v405
      %v1446 = vunpack.c.l.b16 %v406
      %v1447 = vunpack.c.l.b16 %v407
      %v1448 = vunpack.c.l.b16 %v408
      %v1449 = vunpack.c.l.b16 %v409
      %v1450 = vunpack.c.l.b16 %v410
      %v1451 = vunpack.c.l.b16 %v411
      %v1452 = vunpack.c.l.b16 %v412
      %v1453 = vunpack.c.l.b16 %v413
      %v1454 = vunpack.c.l.b16 %v414
      %v1455 = vunpack.c.l.b16 %v415
      %v1456 = vunpack.c.l.b16 %v416
      %v1457 = vunpack.c.l.b16 %v417
      %v1458 = vunpack.c.l.b16 %v418
      %v1459 = vunpack.c.l.b16 %v419
      %v1460 = vunpack.c.l.b16 %v420
      %v1461 = vunpack.c.l.b16 %v421
      %v1462 = vunpack.c.l.b16 %v422
      %v1463 = vunpack.c.l.b16 %v423
      %v1464 = vunpack.c.l.b16 %v424
      %v1465 = vunpack.c.l.b16 %v425
      %v1466 = vunpack.c.l.b16 %v426
      %v1467 = vunpack.c.l.b16 %v427
      %v1468 = vunpack.c.l.b16 %v428
      %v1469 = vunpack.c.l.b16 %v429
      %v1470 = vunpack.c.l.b16 %v430
      %v1471 = vunpack.c.l.b16 %v431
      %v1472 = vunpack.c.l.b16 %v432
      %v1473 = vunpack.c.l.b16 %v433
      %v1474 = vunpack.c.l.b16 %v434
      %v1475 = vunpack.c.l.b16 %v435
      %v1476 = vunpack.c.l.b16 %v436
      %v1477 = vunpack.c.l.b16 %v437
      %v1478 = vunpack.c.l.b16 %v438
      %v1479 = vunpack.c.l.b16 %v439
      %v1480 = vunpack.c.l.b16 %v440
      %v1481 = vunpack.c.l.b16 %v441
      %v1482 = vunpack.c.l.b16 %v442
      %v1483 = vunpack.c.l.b16 %v443
      %v1484 = vunpack.c.l.b16 %v444
      %v1485 = vunpack.c.l.b16 %v445
      %v1486 = vunpack.c.l.b16 %v446
      %v1487 = vunpack.c.l.b16 %v447
      %v1488 = vunpack.c.l.b16 %v448
      %v1489 = vunpack.c.l.b16 %v449
      %v1490 = vunpack.c.l.b16 %v450
      %v1491 = vunpack.c.l.b16 %v451
      %v1492 = vunpack.c.l.b16 %v452
      %v1493 = vunpack.c.l.b16 %v453
      %v1494 = vunpack.c.l.b16 %v454
      %v1495 = vunpack.c.l.b16 %v455
      %v1496 = vunpack.c.l.b16 %v456
      %v1497 = vunpack.c.l.b16 %v457
      %v1498 = vunpack.c.l.b16 %v458
      %v1499 = vunpack.c.l.b16 %v459
      %v1500 = vunpack.c.l.b16 %v460
      %v1501 = vunpack.c.l.b16 %v461
      %v1502 = vunpack.c.l.b16 %v462
      %v1503 = vunpack.c.l.b16 %v463
      %v1504 = vunpack.c.l.b16 %v464
      %v1505 = vunpack.c.l.b16 %v465
      %v1506 = vunpack.c.l.b16 %v466
      %v1507 = vunpack.c.l.b16 %v467
      %v1508 = vunpack.c.l.b16 %v468
      %v1509 = vunpack.c.l.b16 %v469
      %v1510 = vunpack.c.l.b16 %v470
      %v1511 = vunpack.c.l.b16 %v471
      %v1512 = vunpack.c.l.b16 %v472
      %v1513 = vunpack.c.l.b16 %v473
      %v1514 = vunpack.c.l.b16 %v474
      %v1515 = vunpack.c.l.b16 %v475
      %v1516 = vunpack.c.l.b16 %v476
      %v1517 = vunpack.c.l.b16 %v477
      %v1518 = vunpack.c.l.b16 %v478
      %v1519 = vunpack.c.l.b16 %v479
      %v1520 = vunpack.c.l.b16 %v480
      %v1521 = vunpack.c.l.b16 %v481
      %v1522 = vunpack.c.l.b16 %v482
      %v1523 = vunpack.c.l.b16 %v483
      %v1524 = vunpack.c.l.b16 %v484
      %v1525 = vunpack.c.l.b16 %v485
      %v1526 = vunpack.c.l.b16 %v486
      %v1527 = vunpack.c.l.b16 %v487
      %v1528 = vunpack.c.l.b16 %v488
      %v1529 = vunpack.c.l.b16 %v489
      %v1530 = vunpack.c.l.b16 %v490
      %v1531 = vunpack.c.l.b16 %v491
      %v1532 = vunpack.c.l.b16 %v492
      %v1533 = vunpack.c.l.b16 %v493
      %v1534 = vunpack.c.l.b16 %v494
      %v1535 = vunpack.c.l.b16 %v495
      %v1536 = vunpack.c.l.b16 %v496
      %v1537 = vunpack.c.l.b16 %v497
      %v1538 = vunpack.c.l.b16 %v498
      %v1539 = vunpack.c.l.b16 %v499
      %v1540 = vunpack.c.l.b16 %v500
      %v1541 = vunpack.c.l.b16 %v501
      %v1542 = vunpack.c.l.b16 %v502
      %v1543 = vunpack.c.l.b16 %v503
      %v1544 = vunpack.c.l.b16 %v504
      %v1545 = vunpack.c.l.b16 %v505
      %v1546 = vunpack.c.l.b16 %v506
      %v1547 = vunpack.c.l.b16 %v507
      %v1548 = vunpack.c.l.b16 %v508
      %v1549 = vunpack.c.l.b16 %v509
      %v1550 = vunpack.c.l.b16 %v510
      %v1551 = vunpack.c.l.b16 %v511
      %v1552 = vunpack.c.l.b16 %v512
      %v1553 = vunpack.c.l.b16 %v513
      %v1554 = vunpack.c.l.b16 %v514
      %v1555 = vunpack.c.l.b16 %v515
      %v1556 = vunpack.c.l.b16 %v516
      %v1557 = vunpack.c.l.b16 %v517
      %v1558 = vunpack.c.l.b16 %v518
      %v1559 = vunpack.c.l.b16 %v519
      %v1560 = vunpack.c.l.b16 %v520
      %v1561 = vunpack.c.l.b16 %v521
      %v1562 = vunpack.c.l.b16 %v522
      %v1563 = vunpack.c.l.b16 %v523
      %v1564 = vunpack.c.l.b16 %v524
      %v1565 = vunpack.c.l.b16 %v525
      %v1566 = vunpack.c.l.b16 %v526
      %v1567 = vunpack.c.l.b16 %v527
      %v1568 = vunpack.c.l.b16 %v528
      %v1569 = vunpack.c.l.b16 %v529
      %v1570 = vunpack.c.l.b16 %v530
      %v1571 = vunpack.c.l.b16 %v531
      %v1572 = vunpack.c.l.b16 %v532
      %v1573 = vunpack.c.l.b16 %v533
      %v1574 = vunpack.c.l.b16 %v534
      %v1575 = vunpack.c.l.b16 %v535
      %v1576 = vunpack.c.l.b16 %v536
      %v1577 = vunpack.c.l.b16 %v537
      %v1578 = vunpack.c.l.b16 %v538
      %v1579 = vunpack.c.l.b16 %v539
      %v1580 = vunpack.c.l.b16 %v540
      %v1581 = vunpack.c.l.b16 %v541
      %v1582 = vunpack.c.l.b16 %v542
      %v1583 = vunpack.c.l.b16 %v543
      %v1584 = vunpack.c.l.b16 %v544
      %v1585 = vunpack.c.l.b16 %v545
      %v1586 = vunpack.c.l.b16 %v546
      %v1587 = vunpack.c.l.b16 %v547
      %v1588 = vunpack.c.l.b16 %v548
      %v1589 = vunpack.c.l.b16 %v549
      %v1590 = vunpack.c.l.b16 %v550
      %v1591 = vunpack.c.l.b16 %v551
      %v1592 = vunpack.c.l.b16 %v552
      %v1593 = vunpack.c.l.b16 %v553
      %v1594 = vunpack.c.l.b16 %v554
      %v1595 = vunpack.c.l.b16 %v555
      %v1596 = vunpack.c.l.b16 %v556
      %v1597 = vunpack.c.l.b16 %v557
      %v1598 = vunpack.c.l.b16 %v558
      %v1599 = vunpack.c.l.b16 %v559
      %v1600 = vunpack.c.l.b16 %v560
      %v1601 = vunpack.c.l.b16 %v561
      %v1602 = vunpack.c.l.b16 %v562
      %v1603 = vunpack.c.l.b16 %v563
      %v1604 = vunpack.c.l.b16 %v564
      %v1605 = vunpack.c.l.b16 %v565
      %v1606 = vunpack.c.l.b16 %v566
      %v1607 = vunpack.c.l.b16 %v567
      %v1608 = vunpack.c.l.b16 %v568
      %v1609 = vunpack.c.l.b16 %v569
      %v1610 = vunpack.c.l.b16 %v570
      %v1611 = vunpack.c.l.b16 %v571
      %v1612 = vunpack.c.l.b16 %v572
      %v1613 = vunpack.c.l.b16 %v573
      %v1614 = vunpack.c.l.b16 %v574
      %v1615 = vunpack.c.l.b16 %v575
      %v1616 = vunpack.c.l.b16 %v576
      %v1617 = vunpack.c.l.b16 %v577
      %v1618 = vunpack.c.l.b16 %v578
      %v1619 = vunpack.c.l.b16 %v579
      %v1620 = vunpack.c.l.b16 %v580
      %v1621 = vunpack.c.l.b16 %v581
      %v1622 = vunpack.c.l.b16 %v582
      %v1623 = vunpack.c.l.b16 %v583
      %v1624 = vunpack.c.l.b16 %v584
      %v1625 = vunpack.c.l.b16 %v585
      %v1626 = vunpack.c.l.b16 %v586
      %v1627 = vunpack.c.l.b16 %v587
      %v1628 = vunpack.c.l.b16 %v588
      %v1629 = vunpack.c.l.b16 %v589
      %v1630 = vunpack.c.l.b16 %v590
      %v1631 = vunpack.c.l.b16 %v591
      %v1632 = vunpack.c.l.b16 %v592
      %v1633 = vunpack.c.l.b16 %v593
      %v1634 = vunpack.c.l.b16 %v594
      %v1635 = vunpack.c.l.b16 %v595
      %v1636 = vunpack.c.l.b16 %v596
      %v1637 = vunpack.c.l.b16 %v597
      %v1638 = vunpack.c.l.b16 %v598
      %v1639 = vunpack.c.l.b16 %v599
      %v1640 = vunpack.c.l.b16 %v600
      %v1641 = vunpack.c.l.b16 %v601
      %v1642 = vunpack.c.l.b16 %v602
      %v1643 = vunpack.c.l.b16 %v603
      %v1644 = vunpack.c.l.b16 %v604
      %v1645 = vunpack.c.l.b16 %v605
      %v1646 = vunpack.c.l.b16 %v606
      %v1647 = vunpack.c.l.b16 %v607
      %v1648 = vunpack.c.l.b16 %v608
      %v1649 = vunpack.c.l.b16 %v609
      %v1650 = vunpack.c.l.b16 %v610
      %v1651 = vunpack.c.l.b16 %v611
      %v1652 = vunpack.c.l.b16 %v612
      %v1653 = vunpack.c.l.b16 %v613
      %v1654 = vunpack.c.l.b16 %v614
      %v1655 = vunpack.c.l.b16 %v615
      %v1656 = vunpack.c.l.b16 %v616
      %v1657 = vunpack.c.l.b16 %v617
      %v1658 = vunpack.c.l.b16 %v618
      %v1659 = vunpack.c.l.b16 %v619
      %v1660 = vunpack.c.l.b16 %v620
      %v1661 = vunpack.c.l.b16 %v621
      %v1662 = vunpack.c.l.b16 %v622
      %v1663 = vunpack.c.l.b16 %v623
      %v1664 = vunpack.c.l.b16 %v624
      %v1665 = vunpack.c.l.b16 %v625
      %v1666 = vunpack.c.l.b16 %v626
      %v1667 = vunpack.c.l.b16 %v627
      %v1668 = vunpack.c.l.b16 %v628
      %v1669 = vunpack.c.l.b16 %v629
      %v1670 = vunpack.c.l.b16 %v630
      %v1671 = vunpack.c.l.b16 %v631
      %v1672 = vunpack.c.l.b16 %v632
      %v1673 = vunpack.c.l.b16 %v633
      %v1674 = vunpack.c.l.b16 %v634
      %v1675 = vunpack.c.l.b16 %v635
      %v1676 = vunpack.c.l.b16 %v636
      %v1677 = vunpack.c.l.b16 %v637
      %v1678 = vunpack.c.l.b16 %v638
      %v1679 = vunpack.c.l.b16 %v639
      %v1680 = vunpack.c.l.b16 %v640
      %v1681 = vunpack.c.l.b16 %v641
      %v1682 = vunpack.c.l.b16 %v642
      %v1683 = vunpack.c.l.b16 %v643
      %v1684 = vunpack.c.l.b16 %v644
      %v1685 = vunpack.c.l.b16 %v645
      %v1686 = vunpack.c.l.b16 %v646
      %v1687 = vunpack.c.l.b16 %v647
      %v1688 = vunpack.c.l.b16 %v648
      %v1689 = vunpack.c.l.b16 %v649
      %v1690 = vunpack.c.l.b16 %v650
      %v1691 = vunpack.c.l.b16 %v651
      %v1692 = vunpack.c.l.b16 %v652
      %v1693 = vunpack.c.l.b16 %v653
      %v1694 = vunpack.c.l.b16 %v654
      %v1695 = vunpack.c.l.b16 %v655
      %v1696 = vunpack.c.l.b16 %v656
      %v1697 = vunpack.c.l.b16 %v657
      %v1698 = vunpack.c.l.b16 %v658
      %v1699 = vpack.c.b16 %v1188, %v1187
      %v1700 = vpack.c.b16 %v1190, %v1189
      %v1701 = vpack.c.b16 %v1192, %v1191
      %v1702 = vpack.c.b16 %v1194, %v1193
      %v1703 = vpack.c.b16 %v1196, %v1195
      %v1704 = vpack.c.b16 %v1198, %v1197
      %v1705 = vpack.c.b16 %v1200, %v1199
      %v1706 = vpack.c.b16 %v1202, %v1201
      %v1707 = vpack.c.b16 %v1204, %v1203
      %v1708 = vpack.c.b16 %v1206, %v1205
      %v1709 = vpack.c.b16 %v1208, %v1207
      %v1710 = vpack.c.b16 %v1210, %v1209
      %v1711 = vpack.c.b16 %v1212, %v1211
      %v1712 = vpack.c.b16 %v1214, %v1213
      %v1713 = vpack.c.b16 %v1216, %v1215
      %v1714 = vpack.c.b16 %v1218, %v1217
      %v1715 = vpack.c.b16 %v1220, %v1219
      %v1716 = vpack.c.b16 %v1222, %v1221
      %v1717 = vpack.c.b16 %v1224, %v1223
      %v1718 = vpack.c.b16 %v1226, %v1225
      %v1719 = vpack.c.b16 %v1228, %v1227
      %v1720 = vpack.c.b16 %v1230, %v1229
      %v1721 = vpack.c.b16 %v1232, %v1231
      %v1722 = vpack.c.b16 %v1234, %v1233
      %v1723 = vpack.c.b16 %v1236, %v1235
      %v1724 = vpack.c.b16 %v1238, %v1237
      %v1725 = vpack.c.b16 %v1240, %v1239
      %v1726 = vpack.c.b16 %v1242, %v1241
      %v1727 = vpack.c.b16 %v1244, %v1243
      %v1728 = vpack.c.b16 %v1246, %v1245
      %v1729 = vpack.c.b16 %v1248, %v1247
      %v1730 = vpack.c.b16 %v1250, %v1249
      %v1731 = vpack.c.b16 %v1252, %v1251
      %v1732 = vpack.c.b16 %v1254, %v1253
      %v1733 = vpack.c.b16 %v1256, %v1255
      %v1734 = vpack.c.b16 %v1258, %v1257
      %v1735 = vpack.c.b16 %v1260, %v1259
      %v1736 = vpack.c.b16 %v1262, %v1261
      %v1737 = vpack.c.b16 %v1264, %v1263
      %v1738 = vpack.c.b16 %v1266, %v1265
      %v1739 = vpack.c.b16 %v1268, %v1267
      %v1740 = vpack.c.b16 %v1270, %v1269
      %v1741 = vpack.c.b16 %v1272, %v1271
      %v1742 = vpack.c.b16 %v1274, %v1273
      %v1743 = vpack.c.b16 %v1276, %v1275
      %v1744 = vpack.c.b16 %v1278, %v1277
      %v1745 = vpack.c.b16 %v1280, %v1279
      %v1746 = vpack.c.b16 %v1282, %v1281
      %v1747 = vpack.c.b16 %v1284, %v1283
      %v1748 = vpack.c.b16 %v1286, %v1285
      %v1749 = vpack.c.b16 %v1288, %v1287
      %v1750 = vpack.c.b16 %v1290, %v1289
      %v1751 = vpack.c.b16 %v1292, %v1291
      %v1752 = vpack.c.b16 %v1294, %v1293
      %v1753 = vpack.c.b16 %v1296, %v1295
      %v1754 = vpack.c.b16 %v1298, %v1297
      %v1755 = vpack.c.b16 %v1300, %v1299
      %v1756 = vpack.c.b16 %v1302, %v1301
      %v1757 = vpack.c.b16 %v1304, %v1303
      %v1758 = vpack.c.b16 %v1306, %v1305
      %v1759 = vpack.c.b16 %v1308, %v1307
      %v1760 = vpack.c.b16 %v1310, %v1309
      %v1761 = vpack.c.b16 %v1312, %v1311
      %v1762 = vpack.c.b16 %v1314, %v1313
      %v1763 = vpack.c.b16 %v1316, %v1315
      %v1764 = vpack.c.b16 %v1318, %v1317
      %v1765 = vpack.c.b16 %v1320, %v1319
      %v1766 = vpack.c.b16 %v1322, %v1321
      %v1767 = vpack.c.b16 %v1324, %v1323
      %v1768 = vpack.c.b16 %v1326, %v1325
      %v1769 = vpack.c.b16 %v1328, %v1327
      %v1770 = vpack.c.b16 %v1330, %v1329
      %v1771 = vpack.c.b16 %v1332, %v1331
      %v1772 = vpack.c.b16 %v1334, %v1333
      %v1773 = vpack.c.b16 %v1336, %v1335
      %v1774 = vpack.c.b16 %v1338, %v1337
      %v1775 = vpack.c.b16 %v1340, %v1339
      %v1776 = vpack.c.b16 %v1342, %v1341
      %v1777 = vpack.c.b16 %v1344, %v1343
      %v1778 = vpack.c.b16 %v1346, %v1345
      %v1779 = vpack.c.b16 %v1348, %v1347
      %v1780 = vpack.c.b16 %v1350, %v1349
      %v1781 = vpack.c.b16 %v1352, %v1351
      %v1782 = vpack.c.b16 %v1354, %v1353
      %v1783 = vpack.c.b16 %v1356, %v1355
      %v1784 = vpack.c.b16 %v1358, %v1357
      %v1785 = vpack.c.b16 %v1360, %v1359
      %v1786 = vpack.c.b16 %v1362, %v1361
      %v1787 = vpack.c.b16 %v1364, %v1363
      %v1788 = vpack.c.b16 %v1366, %v1365
      %v1789 = vpack.c.b16 %v1368, %v1367
      %v1790 = vpack.c.b16 %v1370, %v1369
      %v1791 = vpack.c.b16 %v1372, %v1371
      %v1792 = vpack.c.b16 %v1374, %v1373
      %v1793 = vpack.c.b16 %v1376, %v1375
      %v1794 = vpack.c.b16 %v1378, %v1377
      %v1795 = vpack.c.b16 %v1380, %v1379
      %v1796 = vpack.c.b16 %v1382, %v1381
      %v1797 = vpack.c.b16 %v1384, %v1383
      %v1798 = vpack.c.b16 %v1386, %v1385
      %v1799 = vpack.c.b16 %v1388, %v1387
      %v1800 = vpack.c.b16 %v1390, %v1389
      %v1801 = vpack.c.b16 %v1392, %v1391
      %v1802 = vpack.c.b16 %v1394, %v1393
      %v1803 = vpack.c.b16 %v1396, %v1395
      %v1804 = vpack.c.b16 %v1398, %v1397
      %v1805 = vpack.c.b16 %v1400, %v1399
      %v1806 = vpack.c.b16 %v1402, %v1401
      %v1807 = vpack.c.b16 %v1404, %v1403
      %v1808 = vpack.c.b16 %v1406, %v1405
      %v1809 = vpack.c.b16 %v1408, %v1407
      %v1810 = vpack.c.b16 %v1410, %v1409
      %v1811 = vpack.c.b16 %v1412, %v1411
      %v1812 = vpack.c.b16 %v1414, %v1413
      %v1813 = vpack.c.b16 %v1416, %v1415
      %v1814 = vpack.c.b16 %v1418, %v1417
      %v1815 = vpack.c.b16 %v1420, %v1419
      %v1816 = vpack.c.b16 %v1422, %v1421
      %v1817 = vpack.c.b16 %v1424, %v1423
      %v1818 = vpack.c.b16 %v1426, %v1425
      %v1819 = vpack.c.b16 %v1428, %v1427
      %v1820 = vpack.c.b16 %v1430, %v1429
      %v1821 = vpack.c.b16 %v1432, %v1431
      %v1822 = vpack.c.b16 %v1434, %v1433
      %v1823 = vpack.c.b16 %v1436, %v1435
      %v1824 = vpack.c.b16 %v1438, %v1437
      %v1825 = vpack.c.b16 %v1440, %v1439
      %v1826 = vpack.c.b16 %v1442, %v1441
      %v1827 = vpack.c.b16 %v1444, %v1443
      %v1828 = vpack.c.b16 %v1446, %v1445
      %v1829 = vpack.c.b16 %v1448, %v1447
      %v1830 = vpack.c.b16 %v1450, %v1449
      %v1831 = vpack.c.b16 %v1452, %v1451
      %v1832 = vpack.c.b16 %v1454, %v1453
      %v1833 = vpack.c.b16 %v1456, %v1455
      %v1834 = vpack.c.b16 %v1458, %v1457
      %v1835 = vpack.c.b16 %v1460, %v1459
      %v1836 = vpack.c.b16 %v1462, %v1461
      %v1837 = vpack.c.b16 %v1464, %v1463
      %v1838 = vpack.c.b16 %v1466, %v1465
      %v1839 = vpack.c.b16 %v1468, %v1467
      %v1840 = vpack.c.b16 %v1470, %v1469
      %v1841 = vpack.c.b16 %v1472, %v1471
      %v1842 = vpack.c.b16 %v1474, %v1473
      %v1843 = vpack.c.b16 %v1476, %v1475
      %v1844 = vpack.c.b16 %v1478, %v1477
      %v1845 = vpack.c.b16 %v1480, %v1479
      %v1846 = vpack.c.b16 %v1482, %v1481
      %v1847 = vpack.c.b16 %v1484, %v1483
      %v1848 = vpack.c.b16 %v1486, %v1485
      %v1849 = vpack.c.b16 %v1488, %v1487
      %v1850 = vpack.c.b16 %v1490, %v1489
      %v1851 = vpack.c.b16 %v1492, %v1491
      %v1852 = vpack.c.b16 %v1494, %v1493
      %v1853 = vpack.c.b16 %v1496, %v1495
      %v1854 = vpack.c.b16 %v1498, %v1497
      %v1855 = vpack.c.b16 %v1500, %v1499
      %v1856 = vpack.c.b16 %v1502, %v1501
      %v1857 = vpack.c.b16 %v1504, %v1503
      %v1858 = vpack.c.b16 %v1506, %v1505
      %v1859 = vpack.c.b16 %v1508, %v1507
      %v1860 = vpack.c.b16 %v1510, %v1509
      %v1861 = vpack.c.b16 %v1512, %v1511
      %v1862 = vpack.c.b16 %v1514, %v1513
      %v1863 = vpack.c.b16 %v1516, %v1515
      %v1864 = vpack.c.b16 %v1518, %v1517
      %v1865 = vpack.c.b16 %v1520, %v1519
      %v1866 = vpack.c.b16 %v1522, %v1521
      %v1867 = vpack.c.b16 %v1524, %v1523
      %v1868 = vpack.c.b16 %v1526, %v1525
      %v1869 = vpack.c.b16 %v1528, %v1527
      %v1870 = vpack.c.b16 %v1530, %v1529
      %v1871 = vpack.c.b16 %v1532, %v1531
      %v1872 = vpack.c.b16 %v1534, %v1533
      %v1873 = vpack.c.b16 %v1536, %v1535
      %v1874 = vpack.c.b16 %v1538, %v1537
      %v1875 = vpack.c.b16 %v1540, %v1539
      %v1876 = vpack.c.b16 %v1542, %v1541
      %v1877 = vpack.c.b16 %v1544, %v1543
      %v1878 = vpack.c.b16 %v1546, %v1545
      %v1879 = vpack.c.b16 %v1548, %v1547
      %v1880 = vpack.c.b16 %v1550, %v1549
      %v1881 = vpack.c.b16 %v1552, %v1551
      %v1882 = vpack.c.b16 %v1554, %v1553
      %v1883 = vpack.c.b16 %v1556, %v1555
      %v1884 = vpack.c.b16 %v1558, %v1557
      %v1885 = vpack.c.b16 %v1560, %v1559
      %v1886 = vpack.c.b16 %v1562, %v1561
      %v1887 = vpack.c.b16 %v1564, %v1563
      %v1888 = vpack.c.b16 %v1566, %v1565
      %v1889 = vpack.c.b16 %v1568, %v1567
      %v1890 = vpack.c.b16 %v1570, %v1569
      %v1891 = vpack.c.b16 %v1572, %v1571
      %v1892 = vpack.c.b16 %v1574, %v1573
      %v1893 = vpack.c.b16 %v1576, %v1575
      %v1894 = vpack.c.b16 %v1578, %v1577
      %v1895 = vpack.c.b16 %v1580, %v1579
      %v1896 = vpack.c.b16 %v1582, %v1581
      %v1897 = vpack.c.b16 %v1584, %v1583
      %v1898 = vpack.c.b16 %v1586, %v1585
      %v1899 = vpack.c.b16 %v1588, %v1587
      %v1900 = vpack.c.b16 %v1590, %v1589
      %v1901 = vpack.c.b16 %v1592, %v1591
      %v1902 = vpack.c.b16 %v1594, %v1593
      %v1903 = vpack.c.b16 %v1596, %v1595
      %v1904 = vpack.c.b16 %v1598, %v1597
      %v1905 = vpack.c.b16 %v1600, %v1599
      %v1906 = vpack.c.b16 %v1602, %v1601
      %v1907 = vpack.c.b16 %v1604, %v1603
      %v1908 = vpack.c.b16 %v1606, %v1605
      %v1909 = vpack.c.b16 %v1608, %v1607
      %v1910 = vpack.c.b16 %v1610, %v1609
      %v1911 = vpack.c.b16 %v1612, %v1611
      %v1912 = vpack.c.b16 %v1614, %v1613
      %v1913 = vpack.c.b16 %v1616, %v1615
      %v1914 = vpack.c.b16 %v1618, %v1617
      %v1915 = vpack.c.b16 %v1620, %v1619
      %v1916 = vpack.c.b16 %v1622, %v1621
      %v1917 = vpack.c.b16 %v1624, %v1623
      %v1918 = vpack.c.b16 %v1626, %v1625
      %v1919 = vpack.c.b16 %v1628, %v1627
      %v1920 = vpack.c.b16 %v1630, %v1629
      %v1921 = vpack.c.b16 %v1632, %v1631
      %v1922 = vpack.c.b16 %v1634, %v1633
      %v1923 = vpack.c.b16 %v1636, %v1635
      %v1924 = vpack.c.b16 %v1638, %v1637
      %v1925 = vpack.c.b16 %v1640, %v1639
      %v1926 = vpack.c.b16 %v1642, %v1641
      %v1927 = vpack.c.b16 %v1644, %v1643
      %v1928 = vpack.c.b16 %v1646, %v1645
      %v1929 = vpack.c.b16 %v1648, %v1647
      %v1930 = vpack.c.b16 %v1650, %v1649
      %v1931 = vpack.c.b16 %v1652, %v1651
      %v1932 = vpack.c.b16 %v1654, %v1653
      %v1933 = vpack.c.b16 %v1656, %v1655
      %v1934 = vpack.c.b16 %v1658, %v1657
      %v1935 = vpack.c.b16 %v1660, %v1659
      %v1936 = vpack.c.b16 %v1662, %v1661
      %v1937 = vpack.c.b16 %v1664, %v1663
      %v1938 = vpack.c.b16 %v1666, %v1665
      %v1939 = vpack.c.b16 %v1668, %v1667
      %v1940 = vpack.c.b16 %v1670, %v1669
      %v1941 = vpack.c.b16 %v1672, %v1671
      %v1942 = vpack.c.b16 %v1674, %v1673
      %v1943 = vpack.c.b16 %v1676, %v1675
      %v1944 = vpack.c.b16 %v1678, %v1677
      %v1945 = vpack.c.b16 %v1680, %v1679
      %v1946 = vpack.c.b16 %v1682, %v1681
      %v1947 = vpack.c.b16 %v1684, %v1683
      %v1948 = vpack.c.b16 %v1686, %v1685
      %v1949 = vpack.c.b16 %v1688, %v1687
      %v1950 = vpack.c.b16 %v1690, %v1689
      %v1951 = vpack.c.b16 %v1692, %v1691
      %v1952 = vpack.c.b16 %v1694, %v1693
      %v1953 = vpack.c.b16 %v1696, %v1695
      %v1954 = vpack.c.b16 %v1698, %v1697
      %v2227 = vunpack.c.l.b16 %v659
      %v2228 = vunpack.c.l.b16 %v660
      %v2229 = vunpack.c.l.b16 %v661
      %v2230 = vunpack.c.l.b16 %v662
      %v2231 = vunpack.c.l.b16 %v663
      %v2232 = vunpack.c.l.b16 %v664
      %v2233 = vunpack.c.l.b16 %v665
      %v2234 = vunpack.c.l.b16 %v666
      %v2235 = vunpack.c.l.b16 %v667
      %v2236 = vunpack.c.l.b16 %v668
      %v2237 = vunpack.c.l.b16 %v669
      %v2238 = vunpack.c.l.b16 %v670
      %v2239 = vunpack.c.l.b16 %v671
      %v2240 = vunpack.c.l.b16 %v672
      %v2241 = vunpack.c.l.b16 %v673
      %v2242 = vunpack.c.l.b16 %v674
      %v2243 = vpack.c.b16 %v2228, %v2227
      %v2244 = vpack.c.b16 %v2230, %v2229
      %v2245 = vpack.c.b16 %v2232, %v2231
      %v2246 = vpack.c.b16 %v2234, %v2233
      %v2247 = vpack.c.b16 %v2236, %v2235
      %v2248 = vpack.c.b16 %v2238, %v2237
      %v2249 = vpack.c.b16 %v2240, %v2239
      %v2250 = vpack.c.b16 %v2242, %v2241
      %2259 = vmatpush.bf16.msra.mxu0 %v2250
      %2260 = vmatpush.bf16.msra.mxu0 %v2249
      %2261 = vmatpush.bf16.msra.mxu0 %v2248
      %2262 = vmatpush.bf16.msra.mxu0 %v2247
      %2263 = vmatpush.bf16.msra.mxu0 %v2246
      %2264 = vmatpush.bf16.msra.mxu0 %v2245
      %2265 = vmatpush.bf16.msra.mxu0 %v2244
      %2266 = vmatpush.bf16.msra.mxu0 %v2243
      %2267 = vmatmul.bf16.gmra.mxu0 %v1699
      %v2268 = vpop.f32.mrf.mxu0
      %v2269 = vadd.f32 0.0, %v2268
      %v2270 = vpop.f32.mrf.mxu0
      %v2271 = vadd.f32 0.0, %v2270
      %2272 = vmatmul.bf16.gmra.mxu0 %v1700
      %v2273 = vpop.f32.mrf.mxu0
      %v2274 = vadd.f32 0.0, %v2273
      %v2275 = vpop.f32.mrf.mxu0
      %v2276 = vadd.f32 0.0, %v2275
      %2277 = vmatmul.bf16.gmra.mxu0 %v1701
      %v2278 = vpop.f32.mrf.mxu0
      %v2279 = vadd.f32 0.0, %v2278
      %v2280 = vpop.f32.mrf.mxu0
      %v2281 = vadd.f32 0.0, %v2280
      %2282 = vmatmul.bf16.gmra.mxu0 %v1702
      %v2283 = vpop.f32.mrf.mxu0
      %v2284 = vadd.f32 0.0, %v2283
      %v2285 = vpop.f32.mrf.mxu0
      %v2286 = vadd.f32 0.0, %v2285
      %2287 = vmatmul.bf16.gmra.mxu0 %v1703
      %v2288 = vpop.f32.mrf.mxu0
      %v2289 = vadd.f32 0.0, %v2288
      %v2290 = vpop.f32.mrf.mxu0
      %v2291 = vadd.f32 0.0, %v2290
      %2292 = vmatmul.bf16.gmra.mxu0 %v1704
      %v2293 = vpop.f32.mrf.mxu0
      %v2294 = vadd.f32 0.0, %v2293
      %v2295 = vpop.f32.mrf.mxu0
      %v2296 = vadd.f32 0.0, %v2295
      %2297 = vmatmul.bf16.gmra.mxu0 %v1705
      %v2298 = vpop.f32.mrf.mxu0
      %v2299 = vadd.f32 0.0, %v2298
      %v2300 = vpop.f32.mrf.mxu0
      %v2301 = vadd.f32 0.0, %v2300
      %2302 = vmatmul.bf16.gmra.mxu0 %v1706
      %v2303 = vpop.f32.mrf.mxu0
      %v2304 = vadd.f32 0.0, %v2303
      %v2305 = vpop.f32.mrf.mxu0
      %v2306 = vadd.f32 0.0, %v2305
      %2307 = vmatmul.bf16.gmra.mxu0 %v1707
      %v2308 = vpop.f32.mrf.mxu0
      %v2309 = vadd.f32 0.0, %v2308
      %v2310 = vpop.f32.mrf.mxu0
      %v2311 = vadd.f32 0.0, %v2310
      %2312 = vmatmul.bf16.gmra.mxu0 %v1708
      %v2313 = vpop.f32.mrf.mxu0
      %v2314 = vadd.f32 0.0, %v2313
      %v2315 = vpop.f32.mrf.mxu0
      %v2316 = vadd.f32 0.0, %v2315
      %2317 = vmatmul.bf16.gmra.mxu0 %v1709
      %v2318 = vpop.f32.mrf.mxu0
      %v2319 = vadd.f32 0.0, %v2318
      %v2320 = vpop.f32.mrf.mxu0
      %v2321 = vadd.f32 0.0, %v2320
      %2322 = vmatmul.bf16.gmra.mxu0 %v1710
      %v2323 = vpop.f32.mrf.mxu0
      %v2324 = vadd.f32 0.0, %v2323
      %v2325 = vpop.f32.mrf.mxu0
      %v2326 = vadd.f32 0.0, %v2325
      %2327 = vmatmul.bf16.gmra.mxu0 %v1711
      %v2328 = vpop.f32.mrf.mxu0
      %v2329 = vadd.f32 0.0, %v2328
      %v2330 = vpop.f32.mrf.mxu0
      %v2331 = vadd.f32 0.0, %v2330
      %2332 = vmatmul.bf16.gmra.mxu0 %v1712
      %v2333 = vpop.f32.mrf.mxu0
      %v2334 = vadd.f32 0.0, %v2333
      %v2335 = vpop.f32.mrf.mxu0
      %v2336 = vadd.f32 0.0, %v2335
      %2337 = vmatmul.bf16.gmra.mxu0 %v1713
      %v2338 = vpop.f32.mrf.mxu0
      %v2339 = vadd.f32 0.0, %v2338
      %v2340 = vpop.f32.mrf.mxu0
      %v2341 = vadd.f32 0.0, %v2340
      %2342 = vmatmul.bf16.gmra.mxu0 %v1714
      %v2343 = vpop.f32.mrf.mxu0
      %v2344 = vadd.f32 0.0, %v2343
      %v2345 = vpop.f32.mrf.mxu0
      %v2346 = vadd.f32 0.0, %v2345
      %2347 = vmatmul.bf16.gmra.mxu0 %v1715
      %v2348 = vpop.f32.mrf.mxu0
      %v2349 = vadd.f32 0.0, %v2348
      %v2350 = vpop.f32.mrf.mxu0
      %v2351 = vadd.f32 0.0, %v2350
      %2352 = vmatmul.bf16.gmra.mxu0 %v1716
      %v2353 = vpop.f32.mrf.mxu0
      %v2354 = vadd.f32 0.0, %v2353
      %v2355 = vpop.f32.mrf.mxu0
      %v2356 = vadd.f32 0.0, %v2355
      %2357 = vmatmul.bf16.gmra.mxu0 %v1717
      %v2358 = vpop.f32.mrf.mxu0
      %v2359 = vadd.f32 0.0, %v2358
      %v2360 = vpop.f32.mrf.mxu0
      %v2361 = vadd.f32 0.0, %v2360
      %2362 = vmatmul.bf16.gmra.mxu0 %v1718
      %v2363 = vpop.f32.mrf.mxu0
      %v2364 = vadd.f32 0.0, %v2363
      %v2365 = vpop.f32.mrf.mxu0
      %v2366 = vadd.f32 0.0, %v2365
      %2367 = vmatmul.bf16.gmra.mxu0 %v1719
      %v2368 = vpop.f32.mrf.mxu0
      %v2369 = vadd.f32 0.0, %v2368
      %v2370 = vpop.f32.mrf.mxu0
      %v2371 = vadd.f32 0.0, %v2370
      %2372 = vmatmul.bf16.gmra.mxu0 %v1720
      %v2373 = vpop.f32.mrf.mxu0
      %v2374 = vadd.f32 0.0, %v2373
      %v2375 = vpop.f32.mrf.mxu0
      %v2376 = vadd.f32 0.0, %v2375
      %2377 = vmatmul.bf16.gmra.mxu0 %v1721
      %v2378 = vpop.f32.mrf.mxu0
      %v2379 = vadd.f32 0.0, %v2378
      %v2380 = vpop.f32.mrf.mxu0
      %v2381 = vadd.f32 0.0, %v2380
      %2382 = vmatmul.bf16.gmra.mxu0 %v1722
      %v2383 = vpop.f32.mrf.mxu0
      %v2384 = vadd.f32 0.0, %v2383
      %v2385 = vpop.f32.mrf.mxu0
      %v2386 = vadd.f32 0.0, %v2385
      %2387 = vmatmul.bf16.gmra.mxu0 %v1723
      %v2388 = vpop.f32.mrf.mxu0
      %v2389 = vadd.f32 0.0, %v2388
      %v2390 = vpop.f32.mrf.mxu0
      %v2391 = vadd.f32 0.0, %v2390
      %2392 = vmatmul.bf16.gmra.mxu0 %v1724
      %v2393 = vpop.f32.mrf.mxu0
      %v2394 = vadd.f32 0.0, %v2393
      %v2395 = vpop.f32.mrf.mxu0
      %v2396 = vadd.f32 0.0, %v2395
      %2397 = vmatmul.bf16.gmra.mxu0 %v1725
      %v2398 = vpop.f32.mrf.mxu0
      %v2399 = vadd.f32 0.0, %v2398
      %v2400 = vpop.f32.mrf.mxu0
      %v2401 = vadd.f32 0.0, %v2400
      %2402 = vmatmul.bf16.gmra.mxu0 %v1726
      %v2403 = vpop.f32.mrf.mxu0
      %v2404 = vadd.f32 0.0, %v2403
      %v2405 = vpop.f32.mrf.mxu0
      %v2406 = vadd.f32 0.0, %v2405
      %2407 = vmatmul.bf16.gmra.mxu0 %v1727
      %v2408 = vpop.f32.mrf.mxu0
      %v2409 = vadd.f32 0.0, %v2408
      %v2410 = vpop.f32.mrf.mxu0
      %v2411 = vadd.f32 0.0, %v2410
      %2412 = vmatmul.bf16.gmra.mxu0 %v1728
      %v2413 = vpop.f32.mrf.mxu0
      %v2414 = vadd.f32 0.0, %v2413
      %v2415 = vpop.f32.mrf.mxu0
      %v2416 = vadd.f32 0.0, %v2415
      %2417 = vmatmul.bf16.gmra.mxu0 %v1729
      %v2418 = vpop.f32.mrf.mxu0
      %v2419 = vadd.f32 0.0, %v2418
      %v2420 = vpop.f32.mrf.mxu0
      %v2421 = vadd.f32 0.0, %v2420
      %2422 = vmatmul.bf16.gmra.mxu0 %v1730
      %v2423 = vpop.f32.mrf.mxu0
      %v2424 = vadd.f32 0.0, %v2423
      %v2425 = vpop.f32.mrf.mxu0
      %v2426 = vadd.f32 0.0, %v2425
      %2427 = vmatmul.bf16.gmra.mxu0 %v1731
      %v2428 = vpop.f32.mrf.mxu0
      %v2429 = vadd.f32 0.0, %v2428
      %v2430 = vpop.f32.mrf.mxu0
      %v2431 = vadd.f32 0.0, %v2430
      %2432 = vmatmul.bf16.gmra.mxu0 %v1732
      %v2433 = vpop.f32.mrf.mxu0
      %v2434 = vadd.f32 0.0, %v2433
      %v2435 = vpop.f32.mrf.mxu0
      %v2436 = vadd.f32 0.0, %v2435
      %2437 = vmatmul.bf16.gmra.mxu0 %v1733
      %v2438 = vpop.f32.mrf.mxu0
      %v2439 = vadd.f32 0.0, %v2438
      %v2440 = vpop.f32.mrf.mxu0
      %v2441 = vadd.f32 0.0, %v2440
      %2442 = vmatmul.bf16.gmra.mxu0 %v1734
      %v2443 = vpop.f32.mrf.mxu0
      %v2444 = vadd.f32 0.0, %v2443
      %v2445 = vpop.f32.mrf.mxu0
      %v2446 = vadd.f32 0.0, %v2445
      %2447 = vmatmul.bf16.gmra.mxu0 %v1735
      %v2448 = vpop.f32.mrf.mxu0
      %v2449 = vadd.f32 0.0, %v2448
      %v2450 = vpop.f32.mrf.mxu0
      %v2451 = vadd.f32 0.0, %v2450
      %2452 = vmatmul.bf16.gmra.mxu0 %v1736
      %v2453 = vpop.f32.mrf.mxu0
      %v2454 = vadd.f32 0.0, %v2453
      %v2455 = vpop.f32.mrf.mxu0
      %v2456 = vadd.f32 0.0, %v2455
      %2457 = vmatmul.bf16.gmra.mxu0 %v1737
      %v2458 = vpop.f32.mrf.mxu0
      %v2459 = vadd.f32 0.0, %v2458
      %v2460 = vpop.f32.mrf.mxu0
      %v2461 = vadd.f32 0.0, %v2460
      %2462 = vmatmul.bf16.gmra.mxu0 %v1738
      %v2463 = vpop.f32.mrf.mxu0
      %v2464 = vadd.f32 0.0, %v2463
      %v2465 = vpop.f32.mrf.mxu0
      %v2466 = vadd.f32 0.0, %v2465
      %2467 = vmatmul.bf16.gmra.mxu0 %v1739
      %v2468 = vpop.f32.mrf.mxu0
      %v2469 = vadd.f32 0.0, %v2468
      %v2470 = vpop.f32.mrf.mxu0
      %v2471 = vadd.f32 0.0, %v2470
      %2472 = vmatmul.bf16.gmra.mxu0 %v1740
      %v2473 = vpop.f32.mrf.mxu0
      %v2474 = vadd.f32 0.0, %v2473
      %v2475 = vpop.f32.mrf.mxu0
      %v2476 = vadd.f32 0.0, %v2475
      %2477 = vmatmul.bf16.gmra.mxu0 %v1741
      %v2478 = vpop.f32.mrf.mxu0
      %v2479 = vadd.f32 0.0, %v2478
      %v2480 = vpop.f32.mrf.mxu0
      %v2481 = vadd.f32 0.0, %v2480
      %2482 = vmatmul.bf16.gmra.mxu0 %v1742
      %v2483 = vpop.f32.mrf.mxu0
      %v2484 = vadd.f32 0.0, %v2483
      %v2485 = vpop.f32.mrf.mxu0
      %v2486 = vadd.f32 0.0, %v2485
      %2487 = vmatmul.bf16.gmra.mxu0 %v1743
      %v2488 = vpop.f32.mrf.mxu0
      %v2489 = vadd.f32 0.0, %v2488
      %v2490 = vpop.f32.mrf.mxu0
      %v2491 = vadd.f32 0.0, %v2490
      %2492 = vmatmul.bf16.gmra.mxu0 %v1744
      %v2493 = vpop.f32.mrf.mxu0
      %v2494 = vadd.f32 0.0, %v2493
      %v2495 = vpop.f32.mrf.mxu0
      %v2496 = vadd.f32 0.0, %v2495
      %2497 = vmatmul.bf16.gmra.mxu0 %v1745
      %v2498 = vpop.f32.mrf.mxu0
      %v2499 = vadd.f32 0.0, %v2498
      %v2500 = vpop.f32.mrf.mxu0
      %v2501 = vadd.f32 0.0, %v2500
      %2502 = vmatmul.bf16.gmra.mxu0 %v1746
      %v2503 = vpop.f32.mrf.mxu0
      %v2504 = vadd.f32 0.0, %v2503
      %v2505 = vpop.f32.mrf.mxu0
      %v2506 = vadd.f32 0.0, %v2505
      %2507 = vmatmul.bf16.gmra.mxu0 %v1747
      %v2508 = vpop.f32.mrf.mxu0
      %v2509 = vadd.f32 0.0, %v2508
      %v2510 = vpop.f32.mrf.mxu0
      %v2511 = vadd.f32 0.0, %v2510
      %2512 = vmatmul.bf16.gmra.mxu0 %v1748
      %v2513 = vpop.f32.mrf.mxu0
      %v2514 = vadd.f32 0.0, %v2513
      %v2515 = vpop.f32.mrf.mxu0
      %v2516 = vadd.f32 0.0, %v2515
      %2517 = vmatmul.bf16.gmra.mxu0 %v1749
      %v2518 = vpop.f32.mrf.mxu0
      %v2519 = vadd.f32 0.0, %v2518
      %v2520 = vpop.f32.mrf.mxu0
      %v2521 = vadd.f32 0.0, %v2520
      %2522 = vmatmul.bf16.gmra.mxu0 %v1750
      %v2523 = vpop.f32.mrf.mxu0
      %v2524 = vadd.f32 0.0, %v2523
      %v2525 = vpop.f32.mrf.mxu0
      %v2526 = vadd.f32 0.0, %v2525
      %2527 = vmatmul.bf16.gmra.mxu0 %v1751
      %v2528 = vpop.f32.mrf.mxu0
      %v2529 = vadd.f32 0.0, %v2528
      %v2530 = vpop.f32.mrf.mxu0
      %v2531 = vadd.f32 0.0, %v2530
      %2532 = vmatmul.bf16.gmra.mxu0 %v1752
      %v2533 = vpop.f32.mrf.mxu0
      %v2534 = vadd.f32 0.0, %v2533
      %v2535 = vpop.f32.mrf.mxu0
      %v2536 = vadd.f32 0.0, %v2535
      %2537 = vmatmul.bf16.gmra.mxu0 %v1753
      %v2538 = vpop.f32.mrf.mxu0
      %v2539 = vadd.f32 0.0, %v2538
      %v2540 = vpop.f32.mrf.mxu0
      %v2541 = vadd.f32 0.0, %v2540
      %2542 = vmatmul.bf16.gmra.mxu0 %v1754
      %v2543 = vpop.f32.mrf.mxu0
      %v2544 = vadd.f32 0.0, %v2543
      %v2545 = vpop.f32.mrf.mxu0
      %v2546 = vadd.f32 0.0, %v2545
      %2547 = vmatmul.bf16.gmra.mxu0 %v1755
      %v2548 = vpop.f32.mrf.mxu0
      %v2549 = vadd.f32 0.0, %v2548
      %v2550 = vpop.f32.mrf.mxu0
      %v2551 = vadd.f32 0.0, %v2550
      %2552 = vmatmul.bf16.gmra.mxu0 %v1756
      %v2553 = vpop.f32.mrf.mxu0
      %v2554 = vadd.f32 0.0, %v2553
      %v2555 = vpop.f32.mrf.mxu0
      %v2556 = vadd.f32 0.0, %v2555
      %2557 = vmatmul.bf16.gmra.mxu0 %v1757
      %v2558 = vpop.f32.mrf.mxu0
      %v2559 = vadd.f32 0.0, %v2558
      %v2560 = vpop.f32.mrf.mxu0
      %v2561 = vadd.f32 0.0, %v2560
      %2562 = vmatmul.bf16.gmra.mxu0 %v1758
      %v2563 = vpop.f32.mrf.mxu0
      %v2564 = vadd.f32 0.0, %v2563
      %v2565 = vpop.f32.mrf.mxu0
      %v2566 = vadd.f32 0.0, %v2565
      %2567 = vmatmul.bf16.gmra.mxu0 %v1759
      %v2568 = vpop.f32.mrf.mxu0
      %v2569 = vadd.f32 0.0, %v2568
      %v2570 = vpop.f32.mrf.mxu0
      %v2571 = vadd.f32 0.0, %v2570
      %2572 = vmatmul.bf16.gmra.mxu0 %v1760
      %v2573 = vpop.f32.mrf.mxu0
      %v2574 = vadd.f32 0.0, %v2573
      %v2575 = vpop.f32.mrf.mxu0
      %v2576 = vadd.f32 0.0, %v2575
      %2577 = vmatmul.bf16.gmra.mxu0 %v1761
      %v2578 = vpop.f32.mrf.mxu0
      %v2579 = vadd.f32 0.0, %v2578
      %v2580 = vpop.f32.mrf.mxu0
      %v2581 = vadd.f32 0.0, %v2580
      %2582 = vmatmul.bf16.gmra.mxu0 %v1762
      %v2583 = vpop.f32.mrf.mxu0
      %v2584 = vadd.f32 0.0, %v2583
      %v2585 = vpop.f32.mrf.mxu0
      %v2586 = vadd.f32 0.0, %v2585
      %2587 = vmatmul.bf16.gmra.mxu0 %v1763
      %v2588 = vpop.f32.mrf.mxu0
      %v2589 = vadd.f32 0.0, %v2588
      %v2590 = vpop.f32.mrf.mxu0
      %v2591 = vadd.f32 0.0, %v2590
      %2592 = vmatmul.bf16.gmra.mxu0 %v1764
      %v2593 = vpop.f32.mrf.mxu0
      %v2594 = vadd.f32 0.0, %v2593
      %v2595 = vpop.f32.mrf.mxu0
      %v2596 = vadd.f32 0.0, %v2595
      %2597 = vmatmul.bf16.gmra.mxu0 %v1765
      %v2598 = vpop.f32.mrf.mxu0
      %v2599 = vadd.f32 0.0, %v2598
      %v2600 = vpop.f32.mrf.mxu0
      %v2601 = vadd.f32 0.0, %v2600
      %2602 = vmatmul.bf16.gmra.mxu0 %v1766
      %v2603 = vpop.f32.mrf.mxu0
      %v2604 = vadd.f32 0.0, %v2603
      %v2605 = vpop.f32.mrf.mxu0
      %v2606 = vadd.f32 0.0, %v2605
      %2607 = vmatmul.bf16.gmra.mxu0 %v1767
      %v2608 = vpop.f32.mrf.mxu0
      %v2609 = vadd.f32 0.0, %v2608
      %v2610 = vpop.f32.mrf.mxu0
      %v2611 = vadd.f32 0.0, %v2610
      %2612 = vmatmul.bf16.gmra.mxu0 %v1768
      %v2613 = vpop.f32.mrf.mxu0
      %v2614 = vadd.f32 0.0, %v2613
      %v2615 = vpop.f32.mrf.mxu0
      %v2616 = vadd.f32 0.0, %v2615
      %2617 = vmatmul.bf16.gmra.mxu0 %v1769
      %v2618 = vpop.f32.mrf.mxu0
      %v2619 = vadd.f32 0.0, %v2618
      %v2620 = vpop.f32.mrf.mxu0
      %v2621 = vadd.f32 0.0, %v2620
      %2622 = vmatmul.bf16.gmra.mxu0 %v1770
      %v2623 = vpop.f32.mrf.mxu0
      %v2624 = vadd.f32 0.0, %v2623
      %v2625 = vpop.f32.mrf.mxu0
      %v2626 = vadd.f32 0.0, %v2625
      %2627 = vmatmul.bf16.gmra.mxu0 %v1771
      %v2628 = vpop.f32.mrf.mxu0
      %v2629 = vadd.f32 0.0, %v2628
      %v2630 = vpop.f32.mrf.mxu0
      %v2631 = vadd.f32 0.0, %v2630
      %2632 = vmatmul.bf16.gmra.mxu0 %v1772
      %v2633 = vpop.f32.mrf.mxu0
      %v2634 = vadd.f32 0.0, %v2633
      %v2635 = vpop.f32.mrf.mxu0
      %v2636 = vadd.f32 0.0, %v2635
      %2637 = vmatmul.bf16.gmra.mxu0 %v1773
      %v2638 = vpop.f32.mrf.mxu0
      %v2639 = vadd.f32 0.0, %v2638
      %v2640 = vpop.f32.mrf.mxu0
      %v2641 = vadd.f32 0.0, %v2640
      %2642 = vmatmul.bf16.gmra.mxu0 %v1774
      %v2643 = vpop.f32.mrf.mxu0
      %v2644 = vadd.f32 0.0, %v2643
      %v2645 = vpop.f32.mrf.mxu0
      %v2646 = vadd.f32 0.0, %v2645
      %2647 = vmatmul.bf16.gmra.mxu0 %v1775
      %v2648 = vpop.f32.mrf.mxu0
      %v2649 = vadd.f32 0.0, %v2648
      %v2650 = vpop.f32.mrf.mxu0
      %v2651 = vadd.f32 0.0, %v2650
      %2652 = vmatmul.bf16.gmra.mxu0 %v1776
      %v2653 = vpop.f32.mrf.mxu0
      %v2654 = vadd.f32 0.0, %v2653
      %v2655 = vpop.f32.mrf.mxu0
      %v2656 = vadd.f32 0.0, %v2655
      %2657 = vmatmul.bf16.gmra.mxu0 %v1777
      %v2658 = vpop.f32.mrf.mxu0
      %v2659 = vadd.f32 0.0, %v2658
      %v2660 = vpop.f32.mrf.mxu0
      %v2661 = vadd.f32 0.0, %v2660
      %2662 = vmatmul.bf16.gmra.mxu0 %v1778
      %v2663 = vpop.f32.mrf.mxu0
      %v2664 = vadd.f32 0.0, %v2663
      %v2665 = vpop.f32.mrf.mxu0
      %v2666 = vadd.f32 0.0, %v2665
      %2667 = vmatmul.bf16.gmra.mxu0 %v1779
      %v2668 = vpop.f32.mrf.mxu0
      %v2669 = vadd.f32 0.0, %v2668
      %v2670 = vpop.f32.mrf.mxu0
      %v2671 = vadd.f32 0.0, %v2670
      %2672 = vmatmul.bf16.gmra.mxu0 %v1780
      %v2673 = vpop.f32.mrf.mxu0
      %v2674 = vadd.f32 0.0, %v2673
      %v2675 = vpop.f32.mrf.mxu0
      %v2676 = vadd.f32 0.0, %v2675
      %2677 = vmatmul.bf16.gmra.mxu0 %v1781
      %v2678 = vpop.f32.mrf.mxu0
      %v2679 = vadd.f32 0.0, %v2678
      %v2680 = vpop.f32.mrf.mxu0
      %v2681 = vadd.f32 0.0, %v2680
      %2682 = vmatmul.bf16.gmra.mxu0 %v1782
      %v2683 = vpop.f32.mrf.mxu0
      %v2684 = vadd.f32 0.0, %v2683
      %v2685 = vpop.f32.mrf.mxu0
      %v2686 = vadd.f32 0.0, %v2685
      %2687 = vmatmul.bf16.gmra.mxu0 %v1783
      %v2688 = vpop.f32.mrf.mxu0
      %v2689 = vadd.f32 0.0, %v2688
      %v2690 = vpop.f32.mrf.mxu0
      %v2691 = vadd.f32 0.0, %v2690
      %2692 = vmatmul.bf16.gmra.mxu0 %v1784
      %v2693 = vpop.f32.mrf.mxu0
      %v2694 = vadd.f32 0.0, %v2693
      %v2695 = vpop.f32.mrf.mxu0
      %v2696 = vadd.f32 0.0, %v2695
      %2697 = vmatmul.bf16.gmra.mxu0 %v1785
      %v2698 = vpop.f32.mrf.mxu0
      %v2699 = vadd.f32 0.0, %v2698
      %v2700 = vpop.f32.mrf.mxu0
      %v2701 = vadd.f32 0.0, %v2700
      %2702 = vmatmul.bf16.gmra.mxu0 %v1786
      %v2703 = vpop.f32.mrf.mxu0
      %v2704 = vadd.f32 0.0, %v2703
      %v2705 = vpop.f32.mrf.mxu0
      %v2706 = vadd.f32 0.0, %v2705
      %2707 = vmatmul.bf16.gmra.mxu0 %v1787
      %v2708 = vpop.f32.mrf.mxu0
      %v2709 = vadd.f32 0.0, %v2708
      %v2710 = vpop.f32.mrf.mxu0
      %v2711 = vadd.f32 0.0, %v2710
      %2712 = vmatmul.bf16.gmra.mxu0 %v1788
      %v2713 = vpop.f32.mrf.mxu0
      %v2714 = vadd.f32 0.0, %v2713
      %v2715 = vpop.f32.mrf.mxu0
      %v2716 = vadd.f32 0.0, %v2715
      %2717 = vmatmul.bf16.gmra.mxu0 %v1789
      %v2718 = vpop.f32.mrf.mxu0
      %v2719 = vadd.f32 0.0, %v2718
      %v2720 = vpop.f32.mrf.mxu0
      %v2721 = vadd.f32 0.0, %v2720
      %2722 = vmatmul.bf16.gmra.mxu0 %v1790
      %v2723 = vpop.f32.mrf.mxu0
      %v2724 = vadd.f32 0.0, %v2723
      %v2725 = vpop.f32.mrf.mxu0
      %v2726 = vadd.f32 0.0, %v2725
      %2727 = vmatmul.bf16.gmra.mxu0 %v1791
      %v2728 = vpop.f32.mrf.mxu0
      %v2729 = vadd.f32 0.0, %v2728
      %v2730 = vpop.f32.mrf.mxu0
      %v2731 = vadd.f32 0.0, %v2730
      %2732 = vmatmul.bf16.gmra.mxu0 %v1792
      %v2733 = vpop.f32.mrf.mxu0
      %v2734 = vadd.f32 0.0, %v2733
      %v2735 = vpop.f32.mrf.mxu0
      %v2736 = vadd.f32 0.0, %v2735
      %2737 = vmatmul.bf16.gmra.mxu0 %v1793
      %v2738 = vpop.f32.mrf.mxu0
      %v2739 = vadd.f32 0.0, %v2738
      %v2740 = vpop.f32.mrf.mxu0
      %v2741 = vadd.f32 0.0, %v2740
      %2742 = vmatmul.bf16.gmra.mxu0 %v1794
      %v2743 = vpop.f32.mrf.mxu0
      %v2744 = vadd.f32 0.0, %v2743
      %v2745 = vpop.f32.mrf.mxu0
      %v2746 = vadd.f32 0.0, %v2745
      %2747 = vmatmul.bf16.gmra.mxu0 %v1795
      %v2748 = vpop.f32.mrf.mxu0
      %v2749 = vadd.f32 0.0, %v2748
      %v2750 = vpop.f32.mrf.mxu0
      %v2751 = vadd.f32 0.0, %v2750
      %2752 = vmatmul.bf16.gmra.mxu0 %v1796
      %v2753 = vpop.f32.mrf.mxu0
      %v2754 = vadd.f32 0.0, %v2753
      %v2755 = vpop.f32.mrf.mxu0
      %v2756 = vadd.f32 0.0, %v2755
      %2757 = vmatmul.bf16.gmra.mxu0 %v1797
      %v2758 = vpop.f32.mrf.mxu0
      %v2759 = vadd.f32 0.0, %v2758
      %v2760 = vpop.f32.mrf.mxu0
      %v2761 = vadd.f32 0.0, %v2760
      %2762 = vmatmul.bf16.gmra.mxu0 %v1798
      %v2763 = vpop.f32.mrf.mxu0
      %v2764 = vadd.f32 0.0, %v2763
      %v2765 = vpop.f32.mrf.mxu0
      %v2766 = vadd.f32 0.0, %v2765
      %2767 = vmatmul.bf16.gmra.mxu0 %v1799
      %v2768 = vpop.f32.mrf.mxu0
      %v2769 = vadd.f32 0.0, %v2768
      %v2770 = vpop.f32.mrf.mxu0
      %v2771 = vadd.f32 0.0, %v2770
      %2772 = vmatmul.bf16.gmra.mxu0 %v1800
      %v2773 = vpop.f32.mrf.mxu0
      %v2774 = vadd.f32 0.0, %v2773
      %v2775 = vpop.f32.mrf.mxu0
      %v2776 = vadd.f32 0.0, %v2775
      %2777 = vmatmul.bf16.gmra.mxu0 %v1801
      %v2778 = vpop.f32.mrf.mxu0
      %v2779 = vadd.f32 0.0, %v2778
      %v2780 = vpop.f32.mrf.mxu0
      %v2781 = vadd.f32 0.0, %v2780
      %2782 = vmatmul.bf16.gmra.mxu0 %v1802
      %v2783 = vpop.f32.mrf.mxu0
      %v2784 = vadd.f32 0.0, %v2783
      %v2785 = vpop.f32.mrf.mxu0
      %v2786 = vadd.f32 0.0, %v2785
      %2787 = vmatmul.bf16.gmra.mxu0 %v1803
      %v2788 = vpop.f32.mrf.mxu0
      %v2789 = vadd.f32 0.0, %v2788
      %v2790 = vpop.f32.mrf.mxu0
      %v2791 = vadd.f32 0.0, %v2790
      %2792 = vmatmul.bf16.gmra.mxu0 %v1804
      %v2793 = vpop.f32.mrf.mxu0
      %v2794 = vadd.f32 0.0, %v2793
      %v2795 = vpop.f32.mrf.mxu0
      %v2796 = vadd.f32 0.0, %v2795
      %2797 = vmatmul.bf16.gmra.mxu0 %v1805
      %v2798 = vpop.f32.mrf.mxu0
      %v2799 = vadd.f32 0.0, %v2798
      %v2800 = vpop.f32.mrf.mxu0
      %v2801 = vadd.f32 0.0, %v2800
      %2802 = vmatmul.bf16.gmra.mxu0 %v1806
      %v2803 = vpop.f32.mrf.mxu0
      %v2804 = vadd.f32 0.0, %v2803
      %v2805 = vpop.f32.mrf.mxu0
      %v2806 = vadd.f32 0.0, %v2805
      %2807 = vmatmul.bf16.gmra.mxu0 %v1807
      %v2808 = vpop.f32.mrf.mxu0
      %v2809 = vadd.f32 0.0, %v2808
      %v2810 = vpop.f32.mrf.mxu0
      %v2811 = vadd.f32 0.0, %v2810
      %2812 = vmatmul.bf16.gmra.mxu0 %v1808
      %v2813 = vpop.f32.mrf.mxu0
      %v2814 = vadd.f32 0.0, %v2813
      %v2815 = vpop.f32.mrf.mxu0
      %v2816 = vadd.f32 0.0, %v2815
      %2817 = vmatmul.bf16.gmra.mxu0 %v1809
      %v2818 = vpop.f32.mrf.mxu0
      %v2819 = vadd.f32 0.0, %v2818
      %v2820 = vpop.f32.mrf.mxu0
      %v2821 = vadd.f32 0.0, %v2820
      %2822 = vmatmul.bf16.gmra.mxu0 %v1810
      %v2823 = vpop.f32.mrf.mxu0
      %v2824 = vadd.f32 0.0, %v2823
      %v2825 = vpop.f32.mrf.mxu0
      %v2826 = vadd.f32 0.0, %v2825
      %2827 = vmatmul.bf16.gmra.mxu0 %v1811
      %v2828 = vpop.f32.mrf.mxu0
      %v2829 = vadd.f32 0.0, %v2828
      %v2830 = vpop.f32.mrf.mxu0
      %v2831 = vadd.f32 0.0, %v2830
      %2832 = vmatmul.bf16.gmra.mxu0 %v1812
      %v2833 = vpop.f32.mrf.mxu0
      %v2834 = vadd.f32 0.0, %v2833
      %v2835 = vpop.f32.mrf.mxu0
      %v2836 = vadd.f32 0.0, %v2835
      %2837 = vmatmul.bf16.gmra.mxu0 %v1813
      %v2838 = vpop.f32.mrf.mxu0
      %v2839 = vadd.f32 0.0, %v2838
      %v2840 = vpop.f32.mrf.mxu0
      %v2841 = vadd.f32 0.0, %v2840
      %2842 = vmatmul.bf16.gmra.mxu0 %v1814
      %v2843 = vpop.f32.mrf.mxu0
      %v2844 = vadd.f32 0.0, %v2843
      %v2845 = vpop.f32.mrf.mxu0
      %v2846 = vadd.f32 0.0, %v2845
      %2847 = vmatmul.bf16.gmra.mxu0 %v1815
      %v2848 = vpop.f32.mrf.mxu0
      %v2849 = vadd.f32 0.0, %v2848
      %v2850 = vpop.f32.mrf.mxu0
      %v2851 = vadd.f32 0.0, %v2850
      %2852 = vmatmul.bf16.gmra.mxu0 %v1816
      %v2853 = vpop.f32.mrf.mxu0
      %v2854 = vadd.f32 0.0, %v2853
      %v2855 = vpop.f32.mrf.mxu0
      %v2856 = vadd.f32 0.0, %v2855
      %2857 = vmatmul.bf16.gmra.mxu0 %v1817
      %v2858 = vpop.f32.mrf.mxu0
      %v2859 = vadd.f32 0.0, %v2858
      %v2860 = vpop.f32.mrf.mxu0
      %v2861 = vadd.f32 0.0, %v2860
      %2862 = vmatmul.bf16.gmra.mxu0 %v1818
      %v2863 = vpop.f32.mrf.mxu0
      %v2864 = vadd.f32 0.0, %v2863
      %v2865 = vpop.f32.mrf.mxu0
      %v2866 = vadd.f32 0.0, %v2865
      %2867 = vmatmul.bf16.gmra.mxu0 %v1819
      %v2868 = vpop.f32.mrf.mxu0
      %v2869 = vadd.f32 0.0, %v2868
      %v2870 = vpop.f32.mrf.mxu0
      %v2871 = vadd.f32 0.0, %v2870
      %2872 = vmatmul.bf16.gmra.mxu0 %v1820
      %v2873 = vpop.f32.mrf.mxu0
      %v2874 = vadd.f32 0.0, %v2873
      %v2875 = vpop.f32.mrf.mxu0
      %v2876 = vadd.f32 0.0, %v2875
      %2877 = vmatmul.bf16.gmra.mxu0 %v1821
      %v2878 = vpop.f32.mrf.mxu0
      %v2879 = vadd.f32 0.0, %v2878
      %v2880 = vpop.f32.mrf.mxu0
      %v2881 = vadd.f32 0.0, %v2880
      %2882 = vmatmul.bf16.gmra.mxu0 %v1822
      %v2883 = vpop.f32.mrf.mxu0
      %v2884 = vadd.f32 0.0, %v2883
      %v2885 = vpop.f32.mrf.mxu0
      %v2886 = vadd.f32 0.0, %v2885
      %2887 = vmatmul.bf16.gmra.mxu0 %v1823
      %v2888 = vpop.f32.mrf.mxu0
      %v2889 = vadd.f32 0.0, %v2888
      %v2890 = vpop.f32.mrf.mxu0
      %v2891 = vadd.f32 0.0, %v2890
      %2892 = vmatmul.bf16.gmra.mxu0 %v1824
      %v2893 = vpop.f32.mrf.mxu0
      %v2894 = vadd.f32 0.0, %v2893
      %v2895 = vpop.f32.mrf.mxu0
      %v2896 = vadd.f32 0.0, %v2895
      %2897 = vmatmul.bf16.gmra.mxu0 %v1825
      %v2898 = vpop.f32.mrf.mxu0
      %v2899 = vadd.f32 0.0, %v2898
      %v2900 = vpop.f32.mrf.mxu0
      %v2901 = vadd.f32 0.0, %v2900
      %2902 = vmatmul.bf16.gmra.mxu0 %v1826
      %v2903 = vpop.f32.mrf.mxu0
      %v2904 = vadd.f32 0.0, %v2903
      %v2905 = vpop.f32.mrf.mxu0
      %v2906 = vadd.f32 0.0, %v2905
      %2907 = vmatmul.bf16.gmra.mxu0 %v1827
      %v2908 = vpop.f32.mrf.mxu0
      %v2909 = vadd.f32 0.0, %v2908
      %v2910 = vpop.f32.mrf.mxu0
      %v2911 = vadd.f32 0.0, %v2910
      %2912 = vmatmul.bf16.gmra.mxu0 %v1828
      %v2913 = vpop.f32.mrf.mxu0
      %v2914 = vadd.f32 0.0, %v2913
      %v2915 = vpop.f32.mrf.mxu0
      %v2916 = vadd.f32 0.0, %v2915
      %2917 = vmatmul.bf16.gmra.mxu0 %v1829
      %v2918 = vpop.f32.mrf.mxu0
      %v2919 = vadd.f32 0.0, %v2918
      %v2920 = vpop.f32.mrf.mxu0
      %v2921 = vadd.f32 0.0, %v2920
      %2922 = vmatmul.bf16.gmra.mxu0 %v1830
      %v2923 = vpop.f32.mrf.mxu0
      %v2924 = vadd.f32 0.0, %v2923
      %v2925 = vpop.f32.mrf.mxu0
      %v2926 = vadd.f32 0.0, %v2925
      %2927 = vmatmul.bf16.gmra.mxu0 %v1831
      %v2928 = vpop.f32.mrf.mxu0
      %v2929 = vadd.f32 0.0, %v2928
      %v2930 = vpop.f32.mrf.mxu0
      %v2931 = vadd.f32 0.0, %v2930
      %2932 = vmatmul.bf16.gmra.mxu0 %v1832
      %v2933 = vpop.f32.mrf.mxu0
      %v2934 = vadd.f32 0.0, %v2933
      %v2935 = vpop.f32.mrf.mxu0
      %v2936 = vadd.f32 0.0, %v2935
      %2937 = vmatmul.bf16.gmra.mxu0 %v1833
      %v2938 = vpop.f32.mrf.mxu0
      %v2939 = vadd.f32 0.0, %v2938
      %v2940 = vpop.f32.mrf.mxu0
      %v2941 = vadd.f32 0.0, %v2940
      %2942 = vmatmul.bf16.gmra.mxu0 %v1834
      %v2943 = vpop.f32.mrf.mxu0
      %v2944 = vadd.f32 0.0, %v2943
      %v2945 = vpop.f32.mrf.mxu0
      %v2946 = vadd.f32 0.0, %v2945
      %2947 = vmatmul.bf16.gmra.mxu0 %v1835
      %v2948 = vpop.f32.mrf.mxu0
      %v2949 = vadd.f32 0.0, %v2948
      %v2950 = vpop.f32.mrf.mxu0
      %v2951 = vadd.f32 0.0, %v2950
      %2952 = vmatmul.bf16.gmra.mxu0 %v1836
      %v2953 = vpop.f32.mrf.mxu0
      %v2954 = vadd.f32 0.0, %v2953
      %v2955 = vpop.f32.mrf.mxu0
      %v2956 = vadd.f32 0.0, %v2955
      %2957 = vmatmul.bf16.gmra.mxu0 %v1837
      %v2958 = vpop.f32.mrf.mxu0
      %v2959 = vadd.f32 0.0, %v2958
      %v2960 = vpop.f32.mrf.mxu0
      %v2961 = vadd.f32 0.0, %v2960
      %2962 = vmatmul.bf16.gmra.mxu0 %v1838
      %v2963 = vpop.f32.mrf.mxu0
      %v2964 = vadd.f32 0.0, %v2963
      %v2965 = vpop.f32.mrf.mxu0
      %v2966 = vadd.f32 0.0, %v2965
      %2967 = vmatmul.bf16.gmra.mxu0 %v1839
      %v2968 = vpop.f32.mrf.mxu0
      %v2969 = vadd.f32 0.0, %v2968
      %v2970 = vpop.f32.mrf.mxu0
      %v2971 = vadd.f32 0.0, %v2970
      %2972 = vmatmul.bf16.gmra.mxu0 %v1840
      %v2973 = vpop.f32.mrf.mxu0
      %v2974 = vadd.f32 0.0, %v2973
      %v2975 = vpop.f32.mrf.mxu0
      %v2976 = vadd.f32 0.0, %v2975
      %2977 = vmatmul.bf16.gmra.mxu0 %v1841
      %v2978 = vpop.f32.mrf.mxu0
      %v2979 = vadd.f32 0.0, %v2978
      %v2980 = vpop.f32.mrf.mxu0
      %v2981 = vadd.f32 0.0, %v2980
      %2982 = vmatmul.bf16.gmra.mxu0 %v1842
      %v2983 = vpop.f32.mrf.mxu0
      %v2984 = vadd.f32 0.0, %v2983
      %v2985 = vpop.f32.mrf.mxu0
      %v2986 = vadd.f32 0.0, %v2985
      %2987 = vmatmul.bf16.gmra.mxu0 %v1843
      %v2988 = vpop.f32.mrf.mxu0
      %v2989 = vadd.f32 0.0, %v2988
      %v2990 = vpop.f32.mrf.mxu0
      %v2991 = vadd.f32 0.0, %v2990
      %2992 = vmatmul.bf16.gmra.mxu0 %v1844
      %v2993 = vpop.f32.mrf.mxu0
      %v2994 = vadd.f32 0.0, %v2993
      %v2995 = vpop.f32.mrf.mxu0
      %v2996 = vadd.f32 0.0, %v2995
      %2997 = vmatmul.bf16.gmra.mxu0 %v1845
      %v2998 = vpop.f32.mrf.mxu0
      %v2999 = vadd.f32 0.0, %v2998
      %v3000 = vpop.f32.mrf.mxu0
      %v3001 = vadd.f32 0.0, %v3000
      %3002 = vmatmul.bf16.gmra.mxu0 %v1846
      %v3003 = vpop.f32.mrf.mxu0
      %v3004 = vadd.f32 0.0, %v3003
      %v3005 = vpop.f32.mrf.mxu0
      %v3006 = vadd.f32 0.0, %v3005
      %3007 = vmatmul.bf16.gmra.mxu0 %v1847
      %v3008 = vpop.f32.mrf.mxu0
      %v3009 = vadd.f32 0.0, %v3008
      %v3010 = vpop.f32.mrf.mxu0
      %v3011 = vadd.f32 0.0, %v3010
      %3012 = vmatmul.bf16.gmra.mxu0 %v1848
      %v3013 = vpop.f32.mrf.mxu0
      %v3014 = vadd.f32 0.0, %v3013
      %v3015 = vpop.f32.mrf.mxu0
      %v3016 = vadd.f32 0.0, %v3015
      %3017 = vmatmul.bf16.gmra.mxu0 %v1849
      %v3018 = vpop.f32.mrf.mxu0
      %v3019 = vadd.f32 0.0, %v3018
      %v3020 = vpop.f32.mrf.mxu0
      %v3021 = vadd.f32 0.0, %v3020
      %3022 = vmatmul.bf16.gmra.mxu0 %v1850
      %v3023 = vpop.f32.mrf.mxu0
      %v3024 = vadd.f32 0.0, %v3023
      %v3025 = vpop.f32.mrf.mxu0
      %v3026 = vadd.f32 0.0, %v3025
      %3027 = vmatmul.bf16.gmra.mxu0 %v1851
      %v3028 = vpop.f32.mrf.mxu0
      %v3029 = vadd.f32 0.0, %v3028
      %v3030 = vpop.f32.mrf.mxu0
      %v3031 = vadd.f32 0.0, %v3030
      %3032 = vmatmul.bf16.gmra.mxu0 %v1852
      %v3033 = vpop.f32.mrf.mxu0
      %v3034 = vadd.f32 0.0, %v3033
      %v3035 = vpop.f32.mrf.mxu0
      %v3036 = vadd.f32 0.0, %v3035
      %3037 = vmatmul.bf16.gmra.mxu0 %v1853
      %v3038 = vpop.f32.mrf.mxu0
      %v3039 = vadd.f32 0.0, %v3038
      %v3040 = vpop.f32.mrf.mxu0
      %v3041 = vadd.f32 0.0, %v3040
      %3042 = vmatmul.bf16.gmra.mxu0 %v1854
      %v3043 = vpop.f32.mrf.mxu0
      %v3044 = vadd.f32 0.0, %v3043
      %v3045 = vpop.f32.mrf.mxu0
      %v3046 = vadd.f32 0.0, %v3045
      %3047 = vmatmul.bf16.gmra.mxu0 %v1855
      %v3048 = vpop.f32.mrf.mxu0
      %v3049 = vadd.f32 0.0, %v3048
      %v3050 = vpop.f32.mrf.mxu0
      %v3051 = vadd.f32 0.0, %v3050
      %3052 = vmatmul.bf16.gmra.mxu0 %v1856
      %v3053 = vpop.f32.mrf.mxu0
      %v3054 = vadd.f32 0.0, %v3053
      %v3055 = vpop.f32.mrf.mxu0
      %v3056 = vadd.f32 0.0, %v3055
      %3057 = vmatmul.bf16.gmra.mxu0 %v1857
      %v3058 = vpop.f32.mrf.mxu0
      %v3059 = vadd.f32 0.0, %v3058
      %v3060 = vpop.f32.mrf.mxu0
      %v3061 = vadd.f32 0.0, %v3060
      %3062 = vmatmul.bf16.gmra.mxu0 %v1858
      %v3063 = vpop.f32.mrf.mxu0
      %v3064 = vadd.f32 0.0, %v3063
      %v3065 = vpop.f32.mrf.mxu0
      %v3066 = vadd.f32 0.0, %v3065
      %3067 = vmatmul.bf16.gmra.mxu0 %v1859
      %v3068 = vpop.f32.mrf.mxu0
      %v3069 = vadd.f32 0.0, %v3068
      %v3070 = vpop.f32.mrf.mxu0
      %v3071 = vadd.f32 0.0, %v3070
      %3072 = vmatmul.bf16.gmra.mxu0 %v1860
      %v3073 = vpop.f32.mrf.mxu0
      %v3074 = vadd.f32 0.0, %v3073
      %v3075 = vpop.f32.mrf.mxu0
      %v3076 = vadd.f32 0.0, %v3075
      %3077 = vmatmul.bf16.gmra.mxu0 %v1861
      %v3078 = vpop.f32.mrf.mxu0
      %v3079 = vadd.f32 0.0, %v3078
      %v3080 = vpop.f32.mrf.mxu0
      %v3081 = vadd.f32 0.0, %v3080
      %3082 = vmatmul.bf16.gmra.mxu0 %v1862
      %v3083 = vpop.f32.mrf.mxu0
      %v3084 = vadd.f32 0.0, %v3083
      %v3085 = vpop.f32.mrf.mxu0
      %v3086 = vadd.f32 0.0, %v3085
      %3087 = vmatmul.bf16.gmra.mxu0 %v1863
      %v3088 = vpop.f32.mrf.mxu0
      %v3089 = vadd.f32 0.0, %v3088
      %v3090 = vpop.f32.mrf.mxu0
      %v3091 = vadd.f32 0.0, %v3090
      %3092 = vmatmul.bf16.gmra.mxu0 %v1864
      %v3093 = vpop.f32.mrf.mxu0
      %v3094 = vadd.f32 0.0, %v3093
      %v3095 = vpop.f32.mrf.mxu0
      %v3096 = vadd.f32 0.0, %v3095
      %3097 = vmatmul.bf16.gmra.mxu0 %v1865
      %v3098 = vpop.f32.mrf.mxu0
      %v3099 = vadd.f32 0.0, %v3098
      %v3100 = vpop.f32.mrf.mxu0
      %v3101 = vadd.f32 0.0, %v3100
      %3102 = vmatmul.bf16.gmra.mxu0 %v1866
      %v3103 = vpop.f32.mrf.mxu0
      %v3104 = vadd.f32 0.0, %v3103
      %v3105 = vpop.f32.mrf.mxu0
      %v3106 = vadd.f32 0.0, %v3105
      %3107 = vmatmul.bf16.gmra.mxu0 %v1867
      %v3108 = vpop.f32.mrf.mxu0
      %v3109 = vadd.f32 0.0, %v3108
      %v3110 = vpop.f32.mrf.mxu0
      %v3111 = vadd.f32 0.0, %v3110
      %3112 = vmatmul.bf16.gmra.mxu0 %v1868
      %v3113 = vpop.f32.mrf.mxu0
      %v3114 = vadd.f32 0.0, %v3113
      %v3115 = vpop.f32.mrf.mxu0
      %v3116 = vadd.f32 0.0, %v3115
      %3117 = vmatmul.bf16.gmra.mxu0 %v1869
      %v3118 = vpop.f32.mrf.mxu0
      %v3119 = vadd.f32 0.0, %v3118
      %v3120 = vpop.f32.mrf.mxu0
      %v3121 = vadd.f32 0.0, %v3120
      %3122 = vmatmul.bf16.gmra.mxu0 %v1870
      %v3123 = vpop.f32.mrf.mxu0
      %v3124 = vadd.f32 0.0, %v3123
      %v3125 = vpop.f32.mrf.mxu0
      %v3126 = vadd.f32 0.0, %v3125
      %3127 = vmatmul.bf16.gmra.mxu0 %v1871
      %v3128 = vpop.f32.mrf.mxu0
      %v3129 = vadd.f32 0.0, %v3128
      %v3130 = vpop.f32.mrf.mxu0
      %v3131 = vadd.f32 0.0, %v3130
      %3132 = vmatmul.bf16.gmra.mxu0 %v1872
      %v3133 = vpop.f32.mrf.mxu0
      %v3134 = vadd.f32 0.0, %v3133
      %v3135 = vpop.f32.mrf.mxu0
      %v3136 = vadd.f32 0.0, %v3135
      %3137 = vmatmul.bf16.gmra.mxu0 %v1873
      %v3138 = vpop.f32.mrf.mxu0
      %v3139 = vadd.f32 0.0, %v3138
      %v3140 = vpop.f32.mrf.mxu0
      %v3141 = vadd.f32 0.0, %v3140
      %3142 = vmatmul.bf16.gmra.mxu0 %v1874
      %v3143 = vpop.f32.mrf.mxu0
      %v3144 = vadd.f32 0.0, %v3143
      %v3145 = vpop.f32.mrf.mxu0
      %v3146 = vadd.f32 0.0, %v3145
      %3147 = vmatmul.bf16.gmra.mxu0 %v1875
      %v3148 = vpop.f32.mrf.mxu0
      %v3149 = vadd.f32 0.0, %v3148
      %v3150 = vpop.f32.mrf.mxu0
      %v3151 = vadd.f32 0.0, %v3150
      %3152 = vmatmul.bf16.gmra.mxu0 %v1876
      %v3153 = vpop.f32.mrf.mxu0
      %v3154 = vadd.f32 0.0, %v3153
      %v3155 = vpop.f32.mrf.mxu0
      %v3156 = vadd.f32 0.0, %v3155
      %3157 = vmatmul.bf16.gmra.mxu0 %v1877
      %v3158 = vpop.f32.mrf.mxu0
      %v3159 = vadd.f32 0.0, %v3158
      %v3160 = vpop.f32.mrf.mxu0
      %v3161 = vadd.f32 0.0, %v3160
      %3162 = vmatmul.bf16.gmra.mxu0 %v1878
      %v3163 = vpop.f32.mrf.mxu0
      %v3164 = vadd.f32 0.0, %v3163
      %v3165 = vpop.f32.mrf.mxu0
      %v3166 = vadd.f32 0.0, %v3165
      %3167 = vmatmul.bf16.gmra.mxu0 %v1879
      %v3168 = vpop.f32.mrf.mxu0
      %v3169 = vadd.f32 0.0, %v3168
      %v3170 = vpop.f32.mrf.mxu0
      %v3171 = vadd.f32 0.0, %v3170
      %3172 = vmatmul.bf16.gmra.mxu0 %v1880
      %v3173 = vpop.f32.mrf.mxu0
      %v3174 = vadd.f32 0.0, %v3173
      %v3175 = vpop.f32.mrf.mxu0
      %v3176 = vadd.f32 0.0, %v3175
      %3177 = vmatmul.bf16.gmra.mxu0 %v1881
      %v3178 = vpop.f32.mrf.mxu0
      %v3179 = vadd.f32 0.0, %v3178
      %v3180 = vpop.f32.mrf.mxu0
      %v3181 = vadd.f32 0.0, %v3180
      %3182 = vmatmul.bf16.gmra.mxu0 %v1882
      %v3183 = vpop.f32.mrf.mxu0
      %v3184 = vadd.f32 0.0, %v3183
      %v3185 = vpop.f32.mrf.mxu0
      %v3186 = vadd.f32 0.0, %v3185
      %3187 = vmatmul.bf16.gmra.mxu0 %v1883
      %v3188 = vpop.f32.mrf.mxu0
      %v3189 = vadd.f32 0.0, %v3188
      %v3190 = vpop.f32.mrf.mxu0
      %v3191 = vadd.f32 0.0, %v3190
      %3192 = vmatmul.bf16.gmra.mxu0 %v1884
      %v3193 = vpop.f32.mrf.mxu0
      %v3194 = vadd.f32 0.0, %v3193
      %v3195 = vpop.f32.mrf.mxu0
      %v3196 = vadd.f32 0.0, %v3195
      %3197 = vmatmul.bf16.gmra.mxu0 %v1885
      %v3198 = vpop.f32.mrf.mxu0
      %v3199 = vadd.f32 0.0, %v3198
      %v3200 = vpop.f32.mrf.mxu0
      %v3201 = vadd.f32 0.0, %v3200
      %3202 = vmatmul.bf16.gmra.mxu0 %v1886
      %v3203 = vpop.f32.mrf.mxu0
      %v3204 = vadd.f32 0.0, %v3203
      %v3205 = vpop.f32.mrf.mxu0
      %v3206 = vadd.f32 0.0, %v3205
      %3207 = vmatmul.bf16.gmra.mxu0 %v1887
      %v3208 = vpop.f32.mrf.mxu0
      %v3209 = vadd.f32 0.0, %v3208
      %v3210 = vpop.f32.mrf.mxu0
      %v3211 = vadd.f32 0.0, %v3210
      %3212 = vmatmul.bf16.gmra.mxu0 %v1888
      %v3213 = vpop.f32.mrf.mxu0
      %v3214 = vadd.f32 0.0, %v3213
      %v3215 = vpop.f32.mrf.mxu0
      %v3216 = vadd.f32 0.0, %v3215
      %3217 = vmatmul.bf16.gmra.mxu0 %v1889
      %v3218 = vpop.f32.mrf.mxu0
      %v3219 = vadd.f32 0.0, %v3218
      %v3220 = vpop.f32.mrf.mxu0
      %v3221 = vadd.f32 0.0, %v3220
      %3222 = vmatmul.bf16.gmra.mxu0 %v1890
      %v3223 = vpop.f32.mrf.mxu0
      %v3224 = vadd.f32 0.0, %v3223
      %v3225 = vpop.f32.mrf.mxu0
      %v3226 = vadd.f32 0.0, %v3225
      %3227 = vmatmul.bf16.gmra.mxu0 %v1891
      %v3228 = vpop.f32.mrf.mxu0
      %v3229 = vadd.f32 0.0, %v3228
      %v3230 = vpop.f32.mrf.mxu0
      %v3231 = vadd.f32 0.0, %v3230
      %3232 = vmatmul.bf16.gmra.mxu0 %v1892
      %v3233 = vpop.f32.mrf.mxu0
      %v3234 = vadd.f32 0.0, %v3233
      %v3235 = vpop.f32.mrf.mxu0
      %v3236 = vadd.f32 0.0, %v3235
      %3237 = vmatmul.bf16.gmra.mxu0 %v1893
      %v3238 = vpop.f32.mrf.mxu0
      %v3239 = vadd.f32 0.0, %v3238
      %v3240 = vpop.f32.mrf.mxu0
      %v3241 = vadd.f32 0.0, %v3240
      %3242 = vmatmul.bf16.gmra.mxu0 %v1894
      %v3243 = vpop.f32.mrf.mxu0
      %v3244 = vadd.f32 0.0, %v3243
      %v3245 = vpop.f32.mrf.mxu0
      %v3246 = vadd.f32 0.0, %v3245
      %3247 = vmatmul.bf16.gmra.mxu0 %v1895
      %v3248 = vpop.f32.mrf.mxu0
      %v3249 = vadd.f32 0.0, %v3248
      %v3250 = vpop.f32.mrf.mxu0
      %v3251 = vadd.f32 0.0, %v3250
      %3252 = vmatmul.bf16.gmra.mxu0 %v1896
      %v3253 = vpop.f32.mrf.mxu0
      %v3254 = vadd.f32 0.0, %v3253
      %v3255 = vpop.f32.mrf.mxu0
      %v3256 = vadd.f32 0.0, %v3255
      %3257 = vmatmul.bf16.gmra.mxu0 %v1897
      %v3258 = vpop.f32.mrf.mxu0
      %v3259 = vadd.f32 0.0, %v3258
      %v3260 = vpop.f32.mrf.mxu0
      %v3261 = vadd.f32 0.0, %v3260
      %3262 = vmatmul.bf16.gmra.mxu0 %v1898
      %v3263 = vpop.f32.mrf.mxu0
      %v3264 = vadd.f32 0.0, %v3263
      %v3265 = vpop.f32.mrf.mxu0
      %v3266 = vadd.f32 0.0, %v3265
      %3267 = vmatmul.bf16.gmra.mxu0 %v1899
      %v3268 = vpop.f32.mrf.mxu0
      %v3269 = vadd.f32 0.0, %v3268
      %v3270 = vpop.f32.mrf.mxu0
      %v3271 = vadd.f32 0.0, %v3270
      %3272 = vmatmul.bf16.gmra.mxu0 %v1900
      %v3273 = vpop.f32.mrf.mxu0
      %v3274 = vadd.f32 0.0, %v3273
      %v3275 = vpop.f32.mrf.mxu0
      %v3276 = vadd.f32 0.0, %v3275
      %3277 = vmatmul.bf16.gmra.mxu0 %v1901
      %v3278 = vpop.f32.mrf.mxu0
      %v3279 = vadd.f32 0.0, %v3278
      %v3280 = vpop.f32.mrf.mxu0
      %v3281 = vadd.f32 0.0, %v3280
      %3282 = vmatmul.bf16.gmra.mxu0 %v1902
      %v3283 = vpop.f32.mrf.mxu0
      %v3284 = vadd.f32 0.0, %v3283
      %v3285 = vpop.f32.mrf.mxu0
      %v3286 = vadd.f32 0.0, %v3285
      %3287 = vmatmul.bf16.gmra.mxu0 %v1903
      %v3288 = vpop.f32.mrf.mxu0
      %v3289 = vadd.f32 0.0, %v3288
      %v3290 = vpop.f32.mrf.mxu0
      %v3291 = vadd.f32 0.0, %v3290
      %3292 = vmatmul.bf16.gmra.mxu0 %v1904
      %v3293 = vpop.f32.mrf.mxu0
      %v3294 = vadd.f32 0.0, %v3293
      %v3295 = vpop.f32.mrf.mxu0
      %v3296 = vadd.f32 0.0, %v3295
      %3297 = vmatmul.bf16.gmra.mxu0 %v1905
      %v3298 = vpop.f32.mrf.mxu0
      %v3299 = vadd.f32 0.0, %v3298
      %v3300 = vpop.f32.mrf.mxu0
      %v3301 = vadd.f32 0.0, %v3300
      %3302 = vmatmul.bf16.gmra.mxu0 %v1906
      %v3303 = vpop.f32.mrf.mxu0
      %v3304 = vadd.f32 0.0, %v3303
      %v3305 = vpop.f32.mrf.mxu0
      %v3306 = vadd.f32 0.0, %v3305
      %3307 = vmatmul.bf16.gmra.mxu0 %v1907
      %v3308 = vpop.f32.mrf.mxu0
      %v3309 = vadd.f32 0.0, %v3308
      %v3310 = vpop.f32.mrf.mxu0
      %v3311 = vadd.f32 0.0, %v3310
      %3312 = vmatmul.bf16.gmra.mxu0 %v1908
      %v3313 = vpop.f32.mrf.mxu0
      %v3314 = vadd.f32 0.0, %v3313
      %v3315 = vpop.f32.mrf.mxu0
      %v3316 = vadd.f32 0.0, %v3315
      %3317 = vmatmul.bf16.gmra.mxu0 %v1909
      %v3318 = vpop.f32.mrf.mxu0
      %v3319 = vadd.f32 0.0, %v3318
      %v3320 = vpop.f32.mrf.mxu0
      %v3321 = vadd.f32 0.0, %v3320
      %3322 = vmatmul.bf16.gmra.mxu0 %v1910
      %v3323 = vpop.f32.mrf.mxu0
      %v3324 = vadd.f32 0.0, %v3323
      %v3325 = vpop.f32.mrf.mxu0
      %v3326 = vadd.f32 0.0, %v3325
      %3327 = vmatmul.bf16.gmra.mxu0 %v1911
      %v3328 = vpop.f32.mrf.mxu0
      %v3329 = vadd.f32 0.0, %v3328
      %v3330 = vpop.f32.mrf.mxu0
      %v3331 = vadd.f32 0.0, %v3330
      %3332 = vmatmul.bf16.gmra.mxu0 %v1912
      %v3333 = vpop.f32.mrf.mxu0
      %v3334 = vadd.f32 0.0, %v3333
      %v3335 = vpop.f32.mrf.mxu0
      %v3336 = vadd.f32 0.0, %v3335
      %3337 = vmatmul.bf16.gmra.mxu0 %v1913
      %v3338 = vpop.f32.mrf.mxu0
      %v3339 = vadd.f32 0.0, %v3338
      %v3340 = vpop.f32.mrf.mxu0
      %v3341 = vadd.f32 0.0, %v3340
      %3342 = vmatmul.bf16.gmra.mxu0 %v1914
      %v3343 = vpop.f32.mrf.mxu0
      %v3344 = vadd.f32 0.0, %v3343
      %v3345 = vpop.f32.mrf.mxu0
      %v3346 = vadd.f32 0.0, %v3345
      %3347 = vmatmul.bf16.gmra.mxu0 %v1915
      %v3348 = vpop.f32.mrf.mxu0
      %v3349 = vadd.f32 0.0, %v3348
      %v3350 = vpop.f32.mrf.mxu0
      %v3351 = vadd.f32 0.0, %v3350
      %3352 = vmatmul.bf16.gmra.mxu0 %v1916
      %v3353 = vpop.f32.mrf.mxu0
      %v3354 = vadd.f32 0.0, %v3353
      %v3355 = vpop.f32.mrf.mxu0
      %v3356 = vadd.f32 0.0, %v3355
      %3357 = vmatmul.bf16.gmra.mxu0 %v1917
      %v3358 = vpop.f32.mrf.mxu0
      %v3359 = vadd.f32 0.0, %v3358
      %v3360 = vpop.f32.mrf.mxu0
      %v3361 = vadd.f32 0.0, %v3360
      %3362 = vmatmul.bf16.gmra.mxu0 %v1918
      %v3363 = vpop.f32.mrf.mxu0
      %v3364 = vadd.f32 0.0, %v3363
      %v3365 = vpop.f32.mrf.mxu0
      %v3366 = vadd.f32 0.0, %v3365
      %3367 = vmatmul.bf16.gmra.mxu0 %v1919
      %v3368 = vpop.f32.mrf.mxu0
      %v3369 = vadd.f32 0.0, %v3368
      %v3370 = vpop.f32.mrf.mxu0
      %v3371 = vadd.f32 0.0, %v3370
      %3372 = vmatmul.bf16.gmra.mxu0 %v1920
      %v3373 = vpop.f32.mrf.mxu0
      %v3374 = vadd.f32 0.0, %v3373
      %v3375 = vpop.f32.mrf.mxu0
      %v3376 = vadd.f32 0.0, %v3375
      %3377 = vmatmul.bf16.gmra.mxu0 %v1921
      %v3378 = vpop.f32.mrf.mxu0
      %v3379 = vadd.f32 0.0, %v3378
      %v3380 = vpop.f32.mrf.mxu0
      %v3381 = vadd.f32 0.0, %v3380
      %3382 = vmatmul.bf16.gmra.mxu0 %v1922
      %v3383 = vpop.f32.mrf.mxu0
      %v3384 = vadd.f32 0.0, %v3383
      %v3385 = vpop.f32.mrf.mxu0
      %v3386 = vadd.f32 0.0, %v3385
      %3387 = vmatmul.bf16.gmra.mxu0 %v1923
      %v3388 = vpop.f32.mrf.mxu0
      %v3389 = vadd.f32 0.0, %v3388
      %v3390 = vpop.f32.mrf.mxu0
      %v3391 = vadd.f32 0.0, %v3390
      %3392 = vmatmul.bf16.gmra.mxu0 %v1924
      %v3393 = vpop.f32.mrf.mxu0
      %v3394 = vadd.f32 0.0, %v3393
      %v3395 = vpop.f32.mrf.mxu0
      %v3396 = vadd.f32 0.0, %v3395
      %3397 = vmatmul.bf16.gmra.mxu0 %v1925
      %v3398 = vpop.f32.mrf.mxu0
      %v3399 = vadd.f32 0.0, %v3398
      %v3400 = vpop.f32.mrf.mxu0
      %v3401 = vadd.f32 0.0, %v3400
      %3402 = vmatmul.bf16.gmra.mxu0 %v1926
      %v3403 = vpop.f32.mrf.mxu0
      %v3404 = vadd.f32 0.0, %v3403
      %v3405 = vpop.f32.mrf.mxu0
      %v3406 = vadd.f32 0.0, %v3405
      %3407 = vmatmul.bf16.gmra.mxu0 %v1927
      %v3408 = vpop.f32.mrf.mxu0
      %v3409 = vadd.f32 0.0, %v3408
      %v3410 = vpop.f32.mrf.mxu0
      %v3411 = vadd.f32 0.0, %v3410
      %3412 = vmatmul.bf16.gmra.mxu0 %v1928
      %v3413 = vpop.f32.mrf.mxu0
      %v3414 = vadd.f32 0.0, %v3413
      %v3415 = vpop.f32.mrf.mxu0
      %v3416 = vadd.f32 0.0, %v3415
      %3417 = vmatmul.bf16.gmra.mxu0 %v1929
      %v3418 = vpop.f32.mrf.mxu0
      %v3419 = vadd.f32 0.0, %v3418
      %v3420 = vpop.f32.mrf.mxu0
      %v3421 = vadd.f32 0.0, %v3420
      %3422 = vmatmul.bf16.gmra.mxu0 %v1930
      %v3423 = vpop.f32.mrf.mxu0
      %v3424 = vadd.f32 0.0, %v3423
      %v3425 = vpop.f32.mrf.mxu0
      %v3426 = vadd.f32 0.0, %v3425
      %3427 = vmatmul.bf16.gmra.mxu0 %v1931
      %v3428 = vpop.f32.mrf.mxu0
      %v3429 = vadd.f32 0.0, %v3428
      %v3430 = vpop.f32.mrf.mxu0
      %v3431 = vadd.f32 0.0, %v3430
      %3432 = vmatmul.bf16.gmra.mxu0 %v1932
      %v3433 = vpop.f32.mrf.mxu0
      %v3434 = vadd.f32 0.0, %v3433
      %v3435 = vpop.f32.mrf.mxu0
      %v3436 = vadd.f32 0.0, %v3435
      %3437 = vmatmul.bf16.gmra.mxu0 %v1933
      %v3438 = vpop.f32.mrf.mxu0
      %v3439 = vadd.f32 0.0, %v3438
      %v3440 = vpop.f32.mrf.mxu0
      %v3441 = vadd.f32 0.0, %v3440
      %3442 = vmatmul.bf16.gmra.mxu0 %v1934
      %v3443 = vpop.f32.mrf.mxu0
      %v3444 = vadd.f32 0.0, %v3443
      %v3445 = vpop.f32.mrf.mxu0
      %v3446 = vadd.f32 0.0, %v3445
      %3447 = vmatmul.bf16.gmra.mxu0 %v1935
      %v3448 = vpop.f32.mrf.mxu0
      %v3449 = vadd.f32 0.0, %v3448
      %v3450 = vpop.f32.mrf.mxu0
      %v3451 = vadd.f32 0.0, %v3450
      %3452 = vmatmul.bf16.gmra.mxu0 %v1936
      %v3453 = vpop.f32.mrf.mxu0
      %v3454 = vadd.f32 0.0, %v3453
      %v3455 = vpop.f32.mrf.mxu0
      %v3456 = vadd.f32 0.0, %v3455
      %3457 = vmatmul.bf16.gmra.mxu0 %v1937
      %v3458 = vpop.f32.mrf.mxu0
      %v3459 = vadd.f32 0.0, %v3458
      %v3460 = vpop.f32.mrf.mxu0
      %v3461 = vadd.f32 0.0, %v3460
      %3462 = vmatmul.bf16.gmra.mxu0 %v1938
      %v3463 = vpop.f32.mrf.mxu0
      %v3464 = vadd.f32 0.0, %v3463
      %v3465 = vpop.f32.mrf.mxu0
      %v3466 = vadd.f32 0.0, %v3465
      %3467 = vmatmul.bf16.gmra.mxu0 %v1939
      %v3468 = vpop.f32.mrf.mxu0
      %v3469 = vadd.f32 0.0, %v3468
      %v3470 = vpop.f32.mrf.mxu0
      %v3471 = vadd.f32 0.0, %v3470
      %3472 = vmatmul.bf16.gmra.mxu0 %v1940
      %v3473 = vpop.f32.mrf.mxu0
      %v3474 = vadd.f32 0.0, %v3473
      %v3475 = vpop.f32.mrf.mxu0
      %v3476 = vadd.f32 0.0, %v3475
      %3477 = vmatmul.bf16.gmra.mxu0 %v1941
      %v3478 = vpop.f32.mrf.mxu0
      %v3479 = vadd.f32 0.0, %v3478
      %v3480 = vpop.f32.mrf.mxu0
      %v3481 = vadd.f32 0.0, %v3480
      %3482 = vmatmul.bf16.gmra.mxu0 %v1942
      %v3483 = vpop.f32.mrf.mxu0
      %v3484 = vadd.f32 0.0, %v3483
      %v3485 = vpop.f32.mrf.mxu0
      %v3486 = vadd.f32 0.0, %v3485
      %3487 = vmatmul.bf16.gmra.mxu0 %v1943
      %v3488 = vpop.f32.mrf.mxu0
      %v3489 = vadd.f32 0.0, %v3488
      %v3490 = vpop.f32.mrf.mxu0
      %v3491 = vadd.f32 0.0, %v3490
      %3492 = vmatmul.bf16.gmra.mxu0 %v1944
      %v3493 = vpop.f32.mrf.mxu0
      %v3494 = vadd.f32 0.0, %v3493
      %v3495 = vpop.f32.mrf.mxu0
      %v3496 = vadd.f32 0.0, %v3495
      %3497 = vmatmul.bf16.gmra.mxu0 %v1945
      %v3498 = vpop.f32.mrf.mxu0
      %v3499 = vadd.f32 0.0, %v3498
      %v3500 = vpop.f32.mrf.mxu0
      %v3501 = vadd.f32 0.0, %v3500
      %3502 = vmatmul.bf16.gmra.mxu0 %v1946
      %v3503 = vpop.f32.mrf.mxu0
      %v3504 = vadd.f32 0.0, %v3503
      %v3505 = vpop.f32.mrf.mxu0
      %v3506 = vadd.f32 0.0, %v3505
      %3507 = vmatmul.bf16.gmra.mxu0 %v1947
      %v3508 = vpop.f32.mrf.mxu0
      %v3509 = vadd.f32 0.0, %v3508
      %v3510 = vpop.f32.mrf.mxu0
      %v3511 = vadd.f32 0.0, %v3510
      %3512 = vmatmul.bf16.gmra.mxu0 %v1948
      %v3513 = vpop.f32.mrf.mxu0
      %v3514 = vadd.f32 0.0, %v3513
      %v3515 = vpop.f32.mrf.mxu0
      %v3516 = vadd.f32 0.0, %v3515
      %3517 = vmatmul.bf16.gmra.mxu0 %v1949
      %v3518 = vpop.f32.mrf.mxu0
      %v3519 = vadd.f32 0.0, %v3518
      %v3520 = vpop.f32.mrf.mxu0
      %v3521 = vadd.f32 0.0, %v3520
      %3522 = vmatmul.bf16.gmra.mxu0 %v1950
      %v3523 = vpop.f32.mrf.mxu0
      %v3524 = vadd.f32 0.0, %v3523
      %v3525 = vpop.f32.mrf.mxu0
      %v3526 = vadd.f32 0.0, %v3525
      %3527 = vmatmul.bf16.gmra.mxu0 %v1951
      %v3528 = vpop.f32.mrf.mxu0
      %v3529 = vadd.f32 0.0, %v3528
      %v3530 = vpop.f32.mrf.mxu0
      %v3531 = vadd.f32 0.0, %v3530
      %3532 = vmatmul.bf16.gmra.mxu0 %v1952
      %v3533 = vpop.f32.mrf.mxu0
      %v3534 = vadd.f32 0.0, %v3533
      %v3535 = vpop.f32.mrf.mxu0
      %v3536 = vadd.f32 0.0, %v3535
      %3537 = vmatmul.bf16.gmra.mxu0 %v1953
      %v3538 = vpop.f32.mrf.mxu0
      %v3539 = vadd.f32 0.0, %v3538
      %v3540 = vpop.f32.mrf.mxu0
      %v3541 = vadd.f32 0.0, %v3540
      %3542 = vmatmul.bf16.gmra.mxu0 %v1954
      %v3543 = vpop.f32.mrf.mxu0
      %v3544 = vadd.f32 0.0, %v3543
      %v3545 = vpop.f32.mrf.mxu0
      %v3546 = vadd.f32 0.0, %v3545
      %3547 = vdwg.mxu0
      %v3548 = vmul.f32 %v2269, 0.2
      %v3549 = vmul.f32 %v2271, 0.2
      %v3550 = vmul.f32 %v2274, 0.2
      %v3551 = vmul.f32 %v2276, 0.2
      %v3552 = vmul.f32 %v2279, 0.2
      %v3553 = vmul.f32 %v2281, 0.2
      %v3554 = vmul.f32 %v2284, 0.2
      %v3555 = vmul.f32 %v2286, 0.2
      %v3556 = vmul.f32 %v2289, 0.2
      %v3557 = vmul.f32 %v2291, 0.2
      %v3558 = vmul.f32 %v2294, 0.2
      %v3559 = vmul.f32 %v2296, 0.2
      %v3560 = vmul.f32 %v2299, 0.2
      %v3561 = vmul.f32 %v2301, 0.2
      %v3562 = vmul.f32 %v2304, 0.2
      %v3563 = vmul.f32 %v2306, 0.2
      %v3564 = vmul.f32 %v2309, 0.2
      %v3565 = vmul.f32 %v2311, 0.2
      %v3566 = vmul.f32 %v2314, 0.2
      %v3567 = vmul.f32 %v2316, 0.2
      %v3568 = vmul.f32 %v2319, 0.2
      %v3569 = vmul.f32 %v2321, 0.2
      %v3570 = vmul.f32 %v2324, 0.2
      %v3571 = vmul.f32 %v2326, 0.2
      %v3572 = vmul.f32 %v2329, 0.2
      %v3573 = vmul.f32 %v2331, 0.2
      %v3574 = vmul.f32 %v2334, 0.2
      %v3575 = vmul.f32 %v2336, 0.2
      %v3576 = vmul.f32 %v2339, 0.2
      %v3577 = vmul.f32 %v2341, 0.2
      %v3578 = vmul.f32 %v2344, 0.2
      %v3579 = vmul.f32 %v2346, 0.2
      %v3580 = vmul.f32 %v2349, 0.2
      %v3581 = vmul.f32 %v2351, 0.2
      %v3582 = vmul.f32 %v2354, 0.2
      %v3583 = vmul.f32 %v2356, 0.2
      %v3584 = vmul.f32 %v2359, 0.2
      %v3585 = vmul.f32 %v2361, 0.2
      %v3586 = vmul.f32 %v2364, 0.2
      %v3587 = vmul.f32 %v2366, 0.2
      %v3588 = vmul.f32 %v2369, 0.2
      %v3589 = vmul.f32 %v2371, 0.2
      %v3590 = vmul.f32 %v2374, 0.2
      %v3591 = vmul.f32 %v2376, 0.2
      %v3592 = vmul.f32 %v2379, 0.2
      %v3593 = vmul.f32 %v2381, 0.2
      %v3594 = vmul.f32 %v2384, 0.2
      %v3595 = vmul.f32 %v2386, 0.2
      %v3596 = vmul.f32 %v2389, 0.2
      %v3597 = vmul.f32 %v2391, 0.2
      %v3598 = vmul.f32 %v2394, 0.2
      %v3599 = vmul.f32 %v2396, 0.2
      %v3600 = vmul.f32 %v2399, 0.2
      %v3601 = vmul.f32 %v2401, 0.2
      %v3602 = vmul.f32 %v2404, 0.2
      %v3603 = vmul.f32 %v2406, 0.2
      %v3604 = vmul.f32 %v2409, 0.2
      %v3605 = vmul.f32 %v2411, 0.2
      %v3606 = vmul.f32 %v2414, 0.2
      %v3607 = vmul.f32 %v2416, 0.2
      %v3608 = vmul.f32 %v2419, 0.2
      %v3609 = vmul.f32 %v2421, 0.2
      %v3610 = vmul.f32 %v2424, 0.2
      %v3611 = vmul.f32 %v2426, 0.2
      %v3612 = vmul.f32 %v2429, 0.2
      %v3613 = vmul.f32 %v2431, 0.2
      %v3614 = vmul.f32 %v2434, 0.2
      %v3615 = vmul.f32 %v2436, 0.2
      %v3616 = vmul.f32 %v2439, 0.2
      %v3617 = vmul.f32 %v2441, 0.2
      %v3618 = vmul.f32 %v2444, 0.2
      %v3619 = vmul.f32 %v2446, 0.2
      %v3620 = vmul.f32 %v2449, 0.2
      %v3621 = vmul.f32 %v2451, 0.2
      %v3622 = vmul.f32 %v2454, 0.2
      %v3623 = vmul.f32 %v2456, 0.2
      %v3624 = vmul.f32 %v2459, 0.2
      %v3625 = vmul.f32 %v2461, 0.2
      %v3626 = vmul.f32 %v2464, 0.2
      %v3627 = vmul.f32 %v2466, 0.2
      %v3628 = vmul.f32 %v2469, 0.2
      %v3629 = vmul.f32 %v2471, 0.2
      %v3630 = vmul.f32 %v2474, 0.2
      %v3631 = vmul.f32 %v2476, 0.2
      %v3632 = vmul.f32 %v2479, 0.2
      %v3633 = vmul.f32 %v2481, 0.2
      %v3634 = vmul.f32 %v2484, 0.2
      %v3635 = vmul.f32 %v2486, 0.2
      %v3636 = vmul.f32 %v2489, 0.2
      %v3637 = vmul.f32 %v2491, 0.2
      %v3638 = vmul.f32 %v2494, 0.2
      %v3639 = vmul.f32 %v2496, 0.2
      %v3640 = vmul.f32 %v2499, 0.2
      %v3641 = vmul.f32 %v2501, 0.2
      %v3642 = vmul.f32 %v2504, 0.2
      %v3643 = vmul.f32 %v2506, 0.2
      %v3644 = vmul.f32 %v2509, 0.2
      %v3645 = vmul.f32 %v2511, 0.2
      %v3646 = vmul.f32 %v2514, 0.2
      %v3647 = vmul.f32 %v2516, 0.2
      %v3648 = vmul.f32 %v2519, 0.2
      %v3649 = vmul.f32 %v2521, 0.2
      %v3650 = vmul.f32 %v2524, 0.2
      %v3651 = vmul.f32 %v2526, 0.2
      %v3652 = vmul.f32 %v2529, 0.2
      %v3653 = vmul.f32 %v2531, 0.2
      %v3654 = vmul.f32 %v2534, 0.2
      %v3655 = vmul.f32 %v2536, 0.2
      %v3656 = vmul.f32 %v2539, 0.2
      %v3657 = vmul.f32 %v2541, 0.2
      %v3658 = vmul.f32 %v2544, 0.2
      %v3659 = vmul.f32 %v2546, 0.2
      %v3660 = vmul.f32 %v2549, 0.2
      %v3661 = vmul.f32 %v2551, 0.2
      %v3662 = vmul.f32 %v2554, 0.2
      %v3663 = vmul.f32 %v2556, 0.2
      %v3664 = vmul.f32 %v2559, 0.2
      %v3665 = vmul.f32 %v2561, 0.2
      %v3666 = vmul.f32 %v2564, 0.2
      %v3667 = vmul.f32 %v2566, 0.2
      %v3668 = vmul.f32 %v2569, 0.2
      %v3669 = vmul.f32 %v2571, 0.2
      %v3670 = vmul.f32 %v2574, 0.2
      %v3671 = vmul.f32 %v2576, 0.2
      %v3672 = vmul.f32 %v2579, 0.2
      %v3673 = vmul.f32 %v2581, 0.2
      %v3674 = vmul.f32 %v2584, 0.2
      %v3675 = vmul.f32 %v2586, 0.2
      %v3676 = vmul.f32 %v2589, 0.2
      %v3677 = vmul.f32 %v2591, 0.2
      %v3678 = vmul.f32 %v2594, 0.2
      %v3679 = vmul.f32 %v2596, 0.2
      %v3680 = vmul.f32 %v2599, 0.2
      %v3681 = vmul.f32 %v2601, 0.2
      %v3682 = vmul.f32 %v2604, 0.2
      %v3683 = vmul.f32 %v2606, 0.2
      %v3684 = vmul.f32 %v2609, 0.2
      %v3685 = vmul.f32 %v2611, 0.2
      %v3686 = vmul.f32 %v2614, 0.2
      %v3687 = vmul.f32 %v2616, 0.2
      %v3688 = vmul.f32 %v2619, 0.2
      %v3689 = vmul.f32 %v2621, 0.2
      %v3690 = vmul.f32 %v2624, 0.2
      %v3691 = vmul.f32 %v2626, 0.2
      %v3692 = vmul.f32 %v2629, 0.2
      %v3693 = vmul.f32 %v2631, 0.2
      %v3694 = vmul.f32 %v2634, 0.2
      %v3695 = vmul.f32 %v2636, 0.2
      %v3696 = vmul.f32 %v2639, 0.2
      %v3697 = vmul.f32 %v2641, 0.2
      %v3698 = vmul.f32 %v2644, 0.2
      %v3699 = vmul.f32 %v2646, 0.2
      %v3700 = vmul.f32 %v2649, 0.2
      %v3701 = vmul.f32 %v2651, 0.2
      %v3702 = vmul.f32 %v2654, 0.2
      %v3703 = vmul.f32 %v2656, 0.2
      %v3704 = vmul.f32 %v2659, 0.2
      %v3705 = vmul.f32 %v2661, 0.2
      %v3706 = vmul.f32 %v2664, 0.2
      %v3707 = vmul.f32 %v2666, 0.2
      %v3708 = vmul.f32 %v2669, 0.2
      %v3709 = vmul.f32 %v2671, 0.2
      %v3710 = vmul.f32 %v2674, 0.2
      %v3711 = vmul.f32 %v2676, 0.2
      %v3712 = vmul.f32 %v2679, 0.2
      %v3713 = vmul.f32 %v2681, 0.2
      %v3714 = vmul.f32 %v2684, 0.2
      %v3715 = vmul.f32 %v2686, 0.2
      %v3716 = vmul.f32 %v2689, 0.2
      %v3717 = vmul.f32 %v2691, 0.2
      %v3718 = vmul.f32 %v2694, 0.2
      %v3719 = vmul.f32 %v2696, 0.2
      %v3720 = vmul.f32 %v2699, 0.2
      %v3721 = vmul.f32 %v2701, 0.2
      %v3722 = vmul.f32 %v2704, 0.2
      %v3723 = vmul.f32 %v2706, 0.2
      %v3724 = vmul.f32 %v2709, 0.2
      %v3725 = vmul.f32 %v2711, 0.2
      %v3726 = vmul.f32 %v2714, 0.2
      %v3727 = vmul.f32 %v2716, 0.2
      %v3728 = vmul.f32 %v2719, 0.2
      %v3729 = vmul.f32 %v2721, 0.2
      %v3730 = vmul.f32 %v2724, 0.2
      %v3731 = vmul.f32 %v2726, 0.2
      %v3732 = vmul.f32 %v2729, 0.2
      %v3733 = vmul.f32 %v2731, 0.2
      %v3734 = vmul.f32 %v2734, 0.2
      %v3735 = vmul.f32 %v2736, 0.2
      %v3736 = vmul.f32 %v2739, 0.2
      %v3737 = vmul.f32 %v2741, 0.2
      %v3738 = vmul.f32 %v2744, 0.2
      %v3739 = vmul.f32 %v2746, 0.2
      %v3740 = vmul.f32 %v2749, 0.2
      %v3741 = vmul.f32 %v2751, 0.2
      %v3742 = vmul.f32 %v2754, 0.2
      %v3743 = vmul.f32 %v2756, 0.2
      %v3744 = vmul.f32 %v2759, 0.2
      %v3745 = vmul.f32 %v2761, 0.2
      %v3746 = vmul.f32 %v2764, 0.2
      %v3747 = vmul.f32 %v2766, 0.2
      %v3748 = vmul.f32 %v2769, 0.2
      %v3749 = vmul.f32 %v2771, 0.2
      %v3750 = vmul.f32 %v2774, 0.2
      %v3751 = vmul.f32 %v2776, 0.2
      %v3752 = vmul.f32 %v2779, 0.2
      %v3753 = vmul.f32 %v2781, 0.2
      %v3754 = vmul.f32 %v2784, 0.2
      %v3755 = vmul.f32 %v2786, 0.2
      %v3756 = vmul.f32 %v2789, 0.2
      %v3757 = vmul.f32 %v2791, 0.2
      %v3758 = vmul.f32 %v2794, 0.2
      %v3759 = vmul.f32 %v2796, 0.2
      %v3760 = vmul.f32 %v2799, 0.2
      %v3761 = vmul.f32 %v2801, 0.2
      %v3762 = vmul.f32 %v2804, 0.2
      %v3763 = vmul.f32 %v2806, 0.2
      %v3764 = vmul.f32 %v2809, 0.2
      %v3765 = vmul.f32 %v2811, 0.2
      %v3766 = vmul.f32 %v2814, 0.2
      %v3767 = vmul.f32 %v2816, 0.2
      %v3768 = vmul.f32 %v2819, 0.2
      %v3769 = vmul.f32 %v2821, 0.2
      %v3770 = vmul.f32 %v2824, 0.2
      %v3771 = vmul.f32 %v2826, 0.2
      %v3772 = vmul.f32 %v2829, 0.2
      %v3773 = vmul.f32 %v2831, 0.2
      %v3774 = vmul.f32 %v2834, 0.2
      %v3775 = vmul.f32 %v2836, 0.2
      %v3776 = vmul.f32 %v2839, 0.2
      %v3777 = vmul.f32 %v2841, 0.2
      %v3778 = vmul.f32 %v2844, 0.2
      %v3779 = vmul.f32 %v2846, 0.2
      %v3780 = vmul.f32 %v2849, 0.2
      %v3781 = vmul.f32 %v2851, 0.2
      %v3782 = vmul.f32 %v2854, 0.2
      %v3783 = vmul.f32 %v2856, 0.2
      %v3784 = vmul.f32 %v2859, 0.2
      %v3785 = vmul.f32 %v2861, 0.2
      %v3786 = vmul.f32 %v2864, 0.2
      %v3787 = vmul.f32 %v2866, 0.2
      %v3788 = vmul.f32 %v2869, 0.2
      %v3789 = vmul.f32 %v2871, 0.2
      %v3790 = vmul.f32 %v2874, 0.2
      %v3791 = vmul.f32 %v2876, 0.2
      %v3792 = vmul.f32 %v2879, 0.2
      %v3793 = vmul.f32 %v2881, 0.2
      %v3794 = vmul.f32 %v2884, 0.2
      %v3795 = vmul.f32 %v2886, 0.2
      %v3796 = vmul.f32 %v2889, 0.2
      %v3797 = vmul.f32 %v2891, 0.2
      %v3798 = vmul.f32 %v2894, 0.2
      %v3799 = vmul.f32 %v2896, 0.2
      %v3800 = vmul.f32 %v2899, 0.2
      %v3801 = vmul.f32 %v2901, 0.2
      %v3802 = vmul.f32 %v2904, 0.2
      %v3803 = vmul.f32 %v2906, 0.2
      %v3804 = vmul.f32 %v2909, 0.2
      %v3805 = vmul.f32 %v2911, 0.2
      %v3806 = vmul.f32 %v2914, 0.2
      %v3807 = vmul.f32 %v2916, 0.2
      %v3808 = vmul.f32 %v2919, 0.2
      %v3809 = vmul.f32 %v2921, 0.2
      %v3810 = vmul.f32 %v2924, 0.2
      %v3811 = vmul.f32 %v2926, 0.2
      %v3812 = vmul.f32 %v2929, 0.2
      %v3813 = vmul.f32 %v2931, 0.2
      %v3814 = vmul.f32 %v2934, 0.2
      %v3815 = vmul.f32 %v2936, 0.2
      %v3816 = vmul.f32 %v2939, 0.2
      %v3817 = vmul.f32 %v2941, 0.2
      %v3818 = vmul.f32 %v2944, 0.2
      %v3819 = vmul.f32 %v2946, 0.2
      %v3820 = vmul.f32 %v2949, 0.2
      %v3821 = vmul.f32 %v2951, 0.2
      %v3822 = vmul.f32 %v2954, 0.2
      %v3823 = vmul.f32 %v2956, 0.2
      %v3824 = vmul.f32 %v2959, 0.2
      %v3825 = vmul.f32 %v2961, 0.2
      %v3826 = vmul.f32 %v2964, 0.2
      %v3827 = vmul.f32 %v2966, 0.2
      %v3828 = vmul.f32 %v2969, 0.2
      %v3829 = vmul.f32 %v2971, 0.2
      %v3830 = vmul.f32 %v2974, 0.2
      %v3831 = vmul.f32 %v2976, 0.2
      %v3832 = vmul.f32 %v2979, 0.2
      %v3833 = vmul.f32 %v2981, 0.2
      %v3834 = vmul.f32 %v2984, 0.2
      %v3835 = vmul.f32 %v2986, 0.2
      %v3836 = vmul.f32 %v2989, 0.2
      %v3837 = vmul.f32 %v2991, 0.2
      %v3838 = vmul.f32 %v2994, 0.2
      %v3839 = vmul.f32 %v2996, 0.2
      %v3840 = vmul.f32 %v2999, 0.2
      %v3841 = vmul.f32 %v3001, 0.2
      %v3842 = vmul.f32 %v3004, 0.2
      %v3843 = vmul.f32 %v3006, 0.2
      %v3844 = vmul.f32 %v3009, 0.2
      %v3845 = vmul.f32 %v3011, 0.2
      %v3846 = vmul.f32 %v3014, 0.2
      %v3847 = vmul.f32 %v3016, 0.2
      %v3848 = vmul.f32 %v3019, 0.2
      %v3849 = vmul.f32 %v3021, 0.2
      %v3850 = vmul.f32 %v3024, 0.2
      %v3851 = vmul.f32 %v3026, 0.2
      %v3852 = vmul.f32 %v3029, 0.2
      %v3853 = vmul.f32 %v3031, 0.2
      %v3854 = vmul.f32 %v3034, 0.2
      %v3855 = vmul.f32 %v3036, 0.2
      %v3856 = vmul.f32 %v3039, 0.2
      %v3857 = vmul.f32 %v3041, 0.2
      %v3858 = vmul.f32 %v3044, 0.2
      %v3859 = vmul.f32 %v3046, 0.2
      %v3860 = vmul.f32 %v3049, 0.2
      %v3861 = vmul.f32 %v3051, 0.2
      %v3862 = vmul.f32 %v3054, 0.2
      %v3863 = vmul.f32 %v3056, 0.2
      %v3864 = vmul.f32 %v3059, 0.2
      %v3865 = vmul.f32 %v3061, 0.2
      %v3866 = vmul.f32 %v3064, 0.2
      %v3867 = vmul.f32 %v3066, 0.2
      %v3868 = vmul.f32 %v3069, 0.2
      %v3869 = vmul.f32 %v3071, 0.2
      %v3870 = vmul.f32 %v3074, 0.2
      %v3871 = vmul.f32 %v3076, 0.2
      %v3872 = vmul.f32 %v3079, 0.2
      %v3873 = vmul.f32 %v3081, 0.2
      %v3874 = vmul.f32 %v3084, 0.2
      %v3875 = vmul.f32 %v3086, 0.2
      %v3876 = vmul.f32 %v3089, 0.2
      %v3877 = vmul.f32 %v3091, 0.2
      %v3878 = vmul.f32 %v3094, 0.2
      %v3879 = vmul.f32 %v3096, 0.2
      %v3880 = vmul.f32 %v3099, 0.2
      %v3881 = vmul.f32 %v3101, 0.2
      %v3882 = vmul.f32 %v3104, 0.2
      %v3883 = vmul.f32 %v3106, 0.2
      %v3884 = vmul.f32 %v3109, 0.2
      %v3885 = vmul.f32 %v3111, 0.2
      %v3886 = vmul.f32 %v3114, 0.2
      %v3887 = vmul.f32 %v3116, 0.2
      %v3888 = vmul.f32 %v3119, 0.2
      %v3889 = vmul.f32 %v3121, 0.2
      %v3890 = vmul.f32 %v3124, 0.2
      %v3891 = vmul.f32 %v3126, 0.2
      %v3892 = vmul.f32 %v3129, 0.2
      %v3893 = vmul.f32 %v3131, 0.2
      %v3894 = vmul.f32 %v3134, 0.2
      %v3895 = vmul.f32 %v3136, 0.2
      %v3896 = vmul.f32 %v3139, 0.2
      %v3897 = vmul.f32 %v3141, 0.2
      %v3898 = vmul.f32 %v3144, 0.2
      %v3899 = vmul.f32 %v3146, 0.2
      %v3900 = vmul.f32 %v3149, 0.2
      %v3901 = vmul.f32 %v3151, 0.2
      %v3902 = vmul.f32 %v3154, 0.2
      %v3903 = vmul.f32 %v3156, 0.2
      %v3904 = vmul.f32 %v3159, 0.2
      %v3905 = vmul.f32 %v3161, 0.2
      %v3906 = vmul.f32 %v3164, 0.2
      %v3907 = vmul.f32 %v3166, 0.2
      %v3908 = vmul.f32 %v3169, 0.2
      %v3909 = vmul.f32 %v3171, 0.2
      %v3910 = vmul.f32 %v3174, 0.2
      %v3911 = vmul.f32 %v3176, 0.2
      %v3912 = vmul.f32 %v3179, 0.2
      %v3913 = vmul.f32 %v3181, 0.2
      %v3914 = vmul.f32 %v3184, 0.2
      %v3915 = vmul.f32 %v3186, 0.2
      %v3916 = vmul.f32 %v3189, 0.2
      %v3917 = vmul.f32 %v3191, 0.2
      %v3918 = vmul.f32 %v3194, 0.2
      %v3919 = vmul.f32 %v3196, 0.2
      %v3920 = vmul.f32 %v3199, 0.2
      %v3921 = vmul.f32 %v3201, 0.2
      %v3922 = vmul.f32 %v3204, 0.2
      %v3923 = vmul.f32 %v3206, 0.2
      %v3924 = vmul.f32 %v3209, 0.2
      %v3925 = vmul.f32 %v3211, 0.2
      %v3926 = vmul.f32 %v3214, 0.2
      %v3927 = vmul.f32 %v3216, 0.2
      %v3928 = vmul.f32 %v3219, 0.2
      %v3929 = vmul.f32 %v3221, 0.2
      %v3930 = vmul.f32 %v3224, 0.2
      %v3931 = vmul.f32 %v3226, 0.2
      %v3932 = vmul.f32 %v3229, 0.2
      %v3933 = vmul.f32 %v3231, 0.2
      %v3934 = vmul.f32 %v3234, 0.2
      %v3935 = vmul.f32 %v3236, 0.2
      %v3936 = vmul.f32 %v3239, 0.2
      %v3937 = vmul.f32 %v3241, 0.2
      %v3938 = vmul.f32 %v3244, 0.2
      %v3939 = vmul.f32 %v3246, 0.2
      %v3940 = vmul.f32 %v3249, 0.2
      %v3941 = vmul.f32 %v3251, 0.2
      %v3942 = vmul.f32 %v3254, 0.2
      %v3943 = vmul.f32 %v3256, 0.2
      %v3944 = vmul.f32 %v3259, 0.2
      %v3945 = vmul.f32 %v3261, 0.2
      %v3946 = vmul.f32 %v3264, 0.2
      %v3947 = vmul.f32 %v3266, 0.2
      %v3948 = vmul.f32 %v3269, 0.2
      %v3949 = vmul.f32 %v3271, 0.2
      %v3950 = vmul.f32 %v3274, 0.2
      %v3951 = vmul.f32 %v3276, 0.2
      %v3952 = vmul.f32 %v3279, 0.2
      %v3953 = vmul.f32 %v3281, 0.2
      %v3954 = vmul.f32 %v3284, 0.2
      %v3955 = vmul.f32 %v3286, 0.2
      %v3956 = vmul.f32 %v3289, 0.2
      %v3957 = vmul.f32 %v3291, 0.2
      %v3958 = vmul.f32 %v3294, 0.2
      %v3959 = vmul.f32 %v3296, 0.2
      %v3960 = vmul.f32 %v3299, 0.2
      %v3961 = vmul.f32 %v3301, 0.2
      %v3962 = vmul.f32 %v3304, 0.2
      %v3963 = vmul.f32 %v3306, 0.2
      %v3964 = vmul.f32 %v3309, 0.2
      %v3965 = vmul.f32 %v3311, 0.2
      %v3966 = vmul.f32 %v3314, 0.2
      %v3967 = vmul.f32 %v3316, 0.2
      %v3968 = vmul.f32 %v3319, 0.2
      %v3969 = vmul.f32 %v3321, 0.2
      %v3970 = vmul.f32 %v3324, 0.2
      %v3971 = vmul.f32 %v3326, 0.2
      %v3972 = vmul.f32 %v3329, 0.2
      %v3973 = vmul.f32 %v3331, 0.2
      %v3974 = vmul.f32 %v3334, 0.2
      %v3975 = vmul.f32 %v3336, 0.2
      %v3976 = vmul.f32 %v3339, 0.2
      %v3977 = vmul.f32 %v3341, 0.2
      %v3978 = vmul.f32 %v3344, 0.2
      %v3979 = vmul.f32 %v3346, 0.2
      %v3980 = vmul.f32 %v3349, 0.2
      %v3981 = vmul.f32 %v3351, 0.2
      %v3982 = vmul.f32 %v3354, 0.2
      %v3983 = vmul.f32 %v3356, 0.2
      %v3984 = vmul.f32 %v3359, 0.2
      %v3985 = vmul.f32 %v3361, 0.2
      %v3986 = vmul.f32 %v3364, 0.2
      %v3987 = vmul.f32 %v3366, 0.2
      %v3988 = vmul.f32 %v3369, 0.2
      %v3989 = vmul.f32 %v3371, 0.2
      %v3990 = vmul.f32 %v3374, 0.2
      %v3991 = vmul.f32 %v3376, 0.2
      %v3992 = vmul.f32 %v3379, 0.2
      %v3993 = vmul.f32 %v3381, 0.2
      %v3994 = vmul.f32 %v3384, 0.2
      %v3995 = vmul.f32 %v3386, 0.2
      %v3996 = vmul.f32 %v3389, 0.2
      %v3997 = vmul.f32 %v3391, 0.2
      %v3998 = vmul.f32 %v3394, 0.2
      %v3999 = vmul.f32 %v3396, 0.2
      %v4000 = vmul.f32 %v3399, 0.2
      %v4001 = vmul.f32 %v3401, 0.2
      %v4002 = vmul.f32 %v3404, 0.2
      %v4003 = vmul.f32 %v3406, 0.2
      %v4004 = vmul.f32 %v3409, 0.2
      %v4005 = vmul.f32 %v3411, 0.2
      %v4006 = vmul.f32 %v3414, 0.2
      %v4007 = vmul.f32 %v3416, 0.2
      %v4008 = vmul.f32 %v3419, 0.2
      %v4009 = vmul.f32 %v3421, 0.2
      %v4010 = vmul.f32 %v3424, 0.2
      %v4011 = vmul.f32 %v3426, 0.2
      %v4012 = vmul.f32 %v3429, 0.2
      %v4013 = vmul.f32 %v3431, 0.2
      %v4014 = vmul.f32 %v3434, 0.2
      %v4015 = vmul.f32 %v3436, 0.2
      %v4016 = vmul.f32 %v3439, 0.2
      %v4017 = vmul.f32 %v3441, 0.2
      %v4018 = vmul.f32 %v3444, 0.2
      %v4019 = vmul.f32 %v3446, 0.2
      %v4020 = vmul.f32 %v3449, 0.2
      %v4021 = vmul.f32 %v3451, 0.2
      %v4022 = vmul.f32 %v3454, 0.2
      %v4023 = vmul.f32 %v3456, 0.2
      %v4024 = vmul.f32 %v3459, 0.2
      %v4025 = vmul.f32 %v3461, 0.2
      %v4026 = vmul.f32 %v3464, 0.2
      %v4027 = vmul.f32 %v3466, 0.2
      %v4028 = vmul.f32 %v3469, 0.2
      %v4029 = vmul.f32 %v3471, 0.2
      %v4030 = vmul.f32 %v3474, 0.2
      %v4031 = vmul.f32 %v3476, 0.2
      %v4032 = vmul.f32 %v3479, 0.2
      %v4033 = vmul.f32 %v3481, 0.2
      %v4034 = vmul.f32 %v3484, 0.2
      %v4035 = vmul.f32 %v3486, 0.2
      %v4036 = vmul.f32 %v3489, 0.2
      %v4037 = vmul.f32 %v3491, 0.2
      %v4038 = vmul.f32 %v3494, 0.2
      %v4039 = vmul.f32 %v3496, 0.2
      %v4040 = vmul.f32 %v3499, 0.2
      %v4041 = vmul.f32 %v3501, 0.2
      %v4042 = vmul.f32 %v3504, 0.2
      %v4043 = vmul.f32 %v3506, 0.2
      %v4044 = vmul.f32 %v3509, 0.2
      %v4045 = vmul.f32 %v3511, 0.2
      %v4046 = vmul.f32 %v3514, 0.2
      %v4047 = vmul.f32 %v3516, 0.2
      %v4048 = vmul.f32 %v3519, 0.2
      %v4049 = vmul.f32 %v3521, 0.2
      %v4050 = vmul.f32 %v3524, 0.2
      %v4051 = vmul.f32 %v3526, 0.2
      %v4052 = vmul.f32 %v3529, 0.2
      %v4053 = vmul.f32 %v3531, 0.2
      %v4054 = vmul.f32 %v3534, 0.2
      %v4055 = vmul.f32 %v3536, 0.2
      %v4056 = vmul.f32 %v3539, 0.2
      %v4057 = vmul.f32 %v3541, 0.2
      %v4058 = vmul.f32 %v3544, 0.2
      %v4059 = vmul.f32 %v3546, 0.2
      %v4060 = vmax.f32 %v2269, %v3548
      %v4061 = vmax.f32 %v2271, %v3549
      %v4062 = vmax.f32 %v2274, %v3550
      %v4063 = vmax.f32 %v2276, %v3551
      %v4064 = vmax.f32 %v2279, %v3552
      %v4065 = vmax.f32 %v2281, %v3553
      %v4066 = vmax.f32 %v2284, %v3554
      %v4067 = vmax.f32 %v2286, %v3555
      %v4068 = vmax.f32 %v2289, %v3556
      %v4069 = vmax.f32 %v2291, %v3557
      %v4070 = vmax.f32 %v2294, %v3558
      %v4071 = vmax.f32 %v2296, %v3559
      %v4072 = vmax.f32 %v2299, %v3560
      %v4073 = vmax.f32 %v2301, %v3561
      %v4074 = vmax.f32 %v2304, %v3562
      %v4075 = vmax.f32 %v2306, %v3563
      %v4076 = vmax.f32 %v2309, %v3564
      %v4077 = vmax.f32 %v2311, %v3565
      %v4078 = vmax.f32 %v2314, %v3566
      %v4079 = vmax.f32 %v2316, %v3567
      %v4080 = vmax.f32 %v2319, %v3568
      %v4081 = vmax.f32 %v2321, %v3569
      %v4082 = vmax.f32 %v2324, %v3570
      %v4083 = vmax.f32 %v2326, %v3571
      %v4084 = vmax.f32 %v2329, %v3572
      %v4085 = vmax.f32 %v2331, %v3573
      %v4086 = vmax.f32 %v2334, %v3574
      %v4087 = vmax.f32 %v2336, %v3575
      %v4088 = vmax.f32 %v2339, %v3576
      %v4089 = vmax.f32 %v2341, %v3577
      %v4090 = vmax.f32 %v2344, %v3578
      %v4091 = vmax.f32 %v2346, %v3579
      %v4092 = vmax.f32 %v2349, %v3580
      %v4093 = vmax.f32 %v2351, %v3581
      %v4094 = vmax.f32 %v2354, %v3582
      %v4095 = vmax.f32 %v2356, %v3583
      %v4096 = vmax.f32 %v2359, %v3584
      %v4097 = vmax.f32 %v2361, %v3585
      %v4098 = vmax.f32 %v2364, %v3586
      %v4099 = vmax.f32 %v2366, %v3587
      %v4100 = vmax.f32 %v2369, %v3588
      %v4101 = vmax.f32 %v2371, %v3589
      %v4102 = vmax.f32 %v2374, %v3590
      %v4103 = vmax.f32 %v2376, %v3591
      %v4104 = vmax.f32 %v2379, %v3592
      %v4105 = vmax.f32 %v2381, %v3593
      %v4106 = vmax.f32 %v2384, %v3594
      %v4107 = vmax.f32 %v2386, %v3595
      %v4108 = vmax.f32 %v2389, %v3596
      %v4109 = vmax.f32 %v2391, %v3597
      %v4110 = vmax.f32 %v2394, %v3598
      %v4111 = vmax.f32 %v2396, %v3599
      %v4112 = vmax.f32 %v2399, %v3600
      %v4113 = vmax.f32 %v2401, %v3601
      %v4114 = vmax.f32 %v2404, %v3602
      %v4115 = vmax.f32 %v2406, %v3603
      %v4116 = vmax.f32 %v2409, %v3604
      %v4117 = vmax.f32 %v2411, %v3605
      %v4118 = vmax.f32 %v2414, %v3606
      %v4119 = vmax.f32 %v2416, %v3607
      %v4120 = vmax.f32 %v2419, %v3608
      %v4121 = vmax.f32 %v2421, %v3609
      %v4122 = vmax.f32 %v2424, %v3610
      %v4123 = vmax.f32 %v2426, %v3611
      %v4124 = vmax.f32 %v2429, %v3612
      %v4125 = vmax.f32 %v2431, %v3613
      %v4126 = vmax.f32 %v2434, %v3614
      %v4127 = vmax.f32 %v2436, %v3615
      %v4128 = vmax.f32 %v2439, %v3616
      %v4129 = vmax.f32 %v2441, %v3617
      %v4130 = vmax.f32 %v2444, %v3618
      %v4131 = vmax.f32 %v2446, %v3619
      %v4132 = vmax.f32 %v2449, %v3620
      %v4133 = vmax.f32 %v2451, %v3621
      %v4134 = vmax.f32 %v2454, %v3622
      %v4135 = vmax.f32 %v2456, %v3623
      %v4136 = vmax.f32 %v2459, %v3624
      %v4137 = vmax.f32 %v2461, %v3625
      %v4138 = vmax.f32 %v2464, %v3626
      %v4139 = vmax.f32 %v2466, %v3627
      %v4140 = vmax.f32 %v2469, %v3628
      %v4141 = vmax.f32 %v2471, %v3629
      %v4142 = vmax.f32 %v2474, %v3630
      %v4143 = vmax.f32 %v2476, %v3631
      %v4144 = vmax.f32 %v2479, %v3632
      %v4145 = vmax.f32 %v2481, %v3633
      %v4146 = vmax.f32 %v2484, %v3634
      %v4147 = vmax.f32 %v2486, %v3635
      %v4148 = vmax.f32 %v2489, %v3636
      %v4149 = vmax.f32 %v2491, %v3637
      %v4150 = vmax.f32 %v2494, %v3638
      %v4151 = vmax.f32 %v2496, %v3639
      %v4152 = vmax.f32 %v2499, %v3640
      %v4153 = vmax.f32 %v2501, %v3641
      %v4154 = vmax.f32 %v2504, %v3642
      %v4155 = vmax.f32 %v2506, %v3643
      %v4156 = vmax.f32 %v2509, %v3644
      %v4157 = vmax.f32 %v2511, %v3645
      %v4158 = vmax.f32 %v2514, %v3646
      %v4159 = vmax.f32 %v2516, %v3647
      %v4160 = vmax.f32 %v2519, %v3648
      %v4161 = vmax.f32 %v2521, %v3649
      %v4162 = vmax.f32 %v2524, %v3650
      %v4163 = vmax.f32 %v2526, %v3651
      %v4164 = vmax.f32 %v2529, %v3652
      %v4165 = vmax.f32 %v2531, %v3653
      %v4166 = vmax.f32 %v2534, %v3654
      %v4167 = vmax.f32 %v2536, %v3655
      %v4168 = vmax.f32 %v2539, %v3656
      %v4169 = vmax.f32 %v2541, %v3657
      %v4170 = vmax.f32 %v2544, %v3658
      %v4171 = vmax.f32 %v2546, %v3659
      %v4172 = vmax.f32 %v2549, %v3660
      %v4173 = vmax.f32 %v2551, %v3661
      %v4174 = vmax.f32 %v2554, %v3662
      %v4175 = vmax.f32 %v2556, %v3663
      %v4176 = vmax.f32 %v2559, %v3664
      %v4177 = vmax.f32 %v2561, %v3665
      %v4178 = vmax.f32 %v2564, %v3666
      %v4179 = vmax.f32 %v2566, %v3667
      %v4180 = vmax.f32 %v2569, %v3668
      %v4181 = vmax.f32 %v2571, %v3669
      %v4182 = vmax.f32 %v2574, %v3670
      %v4183 = vmax.f32 %v2576, %v3671
      %v4184 = vmax.f32 %v2579, %v3672
      %v4185 = vmax.f32 %v2581, %v3673
      %v4186 = vmax.f32 %v2584, %v3674
      %v4187 = vmax.f32 %v2586, %v3675
      %v4188 = vmax.f32 %v2589, %v3676
      %v4189 = vmax.f32 %v2591, %v3677
      %v4190 = vmax.f32 %v2594, %v3678
      %v4191 = vmax.f32 %v2596, %v3679
      %v4192 = vmax.f32 %v2599, %v3680
      %v4193 = vmax.f32 %v2601, %v3681
      %v4194 = vmax.f32 %v2604, %v3682
      %v4195 = vmax.f32 %v2606, %v3683
      %v4196 = vmax.f32 %v2609, %v3684
      %v4197 = vmax.f32 %v2611, %v3685
      %v4198 = vmax.f32 %v2614, %v3686
      %v4199 = vmax.f32 %v2616, %v3687
      %v4200 = vmax.f32 %v2619, %v3688
      %v4201 = vmax.f32 %v2621, %v3689
      %v4202 = vmax.f32 %v2624, %v3690
      %v4203 = vmax.f32 %v2626, %v3691
      %v4204 = vmax.f32 %v2629, %v3692
      %v4205 = vmax.f32 %v2631, %v3693
      %v4206 = vmax.f32 %v2634, %v3694
      %v4207 = vmax.f32 %v2636, %v3695
      %v4208 = vmax.f32 %v2639, %v3696
      %v4209 = vmax.f32 %v2641, %v3697
      %v4210 = vmax.f32 %v2644, %v3698
      %v4211 = vmax.f32 %v2646, %v3699
      %v4212 = vmax.f32 %v2649, %v3700
      %v4213 = vmax.f32 %v2651, %v3701
      %v4214 = vmax.f32 %v2654, %v3702
      %v4215 = vmax.f32 %v2656, %v3703
      %v4216 = vmax.f32 %v2659, %v3704
      %v4217 = vmax.f32 %v2661, %v3705
      %v4218 = vmax.f32 %v2664, %v3706
      %v4219 = vmax.f32 %v2666, %v3707
      %v4220 = vmax.f32 %v2669, %v3708
      %v4221 = vmax.f32 %v2671, %v3709
      %v4222 = vmax.f32 %v2674, %v3710
      %v4223 = vmax.f32 %v2676, %v3711
      %v4224 = vmax.f32 %v2679, %v3712
      %v4225 = vmax.f32 %v2681, %v3713
      %v4226 = vmax.f32 %v2684, %v3714
      %v4227 = vmax.f32 %v2686, %v3715
      %v4228 = vmax.f32 %v2689, %v3716
      %v4229 = vmax.f32 %v2691, %v3717
      %v4230 = vmax.f32 %v2694, %v3718
      %v4231 = vmax.f32 %v2696, %v3719
      %v4232 = vmax.f32 %v2699, %v3720
      %v4233 = vmax.f32 %v2701, %v3721
      %v4234 = vmax.f32 %v2704, %v3722
      %v4235 = vmax.f32 %v2706, %v3723
      %v4236 = vmax.f32 %v2709, %v3724
      %v4237 = vmax.f32 %v2711, %v3725
      %v4238 = vmax.f32 %v2714, %v3726
      %v4239 = vmax.f32 %v2716, %v3727
      %v4240 = vmax.f32 %v2719, %v3728
      %v4241 = vmax.f32 %v2721, %v3729
      %v4242 = vmax.f32 %v2724, %v3730
      %v4243 = vmax.f32 %v2726, %v3731
      %v4244 = vmax.f32 %v2729, %v3732
      %v4245 = vmax.f32 %v2731, %v3733
      %v4246 = vmax.f32 %v2734, %v3734
      %v4247 = vmax.f32 %v2736, %v3735
      %v4248 = vmax.f32 %v2739, %v3736
      %v4249 = vmax.f32 %v2741, %v3737
      %v4250 = vmax.f32 %v2744, %v3738
      %v4251 = vmax.f32 %v2746, %v3739
      %v4252 = vmax.f32 %v2749, %v3740
      %v4253 = vmax.f32 %v2751, %v3741
      %v4254 = vmax.f32 %v2754, %v3742
      %v4255 = vmax.f32 %v2756, %v3743
      %v4256 = vmax.f32 %v2759, %v3744
      %v4257 = vmax.f32 %v2761, %v3745
      %v4258 = vmax.f32 %v2764, %v3746
      %v4259 = vmax.f32 %v2766, %v3747
      %v4260 = vmax.f32 %v2769, %v3748
      %v4261 = vmax.f32 %v2771, %v3749
      %v4262 = vmax.f32 %v2774, %v3750
      %v4263 = vmax.f32 %v2776, %v3751
      %v4264 = vmax.f32 %v2779, %v3752
      %v4265 = vmax.f32 %v2781, %v3753
      %v4266 = vmax.f32 %v2784, %v3754
      %v4267 = vmax.f32 %v2786, %v3755
      %v4268 = vmax.f32 %v2789, %v3756
      %v4269 = vmax.f32 %v2791, %v3757
      %v4270 = vmax.f32 %v2794, %v3758
      %v4271 = vmax.f32 %v2796, %v3759
      %v4272 = vmax.f32 %v2799, %v3760
      %v4273 = vmax.f32 %v2801, %v3761
      %v4274 = vmax.f32 %v2804, %v3762
      %v4275 = vmax.f32 %v2806, %v3763
      %v4276 = vmax.f32 %v2809, %v3764
      %v4277 = vmax.f32 %v2811, %v3765
      %v4278 = vmax.f32 %v2814, %v3766
      %v4279 = vmax.f32 %v2816, %v3767
      %v4280 = vmax.f32 %v2819, %v3768
      %v4281 = vmax.f32 %v2821, %v3769
      %v4282 = vmax.f32 %v2824, %v3770
      %v4283 = vmax.f32 %v2826, %v3771
      %v4284 = vmax.f32 %v2829, %v3772
      %v4285 = vmax.f32 %v2831, %v3773
      %v4286 = vmax.f32 %v2834, %v3774
      %v4287 = vmax.f32 %v2836, %v3775
      %v4288 = vmax.f32 %v2839, %v3776
      %v4289 = vmax.f32 %v2841, %v3777
      %v4290 = vmax.f32 %v2844, %v3778
      %v4291 = vmax.f32 %v2846, %v3779
      %v4292 = vmax.f32 %v2849, %v3780
      %v4293 = vmax.f32 %v2851, %v3781
      %v4294 = vmax.f32 %v2854, %v3782
      %v4295 = vmax.f32 %v2856, %v3783
      %v4296 = vmax.f32 %v2859, %v3784
      %v4297 = vmax.f32 %v2861, %v3785
      %v4298 = vmax.f32 %v2864, %v3786
      %v4299 = vmax.f32 %v2866, %v3787
      %v4300 = vmax.f32 %v2869, %v3788
      %v4301 = vmax.f32 %v2871, %v3789
      %v4302 = vmax.f32 %v2874, %v3790
      %v4303 = vmax.f32 %v2876, %v3791
      %v4304 = vmax.f32 %v2879, %v3792
      %v4305 = vmax.f32 %v2881, %v3793
      %v4306 = vmax.f32 %v2884, %v3794
      %v4307 = vmax.f32 %v2886, %v3795
      %v4308 = vmax.f32 %v2889, %v3796
      %v4309 = vmax.f32 %v2891, %v3797
      %v4310 = vmax.f32 %v2894, %v3798
      %v4311 = vmax.f32 %v2896, %v3799
      %v4312 = vmax.f32 %v2899, %v3800
      %v4313 = vmax.f32 %v2901, %v3801
      %v4314 = vmax.f32 %v2904, %v3802
      %v4315 = vmax.f32 %v2906, %v3803
      %v4316 = vmax.f32 %v2909, %v3804
      %v4317 = vmax.f32 %v2911, %v3805
      %v4318 = vmax.f32 %v2914, %v3806
      %v4319 = vmax.f32 %v2916, %v3807
      %v4320 = vmax.f32 %v2919, %v3808
      %v4321 = vmax.f32 %v2921, %v3809
      %v4322 = vmax.f32 %v2924, %v3810
      %v4323 = vmax.f32 %v2926, %v3811
      %v4324 = vmax.f32 %v2929, %v3812
      %v4325 = vmax.f32 %v2931, %v3813
      %v4326 = vmax.f32 %v2934, %v3814
      %v4327 = vmax.f32 %v2936, %v3815
      %v4328 = vmax.f32 %v2939, %v3816
      %v4329 = vmax.f32 %v2941, %v3817
      %v4330 = vmax.f32 %v2944, %v3818
      %v4331 = vmax.f32 %v2946, %v3819
      %v4332 = vmax.f32 %v2949, %v3820
      %v4333 = vmax.f32 %v2951, %v3821
      %v4334 = vmax.f32 %v2954, %v3822
      %v4335 = vmax.f32 %v2956, %v3823
      %v4336 = vmax.f32 %v2959, %v3824
      %v4337 = vmax.f32 %v2961, %v3825
      %v4338 = vmax.f32 %v2964, %v3826
      %v4339 = vmax.f32 %v2966, %v3827
      %v4340 = vmax.f32 %v2969, %v3828
      %v4341 = vmax.f32 %v2971, %v3829
      %v4342 = vmax.f32 %v2974, %v3830
      %v4343 = vmax.f32 %v2976, %v3831
      %v4344 = vmax.f32 %v2979, %v3832
      %v4345 = vmax.f32 %v2981, %v3833
      %v4346 = vmax.f32 %v2984, %v3834
      %v4347 = vmax.f32 %v2986, %v3835
      %v4348 = vmax.f32 %v2989, %v3836
      %v4349 = vmax.f32 %v2991, %v3837
      %v4350 = vmax.f32 %v2994, %v3838
      %v4351 = vmax.f32 %v2996, %v3839
      %v4352 = vmax.f32 %v2999, %v3840
      %v4353 = vmax.f32 %v3001, %v3841
      %v4354 = vmax.f32 %v3004, %v3842
      %v4355 = vmax.f32 %v3006, %v3843
      %v4356 = vmax.f32 %v3009, %v3844
      %v4357 = vmax.f32 %v3011, %v3845
      %v4358 = vmax.f32 %v3014, %v3846
      %v4359 = vmax.f32 %v3016, %v3847
      %v4360 = vmax.f32 %v3019, %v3848
      %v4361 = vmax.f32 %v3021, %v3849
      %v4362 = vmax.f32 %v3024, %v3850
      %v4363 = vmax.f32 %v3026, %v3851
      %v4364 = vmax.f32 %v3029, %v3852
      %v4365 = vmax.f32 %v3031, %v3853
      %v4366 = vmax.f32 %v3034, %v3854
      %v4367 = vmax.f32 %v3036, %v3855
      %v4368 = vmax.f32 %v3039, %v3856
      %v4369 = vmax.f32 %v3041, %v3857
      %v4370 = vmax.f32 %v3044, %v3858
      %v4371 = vmax.f32 %v3046, %v3859
      %v4372 = vmax.f32 %v3049, %v3860
      %v4373 = vmax.f32 %v3051, %v3861
      %v4374 = vmax.f32 %v3054, %v3862
      %v4375 = vmax.f32 %v3056, %v3863
      %v4376 = vmax.f32 %v3059, %v3864
      %v4377 = vmax.f32 %v3061, %v3865
      %v4378 = vmax.f32 %v3064, %v3866
      %v4379 = vmax.f32 %v3066, %v3867
      %v4380 = vmax.f32 %v3069, %v3868
      %v4381 = vmax.f32 %v3071, %v3869
      %v4382 = vmax.f32 %v3074, %v3870
      %v4383 = vmax.f32 %v3076, %v3871
      %v4384 = vmax.f32 %v3079, %v3872
      %v4385 = vmax.f32 %v3081, %v3873
      %v4386 = vmax.f32 %v3084, %v3874
      %v4387 = vmax.f32 %v3086, %v3875
      %v4388 = vmax.f32 %v3089, %v3876
      %v4389 = vmax.f32 %v3091, %v3877
      %v4390 = vmax.f32 %v3094, %v3878
      %v4391 = vmax.f32 %v3096, %v3879
      %v4392 = vmax.f32 %v3099, %v3880
      %v4393 = vmax.f32 %v3101, %v3881
      %v4394 = vmax.f32 %v3104, %v3882
      %v4395 = vmax.f32 %v3106, %v3883
      %v4396 = vmax.f32 %v3109, %v3884
      %v4397 = vmax.f32 %v3111, %v3885
      %v4398 = vmax.f32 %v3114, %v3886
      %v4399 = vmax.f32 %v3116, %v3887
      %v4400 = vmax.f32 %v3119, %v3888
      %v4401 = vmax.f32 %v3121, %v3889
      %v4402 = vmax.f32 %v3124, %v3890
      %v4403 = vmax.f32 %v3126, %v3891
      %v4404 = vmax.f32 %v3129, %v3892
      %v4405 = vmax.f32 %v3131, %v3893
      %v4406 = vmax.f32 %v3134, %v3894
      %v4407 = vmax.f32 %v3136, %v3895
      %v4408 = vmax.f32 %v3139, %v3896
      %v4409 = vmax.f32 %v3141, %v3897
      %v4410 = vmax.f32 %v3144, %v3898
      %v4411 = vmax.f32 %v3146, %v3899
      %v4412 = vmax.f32 %v3149, %v3900
      %v4413 = vmax.f32 %v3151, %v3901
      %v4414 = vmax.f32 %v3154, %v3902
      %v4415 = vmax.f32 %v3156, %v3903
      %v4416 = vmax.f32 %v3159, %v3904
      %v4417 = vmax.f32 %v3161, %v3905
      %v4418 = vmax.f32 %v3164, %v3906
      %v4419 = vmax.f32 %v3166, %v3907
      %v4420 = vmax.f32 %v3169, %v3908
      %v4421 = vmax.f32 %v3171, %v3909
      %v4422 = vmax.f32 %v3174, %v3910
      %v4423 = vmax.f32 %v3176, %v3911
      %v4424 = vmax.f32 %v3179, %v3912
      %v4425 = vmax.f32 %v3181, %v3913
      %v4426 = vmax.f32 %v3184, %v3914
      %v4427 = vmax.f32 %v3186, %v3915
      %v4428 = vmax.f32 %v3189, %v3916
      %v4429 = vmax.f32 %v3191, %v3917
      %v4430 = vmax.f32 %v3194, %v3918
      %v4431 = vmax.f32 %v3196, %v3919
      %v4432 = vmax.f32 %v3199, %v3920
      %v4433 = vmax.f32 %v3201, %v3921
      %v4434 = vmax.f32 %v3204, %v3922
      %v4435 = vmax.f32 %v3206, %v3923
      %v4436 = vmax.f32 %v3209, %v3924
      %v4437 = vmax.f32 %v3211, %v3925
      %v4438 = vmax.f32 %v3214, %v3926
      %v4439 = vmax.f32 %v3216, %v3927
      %v4440 = vmax.f32 %v3219, %v3928
      %v4441 = vmax.f32 %v3221, %v3929
      %v4442 = vmax.f32 %v3224, %v3930
      %v4443 = vmax.f32 %v3226, %v3931
      %v4444 = vmax.f32 %v3229, %v3932
      %v4445 = vmax.f32 %v3231, %v3933
      %v4446 = vmax.f32 %v3234, %v3934
      %v4447 = vmax.f32 %v3236, %v3935
      %v4448 = vmax.f32 %v3239, %v3936
      %v4449 = vmax.f32 %v3241, %v3937
      %v4450 = vmax.f32 %v3244, %v3938
      %v4451 = vmax.f32 %v3246, %v3939
      %v4452 = vmax.f32 %v3249, %v3940
      %v4453 = vmax.f32 %v3251, %v3941
      %v4454 = vmax.f32 %v3254, %v3942
      %v4455 = vmax.f32 %v3256, %v3943
      %v4456 = vmax.f32 %v3259, %v3944
      %v4457 = vmax.f32 %v3261, %v3945
      %v4458 = vmax.f32 %v3264, %v3946
      %v4459 = vmax.f32 %v3266, %v3947
      %v4460 = vmax.f32 %v3269, %v3948
      %v4461 = vmax.f32 %v3271, %v3949
      %v4462 = vmax.f32 %v3274, %v3950
      %v4463 = vmax.f32 %v3276, %v3951
      %v4464 = vmax.f32 %v3279, %v3952
      %v4465 = vmax.f32 %v3281, %v3953
      %v4466 = vmax.f32 %v3284, %v3954
      %v4467 = vmax.f32 %v3286, %v3955
      %v4468 = vmax.f32 %v3289, %v3956
      %v4469 = vmax.f32 %v3291, %v3957
      %v4470 = vmax.f32 %v3294, %v3958
      %v4471 = vmax.f32 %v3296, %v3959
      %v4472 = vmax.f32 %v3299, %v3960
      %v4473 = vmax.f32 %v3301, %v3961
      %v4474 = vmax.f32 %v3304, %v3962
      %v4475 = vmax.f32 %v3306, %v3963
      %v4476 = vmax.f32 %v3309, %v3964
      %v4477 = vmax.f32 %v3311, %v3965
      %v4478 = vmax.f32 %v3314, %v3966
      %v4479 = vmax.f32 %v3316, %v3967
      %v4480 = vmax.f32 %v3319, %v3968
      %v4481 = vmax.f32 %v3321, %v3969
      %v4482 = vmax.f32 %v3324, %v3970
      %v4483 = vmax.f32 %v3326, %v3971
      %v4484 = vmax.f32 %v3329, %v3972
      %v4485 = vmax.f32 %v3331, %v3973
      %v4486 = vmax.f32 %v3334, %v3974
      %v4487 = vmax.f32 %v3336, %v3975
      %v4488 = vmax.f32 %v3339, %v3976
      %v4489 = vmax.f32 %v3341, %v3977
      %v4490 = vmax.f32 %v3344, %v3978
      %v4491 = vmax.f32 %v3346, %v3979
      %v4492 = vmax.f32 %v3349, %v3980
      %v4493 = vmax.f32 %v3351, %v3981
      %v4494 = vmax.f32 %v3354, %v3982
      %v4495 = vmax.f32 %v3356, %v3983
      %v4496 = vmax.f32 %v3359, %v3984
      %v4497 = vmax.f32 %v3361, %v3985
      %v4498 = vmax.f32 %v3364, %v3986
      %v4499 = vmax.f32 %v3366, %v3987
      %v4500 = vmax.f32 %v3369, %v3988
      %v4501 = vmax.f32 %v3371, %v3989
      %v4502 = vmax.f32 %v3374, %v3990
      %v4503 = vmax.f32 %v3376, %v3991
      %v4504 = vmax.f32 %v3379, %v3992
      %v4505 = vmax.f32 %v3381, %v3993
      %v4506 = vmax.f32 %v3384, %v3994
      %v4507 = vmax.f32 %v3386, %v3995
      %v4508 = vmax.f32 %v3389, %v3996
      %v4509 = vmax.f32 %v3391, %v3997
      %v4510 = vmax.f32 %v3394, %v3998
      %v4511 = vmax.f32 %v3396, %v3999
      %v4512 = vmax.f32 %v3399, %v4000
      %v4513 = vmax.f32 %v3401, %v4001
      %v4514 = vmax.f32 %v3404, %v4002
      %v4515 = vmax.f32 %v3406, %v4003
      %v4516 = vmax.f32 %v3409, %v4004
      %v4517 = vmax.f32 %v3411, %v4005
      %v4518 = vmax.f32 %v3414, %v4006
      %v4519 = vmax.f32 %v3416, %v4007
      %v4520 = vmax.f32 %v3419, %v4008
      %v4521 = vmax.f32 %v3421, %v4009
      %v4522 = vmax.f32 %v3424, %v4010
      %v4523 = vmax.f32 %v3426, %v4011
      %v4524 = vmax.f32 %v3429, %v4012
      %v4525 = vmax.f32 %v3431, %v4013
      %v4526 = vmax.f32 %v3434, %v4014
      %v4527 = vmax.f32 %v3436, %v4015
      %v4528 = vmax.f32 %v3439, %v4016
      %v4529 = vmax.f32 %v3441, %v4017
      %v4530 = vmax.f32 %v3444, %v4018
      %v4531 = vmax.f32 %v3446, %v4019
      %v4532 = vmax.f32 %v3449, %v4020
      %v4533 = vmax.f32 %v3451, %v4021
      %v4534 = vmax.f32 %v3454, %v4022
      %v4535 = vmax.f32 %v3456, %v4023
      %v4536 = vmax.f32 %v3459, %v4024
      %v4537 = vmax.f32 %v3461, %v4025
      %v4538 = vmax.f32 %v3464, %v4026
      %v4539 = vmax.f32 %v3466, %v4027
      %v4540 = vmax.f32 %v3469, %v4028
      %v4541 = vmax.f32 %v3471, %v4029
      %v4542 = vmax.f32 %v3474, %v4030
      %v4543 = vmax.f32 %v3476, %v4031
      %v4544 = vmax.f32 %v3479, %v4032
      %v4545 = vmax.f32 %v3481, %v4033
      %v4546 = vmax.f32 %v3484, %v4034
      %v4547 = vmax.f32 %v3486, %v4035
      %v4548 = vmax.f32 %v3489, %v4036
      %v4549 = vmax.f32 %v3491, %v4037
      %v4550 = vmax.f32 %v3494, %v4038
      %v4551 = vmax.f32 %v3496, %v4039
      %v4552 = vmax.f32 %v3499, %v4040
      %v4553 = vmax.f32 %v3501, %v4041
      %v4554 = vmax.f32 %v3504, %v4042
      %v4555 = vmax.f32 %v3506, %v4043
      %v4556 = vmax.f32 %v3509, %v4044
      %v4557 = vmax.f32 %v3511, %v4045
      %v4558 = vmax.f32 %v3514, %v4046
      %v4559 = vmax.f32 %v3516, %v4047
      %v4560 = vmax.f32 %v3519, %v4048
      %v4561 = vmax.f32 %v3521, %v4049
      %v4562 = vmax.f32 %v3524, %v4050
      %v4563 = vmax.f32 %v3526, %v4051
      %v4564 = vmax.f32 %v3529, %v4052
      %v4565 = vmax.f32 %v3531, %v4053
      %v4566 = vmax.f32 %v3534, %v4054
      %v4567 = vmax.f32 %v3536, %v4055
      %v4568 = vmax.f32 %v3539, %v4056
      %v4569 = vmax.f32 %v3541, %v4057
      %v4570 = vmax.f32 %v3544, %v4058
      %v4571 = vmax.f32 %v3546, %v4059
      %v4572 = vpack.c.bf16 %v4060, %v4060
      %v4573 = vpack.c.bf16 %v4061, %v4061
      %v4574 = vpack.c.bf16 %v4062, %v4062
      %v4575 = vpack.c.bf16 %v4063, %v4063
      %v4576 = vpack.c.bf16 %v4064, %v4064
      %v4577 = vpack.c.bf16 %v4065, %v4065
      %v4578 = vpack.c.bf16 %v4066, %v4066
      %v4579 = vpack.c.bf16 %v4067, %v4067
      %v4580 = vpack.c.bf16 %v4068, %v4068
      %v4581 = vpack.c.bf16 %v4069, %v4069
      %v4582 = vpack.c.bf16 %v4070, %v4070
      %v4583 = vpack.c.bf16 %v4071, %v4071
      %v4584 = vpack.c.bf16 %v4072, %v4072
      %v4585 = vpack.c.bf16 %v4073, %v4073
      %v4586 = vpack.c.bf16 %v4074, %v4074
      %v4587 = vpack.c.bf16 %v4075, %v4075
      %v4588 = vpack.c.bf16 %v4076, %v4076
      %v4589 = vpack.c.bf16 %v4077, %v4077
      %v4590 = vpack.c.bf16 %v4078, %v4078
      %v4591 = vpack.c.bf16 %v4079, %v4079
      %v4592 = vpack.c.bf16 %v4080, %v4080
      %v4593 = vpack.c.bf16 %v4081, %v4081
      %v4594 = vpack.c.bf16 %v4082, %v4082
      %v4595 = vpack.c.bf16 %v4083, %v4083
      %v4596 = vpack.c.bf16 %v4084, %v4084
      %v4597 = vpack.c.bf16 %v4085, %v4085
      %v4598 = vpack.c.bf16 %v4086, %v4086
      %v4599 = vpack.c.bf16 %v4087, %v4087
      %v4600 = vpack.c.bf16 %v4088, %v4088
      %v4601 = vpack.c.bf16 %v4089, %v4089
      %v4602 = vpack.c.bf16 %v4090, %v4090
      %v4603 = vpack.c.bf16 %v4091, %v4091
      %v4604 = vpack.c.bf16 %v4092, %v4092
      %v4605 = vpack.c.bf16 %v4093, %v4093
      %v4606 = vpack.c.bf16 %v4094, %v4094
      %v4607 = vpack.c.bf16 %v4095, %v4095
      %v4608 = vpack.c.bf16 %v4096, %v4096
      %v4609 = vpack.c.bf16 %v4097, %v4097
      %v4610 = vpack.c.bf16 %v4098, %v4098
      %v4611 = vpack.c.bf16 %v4099, %v4099
      %v4612 = vpack.c.bf16 %v4100, %v4100
      %v4613 = vpack.c.bf16 %v4101, %v4101
      %v4614 = vpack.c.bf16 %v4102, %v4102
      %v4615 = vpack.c.bf16 %v4103, %v4103
      %v4616 = vpack.c.bf16 %v4104, %v4104
      %v4617 = vpack.c.bf16 %v4105, %v4105
      %v4618 = vpack.c.bf16 %v4106, %v4106
      %v4619 = vpack.c.bf16 %v4107, %v4107
      %v4620 = vpack.c.bf16 %v4108, %v4108
      %v4621 = vpack.c.bf16 %v4109, %v4109
      %v4622 = vpack.c.bf16 %v4110, %v4110
      %v4623 = vpack.c.bf16 %v4111, %v4111
      %v4624 = vpack.c.bf16 %v4112, %v4112
      %v4625 = vpack.c.bf16 %v4113, %v4113
      %v4626 = vpack.c.bf16 %v4114, %v4114
      %v4627 = vpack.c.bf16 %v4115, %v4115
      %v4628 = vpack.c.bf16 %v4116, %v4116
      %v4629 = vpack.c.bf16 %v4117, %v4117
      %v4630 = vpack.c.bf16 %v4118, %v4118
      %v4631 = vpack.c.bf16 %v4119, %v4119
      %v4632 = vpack.c.bf16 %v4120, %v4120
      %v4633 = vpack.c.bf16 %v4121, %v4121
      %v4634 = vpack.c.bf16 %v4122, %v4122
      %v4635 = vpack.c.bf16 %v4123, %v4123
      %v4636 = vpack.c.bf16 %v4124, %v4124
      %v4637 = vpack.c.bf16 %v4125, %v4125
      %v4638 = vpack.c.bf16 %v4126, %v4126
      %v4639 = vpack.c.bf16 %v4127, %v4127
      %v4640 = vpack.c.bf16 %v4128, %v4128
      %v4641 = vpack.c.bf16 %v4129, %v4129
      %v4642 = vpack.c.bf16 %v4130, %v4130
      %v4643 = vpack.c.bf16 %v4131, %v4131
      %v4644 = vpack.c.bf16 %v4132, %v4132
      %v4645 = vpack.c.bf16 %v4133, %v4133
      %v4646 = vpack.c.bf16 %v4134, %v4134
      %v4647 = vpack.c.bf16 %v4135, %v4135
      %v4648 = vpack.c.bf16 %v4136, %v4136
      %v4649 = vpack.c.bf16 %v4137, %v4137
      %v4650 = vpack.c.bf16 %v4138, %v4138
      %v4651 = vpack.c.bf16 %v4139, %v4139
      %v4652 = vpack.c.bf16 %v4140, %v4140
      %v4653 = vpack.c.bf16 %v4141, %v4141
      %v4654 = vpack.c.bf16 %v4142, %v4142
      %v4655 = vpack.c.bf16 %v4143, %v4143
      %v4656 = vpack.c.bf16 %v4144, %v4144
      %v4657 = vpack.c.bf16 %v4145, %v4145
      %v4658 = vpack.c.bf16 %v4146, %v4146
      %v4659 = vpack.c.bf16 %v4147, %v4147
      %v4660 = vpack.c.bf16 %v4148, %v4148
      %v4661 = vpack.c.bf16 %v4149, %v4149
      %v4662 = vpack.c.bf16 %v4150, %v4150
      %v4663 = vpack.c.bf16 %v4151, %v4151
      %v4664 = vpack.c.bf16 %v4152, %v4152
      %v4665 = vpack.c.bf16 %v4153, %v4153
      %v4666 = vpack.c.bf16 %v4154, %v4154
      %v4667 = vpack.c.bf16 %v4155, %v4155
      %v4668 = vpack.c.bf16 %v4156, %v4156
      %v4669 = vpack.c.bf16 %v4157, %v4157
      %v4670 = vpack.c.bf16 %v4158, %v4158
      %v4671 = vpack.c.bf16 %v4159, %v4159
      %v4672 = vpack.c.bf16 %v4160, %v4160
      %v4673 = vpack.c.bf16 %v4161, %v4161
      %v4674 = vpack.c.bf16 %v4162, %v4162
      %v4675 = vpack.c.bf16 %v4163, %v4163
      %v4676 = vpack.c.bf16 %v4164, %v4164
      %v4677 = vpack.c.bf16 %v4165, %v4165
      %v4678 = vpack.c.bf16 %v4166, %v4166
      %v4679 = vpack.c.bf16 %v4167, %v4167
      %v4680 = vpack.c.bf16 %v4168, %v4168
      %v4681 = vpack.c.bf16 %v4169, %v4169
      %v4682 = vpack.c.bf16 %v4170, %v4170
      %v4683 = vpack.c.bf16 %v4171, %v4171
      %v4684 = vpack.c.bf16 %v4172, %v4172
      %v4685 = vpack.c.bf16 %v4173, %v4173
      %v4686 = vpack.c.bf16 %v4174, %v4174
      %v4687 = vpack.c.bf16 %v4175, %v4175
      %v4688 = vpack.c.bf16 %v4176, %v4176
      %v4689 = vpack.c.bf16 %v4177, %v4177
      %v4690 = vpack.c.bf16 %v4178, %v4178
      %v4691 = vpack.c.bf16 %v4179, %v4179
      %v4692 = vpack.c.bf16 %v4180, %v4180
      %v4693 = vpack.c.bf16 %v4181, %v4181
      %v4694 = vpack.c.bf16 %v4182, %v4182
      %v4695 = vpack.c.bf16 %v4183, %v4183
      %v4696 = vpack.c.bf16 %v4184, %v4184
      %v4697 = vpack.c.bf16 %v4185, %v4185
      %v4698 = vpack.c.bf16 %v4186, %v4186
      %v4699 = vpack.c.bf16 %v4187, %v4187
      %v4700 = vpack.c.bf16 %v4188, %v4188
      %v4701 = vpack.c.bf16 %v4189, %v4189
      %v4702 = vpack.c.bf16 %v4190, %v4190
      %v4703 = vpack.c.bf16 %v4191, %v4191
      %v4704 = vpack.c.bf16 %v4192, %v4192
      %v4705 = vpack.c.bf16 %v4193, %v4193
      %v4706 = vpack.c.bf16 %v4194, %v4194
      %v4707 = vpack.c.bf16 %v4195, %v4195
      %v4708 = vpack.c.bf16 %v4196, %v4196
      %v4709 = vpack.c.bf16 %v4197, %v4197
      %v4710 = vpack.c.bf16 %v4198, %v4198
      %v4711 = vpack.c.bf16 %v4199, %v4199
      %v4712 = vpack.c.bf16 %v4200, %v4200
      %v4713 = vpack.c.bf16 %v4201, %v4201
      %v4714 = vpack.c.bf16 %v4202, %v4202
      %v4715 = vpack.c.bf16 %v4203, %v4203
      %v4716 = vpack.c.bf16 %v4204, %v4204
      %v4717 = vpack.c.bf16 %v4205, %v4205
      %v4718 = vpack.c.bf16 %v4206, %v4206
      %v4719 = vpack.c.bf16 %v4207, %v4207
      %v4720 = vpack.c.bf16 %v4208, %v4208
      %v4721 = vpack.c.bf16 %v4209, %v4209
      %v4722 = vpack.c.bf16 %v4210, %v4210
      %v4723 = vpack.c.bf16 %v4211, %v4211
      %v4724 = vpack.c.bf16 %v4212, %v4212
      %v4725 = vpack.c.bf16 %v4213, %v4213
      %v4726 = vpack.c.bf16 %v4214, %v4214
      %v4727 = vpack.c.bf16 %v4215, %v4215
      %v4728 = vpack.c.bf16 %v4216, %v4216
      %v4729 = vpack.c.bf16 %v4217, %v4217
      %v4730 = vpack.c.bf16 %v4218, %v4218
      %v4731 = vpack.c.bf16 %v4219, %v4219
      %v4732 = vpack.c.bf16 %v4220, %v4220
      %v4733 = vpack.c.bf16 %v4221, %v4221
      %v4734 = vpack.c.bf16 %v4222, %v4222
      %v4735 = vpack.c.bf16 %v4223, %v4223
      %v4736 = vpack.c.bf16 %v4224, %v4224
      %v4737 = vpack.c.bf16 %v4225, %v4225
      %v4738 = vpack.c.bf16 %v4226, %v4226
      %v4739 = vpack.c.bf16 %v4227, %v4227
      %v4740 = vpack.c.bf16 %v4228, %v4228
      %v4741 = vpack.c.bf16 %v4229, %v4229
      %v4742 = vpack.c.bf16 %v4230, %v4230
      %v4743 = vpack.c.bf16 %v4231, %v4231
      %v4744 = vpack.c.bf16 %v4232, %v4232
      %v4745 = vpack.c.bf16 %v4233, %v4233
      %v4746 = vpack.c.bf16 %v4234, %v4234
      %v4747 = vpack.c.bf16 %v4235, %v4235
      %v4748 = vpack.c.bf16 %v4236, %v4236
      %v4749 = vpack.c.bf16 %v4237, %v4237
      %v4750 = vpack.c.bf16 %v4238, %v4238
      %v4751 = vpack.c.bf16 %v4239, %v4239
      %v4752 = vpack.c.bf16 %v4240, %v4240
      %v4753 = vpack.c.bf16 %v4241, %v4241
      %v4754 = vpack.c.bf16 %v4242, %v4242
      %v4755 = vpack.c.bf16 %v4243, %v4243
      %v4756 = vpack.c.bf16 %v4244, %v4244
      %v4757 = vpack.c.bf16 %v4245, %v4245
      %v4758 = vpack.c.bf16 %v4246, %v4246
      %v4759 = vpack.c.bf16 %v4247, %v4247
      %v4760 = vpack.c.bf16 %v4248, %v4248
      %v4761 = vpack.c.bf16 %v4249, %v4249
      %v4762 = vpack.c.bf16 %v4250, %v4250
      %v4763 = vpack.c.bf16 %v4251, %v4251
      %v4764 = vpack.c.bf16 %v4252, %v4252
      %v4765 = vpack.c.bf16 %v4253, %v4253
      %v4766 = vpack.c.bf16 %v4254, %v4254
      %v4767 = vpack.c.bf16 %v4255, %v4255
      %v4768 = vpack.c.bf16 %v4256, %v4256
      %v4769 = vpack.c.bf16 %v4257, %v4257
      %v4770 = vpack.c.bf16 %v4258, %v4258
      %v4771 = vpack.c.bf16 %v4259, %v4259
      %v4772 = vpack.c.bf16 %v4260, %v4260
      %v4773 = vpack.c.bf16 %v4261, %v4261
      %v4774 = vpack.c.bf16 %v4262, %v4262
      %v4775 = vpack.c.bf16 %v4263, %v4263
      %v4776 = vpack.c.bf16 %v4264, %v4264
      %v4777 = vpack.c.bf16 %v4265, %v4265
      %v4778 = vpack.c.bf16 %v4266, %v4266
      %v4779 = vpack.c.bf16 %v4267, %v4267
      %v4780 = vpack.c.bf16 %v4268, %v4268
      %v4781 = vpack.c.bf16 %v4269, %v4269
      %v4782 = vpack.c.bf16 %v4270, %v4270
      %v4783 = vpack.c.bf16 %v4271, %v4271
      %v4784 = vpack.c.bf16 %v4272, %v4272
      %v4785 = vpack.c.bf16 %v4273, %v4273
      %v4786 = vpack.c.bf16 %v4274, %v4274
      %v4787 = vpack.c.bf16 %v4275, %v4275
      %v4788 = vpack.c.bf16 %v4276, %v4276
      %v4789 = vpack.c.bf16 %v4277, %v4277
      %v4790 = vpack.c.bf16 %v4278, %v4278
      %v4791 = vpack.c.bf16 %v4279, %v4279
      %v4792 = vpack.c.bf16 %v4280, %v4280
      %v4793 = vpack.c.bf16 %v4281, %v4281
      %v4794 = vpack.c.bf16 %v4282, %v4282
      %v4795 = vpack.c.bf16 %v4283, %v4283
      %v4796 = vpack.c.bf16 %v4284, %v4284
      %v4797 = vpack.c.bf16 %v4285, %v4285
      %v4798 = vpack.c.bf16 %v4286, %v4286
      %v4799 = vpack.c.bf16 %v4287, %v4287
      %v4800 = vpack.c.bf16 %v4288, %v4288
      %v4801 = vpack.c.bf16 %v4289, %v4289
      %v4802 = vpack.c.bf16 %v4290, %v4290
      %v4803 = vpack.c.bf16 %v4291, %v4291
      %v4804 = vpack.c.bf16 %v4292, %v4292
      %v4805 = vpack.c.bf16 %v4293, %v4293
      %v4806 = vpack.c.bf16 %v4294, %v4294
      %v4807 = vpack.c.bf16 %v4295, %v4295
      %v4808 = vpack.c.bf16 %v4296, %v4296
      %v4809 = vpack.c.bf16 %v4297, %v4297
      %v4810 = vpack.c.bf16 %v4298, %v4298
      %v4811 = vpack.c.bf16 %v4299, %v4299
      %v4812 = vpack.c.bf16 %v4300, %v4300
      %v4813 = vpack.c.bf16 %v4301, %v4301
      %v4814 = vpack.c.bf16 %v4302, %v4302
      %v4815 = vpack.c.bf16 %v4303, %v4303
      %v4816 = vpack.c.bf16 %v4304, %v4304
      %v4817 = vpack.c.bf16 %v4305, %v4305
      %v4818 = vpack.c.bf16 %v4306, %v4306
      %v4819 = vpack.c.bf16 %v4307, %v4307
      %v4820 = vpack.c.bf16 %v4308, %v4308
      %v4821 = vpack.c.bf16 %v4309, %v4309
      %v4822 = vpack.c.bf16 %v4310, %v4310
      %v4823 = vpack.c.bf16 %v4311, %v4311
      %v4824 = vpack.c.bf16 %v4312, %v4312
      %v4825 = vpack.c.bf16 %v4313, %v4313
      %v4826 = vpack.c.bf16 %v4314, %v4314
      %v4827 = vpack.c.bf16 %v4315, %v4315
      %v4828 = vpack.c.bf16 %v4316, %v4316
      %v4829 = vpack.c.bf16 %v4317, %v4317
      %v4830 = vpack.c.bf16 %v4318, %v4318
      %v4831 = vpack.c.bf16 %v4319, %v4319
      %v4832 = vpack.c.bf16 %v4320, %v4320
      %v4833 = vpack.c.bf16 %v4321, %v4321
      %v4834 = vpack.c.bf16 %v4322, %v4322
      %v4835 = vpack.c.bf16 %v4323, %v4323
      %v4836 = vpack.c.bf16 %v4324, %v4324
      %v4837 = vpack.c.bf16 %v4325, %v4325
      %v4838 = vpack.c.bf16 %v4326, %v4326
      %v4839 = vpack.c.bf16 %v4327, %v4327
      %v4840 = vpack.c.bf16 %v4328, %v4328
      %v4841 = vpack.c.bf16 %v4329, %v4329
      %v4842 = vpack.c.bf16 %v4330, %v4330
      %v4843 = vpack.c.bf16 %v4331, %v4331
      %v4844 = vpack.c.bf16 %v4332, %v4332
      %v4845 = vpack.c.bf16 %v4333, %v4333
      %v4846 = vpack.c.bf16 %v4334, %v4334
      %v4847 = vpack.c.bf16 %v4335, %v4335
      %v4848 = vpack.c.bf16 %v4336, %v4336
      %v4849 = vpack.c.bf16 %v4337, %v4337
      %v4850 = vpack.c.bf16 %v4338, %v4338
      %v4851 = vpack.c.bf16 %v4339, %v4339
      %v4852 = vpack.c.bf16 %v4340, %v4340
      %v4853 = vpack.c.bf16 %v4341, %v4341
      %v4854 = vpack.c.bf16 %v4342, %v4342
      %v4855 = vpack.c.bf16 %v4343, %v4343
      %v4856 = vpack.c.bf16 %v4344, %v4344
      %v4857 = vpack.c.bf16 %v4345, %v4345
      %v4858 = vpack.c.bf16 %v4346, %v4346
      %v4859 = vpack.c.bf16 %v4347, %v4347
      %v4860 = vpack.c.bf16 %v4348, %v4348
      %v4861 = vpack.c.bf16 %v4349, %v4349
      %v4862 = vpack.c.bf16 %v4350, %v4350
      %v4863 = vpack.c.bf16 %v4351, %v4351
      %v4864 = vpack.c.bf16 %v4352, %v4352
      %v4865 = vpack.c.bf16 %v4353, %v4353
      %v4866 = vpack.c.bf16 %v4354, %v4354
      %v4867 = vpack.c.bf16 %v4355, %v4355
      %v4868 = vpack.c.bf16 %v4356, %v4356
      %v4869 = vpack.c.bf16 %v4357, %v4357
      %v4870 = vpack.c.bf16 %v4358, %v4358
      %v4871 = vpack.c.bf16 %v4359, %v4359
      %v4872 = vpack.c.bf16 %v4360, %v4360
      %v4873 = vpack.c.bf16 %v4361, %v4361
      %v4874 = vpack.c.bf16 %v4362, %v4362
      %v4875 = vpack.c.bf16 %v4363, %v4363
      %v4876 = vpack.c.bf16 %v4364, %v4364
      %v4877 = vpack.c.bf16 %v4365, %v4365
      %v4878 = vpack.c.bf16 %v4366, %v4366
      %v4879 = vpack.c.bf16 %v4367, %v4367
      %v4880 = vpack.c.bf16 %v4368, %v4368
      %v4881 = vpack.c.bf16 %v4369, %v4369
      %v4882 = vpack.c.bf16 %v4370, %v4370
      %v4883 = vpack.c.bf16 %v4371, %v4371
      %v4884 = vpack.c.bf16 %v4372, %v4372
      %v4885 = vpack.c.bf16 %v4373, %v4373
      %v4886 = vpack.c.bf16 %v4374, %v4374
      %v4887 = vpack.c.bf16 %v4375, %v4375
      %v4888 = vpack.c.bf16 %v4376, %v4376
      %v4889 = vpack.c.bf16 %v4377, %v4377
      %v4890 = vpack.c.bf16 %v4378, %v4378
      %v4891 = vpack.c.bf16 %v4379, %v4379
      %v4892 = vpack.c.bf16 %v4380, %v4380
      %v4893 = vpack.c.bf16 %v4381, %v4381
      %v4894 = vpack.c.bf16 %v4382, %v4382
      %v4895 = vpack.c.bf16 %v4383, %v4383
      %v4896 = vpack.c.bf16 %v4384, %v4384
      %v4897 = vpack.c.bf16 %v4385, %v4385
      %v4898 = vpack.c.bf16 %v4386, %v4386
      %v4899 = vpack.c.bf16 %v4387, %v4387
      %v4900 = vpack.c.bf16 %v4388, %v4388
      %v4901 = vpack.c.bf16 %v4389, %v4389
      %v4902 = vpack.c.bf16 %v4390, %v4390
      %v4903 = vpack.c.bf16 %v4391, %v4391
      %v4904 = vpack.c.bf16 %v4392, %v4392
      %v4905 = vpack.c.bf16 %v4393, %v4393
      %v4906 = vpack.c.bf16 %v4394, %v4394
      %v4907 = vpack.c.bf16 %v4395, %v4395
      %v4908 = vpack.c.bf16 %v4396, %v4396
      %v4909 = vpack.c.bf16 %v4397, %v4397
      %v4910 = vpack.c.bf16 %v4398, %v4398
      %v4911 = vpack.c.bf16 %v4399, %v4399
      %v4912 = vpack.c.bf16 %v4400, %v4400
      %v4913 = vpack.c.bf16 %v4401, %v4401
      %v4914 = vpack.c.bf16 %v4402, %v4402
      %v4915 = vpack.c.bf16 %v4403, %v4403
      %v4916 = vpack.c.bf16 %v4404, %v4404
      %v4917 = vpack.c.bf16 %v4405, %v4405
      %v4918 = vpack.c.bf16 %v4406, %v4406
      %v4919 = vpack.c.bf16 %v4407, %v4407
      %v4920 = vpack.c.bf16 %v4408, %v4408
      %v4921 = vpack.c.bf16 %v4409, %v4409
      %v4922 = vpack.c.bf16 %v4410, %v4410
      %v4923 = vpack.c.bf16 %v4411, %v4411
      %v4924 = vpack.c.bf16 %v4412, %v4412
      %v4925 = vpack.c.bf16 %v4413, %v4413
      %v4926 = vpack.c.bf16 %v4414, %v4414
      %v4927 = vpack.c.bf16 %v4415, %v4415
      %v4928 = vpack.c.bf16 %v4416, %v4416
      %v4929 = vpack.c.bf16 %v4417, %v4417
      %v4930 = vpack.c.bf16 %v4418, %v4418
      %v4931 = vpack.c.bf16 %v4419, %v4419
      %v4932 = vpack.c.bf16 %v4420, %v4420
      %v4933 = vpack.c.bf16 %v4421, %v4421
      %v4934 = vpack.c.bf16 %v4422, %v4422
      %v4935 = vpack.c.bf16 %v4423, %v4423
      %v4936 = vpack.c.bf16 %v4424, %v4424
      %v4937 = vpack.c.bf16 %v4425, %v4425
      %v4938 = vpack.c.bf16 %v4426, %v4426
      %v4939 = vpack.c.bf16 %v4427, %v4427
      %v4940 = vpack.c.bf16 %v4428, %v4428
      %v4941 = vpack.c.bf16 %v4429, %v4429
      %v4942 = vpack.c.bf16 %v4430, %v4430
      %v4943 = vpack.c.bf16 %v4431, %v4431
      %v4944 = vpack.c.bf16 %v4432, %v4432
      %v4945 = vpack.c.bf16 %v4433, %v4433
      %v4946 = vpack.c.bf16 %v4434, %v4434
      %v4947 = vpack.c.bf16 %v4435, %v4435
      %v4948 = vpack.c.bf16 %v4436, %v4436
      %v4949 = vpack.c.bf16 %v4437, %v4437
      %v4950 = vpack.c.bf16 %v4438, %v4438
      %v4951 = vpack.c.bf16 %v4439, %v4439
      %v4952 = vpack.c.bf16 %v4440, %v4440
      %v4953 = vpack.c.bf16 %v4441, %v4441
      %v4954 = vpack.c.bf16 %v4442, %v4442
      %v4955 = vpack.c.bf16 %v4443, %v4443
      %v4956 = vpack.c.bf16 %v4444, %v4444
      %v4957 = vpack.c.bf16 %v4445, %v4445
      %v4958 = vpack.c.bf16 %v4446, %v4446
      %v4959 = vpack.c.bf16 %v4447, %v4447
      %v4960 = vpack.c.bf16 %v4448, %v4448
      %v4961 = vpack.c.bf16 %v4449, %v4449
      %v4962 = vpack.c.bf16 %v4450, %v4450
      %v4963 = vpack.c.bf16 %v4451, %v4451
      %v4964 = vpack.c.bf16 %v4452, %v4452
      %v4965 = vpack.c.bf16 %v4453, %v4453
      %v4966 = vpack.c.bf16 %v4454, %v4454
      %v4967 = vpack.c.bf16 %v4455, %v4455
      %v4968 = vpack.c.bf16 %v4456, %v4456
      %v4969 = vpack.c.bf16 %v4457, %v4457
      %v4970 = vpack.c.bf16 %v4458, %v4458
      %v4971 = vpack.c.bf16 %v4459, %v4459
      %v4972 = vpack.c.bf16 %v4460, %v4460
      %v4973 = vpack.c.bf16 %v4461, %v4461
      %v4974 = vpack.c.bf16 %v4462, %v4462
      %v4975 = vpack.c.bf16 %v4463, %v4463
      %v4976 = vpack.c.bf16 %v4464, %v4464
      %v4977 = vpack.c.bf16 %v4465, %v4465
      %v4978 = vpack.c.bf16 %v4466, %v4466
      %v4979 = vpack.c.bf16 %v4467, %v4467
      %v4980 = vpack.c.bf16 %v4468, %v4468
      %v4981 = vpack.c.bf16 %v4469, %v4469
      %v4982 = vpack.c.bf16 %v4470, %v4470
      %v4983 = vpack.c.bf16 %v4471, %v4471
      %v4984 = vpack.c.bf16 %v4472, %v4472
      %v4985 = vpack.c.bf16 %v4473, %v4473
      %v4986 = vpack.c.bf16 %v4474, %v4474
      %v4987 = vpack.c.bf16 %v4475, %v4475
      %v4988 = vpack.c.bf16 %v4476, %v4476
      %v4989 = vpack.c.bf16 %v4477, %v4477
      %v4990 = vpack.c.bf16 %v4478, %v4478
      %v4991 = vpack.c.bf16 %v4479, %v4479
      %v4992 = vpack.c.bf16 %v4480, %v4480
      %v4993 = vpack.c.bf16 %v4481, %v4481
      %v4994 = vpack.c.bf16 %v4482, %v4482
      %v4995 = vpack.c.bf16 %v4483, %v4483
      %v4996 = vpack.c.bf16 %v4484, %v4484
      %v4997 = vpack.c.bf16 %v4485, %v4485
      %v4998 = vpack.c.bf16 %v4486, %v4486
      %v4999 = vpack.c.bf16 %v4487, %v4487
      %v5000 = vpack.c.bf16 %v4488, %v4488
      %v5001 = vpack.c.bf16 %v4489, %v4489
      %v5002 = vpack.c.bf16 %v4490, %v4490
      %v5003 = vpack.c.bf16 %v4491, %v4491
      %v5004 = vpack.c.bf16 %v4492, %v4492
      %v5005 = vpack.c.bf16 %v4493, %v4493
      %v5006 = vpack.c.bf16 %v4494, %v4494
      %v5007 = vpack.c.bf16 %v4495, %v4495
      %v5008 = vpack.c.bf16 %v4496, %v4496
      %v5009 = vpack.c.bf16 %v4497, %v4497
      %v5010 = vpack.c.bf16 %v4498, %v4498
      %v5011 = vpack.c.bf16 %v4499, %v4499
      %v5012 = vpack.c.bf16 %v4500, %v4500
      %v5013 = vpack.c.bf16 %v4501, %v4501
      %v5014 = vpack.c.bf16 %v4502, %v4502
      %v5015 = vpack.c.bf16 %v4503, %v4503
      %v5016 = vpack.c.bf16 %v4504, %v4504
      %v5017 = vpack.c.bf16 %v4505, %v4505
      %v5018 = vpack.c.bf16 %v4506, %v4506
      %v5019 = vpack.c.bf16 %v4507, %v4507
      %v5020 = vpack.c.bf16 %v4508, %v4508
      %v5021 = vpack.c.bf16 %v4509, %v4509
      %v5022 = vpack.c.bf16 %v4510, %v4510
      %v5023 = vpack.c.bf16 %v4511, %v4511
      %v5024 = vpack.c.bf16 %v4512, %v4512
      %v5025 = vpack.c.bf16 %v4513, %v4513
      %v5026 = vpack.c.bf16 %v4514, %v4514
      %v5027 = vpack.c.bf16 %v4515, %v4515
      %v5028 = vpack.c.bf16 %v4516, %v4516
      %v5029 = vpack.c.bf16 %v4517, %v4517
      %v5030 = vpack.c.bf16 %v4518, %v4518
      %v5031 = vpack.c.bf16 %v4519, %v4519
      %v5032 = vpack.c.bf16 %v4520, %v4520
      %v5033 = vpack.c.bf16 %v4521, %v4521
      %v5034 = vpack.c.bf16 %v4522, %v4522
      %v5035 = vpack.c.bf16 %v4523, %v4523
      %v5036 = vpack.c.bf16 %v4524, %v4524
      %v5037 = vpack.c.bf16 %v4525, %v4525
      %v5038 = vpack.c.bf16 %v4526, %v4526
      %v5039 = vpack.c.bf16 %v4527, %v4527
      %v5040 = vpack.c.bf16 %v4528, %v4528
      %v5041 = vpack.c.bf16 %v4529, %v4529
      %v5042 = vpack.c.bf16 %v4530, %v4530
      %v5043 = vpack.c.bf16 %v4531, %v4531
      %v5044 = vpack.c.bf16 %v4532, %v4532
      %v5045 = vpack.c.bf16 %v4533, %v4533
      %v5046 = vpack.c.bf16 %v4534, %v4534
      %v5047 = vpack.c.bf16 %v4535, %v4535
      %v5048 = vpack.c.bf16 %v4536, %v4536
      %v5049 = vpack.c.bf16 %v4537, %v4537
      %v5050 = vpack.c.bf16 %v4538, %v4538
      %v5051 = vpack.c.bf16 %v4539, %v4539
      %v5052 = vpack.c.bf16 %v4540, %v4540
      %v5053 = vpack.c.bf16 %v4541, %v4541
      %v5054 = vpack.c.bf16 %v4542, %v4542
      %v5055 = vpack.c.bf16 %v4543, %v4543
      %v5056 = vpack.c.bf16 %v4544, %v4544
      %v5057 = vpack.c.bf16 %v4545, %v4545
      %v5058 = vpack.c.bf16 %v4546, %v4546
      %v5059 = vpack.c.bf16 %v4547, %v4547
      %v5060 = vpack.c.bf16 %v4548, %v4548
      %v5061 = vpack.c.bf16 %v4549, %v4549
      %v5062 = vpack.c.bf16 %v4550, %v4550
      %v5063 = vpack.c.bf16 %v4551, %v4551
      %v5064 = vpack.c.bf16 %v4552, %v4552
      %v5065 = vpack.c.bf16 %v4553, %v4553
      %v5066 = vpack.c.bf16 %v4554, %v4554
      %v5067 = vpack.c.bf16 %v4555, %v4555
      %v5068 = vpack.c.bf16 %v4556, %v4556
      %v5069 = vpack.c.bf16 %v4557, %v4557
      %v5070 = vpack.c.bf16 %v4558, %v4558
      %v5071 = vpack.c.bf16 %v4559, %v4559
      %v5072 = vpack.c.bf16 %v4560, %v4560
      %v5073 = vpack.c.bf16 %v4561, %v4561
      %v5074 = vpack.c.bf16 %v4562, %v4562
      %v5075 = vpack.c.bf16 %v4563, %v4563
      %v5076 = vpack.c.bf16 %v4564, %v4564
      %v5077 = vpack.c.bf16 %v4565, %v4565
      %v5078 = vpack.c.bf16 %v4566, %v4566
      %v5079 = vpack.c.bf16 %v4567, %v4567
      %v5080 = vpack.c.bf16 %v4568, %v4568
      %v5081 = vpack.c.bf16 %v4569, %v4569
      %v5082 = vpack.c.bf16 %v4570, %v4570
      %v5083 = vpack.c.bf16 %v4571, %v4571
      %5084 = vst [vmem:[%s145] sm:$0xf] %v4572
      %5085 = vst [vmem:[%s145 + $0x4] sm:$0xf] %v4573
      %5086 = vst [vmem:[%s145 + $0x8] sm:$0xf] %v4574
      %5087 = vst [vmem:[%s145 + $0xc] sm:$0xf] %v4575
      %5088 = vst [vmem:[%s145 + $0x10] sm:$0xf] %v4576
      %5089 = vst [vmem:[%s145 + $0x14] sm:$0xf] %v4577
      %5090 = vst [vmem:[%s145 + $0x18] sm:$0xf] %v4578
      %5091 = vst [vmem:[%s145 + $0x1c] sm:$0xf] %v4579
      %5092 = vst [vmem:[%s145 + $0x20] sm:$0xf] %v4580
      %5093 = vst [vmem:[%s145 + $0x24] sm:$0xf] %v4581
      %5094 = vst [vmem:[%s145 + $0x28] sm:$0xf] %v4582
      %5095 = vst [vmem:[%s145 + $0x2c] sm:$0xf] %v4583
      %5096 = vst [vmem:[%s145 + $0x30] sm:$0xf] %v4584
      %5097 = vst [vmem:[%s145 + $0x34] sm:$0xf] %v4585
      %5098 = vst [vmem:[%s145 + $0x38] sm:$0xf] %v4586
      %5099 = vst [vmem:[%s145 + $0x3c] sm:$0xf] %v4587
      %5100 = vst [vmem:[%s145 + $0x40] sm:$0xf] %v4588
      %5101 = vst [vmem:[%s145 + $0x44] sm:$0xf] %v4589
      %5102 = vst [vmem:[%s145 + $0x48] sm:$0xf] %v4590
      %5103 = vst [vmem:[%s145 + $0x4c] sm:$0xf] %v4591
      %5104 = vst [vmem:[%s145 + $0x50] sm:$0xf] %v4592
      %5105 = vst [vmem:[%s145 + $0x54] sm:$0xf] %v4593
      %5106 = vst [vmem:[%s145 + $0x58] sm:$0xf] %v4594
      %5107 = vst [vmem:[%s145 + $0x5c] sm:$0xf] %v4595
      %5108 = vst [vmem:[%s145 + $0x60] sm:$0xf] %v4596
      %5109 = vst [vmem:[%s145 + $0x64] sm:$0xf] %v4597
      %5110 = vst [vmem:[%s145 + $0x68] sm:$0xf] %v4598
      %5111 = vst [vmem:[%s145 + $0x6c] sm:$0xf] %v4599
      %5112 = vst [vmem:[%s145 + $0x70] sm:$0xf] %v4600
      %5113 = vst [vmem:[%s145 + $0x74] sm:$0xf] %v4601
      %5114 = vst [vmem:[%s145 + $0x78] sm:$0xf] %v4602
      %5115 = vst [vmem:[%s145 + $0x7c] sm:$0xf] %v4603
      %5116 = vst [vmem:[%s145 + $0x80] sm:$0xf] %v4604
      %5117 = vst [vmem:[%s145 + $0x84] sm:$0xf] %v4605
      %5118 = vst [vmem:[%s145 + $0x88] sm:$0xf] %v4606
      %5119 = vst [vmem:[%s145 + $0x8c] sm:$0xf] %v4607
      %5120 = vst [vmem:[%s145 + $0x90] sm:$0xf] %v4608
      %5121 = vst [vmem:[%s145 + $0x94] sm:$0xf] %v4609
      %5122 = vst [vmem:[%s145 + $0x98] sm:$0xf] %v4610
      %5123 = vst [vmem:[%s145 + $0x9c] sm:$0xf] %v4611
      %5124 = vst [vmem:[%s145 + $0xa0] sm:$0xf] %v4612
      %5125 = vst [vmem:[%s145 + $0xa4] sm:$0xf] %v4613
      %5126 = vst [vmem:[%s145 + $0xa8] sm:$0xf] %v4614
      %5127 = vst [vmem:[%s145 + $0xac] sm:$0xf] %v4615
      %5128 = vst [vmem:[%s145 + $0xb0] sm:$0xf] %v4616
      %5129 = vst [vmem:[%s145 + $0xb4] sm:$0xf] %v4617
      %5130 = vst [vmem:[%s145 + $0xb8] sm:$0xf] %v4618
      %5131 = vst [vmem:[%s145 + $0xbc] sm:$0xf] %v4619
      %5132 = vst [vmem:[%s145 + $0xc0] sm:$0xf] %v4620
      %5133 = vst [vmem:[%s145 + $0xc4] sm:$0xf] %v4621
      %5134 = vst [vmem:[%s145 + $0xc8] sm:$0xf] %v4622
      %5135 = vst [vmem:[%s145 + $0xcc] sm:$0xf] %v4623
      %5136 = vst [vmem:[%s145 + $0xd0] sm:$0xf] %v4624
      %5137 = vst [vmem:[%s145 + $0xd4] sm:$0xf] %v4625
      %5138 = vst [vmem:[%s145 + $0xd8] sm:$0xf] %v4626
      %5139 = vst [vmem:[%s145 + $0xdc] sm:$0xf] %v4627
      %5140 = vst [vmem:[%s145 + $0xe0] sm:$0xf] %v4628
      %5141 = vst [vmem:[%s145 + $0xe4] sm:$0xf] %v4629
      %5142 = vst [vmem:[%s145 + $0xe8] sm:$0xf] %v4630
      %5143 = vst [vmem:[%s145 + $0xec] sm:$0xf] %v4631
      %5144 = vst [vmem:[%s145 + $0xf0] sm:$0xf] %v4632
      %5145 = vst [vmem:[%s145 + $0xf4] sm:$0xf] %v4633
      %5146 = vst [vmem:[%s145 + $0xf8] sm:$0xf] %v4634
      %5147 = vst [vmem:[%s145 + $0xfc] sm:$0xf] %v4635
      %5148 = vst [vmem:[%s145 + $0x100] sm:$0xf] %v4636
      %5149 = vst [vmem:[%s145 + $0x104] sm:$0xf] %v4637
      %5150 = vst [vmem:[%s145 + $0x108] sm:$0xf] %v4638
      %5151 = vst [vmem:[%s145 + $0x10c] sm:$0xf] %v4639
      %5152 = vst [vmem:[%s145 + $0x110] sm:$0xf] %v4640
      %5153 = vst [vmem:[%s145 + $0x114] sm:$0xf] %v4641
      %5154 = vst [vmem:[%s145 + $0x118] sm:$0xf] %v4642
      %5155 = vst [vmem:[%s145 + $0x11c] sm:$0xf] %v4643
      %5156 = vst [vmem:[%s145 + $0x120] sm:$0xf] %v4644
      %5157 = vst [vmem:[%s145 + $0x124] sm:$0xf] %v4645
      %5158 = vst [vmem:[%s145 + $0x128] sm:$0xf] %v4646
      %5159 = vst [vmem:[%s145 + $0x12c] sm:$0xf] %v4647
      %5160 = vst [vmem:[%s145 + $0x130] sm:$0xf] %v4648
      %5161 = vst [vmem:[%s145 + $0x134] sm:$0xf] %v4649
      %5162 = vst [vmem:[%s145 + $0x138] sm:$0xf] %v4650
      %5163 = vst [vmem:[%s145 + $0x13c] sm:$0xf] %v4651
      %5164 = vst [vmem:[%s145 + $0x140] sm:$0xf] %v4652
      %5165 = vst [vmem:[%s145 + $0x144] sm:$0xf] %v4653
      %5166 = vst [vmem:[%s145 + $0x148] sm:$0xf] %v4654
      %5167 = vst [vmem:[%s145 + $0x14c] sm:$0xf] %v4655
      %5168 = vst [vmem:[%s145 + $0x150] sm:$0xf] %v4656
      %5169 = vst [vmem:[%s145 + $0x154] sm:$0xf] %v4657
      %5170 = vst [vmem:[%s145 + $0x158] sm:$0xf] %v4658
      %5171 = vst [vmem:[%s145 + $0x15c] sm:$0xf] %v4659
      %5172 = vst [vmem:[%s145 + $0x160] sm:$0xf] %v4660
      %5173 = vst [vmem:[%s145 + $0x164] sm:$0xf] %v4661
      %5174 = vst [vmem:[%s145 + $0x168] sm:$0xf] %v4662
      %5175 = vst [vmem:[%s145 + $0x16c] sm:$0xf] %v4663
      %5176 = vst [vmem:[%s145 + $0x170] sm:$0xf] %v4664
      %5177 = vst [vmem:[%s145 + $0x174] sm:$0xf] %v4665
      %5178 = vst [vmem:[%s145 + $0x178] sm:$0xf] %v4666
      %5179 = vst [vmem:[%s145 + $0x17c] sm:$0xf] %v4667
      %5180 = vst [vmem:[%s145 + $0x180] sm:$0xf] %v4668
      %5181 = vst [vmem:[%s145 + $0x184] sm:$0xf] %v4669
      %5182 = vst [vmem:[%s145 + $0x188] sm:$0xf] %v4670
      %5183 = vst [vmem:[%s145 + $0x18c] sm:$0xf] %v4671
      %5184 = vst [vmem:[%s145 + $0x190] sm:$0xf] %v4672
      %5185 = vst [vmem:[%s145 + $0x194] sm:$0xf] %v4673
      %5186 = vst [vmem:[%s145 + $0x198] sm:$0xf] %v4674
      %5187 = vst [vmem:[%s145 + $0x19c] sm:$0xf] %v4675
      %5188 = vst [vmem:[%s145 + $0x1a0] sm:$0xf] %v4676
      %5189 = vst [vmem:[%s145 + $0x1a4] sm:$0xf] %v4677
      %5190 = vst [vmem:[%s145 + $0x1a8] sm:$0xf] %v4678
      %5191 = vst [vmem:[%s145 + $0x1ac] sm:$0xf] %v4679
      %5192 = vst [vmem:[%s145 + $0x1b0] sm:$0xf] %v4680
      %5193 = vst [vmem:[%s145 + $0x1b4] sm:$0xf] %v4681
      %5194 = vst [vmem:[%s145 + $0x1b8] sm:$0xf] %v4682
      %5195 = vst [vmem:[%s145 + $0x1bc] sm:$0xf] %v4683
      %5196 = vst [vmem:[%s145 + $0x1c0] sm:$0xf] %v4684
      %5197 = vst [vmem:[%s145 + $0x1c4] sm:$0xf] %v4685
      %5198 = vst [vmem:[%s145 + $0x1c8] sm:$0xf] %v4686
      %5199 = vst [vmem:[%s145 + $0x1cc] sm:$0xf] %v4687
      %5200 = vst [vmem:[%s145 + $0x1d0] sm:$0xf] %v4688
      %5201 = vst [vmem:[%s145 + $0x1d4] sm:$0xf] %v4689
      %5202 = vst [vmem:[%s145 + $0x1d8] sm:$0xf] %v4690
      %5203 = vst [vmem:[%s145 + $0x1dc] sm:$0xf] %v4691
      %5204 = vst [vmem:[%s145 + $0x1e0] sm:$0xf] %v4692
      %5205 = vst [vmem:[%s145 + $0x1e4] sm:$0xf] %v4693
      %5206 = vst [vmem:[%s145 + $0x1e8] sm:$0xf] %v4694
      %5207 = vst [vmem:[%s145 + $0x1ec] sm:$0xf] %v4695
      %5208 = vst [vmem:[%s145 + $0x1f0] sm:$0xf] %v4696
      %5209 = vst [vmem:[%s145 + $0x1f4] sm:$0xf] %v4697
      %5210 = vst [vmem:[%s145 + $0x1f8] sm:$0xf] %v4698
      %5211 = vst [vmem:[%s145 + $0x1fc] sm:$0xf] %v4699
      %5212 = vst [vmem:[%s145 + $0x200] sm:$0xf] %v4700
      %5213 = vst [vmem:[%s145 + $0x204] sm:$0xf] %v4701
      %5214 = vst [vmem:[%s145 + $0x208] sm:$0xf] %v4702
      %5215 = vst [vmem:[%s145 + $0x20c] sm:$0xf] %v4703
      %5216 = vst [vmem:[%s145 + $0x210] sm:$0xf] %v4704
      %5217 = vst [vmem:[%s145 + $0x214] sm:$0xf] %v4705
      %5218 = vst [vmem:[%s145 + $0x218] sm:$0xf] %v4706
      %5219 = vst [vmem:[%s145 + $0x21c] sm:$0xf] %v4707
      %5220 = vst [vmem:[%s145 + $0x220] sm:$0xf] %v4708
      %5221 = vst [vmem:[%s145 + $0x224] sm:$0xf] %v4709
      %5222 = vst [vmem:[%s145 + $0x228] sm:$0xf] %v4710
      %5223 = vst [vmem:[%s145 + $0x22c] sm:$0xf] %v4711
      %5224 = vst [vmem:[%s145 + $0x230] sm:$0xf] %v4712
      %5225 = vst [vmem:[%s145 + $0x234] sm:$0xf] %v4713
      %5226 = vst [vmem:[%s145 + $0x238] sm:$0xf] %v4714
      %5227 = vst [vmem:[%s145 + $0x23c] sm:$0xf] %v4715
      %5228 = vst [vmem:[%s145 + $0x240] sm:$0xf] %v4716
      %5229 = vst [vmem:[%s145 + $0x244] sm:$0xf] %v4717
      %5230 = vst [vmem:[%s145 + $0x248] sm:$0xf] %v4718
      %5231 = vst [vmem:[%s145 + $0x24c] sm:$0xf] %v4719
      %5232 = vst [vmem:[%s145 + $0x250] sm:$0xf] %v4720
      %5233 = vst [vmem:[%s145 + $0x254] sm:$0xf] %v4721
      %5234 = vst [vmem:[%s145 + $0x258] sm:$0xf] %v4722
      %5235 = vst [vmem:[%s145 + $0x25c] sm:$0xf] %v4723
      %5236 = vst [vmem:[%s145 + $0x260] sm:$0xf] %v4724
      %5237 = vst [vmem:[%s145 + $0x264] sm:$0xf] %v4725
      %5238 = vst [vmem:[%s145 + $0x268] sm:$0xf] %v4726
      %5239 = vst [vmem:[%s145 + $0x26c] sm:$0xf] %v4727
      %5240 = vst [vmem:[%s145 + $0x270] sm:$0xf] %v4728
      %5241 = vst [vmem:[%s145 + $0x274] sm:$0xf] %v4729
      %5242 = vst [vmem:[%s145 + $0x278] sm:$0xf] %v4730
      %5243 = vst [vmem:[%s145 + $0x27c] sm:$0xf] %v4731
      %5244 = vst [vmem:[%s145 + $0x280] sm:$0xf] %v4732
      %5245 = vst [vmem:[%s145 + $0x284] sm:$0xf] %v4733
      %5246 = vst [vmem:[%s145 + $0x288] sm:$0xf] %v4734
      %5247 = vst [vmem:[%s145 + $0x28c] sm:$0xf] %v4735
      %5248 = vst [vmem:[%s145 + $0x290] sm:$0xf] %v4736
      %5249 = vst [vmem:[%s145 + $0x294] sm:$0xf] %v4737
      %5250 = vst [vmem:[%s145 + $0x298] sm:$0xf] %v4738
      %5251 = vst [vmem:[%s145 + $0x29c] sm:$0xf] %v4739
      %5252 = vst [vmem:[%s145 + $0x2a0] sm:$0xf] %v4740
      %5253 = vst [vmem:[%s145 + $0x2a4] sm:$0xf] %v4741
      %5254 = vst [vmem:[%s145 + $0x2a8] sm:$0xf] %v4742
      %5255 = vst [vmem:[%s145 + $0x2ac] sm:$0xf] %v4743
      %5256 = vst [vmem:[%s145 + $0x2b0] sm:$0xf] %v4744
      %5257 = vst [vmem:[%s145 + $0x2b4] sm:$0xf] %v4745
      %5258 = vst [vmem:[%s145 + $0x2b8] sm:$0xf] %v4746
      %5259 = vst [vmem:[%s145 + $0x2bc] sm:$0xf] %v4747
      %5260 = vst [vmem:[%s145 + $0x2c0] sm:$0xf] %v4748
      %5261 = vst [vmem:[%s145 + $0x2c4] sm:$0xf] %v4749
      %5262 = vst [vmem:[%s145 + $0x2c8] sm:$0xf] %v4750
      %5263 = vst [vmem:[%s145 + $0x2cc] sm:$0xf] %v4751
      %5264 = vst [vmem:[%s145 + $0x2d0] sm:$0xf] %v4752
      %5265 = vst [vmem:[%s145 + $0x2d4] sm:$0xf] %v4753
      %5266 = vst [vmem:[%s145 + $0x2d8] sm:$0xf] %v4754
      %5267 = vst [vmem:[%s145 + $0x2dc] sm:$0xf] %v4755
      %5268 = vst [vmem:[%s145 + $0x2e0] sm:$0xf] %v4756
      %5269 = vst [vmem:[%s145 + $0x2e4] sm:$0xf] %v4757
      %5270 = vst [vmem:[%s145 + $0x2e8] sm:$0xf] %v4758
      %5271 = vst [vmem:[%s145 + $0x2ec] sm:$0xf] %v4759
      %5272 = vst [vmem:[%s145 + $0x2f0] sm:$0xf] %v4760
      %5273 = vst [vmem:[%s145 + $0x2f4] sm:$0xf] %v4761
      %5274 = vst [vmem:[%s145 + $0x2f8] sm:$0xf] %v4762
      %5275 = vst [vmem:[%s145 + $0x2fc] sm:$0xf] %v4763
      %5276 = vst [vmem:[%s145 + $0x300] sm:$0xf] %v4764
      %5277 = vst [vmem:[%s145 + $0x304] sm:$0xf] %v4765
      %5278 = vst [vmem:[%s145 + $0x308] sm:$0xf] %v4766
      %5279 = vst [vmem:[%s145 + $0x30c] sm:$0xf] %v4767
      %5280 = vst [vmem:[%s145 + $0x310] sm:$0xf] %v4768
      %5281 = vst [vmem:[%s145 + $0x314] sm:$0xf] %v4769
      %5282 = vst [vmem:[%s145 + $0x318] sm:$0xf] %v4770
      %5283 = vst [vmem:[%s145 + $0x31c] sm:$0xf] %v4771
      %5284 = vst [vmem:[%s145 + $0x320] sm:$0xf] %v4772
      %5285 = vst [vmem:[%s145 + $0x324] sm:$0xf] %v4773
      %5286 = vst [vmem:[%s145 + $0x328] sm:$0xf] %v4774
      %5287 = vst [vmem:[%s145 + $0x32c] sm:$0xf] %v4775
      %5288 = vst [vmem:[%s145 + $0x330] sm:$0xf] %v4776
      %5289 = vst [vmem:[%s145 + $0x334] sm:$0xf] %v4777
      %5290 = vst [vmem:[%s145 + $0x338] sm:$0xf] %v4778
      %5291 = vst [vmem:[%s145 + $0x33c] sm:$0xf] %v4779
      %5292 = vst [vmem:[%s145 + $0x340] sm:$0xf] %v4780
      %5293 = vst [vmem:[%s145 + $0x344] sm:$0xf] %v4781
      %5294 = vst [vmem:[%s145 + $0x348] sm:$0xf] %v4782
      %5295 = vst [vmem:[%s145 + $0x34c] sm:$0xf] %v4783
      %5296 = vst [vmem:[%s145 + $0x350] sm:$0xf] %v4784
      %5297 = vst [vmem:[%s145 + $0x354] sm:$0xf] %v4785
      %5298 = vst [vmem:[%s145 + $0x358] sm:$0xf] %v4786
      %5299 = vst [vmem:[%s145 + $0x35c] sm:$0xf] %v4787
      %5300 = vst [vmem:[%s145 + $0x360] sm:$0xf] %v4788
      %5301 = vst [vmem:[%s145 + $0x364] sm:$0xf] %v4789
      %5302 = vst [vmem:[%s145 + $0x368] sm:$0xf] %v4790
      %5303 = vst [vmem:[%s145 + $0x36c] sm:$0xf] %v4791
      %5304 = vst [vmem:[%s145 + $0x370] sm:$0xf] %v4792
      %5305 = vst [vmem:[%s145 + $0x374] sm:$0xf] %v4793
      %5306 = vst [vmem:[%s145 + $0x378] sm:$0xf] %v4794
      %5307 = vst [vmem:[%s145 + $0x37c] sm:$0xf] %v4795
      %5308 = vst [vmem:[%s145 + $0x380] sm:$0xf] %v4796
      %5309 = vst [vmem:[%s145 + $0x384] sm:$0xf] %v4797
      %5310 = vst [vmem:[%s145 + $0x388] sm:$0xf] %v4798
      %5311 = vst [vmem:[%s145 + $0x38c] sm:$0xf] %v4799
      %5312 = vst [vmem:[%s145 + $0x390] sm:$0xf] %v4800
      %5313 = vst [vmem:[%s145 + $0x394] sm:$0xf] %v4801
      %5314 = vst [vmem:[%s145 + $0x398] sm:$0xf] %v4802
      %5315 = vst [vmem:[%s145 + $0x39c] sm:$0xf] %v4803
      %5316 = vst [vmem:[%s145 + $0x3a0] sm:$0xf] %v4804
      %5317 = vst [vmem:[%s145 + $0x3a4] sm:$0xf] %v4805
      %5318 = vst [vmem:[%s145 + $0x3a8] sm:$0xf] %v4806
      %5319 = vst [vmem:[%s145 + $0x3ac] sm:$0xf] %v4807
      %5320 = vst [vmem:[%s145 + $0x3b0] sm:$0xf] %v4808
      %5321 = vst [vmem:[%s145 + $0x3b4] sm:$0xf] %v4809
      %5322 = vst [vmem:[%s145 + $0x3b8] sm:$0xf] %v4810
      %5323 = vst [vmem:[%s145 + $0x3bc] sm:$0xf] %v4811
      %5324 = vst [vmem:[%s145 + $0x3c0] sm:$0xf] %v4812
      %5325 = vst [vmem:[%s145 + $0x3c4] sm:$0xf] %v4813
      %5326 = vst [vmem:[%s145 + $0x3c8] sm:$0xf] %v4814
      %5327 = vst [vmem:[%s145 + $0x3cc] sm:$0xf] %v4815
      %5328 = vst [vmem:[%s145 + $0x3d0] sm:$0xf] %v4816
      %5329 = vst [vmem:[%s145 + $0x3d4] sm:$0xf] %v4817
      %5330 = vst [vmem:[%s145 + $0x3d8] sm:$0xf] %v4818
      %5331 = vst [vmem:[%s145 + $0x3dc] sm:$0xf] %v4819
      %5332 = vst [vmem:[%s145 + $0x3e0] sm:$0xf] %v4820
      %5333 = vst [vmem:[%s145 + $0x3e4] sm:$0xf] %v4821
      %5334 = vst [vmem:[%s145 + $0x3e8] sm:$0xf] %v4822
      %5335 = vst [vmem:[%s145 + $0x3ec] sm:$0xf] %v4823
      %5336 = vst [vmem:[%s145 + $0x3f0] sm:$0xf] %v4824
      %5337 = vst [vmem:[%s145 + $0x3f4] sm:$0xf] %v4825
      %5338 = vst [vmem:[%s145 + $0x3f8] sm:$0xf] %v4826
      %5339 = vst [vmem:[%s145 + $0x3fc] sm:$0xf] %v4827
      %5340 = vst [vmem:[%s145 + $0x400] sm:$0xf] %v4828
      %5341 = vst [vmem:[%s145 + $0x404] sm:$0xf] %v4829
      %5342 = vst [vmem:[%s145 + $0x408] sm:$0xf] %v4830
      %5343 = vst [vmem:[%s145 + $0x40c] sm:$0xf] %v4831
      %5344 = vst [vmem:[%s145 + $0x410] sm:$0xf] %v4832
      %5345 = vst [vmem:[%s145 + $0x414] sm:$0xf] %v4833
      %5346 = vst [vmem:[%s145 + $0x418] sm:$0xf] %v4834
      %5347 = vst [vmem:[%s145 + $0x41c] sm:$0xf] %v4835
      %5348 = vst [vmem:[%s145 + $0x420] sm:$0xf] %v4836
      %5349 = vst [vmem:[%s145 + $0x424] sm:$0xf] %v4837
      %5350 = vst [vmem:[%s145 + $0x428] sm:$0xf] %v4838
      %5351 = vst [vmem:[%s145 + $0x42c] sm:$0xf] %v4839
      %5352 = vst [vmem:[%s145 + $0x430] sm:$0xf] %v4840
      %5353 = vst [vmem:[%s145 + $0x434] sm:$0xf] %v4841
      %5354 = vst [vmem:[%s145 + $0x438] sm:$0xf] %v4842
      %5355 = vst [vmem:[%s145 + $0x43c] sm:$0xf] %v4843
      %5356 = vst [vmem:[%s145 + $0x440] sm:$0xf] %v4844
      %5357 = vst [vmem:[%s145 + $0x444] sm:$0xf] %v4845
      %5358 = vst [vmem:[%s145 + $0x448] sm:$0xf] %v4846
      %5359 = vst [vmem:[%s145 + $0x44c] sm:$0xf] %v4847
      %5360 = vst [vmem:[%s145 + $0x450] sm:$0xf] %v4848
      %5361 = vst [vmem:[%s145 + $0x454] sm:$0xf] %v4849
      %5362 = vst [vmem:[%s145 + $0x458] sm:$0xf] %v4850
      %5363 = vst [vmem:[%s145 + $0x45c] sm:$0xf] %v4851
      %5364 = vst [vmem:[%s145 + $0x460] sm:$0xf] %v4852
      %5365 = vst [vmem:[%s145 + $0x464] sm:$0xf] %v4853
      %5366 = vst [vmem:[%s145 + $0x468] sm:$0xf] %v4854
      %5367 = vst [vmem:[%s145 + $0x46c] sm:$0xf] %v4855
      %5368 = vst [vmem:[%s145 + $0x470] sm:$0xf] %v4856
      %5369 = vst [vmem:[%s145 + $0x474] sm:$0xf] %v4857
      %5370 = vst [vmem:[%s145 + $0x478] sm:$0xf] %v4858
      %5371 = vst [vmem:[%s145 + $0x47c] sm:$0xf] %v4859
      %5372 = vst [vmem:[%s145 + $0x480] sm:$0xf] %v4860
      %5373 = vst [vmem:[%s145 + $0x484] sm:$0xf] %v4861
      %5374 = vst [vmem:[%s145 + $0x488] sm:$0xf] %v4862
      %5375 = vst [vmem:[%s145 + $0x48c] sm:$0xf] %v4863
      %5376 = vst [vmem:[%s145 + $0x490] sm:$0xf] %v4864
      %5377 = vst [vmem:[%s145 + $0x494] sm:$0xf] %v4865
      %5378 = vst [vmem:[%s145 + $0x498] sm:$0xf] %v4866
      %5379 = vst [vmem:[%s145 + $0x49c] sm:$0xf] %v4867
      %5380 = vst [vmem:[%s145 + $0x4a0] sm:$0xf] %v4868
      %5381 = vst [vmem:[%s145 + $0x4a4] sm:$0xf] %v4869
      %5382 = vst [vmem:[%s145 + $0x4a8] sm:$0xf] %v4870
      %5383 = vst [vmem:[%s145 + $0x4ac] sm:$0xf] %v4871
      %5384 = vst [vmem:[%s145 + $0x4b0] sm:$0xf] %v4872
      %5385 = vst [vmem:[%s145 + $0x4b4] sm:$0xf] %v4873
      %5386 = vst [vmem:[%s145 + $0x4b8] sm:$0xf] %v4874
      %5387 = vst [vmem:[%s145 + $0x4bc] sm:$0xf] %v4875
      %5388 = vst [vmem:[%s145 + $0x4c0] sm:$0xf] %v4876
      %5389 = vst [vmem:[%s145 + $0x4c4] sm:$0xf] %v4877
      %5390 = vst [vmem:[%s145 + $0x4c8] sm:$0xf] %v4878
      %5391 = vst [vmem:[%s145 + $0x4cc] sm:$0xf] %v4879
      %5392 = vst [vmem:[%s145 + $0x4d0] sm:$0xf] %v4880
      %5393 = vst [vmem:[%s145 + $0x4d4] sm:$0xf] %v4881
      %5394 = vst [vmem:[%s145 + $0x4d8] sm:$0xf] %v4882
      %5395 = vst [vmem:[%s145 + $0x4dc] sm:$0xf] %v4883
      %5396 = vst [vmem:[%s145 + $0x4e0] sm:$0xf] %v4884
      %5397 = vst [vmem:[%s145 + $0x4e4] sm:$0xf] %v4885
      %5398 = vst [vmem:[%s145 + $0x4e8] sm:$0xf] %v4886
      %5399 = vst [vmem:[%s145 + $0x4ec] sm:$0xf] %v4887
      %5400 = vst [vmem:[%s145 + $0x4f0] sm:$0xf] %v4888
      %5401 = vst [vmem:[%s145 + $0x4f4] sm:$0xf] %v4889
      %5402 = vst [vmem:[%s145 + $0x4f8] sm:$0xf] %v4890
      %5403 = vst [vmem:[%s145 + $0x4fc] sm:$0xf] %v4891
      %5404 = vst [vmem:[%s145 + $0x500] sm:$0xf] %v4892
      %5405 = vst [vmem:[%s145 + $0x504] sm:$0xf] %v4893
      %5406 = vst [vmem:[%s145 + $0x508] sm:$0xf] %v4894
      %5407 = vst [vmem:[%s145 + $0x50c] sm:$0xf] %v4895
      %5408 = vst [vmem:[%s145 + $0x510] sm:$0xf] %v4896
      %5409 = vst [vmem:[%s145 + $0x514] sm:$0xf] %v4897
      %5410 = vst [vmem:[%s145 + $0x518] sm:$0xf] %v4898
      %5411 = vst [vmem:[%s145 + $0x51c] sm:$0xf] %v4899
      %5412 = vst [vmem:[%s145 + $0x520] sm:$0xf] %v4900
      %5413 = vst [vmem:[%s145 + $0x524] sm:$0xf] %v4901
      %5414 = vst [vmem:[%s145 + $0x528] sm:$0xf] %v4902
      %5415 = vst [vmem:[%s145 + $0x52c] sm:$0xf] %v4903
      %5416 = vst [vmem:[%s145 + $0x530] sm:$0xf] %v4904
      %5417 = vst [vmem:[%s145 + $0x534] sm:$0xf] %v4905
      %5418 = vst [vmem:[%s145 + $0x538] sm:$0xf] %v4906
      %5419 = vst [vmem:[%s145 + $0x53c] sm:$0xf] %v4907
      %5420 = vst [vmem:[%s145 + $0x540] sm:$0xf] %v4908
      %5421 = vst [vmem:[%s145 + $0x544] sm:$0xf] %v4909
      %5422 = vst [vmem:[%s145 + $0x548] sm:$0xf] %v4910
      %5423 = vst [vmem:[%s145 + $0x54c] sm:$0xf] %v4911
      %5424 = vst [vmem:[%s145 + $0x550] sm:$0xf] %v4912
      %5425 = vst [vmem:[%s145 + $0x554] sm:$0xf] %v4913
      %5426 = vst [vmem:[%s145 + $0x558] sm:$0xf] %v4914
      %5427 = vst [vmem:[%s145 + $0x55c] sm:$0xf] %v4915
      %5428 = vst [vmem:[%s145 + $0x560] sm:$0xf] %v4916
      %5429 = vst [vmem:[%s145 + $0x564] sm:$0xf] %v4917
      %5430 = vst [vmem:[%s145 + $0x568] sm:$0xf] %v4918
      %5431 = vst [vmem:[%s145 + $0x56c] sm:$0xf] %v4919
      %5432 = vst [vmem:[%s145 + $0x570] sm:$0xf] %v4920
      %5433 = vst [vmem:[%s145 + $0x574] sm:$0xf] %v4921
      %5434 = vst [vmem:[%s145 + $0x578] sm:$0xf] %v4922
      %5435 = vst [vmem:[%s145 + $0x57c] sm:$0xf] %v4923
      %5436 = vst [vmem:[%s145 + $0x580] sm:$0xf] %v4924
      %5437 = vst [vmem:[%s145 + $0x584] sm:$0xf] %v4925
      %5438 = vst [vmem:[%s145 + $0x588] sm:$0xf] %v4926
      %5439 = vst [vmem:[%s145 + $0x58c] sm:$0xf] %v4927
      %5440 = vst [vmem:[%s145 + $0x590] sm:$0xf] %v4928
      %5441 = vst [vmem:[%s145 + $0x594] sm:$0xf] %v4929
      %5442 = vst [vmem:[%s145 + $0x598] sm:$0xf] %v4930
      %5443 = vst [vmem:[%s145 + $0x59c] sm:$0xf] %v4931
      %5444 = vst [vmem:[%s145 + $0x5a0] sm:$0xf] %v4932
      %5445 = vst [vmem:[%s145 + $0x5a4] sm:$0xf] %v4933
      %5446 = vst [vmem:[%s145 + $0x5a8] sm:$0xf] %v4934
      %5447 = vst [vmem:[%s145 + $0x5ac] sm:$0xf] %v4935
      %5448 = vst [vmem:[%s145 + $0x5b0] sm:$0xf] %v4936
      %5449 = vst [vmem:[%s145 + $0x5b4] sm:$0xf] %v4937
      %5450 = vst [vmem:[%s145 + $0x5b8] sm:$0xf] %v4938
      %5451 = vst [vmem:[%s145 + $0x5bc] sm:$0xf] %v4939
      %5452 = vst [vmem:[%s145 + $0x5c0] sm:$0xf] %v4940
      %5453 = vst [vmem:[%s145 + $0x5c4] sm:$0xf] %v4941
      %5454 = vst [vmem:[%s145 + $0x5c8] sm:$0xf] %v4942
      %5455 = vst [vmem:[%s145 + $0x5cc] sm:$0xf] %v4943
      %5456 = vst [vmem:[%s145 + $0x5d0] sm:$0xf] %v4944
      %5457 = vst [vmem:[%s145 + $0x5d4] sm:$0xf] %v4945
      %5458 = vst [vmem:[%s145 + $0x5d8] sm:$0xf] %v4946
      %5459 = vst [vmem:[%s145 + $0x5dc] sm:$0xf] %v4947
      %5460 = vst [vmem:[%s145 + $0x5e0] sm:$0xf] %v4948
      %5461 = vst [vmem:[%s145 + $0x5e4] sm:$0xf] %v4949
      %5462 = vst [vmem:[%s145 + $0x5e8] sm:$0xf] %v4950
      %5463 = vst [vmem:[%s145 + $0x5ec] sm:$0xf] %v4951
      %5464 = vst [vmem:[%s145 + $0x5f0] sm:$0xf] %v4952
      %5465 = vst [vmem:[%s145 + $0x5f4] sm:$0xf] %v4953
      %5466 = vst [vmem:[%s145 + $0x5f8] sm:$0xf] %v4954
      %5467 = vst [vmem:[%s145 + $0x5fc] sm:$0xf] %v4955
      %5468 = vst [vmem:[%s145 + $0x600] sm:$0xf] %v4956
      %5469 = vst [vmem:[%s145 + $0x604] sm:$0xf] %v4957
      %5470 = vst [vmem:[%s145 + $0x608] sm:$0xf] %v4958
      %5471 = vst [vmem:[%s145 + $0x60c] sm:$0xf] %v4959
      %5472 = vst [vmem:[%s145 + $0x610] sm:$0xf] %v4960
      %5473 = vst [vmem:[%s145 + $0x614] sm:$0xf] %v4961
      %5474 = vst [vmem:[%s145 + $0x618] sm:$0xf] %v4962
      %5475 = vst [vmem:[%s145 + $0x61c] sm:$0xf] %v4963
      %5476 = vst [vmem:[%s145 + $0x620] sm:$0xf] %v4964
      %5477 = vst [vmem:[%s145 + $0x624] sm:$0xf] %v4965
      %5478 = vst [vmem:[%s145 + $0x628] sm:$0xf] %v4966
      %5479 = vst [vmem:[%s145 + $0x62c] sm:$0xf] %v4967
      %5480 = vst [vmem:[%s145 + $0x630] sm:$0xf] %v4968
      %5481 = vst [vmem:[%s145 + $0x634] sm:$0xf] %v4969
      %5482 = vst [vmem:[%s145 + $0x638] sm:$0xf] %v4970
      %5483 = vst [vmem:[%s145 + $0x63c] sm:$0xf] %v4971
      %5484 = vst [vmem:[%s145 + $0x640] sm:$0xf] %v4972
      %5485 = vst [vmem:[%s145 + $0x644] sm:$0xf] %v4973
      %5486 = vst [vmem:[%s145 + $0x648] sm:$0xf] %v4974
      %5487 = vst [vmem:[%s145 + $0x64c] sm:$0xf] %v4975
      %5488 = vst [vmem:[%s145 + $0x650] sm:$0xf] %v4976
      %5489 = vst [vmem:[%s145 + $0x654] sm:$0xf] %v4977
      %5490 = vst [vmem:[%s145 + $0x658] sm:$0xf] %v4978
      %5491 = vst [vmem:[%s145 + $0x65c] sm:$0xf] %v4979
      %5492 = vst [vmem:[%s145 + $0x660] sm:$0xf] %v4980
      %5493 = vst [vmem:[%s145 + $0x664] sm:$0xf] %v4981
      %5494 = vst [vmem:[%s145 + $0x668] sm:$0xf] %v4982
      %5495 = vst [vmem:[%s145 + $0x66c] sm:$0xf] %v4983
      %5496 = vst [vmem:[%s145 + $0x670] sm:$0xf] %v4984
      %5497 = vst [vmem:[%s145 + $0x674] sm:$0xf] %v4985
      %5498 = vst [vmem:[%s145 + $0x678] sm:$0xf] %v4986
      %5499 = vst [vmem:[%s145 + $0x67c] sm:$0xf] %v4987
      %5500 = vst [vmem:[%s145 + $0x680] sm:$0xf] %v4988
      %5501 = vst [vmem:[%s145 + $0x684] sm:$0xf] %v4989
      %5502 = vst [vmem:[%s145 + $0x688] sm:$0xf] %v4990
      %5503 = vst [vmem:[%s145 + $0x68c] sm:$0xf] %v4991
      %5504 = vst [vmem:[%s145 + $0x690] sm:$0xf] %v4992
      %5505 = vst [vmem:[%s145 + $0x694] sm:$0xf] %v4993
      %5506 = vst [vmem:[%s145 + $0x698] sm:$0xf] %v4994
      %5507 = vst [vmem:[%s145 + $0x69c] sm:$0xf] %v4995
      %5508 = vst [vmem:[%s145 + $0x6a0] sm:$0xf] %v4996
      %5509 = vst [vmem:[%s145 + $0x6a4] sm:$0xf] %v4997
      %5510 = vst [vmem:[%s145 + $0x6a8] sm:$0xf] %v4998
      %5511 = vst [vmem:[%s145 + $0x6ac] sm:$0xf] %v4999
      %5512 = vst [vmem:[%s145 + $0x6b0] sm:$0xf] %v5000
      %5513 = vst [vmem:[%s145 + $0x6b4] sm:$0xf] %v5001
      %5514 = vst [vmem:[%s145 + $0x6b8] sm:$0xf] %v5002
      %5515 = vst [vmem:[%s145 + $0x6bc] sm:$0xf] %v5003
      %5516 = vst [vmem:[%s145 + $0x6c0] sm:$0xf] %v5004
      %5517 = vst [vmem:[%s145 + $0x6c4] sm:$0xf] %v5005
      %5518 = vst [vmem:[%s145 + $0x6c8] sm:$0xf] %v5006
      %5519 = vst [vmem:[%s145 + $0x6cc] sm:$0xf] %v5007
      %5520 = vst [vmem:[%s145 + $0x6d0] sm:$0xf] %v5008
      %5521 = vst [vmem:[%s145 + $0x6d4] sm:$0xf] %v5009
      %5522 = vst [vmem:[%s145 + $0x6d8] sm:$0xf] %v5010
      %5523 = vst [vmem:[%s145 + $0x6dc] sm:$0xf] %v5011
      %5524 = vst [vmem:[%s145 + $0x6e0] sm:$0xf] %v5012
      %5525 = vst [vmem:[%s145 + $0x6e4] sm:$0xf] %v5013
      %5526 = vst [vmem:[%s145 + $0x6e8] sm:$0xf] %v5014
      %5527 = vst [vmem:[%s145 + $0x6ec] sm:$0xf] %v5015
      %5528 = vst [vmem:[%s145 + $0x6f0] sm:$0xf] %v5016
      %5529 = vst [vmem:[%s145 + $0x6f4] sm:$0xf] %v5017
      %5530 = vst [vmem:[%s145 + $0x6f8] sm:$0xf] %v5018
      %5531 = vst [vmem:[%s145 + $0x6fc] sm:$0xf] %v5019
      %5532 = vst [vmem:[%s145 + $0x700] sm:$0xf] %v5020
      %5533 = vst [vmem:[%s145 + $0x704] sm:$0xf] %v5021
      %5534 = vst [vmem:[%s145 + $0x708] sm:$0xf] %v5022
      %5535 = vst [vmem:[%s145 + $0x70c] sm:$0xf] %v5023
      %5536 = vst [vmem:[%s145 + $0x710] sm:$0xf] %v5024
      %5537 = vst [vmem:[%s145 + $0x714] sm:$0xf] %v5025
      %5538 = vst [vmem:[%s145 + $0x718] sm:$0xf] %v5026
      %5539 = vst [vmem:[%s145 + $0x71c] sm:$0xf] %v5027
      %5540 = vst [vmem:[%s145 + $0x720] sm:$0xf] %v5028
      %5541 = vst [vmem:[%s145 + $0x724] sm:$0xf] %v5029
      %5542 = vst [vmem:[%s145 + $0x728] sm:$0xf] %v5030
      %5543 = vst [vmem:[%s145 + $0x72c] sm:$0xf] %v5031
      %5544 = vst [vmem:[%s145 + $0x730] sm:$0xf] %v5032
      %5545 = vst [vmem:[%s145 + $0x734] sm:$0xf] %v5033
      %5546 = vst [vmem:[%s145 + $0x738] sm:$0xf] %v5034
      %5547 = vst [vmem:[%s145 + $0x73c] sm:$0xf] %v5035
      %5548 = vst [vmem:[%s145 + $0x740] sm:$0xf] %v5036
      %5549 = vst [vmem:[%s145 + $0x744] sm:$0xf] %v5037
      %5550 = vst [vmem:[%s145 + $0x748] sm:$0xf] %v5038
      %5551 = vst [vmem:[%s145 + $0x74c] sm:$0xf] %v5039
      %5552 = vst [vmem:[%s145 + $0x750] sm:$0xf] %v5040
      %5553 = vst [vmem:[%s145 + $0x754] sm:$0xf] %v5041
      %5554 = vst [vmem:[%s145 + $0x758] sm:$0xf] %v5042
      %5555 = vst [vmem:[%s145 + $0x75c] sm:$0xf] %v5043
      %5556 = vst [vmem:[%s145 + $0x760] sm:$0xf] %v5044
      %5557 = vst [vmem:[%s145 + $0x764] sm:$0xf] %v5045
      %5558 = vst [vmem:[%s145 + $0x768] sm:$0xf] %v5046
      %5559 = vst [vmem:[%s145 + $0x76c] sm:$0xf] %v5047
      %5560 = vst [vmem:[%s145 + $0x770] sm:$0xf] %v5048
      %5561 = vst [vmem:[%s145 + $0x774] sm:$0xf] %v5049
      %5562 = vst [vmem:[%s145 + $0x778] sm:$0xf] %v5050
      %5563 = vst [vmem:[%s145 + $0x77c] sm:$0xf] %v5051
      %5564 = vst [vmem:[%s145 + $0x780] sm:$0xf] %v5052
      %5565 = vst [vmem:[%s145 + $0x784] sm:$0xf] %v5053
      %5566 = vst [vmem:[%s145 + $0x788] sm:$0xf] %v5054
      %5567 = vst [vmem:[%s145 + $0x78c] sm:$0xf] %v5055
      %5568 = vst [vmem:[%s145 + $0x790] sm:$0xf] %v5056
      %5569 = vst [vmem:[%s145 + $0x794] sm:$0xf] %v5057
      %5570 = vst [vmem:[%s145 + $0x798] sm:$0xf] %v5058
      %5571 = vst [vmem:[%s145 + $0x79c] sm:$0xf] %v5059
      %5572 = vst [vmem:[%s145 + $0x7a0] sm:$0xf] %v5060
      %5573 = vst [vmem:[%s145 + $0x7a4] sm:$0xf] %v5061
      %5574 = vst [vmem:[%s145 + $0x7a8] sm:$0xf] %v5062
      %5575 = vst [vmem:[%s145 + $0x7ac] sm:$0xf] %v5063
      %5576 = vst [vmem:[%s145 + $0x7b0] sm:$0xf] %v5064
      %5577 = vst [vmem:[%s145 + $0x7b4] sm:$0xf] %v5065
      %5578 = vst [vmem:[%s145 + $0x7b8] sm:$0xf] %v5066
      %5579 = vst [vmem:[%s145 + $0x7bc] sm:$0xf] %v5067
      %5580 = vst [vmem:[%s145 + $0x7c0] sm:$0xf] %v5068
      %5581 = vst [vmem:[%s145 + $0x7c4] sm:$0xf] %v5069
      %5582 = vst [vmem:[%s145 + $0x7c8] sm:$0xf] %v5070
      %5583 = vst [vmem:[%s145 + $0x7cc] sm:$0xf] %v5071
      %5584 = vst [vmem:[%s145 + $0x7d0] sm:$0xf] %v5072
      %5585 = vst [vmem:[%s145 + $0x7d4] sm:$0xf] %v5073
      %5586 = vst [vmem:[%s145 + $0x7d8] sm:$0xf] %v5074
      %5587 = vst [vmem:[%s145 + $0x7dc] sm:$0xf] %v5075
      %5588 = vst [vmem:[%s145 + $0x7e0] sm:$0xf] %v5076
      %5589 = vst [vmem:[%s145 + $0x7e4] sm:$0xf] %v5077
      %5590 = vst [vmem:[%s145 + $0x7e8] sm:$0xf] %v5078
      %5591 = vst [vmem:[%s145 + $0x7ec] sm:$0xf] %v5079
      %5592 = vst [vmem:[%s145 + $0x7f0] sm:$0xf] %v5080
      %5593 = vst [vmem:[%s145 + $0x7f4] sm:$0xf] %v5081
      %5594 = vst [vmem:[%s145 + $0x7f8] sm:$0xf] %v5082
      %5595 = vst [vmem:[%s145 + $0x7fc] sm:$0xf] %v5083
      %s5596 = smul.u32 512, %s13
      %p5597 = scmp.lt.s32.totalorder %s5596, 1023
      %s5598 = scalar_select %p5597, %s5596, 1023
      %s5599 = smul.addr %s5598, 4
      %s5600 = scalar_lea.vmem %s2, %s5599
      // Predicated region
      $region29: #{_lambda_.5} parent=27 // pred_check
        %p5601 = pneg %p78
      $region30: #{_lambda_.5} parent=27 // pred_check_branch
        %5603 = sbr.rel (%p5601) target = $region32
      $region31: #{_lambda_.5} parent=27 // pred_region
        %s5604 = smul.u32 512, %s13
      $region32: #{_lambda_.5} parent=27 // pred_fallthru
        _
    $region28: #{_lambda_.5} parent=5 // pred_fallthru
      _
    %p5605 = scmp.le.s32.totalorder 2, %s8
    // Predicated region
    $region33: #{_lambda_.5} parent=5 // pred_check
      %p5606 = pneg %p5605
    $region34: #{_lambda_.5} parent=5 // pred_check_branch
      %5608 = sbr.rel (%p5606) target = $region36
    $region35: #{_lambda_.5} parent=5 // pred_region
      %s5609 = ssub.s32 %s8, 2
      // Predicated region
      $region37: #{_lambda_.5} parent=35 // pred_check
        %p5610 = pneg %p84
      $region38: #{_lambda_.5} parent=35 // pred_check_branch
        %5612 = sbr.rel (%p5610) target = $region40
      $region39: #{_lambda_.5} parent=35 // pred_region
        %s5613 = smul.u32 512, %s14
        %p5614 = scmp.lt.s32.totalorder %s5613, 1023
        %s5615 = scalar_select %p5614, %s5613, 1023
        %s5616 = smul.addr %s5615, 4
        %s5617 = scalar_lea.vmem %s2, %s5616
      $region40: #{_lambda_.5} parent=35 // pred_fallthru
        _
    $region36: #{_lambda_.5} parent=5 // pred_fallthru
      _
  $region6: #{_lambda_.5} parent=0 // loop_footer
    %s12 = sadd.s32 1, %s8
  $region7: #{_lambda_.5} parent=0 // loop_footer_branch
    %7 = sbr.rel target = $region3
  $region8: #{_lambda_.5} parent=0 // loop_exit
    _

// kernel: _lambda_.6
$region0: #{_lambda_.6}
  #allocation0 [shape = 'u32[]', space=smem, size = 0x4, offset = 0x4, fixed_abs, tag = 'smem constant byte address 0x4 - core index']
  #allocation1 [shape = 'u32[72,128]{1,0:T(1,128)}', space=vmem, size = 0x9000, scoped, tag = 'internal scratch']
  %s0 = inlined_call_operand.vmem [shape: bf16[2048,128], index: 0, kind: input, shape index: {}]
  %s1 = inlined_call_operand.vmem [shape: bf16[128,128], index: 1, kind: input, shape index: {}]
  %s2 = inlined_call_operand.vmem [shape: f32[1,128], index: 2, kind: input, shape index: {}]
  %s3 = inlined_call_operand.vmem [shape: f32[1,128], index: 3, kind: input, shape index: {}]
  %s4 = inlined_call_operand.vmem [shape: bf16[2048,128], index: 4, kind: output, shape index: {}]
  %s5 = sld [smem:[#allocation0]]
  $region26: #{_lambda_.6} parent=0
    _
  %s7 = ssub.s32 1, %s5
  %s8 = scalar_select 0, %s7, %s5
  // Predicated region
  $region2: #{_lambda_.6} parent=0 // pred_check
    _
  $region3: #{_lambda_.6} parent=0 // pred_check_branch
    %10 = sbr.rel (0) target = $region5
  $region4: #{_lambda_.6} parent=0 // pred_region
    _
  $region5: #{_lambda_.6} parent=0 // pred_fallthru
    _
  // Predicated region
  $region6: #{_lambda_.6} parent=0 // pred_check
    _
  $region7: #{_lambda_.6} parent=0 // pred_check_branch
    %12 = sbr.rel (0) target = $region9
  $region8: #{_lambda_.6} parent=0 // pred_region
    _
  $region9: #{_lambda_.6} parent=0 // pred_fallthru
    _
  // Predicated region
  $region10: #{_lambda_.6} parent=0 // pred_check
    _
  $region11: #{_lambda_.6} parent=0 // pred_check_branch
    %14 = sbr.rel (0) target = $region13
  $region12: #{_lambda_.6} parent=0 // pred_region
    _
  $region13: #{_lambda_.6} parent=0 // pred_fallthru
    _
  // Predicated region
  $region14: #{_lambda_.6} parent=0 // pred_check
    _
  $region15: #{_lambda_.6} parent=0 // pred_check_branch
    %16 = sbr.rel (0) target = $region17
  $region16: #{_lambda_.6} parent=0 // pred_region
    _
  $region17: #{_lambda_.6} parent=0 // pred_fallthru
    _
  %v17 = vld [vmem:[%s0] sm:$0xf]
  %v18 = vld [vmem:[%s0 + $0x4] sm:$0xf]
  %v19 = vld [vmem:[%s0 + $0x8] sm:$0xf]
  %v20 = vld [vmem:[%s0 + $0xc] sm:$0xf]
  %v21 = vld [vmem:[%s0 + $0x10] sm:$0xf]
  %v22 = vld [vmem:[%s0 + $0x14] sm:$0xf]
  %v23 = vld [vmem:[%s0 + $0x18] sm:$0xf]
  %v24 = vld [vmem:[%s0 + $0x1c] sm:$0xf]
  %v25 = vld [vmem:[%s0 + $0x20] sm:$0xf]
  %v26 = vld [vmem:[%s0 + $0x24] sm:$0xf]
  %v27 = vld [vmem:[%s0 + $0x28] sm:$0xf]
  %v28 = vld [vmem:[%s0 + $0x2c] sm:$0xf]
  %v29 = vld [vmem:[%s0 + $0x30] sm:$0xf]
  %v30 = vld [vmem:[%s0 + $0x34] sm:$0xf]
  %v31 = vld [vmem:[%s0 + $0x38] sm:$0xf]
  %v32 = vld [vmem:[%s0 + $0x3c] sm:$0xf]
  %v33 = vld [vmem:[%s0 + $0x40] sm:$0xf]
  %v34 = vld [vmem:[%s0 + $0x44] sm:$0xf]
  %v35 = vld [vmem:[%s0 + $0x48] sm:$0xf]
  %v36 = vld [vmem:[%s0 + $0x4c] sm:$0xf]
  %v37 = vld [vmem:[%s0 + $0x50] sm:$0xf]
  %v38 = vld [vmem:[%s0 + $0x54] sm:$0xf]
  %v39 = vld [vmem:[%s0 + $0x58] sm:$0xf]
  %v40 = vld [vmem:[%s0 + $0x5c] sm:$0xf]
  %v41 = vld [vmem:[%s0 + $0x60] sm:$0xf]
  %v42 = vld [vmem:[%s0 + $0x64] sm:$0xf]
  %v43 = vld [vmem:[%s0 + $0x68] sm:$0xf]
  %v44 = vld [vmem:[%s0 + $0x6c] sm:$0xf]
  %v45 = vld [vmem:[%s0 + $0x70] sm:$0xf]
  %v46 = vld [vmem:[%s0 + $0x74] sm:$0xf]
  %v47 = vld [vmem:[%s0 + $0x78] sm:$0xf]
  %v48 = vld [vmem:[%s0 + $0x7c] sm:$0xf]
  %v49 = vld [vmem:[%s0 + $0x80] sm:$0xf]
  %v50 = vld [vmem:[%s0 + $0x84] sm:$0xf]
  %v51 = vld [vmem:[%s0 + $0x88] sm:$0xf]
  %v52 = vld [vmem:[%s0 + $0x8c] sm:$0xf]
  %v53 = vld [vmem:[%s0 + $0x90] sm:$0xf]
  %v54 = vld [vmem:[%s0 + $0x94] sm:$0xf]
  %v55 = vld [vmem:[%s0 + $0x98] sm:$0xf]
  %v56 = vld [vmem:[%s0 + $0x9c] sm:$0xf]
  %v57 = vld [vmem:[%s0 + $0xa0] sm:$0xf]
  %v58 = vld [vmem:[%s0 + $0xa4] sm:$0xf]
  %v59 = vld [vmem:[%s0 + $0xa8] sm:$0xf]
  %v60 = vld [vmem:[%s0 + $0xac] sm:$0xf]
  %v61 = vld [vmem:[%s0 + $0xb0] sm:$0xf]
  %v62 = vld [vmem:[%s0 + $0xb4] sm:$0xf]
  %v63 = vld [vmem:[%s0 + $0xb8] sm:$0xf]
  %v64 = vld [vmem:[%s0 + $0xbc] sm:$0xf]
  %v65 = vld [vmem:[%s0 + $0xc0] sm:$0xf]
  %v66 = vld [vmem:[%s0 + $0xc4] sm:$0xf]
  %v67 = vld [vmem:[%s0 + $0xc8] sm:$0xf]
  %v68 = vld [vmem:[%s0 + $0xcc] sm:$0xf]
  %v69 = vld [vmem:[%s0 + $0xd0] sm:$0xf]
  %v70 = vld [vmem:[%s0 + $0xd4] sm:$0xf]
  %v71 = vld [vmem:[%s0 + $0xd8] sm:$0xf]
  %v72 = vld [vmem:[%s0 + $0xdc] sm:$0xf]
  %v73 = vld [vmem:[%s0 + $0xe0] sm:$0xf]
  %v74 = vld [vmem:[%s0 + $0xe4] sm:$0xf]
  %v75 = vld [vmem:[%s0 + $0xe8] sm:$0xf]
  %v76 = vld [vmem:[%s0 + $0xec] sm:$0xf]
  %v77 = vld [vmem:[%s0 + $0xf0] sm:$0xf]
  %v78 = vld [vmem:[%s0 + $0xf4] sm:$0xf]
  %v79 = vld [vmem:[%s0 + $0xf8] sm:$0xf]
  %v80 = vld [vmem:[%s0 + $0xfc] sm:$0xf]
  %v81 = vld [vmem:[%s0 + $0x100] sm:$0xf]
  %v82 = vld [vmem:[%s0 + $0x104] sm:$0xf]
  %v83 = vld [vmem:[%s0 + $0x108] sm:$0xf]
  %v84 = vld [vmem:[%s0 + $0x10c] sm:$0xf]
  %v85 = vld [vmem:[%s0 + $0x110] sm:$0xf]
  %v86 = vld [vmem:[%s0 + $0x114] sm:$0xf]
  %v87 = vld [vmem:[%s0 + $0x118] sm:$0xf]
  %v88 = vld [vmem:[%s0 + $0x11c] sm:$0xf]
  %v89 = vld [vmem:[%s0 + $0x120] sm:$0xf]
  %v90 = vld [vmem:[%s0 + $0x124] sm:$0xf]
  %v91 = vld [vmem:[%s0 + $0x128] sm:$0xf]
  %v92 = vld [vmem:[%s0 + $0x12c] sm:$0xf]
  %v93 = vld [vmem:[%s0 + $0x130] sm:$0xf]
  %v94 = vld [vmem:[%s0 + $0x134] sm:$0xf]
  %v95 = vld [vmem:[%s0 + $0x138] sm:$0xf]
  %v96 = vld [vmem:[%s0 + $0x13c] sm:$0xf]
  %v97 = vld [vmem:[%s0 + $0x140] sm:$0xf]
  %v98 = vld [vmem:[%s0 + $0x144] sm:$0xf]
  %v99 = vld [vmem:[%s0 + $0x148] sm:$0xf]
  %v100 = vld [vmem:[%s0 + $0x14c] sm:$0xf]
  %v101 = vld [vmem:[%s0 + $0x150] sm:$0xf]
  %v102 = vld [vmem:[%s0 + $0x154] sm:$0xf]
  %v103 = vld [vmem:[%s0 + $0x158] sm:$0xf]
  %v104 = vld [vmem:[%s0 + $0x15c] sm:$0xf]
  %v105 = vld [vmem:[%s0 + $0x160] sm:$0xf]
  %v106 = vld [vmem:[%s0 + $0x164] sm:$0xf]
  %v107 = vld [vmem:[%s0 + $0x168] sm:$0xf]
  %v108 = vld [vmem:[%s0 + $0x16c] sm:$0xf]
  %v109 = vld [vmem:[%s0 + $0x170] sm:$0xf]
  %v110 = vld [vmem:[%s0 + $0x174] sm:$0xf]
  %v111 = vld [vmem:[%s0 + $0x178] sm:$0xf]
  %v112 = vld [vmem:[%s0 + $0x17c] sm:$0xf]
  %v113 = vld [vmem:[%s0 + $0x180] sm:$0xf]
  %v114 = vld [vmem:[%s0 + $0x184] sm:$0xf]
  %v115 = vld [vmem:[%s0 + $0x188] sm:$0xf]
  %v116 = vld [vmem:[%s0 + $0x18c] sm:$0xf]
  %v117 = vld [vmem:[%s0 + $0x190] sm:$0xf]
  %v118 = vld [vmem:[%s0 + $0x194] sm:$0xf]
  %v119 = vld [vmem:[%s0 + $0x198] sm:$0xf]
  %v120 = vld [vmem:[%s0 + $0x19c] sm:$0xf]
  %v121 = vld [vmem:[%s0 + $0x1a0] sm:$0xf]
  %v122 = vld [vmem:[%s0 + $0x1a4] sm:$0xf]
  %v123 = vld [vmem:[%s0 + $0x1a8] sm:$0xf]
  %v124 = vld [vmem:[%s0 + $0x1ac] sm:$0xf]
  %v125 = vld [vmem:[%s0 + $0x1b0] sm:$0xf]
  %v126 = vld [vmem:[%s0 + $0x1b4] sm:$0xf]
  %v127 = vld [vmem:[%s0 + $0x1b8] sm:$0xf]
  %v128 = vld [vmem:[%s0 + $0x1bc] sm:$0xf]
  %v129 = vld [vmem:[%s0 + $0x1c0] sm:$0xf]
  %v130 = vld [vmem:[%s0 + $0x1c4] sm:$0xf]
  %v131 = vld [vmem:[%s0 + $0x1c8] sm:$0xf]
  %v132 = vld [vmem:[%s0 + $0x1cc] sm:$0xf]
  %v133 = vld [vmem:[%s0 + $0x1d0] sm:$0xf]
  %v134 = vld [vmem:[%s0 + $0x1d4] sm:$0xf]
  %v135 = vld [vmem:[%s0 + $0x1d8] sm:$0xf]
  %v136 = vld [vmem:[%s0 + $0x1dc] sm:$0xf]
  %v137 = vld [vmem:[%s0 + $0x1e0] sm:$0xf]
  %v138 = vld [vmem:[%s0 + $0x1e4] sm:$0xf]
  %v139 = vld [vmem:[%s0 + $0x1e8] sm:$0xf]
  %v140 = vld [vmem:[%s0 + $0x1ec] sm:$0xf]
  %v141 = vld [vmem:[%s0 + $0x1f0] sm:$0xf]
  %v142 = vld [vmem:[%s0 + $0x1f4] sm:$0xf]
  %v143 = vld [vmem:[%s0 + $0x1f8] sm:$0xf]
  %v144 = vld [vmem:[%s0 + $0x1fc] sm:$0xf]
  %v145 = vld [vmem:[%s0 + $0x200] sm:$0xf]
  %v146 = vld [vmem:[%s0 + $0x204] sm:$0xf]
  %v147 = vld [vmem:[%s0 + $0x208] sm:$0xf]
  %v148 = vld [vmem:[%s0 + $0x20c] sm:$0xf]
  %v149 = vld [vmem:[%s0 + $0x210] sm:$0xf]
  %v150 = vld [vmem:[%s0 + $0x214] sm:$0xf]
  %v151 = vld [vmem:[%s0 + $0x218] sm:$0xf]
  %v152 = vld [vmem:[%s0 + $0x21c] sm:$0xf]
  %v153 = vld [vmem:[%s0 + $0x220] sm:$0xf]
  %v154 = vld [vmem:[%s0 + $0x224] sm:$0xf]
  %v155 = vld [vmem:[%s0 + $0x228] sm:$0xf]
  %v156 = vld [vmem:[%s0 + $0x22c] sm:$0xf]
  %v157 = vld [vmem:[%s0 + $0x230] sm:$0xf]
  %v158 = vld [vmem:[%s0 + $0x234] sm:$0xf]
  %v159 = vld [vmem:[%s0 + $0x238] sm:$0xf]
  %v160 = vld [vmem:[%s0 + $0x23c] sm:$0xf]
  %v161 = vld [vmem:[%s0 + $0x240] sm:$0xf]
  %v162 = vld [vmem:[%s0 + $0x244] sm:$0xf]
  %v163 = vld [vmem:[%s0 + $0x248] sm:$0xf]
  %v164 = vld [vmem:[%s0 + $0x24c] sm:$0xf]
  %v165 = vld [vmem:[%s0 + $0x250] sm:$0xf]
  %v166 = vld [vmem:[%s0 + $0x254] sm:$0xf]
  %v167 = vld [vmem:[%s0 + $0x258] sm:$0xf]
  %v168 = vld [vmem:[%s0 + $0x25c] sm:$0xf]
  %v169 = vld [vmem:[%s0 + $0x260] sm:$0xf]
  %v170 = vld [vmem:[%s0 + $0x264] sm:$0xf]
  %v171 = vld [vmem:[%s0 + $0x268] sm:$0xf]
  %v172 = vld [vmem:[%s0 + $0x26c] sm:$0xf]
  %v173 = vld [vmem:[%s0 + $0x270] sm:$0xf]
  %v174 = vld [vmem:[%s0 + $0x274] sm:$0xf]
  %v175 = vld [vmem:[%s0 + $0x278] sm:$0xf]
  %v176 = vld [vmem:[%s0 + $0x27c] sm:$0xf]
  %v177 = vld [vmem:[%s0 + $0x280] sm:$0xf]
  %v178 = vld [vmem:[%s0 + $0x284] sm:$0xf]
  %v179 = vld [vmem:[%s0 + $0x288] sm:$0xf]
  %v180 = vld [vmem:[%s0 + $0x28c] sm:$0xf]
  %v181 = vld [vmem:[%s0 + $0x290] sm:$0xf]
  %v182 = vld [vmem:[%s0 + $0x294] sm:$0xf]
  %v183 = vld [vmem:[%s0 + $0x298] sm:$0xf]
  %v184 = vld [vmem:[%s0 + $0x29c] sm:$0xf]
  %v185 = vld [vmem:[%s0 + $0x2a0] sm:$0xf]
  %v186 = vld [vmem:[%s0 + $0x2a4] sm:$0xf]
  %v187 = vld [vmem:[%s0 + $0x2a8] sm:$0xf]
  %v188 = vld [vmem:[%s0 + $0x2ac] sm:$0xf]
  %v189 = vld [vmem:[%s0 + $0x2b0] sm:$0xf]
  %v190 = vld [vmem:[%s0 + $0x2b4] sm:$0xf]
  %v191 = vld [vmem:[%s0 + $0x2b8] sm:$0xf]
  %v192 = vld [vmem:[%s0 + $0x2bc] sm:$0xf]
  %v193 = vld [vmem:[%s0 + $0x2c0] sm:$0xf]
  %v194 = vld [vmem:[%s0 + $0x2c4] sm:$0xf]
  %v195 = vld [vmem:[%s0 + $0x2c8] sm:$0xf]
  %v196 = vld [vmem:[%s0 + $0x2cc] sm:$0xf]
  %v197 = vld [vmem:[%s0 + $0x2d0] sm:$0xf]
  %v198 = vld [vmem:[%s0 + $0x2d4] sm:$0xf]
  %v199 = vld [vmem:[%s0 + $0x2d8] sm:$0xf]
  %v200 = vld [vmem:[%s0 + $0x2dc] sm:$0xf]
  %v201 = vld [vmem:[%s0 + $0x2e0] sm:$0xf]
  %v202 = vld [vmem:[%s0 + $0x2e4] sm:$0xf]
  %v203 = vld [vmem:[%s0 + $0x2e8] sm:$0xf]
  %v204 = vld [vmem:[%s0 + $0x2ec] sm:$0xf]
  %v205 = vld [vmem:[%s0 + $0x2f0] sm:$0xf]
  %v206 = vld [vmem:[%s0 + $0x2f4] sm:$0xf]
  %v207 = vld [vmem:[%s0 + $0x2f8] sm:$0xf]
  %v208 = vld [vmem:[%s0 + $0x2fc] sm:$0xf]
  %v209 = vld [vmem:[%s0 + $0x300] sm:$0xf]
  %v210 = vld [vmem:[%s0 + $0x304] sm:$0xf]
  %v211 = vld [vmem:[%s0 + $0x308] sm:$0xf]
  %v212 = vld [vmem:[%s0 + $0x30c] sm:$0xf]
  %v213 = vld [vmem:[%s0 + $0x310] sm:$0xf]
  %v214 = vld [vmem:[%s0 + $0x314] sm:$0xf]
  %v215 = vld [vmem:[%s0 + $0x318] sm:$0xf]
  %v216 = vld [vmem:[%s0 + $0x31c] sm:$0xf]
  %v217 = vld [vmem:[%s0 + $0x320] sm:$0xf]
  %v218 = vld [vmem:[%s0 + $0x324] sm:$0xf]
  %v219 = vld [vmem:[%s0 + $0x328] sm:$0xf]
  %v220 = vld [vmem:[%s0 + $0x32c] sm:$0xf]
  %v221 = vld [vmem:[%s0 + $0x330] sm:$0xf]
  %v222 = vld [vmem:[%s0 + $0x334] sm:$0xf]
  %v223 = vld [vmem:[%s0 + $0x338] sm:$0xf]
  %v224 = vld [vmem:[%s0 + $0x33c] sm:$0xf]
  %v225 = vld [vmem:[%s0 + $0x340] sm:$0xf]
  %v226 = vld [vmem:[%s0 + $0x344] sm:$0xf]
  %v227 = vld [vmem:[%s0 + $0x348] sm:$0xf]
  %v228 = vld [vmem:[%s0 + $0x34c] sm:$0xf]
  %v229 = vld [vmem:[%s0 + $0x350] sm:$0xf]
  %v230 = vld [vmem:[%s0 + $0x354] sm:$0xf]
  %v231 = vld [vmem:[%s0 + $0x358] sm:$0xf]
  %v232 = vld [vmem:[%s0 + $0x35c] sm:$0xf]
  %v233 = vld [vmem:[%s0 + $0x360] sm:$0xf]
  %v234 = vld [vmem:[%s0 + $0x364] sm:$0xf]
  %v235 = vld [vmem:[%s0 + $0x368] sm:$0xf]
  %v236 = vld [vmem:[%s0 + $0x36c] sm:$0xf]
  %v237 = vld [vmem:[%s0 + $0x370] sm:$0xf]
  %v238 = vld [vmem:[%s0 + $0x374] sm:$0xf]
  %v239 = vld [vmem:[%s0 + $0x378] sm:$0xf]
  %v240 = vld [vmem:[%s0 + $0x37c] sm:$0xf]
  %v241 = vld [vmem:[%s0 + $0x380] sm:$0xf]
  %v242 = vld [vmem:[%s0 + $0x384] sm:$0xf]
  %v243 = vld [vmem:[%s0 + $0x388] sm:$0xf]
  %v244 = vld [vmem:[%s0 + $0x38c] sm:$0xf]
  %v245 = vld [vmem:[%s0 + $0x390] sm:$0xf]
  %v246 = vld [vmem:[%s0 + $0x394] sm:$0xf]
  %v247 = vld [vmem:[%s0 + $0x398] sm:$0xf]
  %v248 = vld [vmem:[%s0 + $0x39c] sm:$0xf]
  %v249 = vld [vmem:[%s0 + $0x3a0] sm:$0xf]
  %v250 = vld [vmem:[%s0 + $0x3a4] sm:$0xf]
  %v251 = vld [vmem:[%s0 + $0x3a8] sm:$0xf]
  %v252 = vld [vmem:[%s0 + $0x3ac] sm:$0xf]
  %v253 = vld [vmem:[%s0 + $0x3b0] sm:$0xf]
  %v254 = vld [vmem:[%s0 + $0x3b4] sm:$0xf]
  %v255 = vld [vmem:[%s0 + $0x3b8] sm:$0xf]
  %v256 = vld [vmem:[%s0 + $0x3bc] sm:$0xf]
  %v257 = vld [vmem:[%s0 + $0x3c0] sm:$0xf]
  %v258 = vld [vmem:[%s0 + $0x3c4] sm:$0xf]
  %v259 = vld [vmem:[%s0 + $0x3c8] sm:$0xf]
  %v260 = vld [vmem:[%s0 + $0x3cc] sm:$0xf]
  %v261 = vld [vmem:[%s0 + $0x3d0] sm:$0xf]
  %v262 = vld [vmem:[%s0 + $0x3d4] sm:$0xf]
  %v263 = vld [vmem:[%s0 + $0x3d8] sm:$0xf]
  %v264 = vld [vmem:[%s0 + $0x3dc] sm:$0xf]
  %v265 = vld [vmem:[%s0 + $0x3e0] sm:$0xf]
  %v266 = vld [vmem:[%s0 + $0x3e4] sm:$0xf]
  %v267 = vld [vmem:[%s0 + $0x3e8] sm:$0xf]
  %v268 = vld [vmem:[%s0 + $0x3ec] sm:$0xf]
  %v269 = vld [vmem:[%s0 + $0x3f0] sm:$0xf]
  %v270 = vld [vmem:[%s0 + $0x3f4] sm:$0xf]
  %v271 = vld [vmem:[%s0 + $0x3f8] sm:$0xf]
  %v272 = vld [vmem:[%s0 + $0x3fc] sm:$0xf]
  %v273 = vld [vmem:[%s1] sm:$0xf]
  %v274 = vld [vmem:[%s1 + $0x4] sm:$0xf]
  %v275 = vld [vmem:[%s1 + $0x8] sm:$0xf]
  %v276 = vld [vmem:[%s1 + $0xc] sm:$0xf]
  %v277 = vld [vmem:[%s1 + $0x10] sm:$0xf]
  %v278 = vld [vmem:[%s1 + $0x14] sm:$0xf]
  %v279 = vld [vmem:[%s1 + $0x18] sm:$0xf]
  %v280 = vld [vmem:[%s1 + $0x1c] sm:$0xf]
  %v281 = vld [vmem:[%s1 + $0x20] sm:$0xf]
  %v282 = vld [vmem:[%s1 + $0x24] sm:$0xf]
  %v283 = vld [vmem:[%s1 + $0x28] sm:$0xf]
  %v284 = vld [vmem:[%s1 + $0x2c] sm:$0xf]
  %v285 = vld [vmem:[%s1 + $0x30] sm:$0xf]
  %v286 = vld [vmem:[%s1 + $0x34] sm:$0xf]
  %v287 = vld [vmem:[%s1 + $0x38] sm:$0xf]
  %v288 = vld [vmem:[%s1 + $0x3c] sm:$0xf]
  %v545 = vunpack.c.l.b16 %v17
  %v546 = vunpack.c.l.b16 %v18
  %v547 = vunpack.c.l.b16 %v19
  %v548 = vunpack.c.l.b16 %v20
  %v549 = vunpack.c.l.b16 %v21
  %v550 = vunpack.c.l.b16 %v22
  %v551 = vunpack.c.l.b16 %v23
  %v552 = vunpack.c.l.b16 %v24
  %v553 = vunpack.c.l.b16 %v25
  %v554 = vunpack.c.l.b16 %v26
  %v555 = vunpack.c.l.b16 %v27
  %v556 = vunpack.c.l.b16 %v28
  %v557 = vunpack.c.l.b16 %v29
  %v558 = vunpack.c.l.b16 %v30
  %v559 = vunpack.c.l.b16 %v31
  %v560 = vunpack.c.l.b16 %v32
  %v561 = vunpack.c.l.b16 %v33
  %v562 = vunpack.c.l.b16 %v34
  %v563 = vunpack.c.l.b16 %v35
  %v564 = vunpack.c.l.b16 %v36
  %v565 = vunpack.c.l.b16 %v37
  %v566 = vunpack.c.l.b16 %v38
  %v567 = vunpack.c.l.b16 %v39
  %v568 = vunpack.c.l.b16 %v40
  %v569 = vunpack.c.l.b16 %v41
  %v570 = vunpack.c.l.b16 %v42
  %v571 = vunpack.c.l.b16 %v43
  %v572 = vunpack.c.l.b16 %v44
  %v573 = vunpack.c.l.b16 %v45
  %v574 = vunpack.c.l.b16 %v46
  %v575 = vunpack.c.l.b16 %v47
  %v576 = vunpack.c.l.b16 %v48
  %v577 = vunpack.c.l.b16 %v49
  %v578 = vunpack.c.l.b16 %v50
  %v579 = vunpack.c.l.b16 %v51
  %v580 = vunpack.c.l.b16 %v52
  %v581 = vunpack.c.l.b16 %v53
  %v582 = vunpack.c.l.b16 %v54
  %v583 = vunpack.c.l.b16 %v55
  %v584 = vunpack.c.l.b16 %v56
  %v585 = vunpack.c.l.b16 %v57
  %v586 = vunpack.c.l.b16 %v58
  %v587 = vunpack.c.l.b16 %v59
  %v588 = vunpack.c.l.b16 %v60
  %v589 = vunpack.c.l.b16 %v61
  %v590 = vunpack.c.l.b16 %v62
  %v591 = vunpack.c.l.b16 %v63
  %v592 = vunpack.c.l.b16 %v64
  %v593 = vunpack.c.l.b16 %v65
  %v594 = vunpack.c.l.b16 %v66
  %v595 = vunpack.c.l.b16 %v67
  %v596 = vunpack.c.l.b16 %v68
  %v597 = vunpack.c.l.b16 %v69
  %v598 = vunpack.c.l.b16 %v70
  %v599 = vunpack.c.l.b16 %v71
  %v600 = vunpack.c.l.b16 %v72
  %v601 = vunpack.c.l.b16 %v73
  %v602 = vunpack.c.l.b16 %v74
  %v603 = vunpack.c.l.b16 %v75
  %v604 = vunpack.c.l.b16 %v76
  %v605 = vunpack.c.l.b16 %v77
  %v606 = vunpack.c.l.b16 %v78
  %v607 = vunpack.c.l.b16 %v79
  %v608 = vunpack.c.l.b16 %v80
  %v609 = vunpack.c.l.b16 %v81
  %v610 = vunpack.c.l.b16 %v82
  %v611 = vunpack.c.l.b16 %v83
  %v612 = vunpack.c.l.b16 %v84
  %v613 = vunpack.c.l.b16 %v85
  %v614 = vunpack.c.l.b16 %v86
  %v615 = vunpack.c.l.b16 %v87
  %v616 = vunpack.c.l.b16 %v88
  %v617 = vunpack.c.l.b16 %v89
  %v618 = vunpack.c.l.b16 %v90
  %v619 = vunpack.c.l.b16 %v91
  %v620 = vunpack.c.l.b16 %v92
  %v621 = vunpack.c.l.b16 %v93
  %v622 = vunpack.c.l.b16 %v94
  %v623 = vunpack.c.l.b16 %v95
  %v624 = vunpack.c.l.b16 %v96
  %v625 = vunpack.c.l.b16 %v97
  %v626 = vunpack.c.l.b16 %v98
  %v627 = vunpack.c.l.b16 %v99
  %v628 = vunpack.c.l.b16 %v100
  %v629 = vunpack.c.l.b16 %v101
  %v630 = vunpack.c.l.b16 %v102
  %v631 = vunpack.c.l.b16 %v103
  %v632 = vunpack.c.l.b16 %v104
  %v633 = vunpack.c.l.b16 %v105
  %v634 = vunpack.c.l.b16 %v106
  %v635 = vunpack.c.l.b16 %v107
  %v636 = vunpack.c.l.b16 %v108
  %v637 = vunpack.c.l.b16 %v109
  %v638 = vunpack.c.l.b16 %v110
  %v639 = vunpack.c.l.b16 %v111
  %v640 = vunpack.c.l.b16 %v112
  %v641 = vunpack.c.l.b16 %v113
  %v642 = vunpack.c.l.b16 %v114
  %v643 = vunpack.c.l.b16 %v115
  %v644 = vunpack.c.l.b16 %v116
  %v645 = vunpack.c.l.b16 %v117
  %v646 = vunpack.c.l.b16 %v118
  %v647 = vunpack.c.l.b16 %v119
  %v648 = vunpack.c.l.b16 %v120
  %v649 = vunpack.c.l.b16 %v121
  %v650 = vunpack.c.l.b16 %v122
  %v651 = vunpack.c.l.b16 %v123
  %v652 = vunpack.c.l.b16 %v124
  %v653 = vunpack.c.l.b16 %v125
  %v654 = vunpack.c.l.b16 %v126
  %v655 = vunpack.c.l.b16 %v127
  %v656 = vunpack.c.l.b16 %v128
  %v657 = vunpack.c.l.b16 %v129
  %v658 = vunpack.c.l.b16 %v130
  %v659 = vunpack.c.l.b16 %v131
  %v660 = vunpack.c.l.b16 %v132
  %v661 = vunpack.c.l.b16 %v133
  %v662 = vunpack.c.l.b16 %v134
  %v663 = vunpack.c.l.b16 %v135
  %v664 = vunpack.c.l.b16 %v136
  %v665 = vunpack.c.l.b16 %v137
  %v666 = vunpack.c.l.b16 %v138
  %v667 = vunpack.c.l.b16 %v139
  %v668 = vunpack.c.l.b16 %v140
  %v669 = vunpack.c.l.b16 %v141
  %v670 = vunpack.c.l.b16 %v142
  %v671 = vunpack.c.l.b16 %v143
  %v672 = vunpack.c.l.b16 %v144
  %v673 = vunpack.c.l.b16 %v145
  %v674 = vunpack.c.l.b16 %v146
  %v675 = vunpack.c.l.b16 %v147
  %v676 = vunpack.c.l.b16 %v148
  %v677 = vunpack.c.l.b16 %v149
  %v678 = vunpack.c.l.b16 %v150
  %v679 = vunpack.c.l.b16 %v151
  %v680 = vunpack.c.l.b16 %v152
  %v681 = vunpack.c.l.b16 %v153
  %v682 = vunpack.c.l.b16 %v154
  %v683 = vunpack.c.l.b16 %v155
  %v684 = vunpack.c.l.b16 %v156
  %v685 = vunpack.c.l.b16 %v157
  %v686 = vunpack.c.l.b16 %v158
  %v687 = vunpack.c.l.b16 %v159
  %v688 = vunpack.c.l.b16 %v160
  %v689 = vunpack.c.l.b16 %v161
  %v690 = vunpack.c.l.b16 %v162
  %v691 = vunpack.c.l.b16 %v163
  %v692 = vunpack.c.l.b16 %v164
  %v693 = vunpack.c.l.b16 %v165
  %v694 = vunpack.c.l.b16 %v166
  %v695 = vunpack.c.l.b16 %v167
  %v696 = vunpack.c.l.b16 %v168
  %v697 = vunpack.c.l.b16 %v169
  %v698 = vunpack.c.l.b16 %v170
  %v699 = vunpack.c.l.b16 %v171
  %v700 = vunpack.c.l.b16 %v172
  %v701 = vunpack.c.l.b16 %v173
  %v702 = vunpack.c.l.b16 %v174
  %v703 = vunpack.c.l.b16 %v175
  %v704 = vunpack.c.l.b16 %v176
  %v705 = vunpack.c.l.b16 %v177
  %v706 = vunpack.c.l.b16 %v178
  %v707 = vunpack.c.l.b16 %v179
  %v708 = vunpack.c.l.b16 %v180
  %v709 = vunpack.c.l.b16 %v181
  %v710 = vunpack.c.l.b16 %v182
  %v711 = vunpack.c.l.b16 %v183
  %v712 = vunpack.c.l.b16 %v184
  %v713 = vunpack.c.l.b16 %v185
  %v714 = vunpack.c.l.b16 %v186
  %v715 = vunpack.c.l.b16 %v187
  %v716 = vunpack.c.l.b16 %v188
  %v717 = vunpack.c.l.b16 %v189
  %v718 = vunpack.c.l.b16 %v190
  %v719 = vunpack.c.l.b16 %v191
  %v720 = vunpack.c.l.b16 %v192
  %v721 = vunpack.c.l.b16 %v193
  %v722 = vunpack.c.l.b16 %v194
  %v723 = vunpack.c.l.b16 %v195
  %v724 = vunpack.c.l.b16 %v196
  %v725 = vunpack.c.l.b16 %v197
  %v726 = vunpack.c.l.b16 %v198
  %v727 = vunpack.c.l.b16 %v199
  %v728 = vunpack.c.l.b16 %v200
  %v729 = vunpack.c.l.b16 %v201
  %v730 = vunpack.c.l.b16 %v202
  %v731 = vunpack.c.l.b16 %v203
  %v732 = vunpack.c.l.b16 %v204
  %v733 = vunpack.c.l.b16 %v205
  %v734 = vunpack.c.l.b16 %v206
  %v735 = vunpack.c.l.b16 %v207
  %v736 = vunpack.c.l.b16 %v208
  %v737 = vunpack.c.l.b16 %v209
  %v738 = vunpack.c.l.b16 %v210
  %v739 = vunpack.c.l.b16 %v211
  %v740 = vunpack.c.l.b16 %v212
  %v741 = vunpack.c.l.b16 %v213
  %v742 = vunpack.c.l.b16 %v214
  %v743 = vunpack.c.l.b16 %v215
  %v744 = vunpack.c.l.b16 %v216
  %v745 = vunpack.c.l.b16 %v217
  %v746 = vunpack.c.l.b16 %v218
  %v747 = vunpack.c.l.b16 %v219
  %v748 = vunpack.c.l.b16 %v220
  %v749 = vunpack.c.l.b16 %v221
  %v750 = vunpack.c.l.b16 %v222
  %v751 = vunpack.c.l.b16 %v223
  %v752 = vunpack.c.l.b16 %v224
  %v753 = vunpack.c.l.b16 %v225
  %v754 = vunpack.c.l.b16 %v226
  %v755 = vunpack.c.l.b16 %v227
  %v756 = vunpack.c.l.b16 %v228
  %v757 = vunpack.c.l.b16 %v229
  %v758 = vunpack.c.l.b16 %v230
  %v759 = vunpack.c.l.b16 %v231
  %v760 = vunpack.c.l.b16 %v232
  %v761 = vunpack.c.l.b16 %v233
  %v762 = vunpack.c.l.b16 %v234
  %v763 = vunpack.c.l.b16 %v235
  %v764 = vunpack.c.l.b16 %v236
  %v765 = vunpack.c.l.b16 %v237
  %v766 = vunpack.c.l.b16 %v238
  %v767 = vunpack.c.l.b16 %v239
  %v768 = vunpack.c.l.b16 %v240
  %v769 = vunpack.c.l.b16 %v241
  %v770 = vunpack.c.l.b16 %v242
  %v771 = vunpack.c.l.b16 %v243
  %v772 = vunpack.c.l.b16 %v244
  %v773 = vunpack.c.l.b16 %v245
  %v774 = vunpack.c.l.b16 %v246
  %v775 = vunpack.c.l.b16 %v247
  %v776 = vunpack.c.l.b16 %v248
  %v777 = vunpack.c.l.b16 %v249
  %v778 = vunpack.c.l.b16 %v250
  %v779 = vunpack.c.l.b16 %v251
  %v780 = vunpack.c.l.b16 %v252
  %v781 = vunpack.c.l.b16 %v253
  %v782 = vunpack.c.l.b16 %v254
  %v783 = vunpack.c.l.b16 %v255
  %v784 = vunpack.c.l.b16 %v256
  %v785 = vunpack.c.l.b16 %v257
  %v786 = vunpack.c.l.b16 %v258
  %v787 = vunpack.c.l.b16 %v259
  %v788 = vunpack.c.l.b16 %v260
  %v789 = vunpack.c.l.b16 %v261
  %v790 = vunpack.c.l.b16 %v262
  %v791 = vunpack.c.l.b16 %v263
  %v792 = vunpack.c.l.b16 %v264
  %v793 = vunpack.c.l.b16 %v265
  %v794 = vunpack.c.l.b16 %v266
  %v795 = vunpack.c.l.b16 %v267
  %v796 = vunpack.c.l.b16 %v268
  %v797 = vunpack.c.l.b16 %v269
  %v798 = vunpack.c.l.b16 %v270
  %v799 = vunpack.c.l.b16 %v271
  %v800 = vunpack.c.l.b16 %v272
  %v801 = vpack.c.b16 %v546, %v545
  %v802 = vpack.c.b16 %v548, %v547
  %v803 = vpack.c.b16 %v550, %v549
  %v804 = vpack.c.b16 %v552, %v551
  %v805 = vpack.c.b16 %v554, %v553
  %v806 = vpack.c.b16 %v556, %v555
  %v807 = vpack.c.b16 %v558, %v557
  %v808 = vpack.c.b16 %v560, %v559
  %v809 = vpack.c.b16 %v562, %v561
  %v810 = vpack.c.b16 %v564, %v563
  %v811 = vpack.c.b16 %v566, %v565
  %v812 = vpack.c.b16 %v568, %v567
  %v813 = vpack.c.b16 %v570, %v569
  %v814 = vpack.c.b16 %v572, %v571
  %v815 = vpack.c.b16 %v574, %v573
  %v816 = vpack.c.b16 %v576, %v575
  %v817 = vpack.c.b16 %v578, %v577
  %v818 = vpack.c.b16 %v580, %v579
  %v819 = vpack.c.b16 %v582, %v581
  %v820 = vpack.c.b16 %v584, %v583
  %v821 = vpack.c.b16 %v586, %v585
  %v822 = vpack.c.b16 %v588, %v587
  %v823 = vpack.c.b16 %v590, %v589
  %v824 = vpack.c.b16 %v592, %v591
  %v825 = vpack.c.b16 %v594, %v593
  %v826 = vpack.c.b16 %v596, %v595
  %v827 = vpack.c.b16 %v598, %v597
  %v828 = vpack.c.b16 %v600, %v599
  %v829 = vpack.c.b16 %v602, %v601
  %v830 = vpack.c.b16 %v604, %v603
  %v831 = vpack.c.b16 %v606, %v605
  %v832 = vpack.c.b16 %v608, %v607
  %v833 = vpack.c.b16 %v610, %v609
  %v834 = vpack.c.b16 %v612, %v611
  %v835 = vpack.c.b16 %v614, %v613
  %v836 = vpack.c.b16 %v616, %v615
  %v837 = vpack.c.b16 %v618, %v617
  %v838 = vpack.c.b16 %v620, %v619
  %v839 = vpack.c.b16 %v622, %v621
  %v840 = vpack.c.b16 %v624, %v623
  %v841 = vpack.c.b16 %v626, %v625
  %v842 = vpack.c.b16 %v628, %v627
  %v843 = vpack.c.b16 %v630, %v629
  %v844 = vpack.c.b16 %v632, %v631
  %v845 = vpack.c.b16 %v634, %v633
  %v846 = vpack.c.b16 %v636, %v635
  %v847 = vpack.c.b16 %v638, %v637
  %v848 = vpack.c.b16 %v640, %v639
  %v849 = vpack.c.b16 %v642, %v641
  %v850 = vpack.c.b16 %v644, %v643
  %v851 = vpack.c.b16 %v646, %v645
  %v852 = vpack.c.b16 %v648, %v647
  %v853 = vpack.c.b16 %v650, %v649
  %v854 = vpack.c.b16 %v652, %v651
  %v855 = vpack.c.b16 %v654, %v653
  %v856 = vpack.c.b16 %v656, %v655
  %v857 = vpack.c.b16 %v658, %v657
  %v858 = vpack.c.b16 %v660, %v659
  %v859 = vpack.c.b16 %v662, %v661
  %v860 = vpack.c.b16 %v664, %v663
  %v861 = vpack.c.b16 %v666, %v665
  %v862 = vpack.c.b16 %v668, %v667
  %v863 = vpack.c.b16 %v670, %v669
  %v864 = vpack.c.b16 %v672, %v671
  %v865 = vpack.c.b16 %v674, %v673
  %v866 = vpack.c.b16 %v676, %v675
  %v867 = vpack.c.b16 %v678, %v677
  %v868 = vpack.c.b16 %v680, %v679
  %v869 = vpack.c.b16 %v682, %v681
  %v870 = vpack.c.b16 %v684, %v683
  %v871 = vpack.c.b16 %v686, %v685
  %v872 = vpack.c.b16 %v688, %v687
  %v873 = vpack.c.b16 %v690, %v689
  %v874 = vpack.c.b16 %v692, %v691
  %v875 = vpack.c.b16 %v694, %v693
  %v876 = vpack.c.b16 %v696, %v695
  %v877 = vpack.c.b16 %v698, %v697
  %v878 = vpack.c.b16 %v700, %v699
  %v879 = vpack.c.b16 %v702, %v701
  %v880 = vpack.c.b16 %v704, %v703
  %v881 = vpack.c.b16 %v706, %v705
  %v882 = vpack.c.b16 %v708, %v707
  %v883 = vpack.c.b16 %v710, %v709
  %v884 = vpack.c.b16 %v712, %v711
  %v885 = vpack.c.b16 %v714, %v713
  %v886 = vpack.c.b16 %v716, %v715
  %v887 = vpack.c.b16 %v718, %v717
  %v888 = vpack.c.b16 %v720, %v719
  %v889 = vpack.c.b16 %v722, %v721
  %v890 = vpack.c.b16 %v724, %v723
  %v891 = vpack.c.b16 %v726, %v725
  %v892 = vpack.c.b16 %v728, %v727
  %v893 = vpack.c.b16 %v730, %v729
  %v894 = vpack.c.b16 %v732, %v731
  %v895 = vpack.c.b16 %v734, %v733
  %v896 = vpack.c.b16 %v736, %v735
  %v897 = vpack.c.b16 %v738, %v737
  %v898 = vpack.c.b16 %v740, %v739
  %v899 = vpack.c.b16 %v742, %v741
  %v900 = vpack.c.b16 %v744, %v743
  %v901 = vpack.c.b16 %v746, %v745
  %v902 = vpack.c.b16 %v748, %v747
  %v903 = vpack.c.b16 %v750, %v749
  %v904 = vpack.c.b16 %v752, %v751
  %v905 = vpack.c.b16 %v754, %v753
  %v906 = vpack.c.b16 %v756, %v755
  %v907 = vpack.c.b16 %v758, %v757
  %v908 = vpack.c.b16 %v760, %v759
  %v909 = vpack.c.b16 %v762, %v761
  %v910 = vpack.c.b16 %v764, %v763
  %v911 = vpack.c.b16 %v766, %v765
  %v912 = vpack.c.b16 %v768, %v767
  %v913 = vpack.c.b16 %v770, %v769
  %v914 = vpack.c.b16 %v772, %v771
  %v915 = vpack.c.b16 %v774, %v773
  %v916 = vpack.c.b16 %v776, %v775
  %v917 = vpack.c.b16 %v778, %v777
  %v918 = vpack.c.b16 %v780, %v779
  %v919 = vpack.c.b16 %v782, %v781
  %v920 = vpack.c.b16 %v784, %v783
  %v921 = vpack.c.b16 %v786, %v785
  %v922 = vpack.c.b16 %v788, %v787
  %v923 = vpack.c.b16 %v790, %v789
  %v924 = vpack.c.b16 %v792, %v791
  %v925 = vpack.c.b16 %v794, %v793
  %v926 = vpack.c.b16 %v796, %v795
  %v927 = vpack.c.b16 %v798, %v797
  %v928 = vpack.c.b16 %v800, %v799
  %v1073 = vunpack.c.l.b16 %v273
  %v1074 = vunpack.c.l.b16 %v274
  %v1075 = vunpack.c.l.b16 %v275
  %v1076 = vunpack.c.l.b16 %v276
  %v1077 = vunpack.c.l.b16 %v277
  %v1078 = vunpack.c.l.b16 %v278
  %v1079 = vunpack.c.l.b16 %v279
  %v1080 = vunpack.c.l.b16 %v280
  %v1081 = vunpack.c.l.b16 %v281
  %v1082 = vunpack.c.l.b16 %v282
  %v1083 = vunpack.c.l.b16 %v283
  %v1084 = vunpack.c.l.b16 %v284
  %v1085 = vunpack.c.l.b16 %v285
  %v1086 = vunpack.c.l.b16 %v286
  %v1087 = vunpack.c.l.b16 %v287
  %v1088 = vunpack.c.l.b16 %v288
  %v1089 = vpack.c.b16 %v1074, %v1073
  %v1090 = vpack.c.b16 %v1076, %v1075
  %v1091 = vpack.c.b16 %v1078, %v1077
  %v1092 = vpack.c.b16 %v1080, %v1079
  %v1093 = vpack.c.b16 %v1082, %v1081
  %v1094 = vpack.c.b16 %v1084, %v1083
  %v1095 = vpack.c.b16 %v1086, %v1085
  %v1096 = vpack.c.b16 %v1088, %v1087
  %1105 = vmatpush.bf16.msra.mxu0 %v1096
  %1106 = vmatpush.bf16.msra.mxu0 %v1095
  %1107 = vmatpush.bf16.msra.mxu0 %v1094
  %1108 = vmatpush.bf16.msra.mxu0 %v1093
  %1109 = vmatpush.bf16.msra.mxu0 %v1092
  %1110 = vmatpush.bf16.msra.mxu0 %v1091
  %1111 = vmatpush.bf16.msra.mxu0 %v1090
  %1112 = vmatpush.bf16.msra.mxu0 %v1089
  %1113 = vmatmul.bf16.gmra.mxu0 %v801
  %v1114 = vpop.f32.mrf.mxu0
  %v1115 = vadd.f32 0.0, %v1114
  %v1116 = vpop.f32.mrf.mxu0
  %v1117 = vadd.f32 0.0, %v1116
  %1118 = vmatmul.bf16.gmra.mxu0 %v802
  %v1119 = vpop.f32.mrf.mxu0
  %v1120 = vadd.f32 0.0, %v1119
  %v1121 = vpop.f32.mrf.mxu0
  %v1122 = vadd.f32 0.0, %v1121
  %1123 = vmatmul.bf16.gmra.mxu0 %v803
  %v1124 = vpop.f32.mrf.mxu0
  %v1125 = vadd.f32 0.0, %v1124
  %v1126 = vpop.f32.mrf.mxu0
  %v1127 = vadd.f32 0.0, %v1126
  %1128 = vmatmul.bf16.gmra.mxu0 %v804
  %v1129 = vpop.f32.mrf.mxu0
  %v1130 = vadd.f32 0.0, %v1129
  %v1131 = vpop.f32.mrf.mxu0
  %v1132 = vadd.f32 0.0, %v1131
  %1133 = vmatmul.bf16.gmra.mxu0 %v805
  %v1134 = vpop.f32.mrf.mxu0
  %v1135 = vadd.f32 0.0, %v1134
  %v1136 = vpop.f32.mrf.mxu0
  %v1137 = vadd.f32 0.0, %v1136
  %1138 = vmatmul.bf16.gmra.mxu0 %v806
  %v1139 = vpop.f32.mrf.mxu0
  %v1140 = vadd.f32 0.0, %v1139
  %v1141 = vpop.f32.mrf.mxu0
  %v1142 = vadd.f32 0.0, %v1141
  %1143 = vmatmul.bf16.gmra.mxu0 %v807
  %v1144 = vpop.f32.mrf.mxu0
  %v1145 = vadd.f32 0.0, %v1144
  %v1146 = vpop.f32.mrf.mxu0
  %v1147 = vadd.f32 0.0, %v1146
  %1148 = vmatmul.bf16.gmra.mxu0 %v808
  %v1149 = vpop.f32.mrf.mxu0
  %v1150 = vadd.f32 0.0, %v1149
  %v1151 = vpop.f32.mrf.mxu0
  %v1152 = vadd.f32 0.0, %v1151
  %1153 = vmatmul.bf16.gmra.mxu0 %v809
  %v1154 = vpop.f32.mrf.mxu0
  %v1155 = vadd.f32 0.0, %v1154
  %v1156 = vpop.f32.mrf.mxu0
  %v1157 = vadd.f32 0.0, %v1156
  %1158 = vmatmul.bf16.gmra.mxu0 %v810
  %v1159 = vpop.f32.mrf.mxu0
  %v1160 = vadd.f32 0.0, %v1159
  %v1161 = vpop.f32.mrf.mxu0
  %v1162 = vadd.f32 0.0, %v1161
  %1163 = vmatmul.bf16.gmra.mxu0 %v811
  %v1164 = vpop.f32.mrf.mxu0
  %v1165 = vadd.f32 0.0, %v1164
  %v1166 = vpop.f32.mrf.mxu0
  %v1167 = vadd.f32 0.0, %v1166
  %1168 = vmatmul.bf16.gmra.mxu0 %v812
  %v1169 = vpop.f32.mrf.mxu0
  %v1170 = vadd.f32 0.0, %v1169
  %v1171 = vpop.f32.mrf.mxu0
  %v1172 = vadd.f32 0.0, %v1171
  %1173 = vmatmul.bf16.gmra.mxu0 %v813
  %v1174 = vpop.f32.mrf.mxu0
  %v1175 = vadd.f32 0.0, %v1174
  %v1176 = vpop.f32.mrf.mxu0
  %v1177 = vadd.f32 0.0, %v1176
  %1178 = vmatmul.bf16.gmra.mxu0 %v814
  %v1179 = vpop.f32.mrf.mxu0
  %v1180 = vadd.f32 0.0, %v1179
  %v1181 = vpop.f32.mrf.mxu0
  %v1182 = vadd.f32 0.0, %v1181
  %1183 = vmatmul.bf16.gmra.mxu0 %v815
  %v1184 = vpop.f32.mrf.mxu0
  %v1185 = vadd.f32 0.0, %v1184
  %v1186 = vpop.f32.mrf.mxu0
  %v1187 = vadd.f32 0.0, %v1186
  %1188 = vmatmul.bf16.gmra.mxu0 %v816
  %v1189 = vpop.f32.mrf.mxu0
  %v1190 = vadd.f32 0.0, %v1189
  %v1191 = vpop.f32.mrf.mxu0
  %v1192 = vadd.f32 0.0, %v1191
  %1193 = vmatmul.bf16.gmra.mxu0 %v817
  %v1194 = vpop.f32.mrf.mxu0
  %v1195 = vadd.f32 0.0, %v1194
  %v1196 = vpop.f32.mrf.mxu0
  %v1197 = vadd.f32 0.0, %v1196
  %1198 = vmatmul.bf16.gmra.mxu0 %v818
  %v1199 = vpop.f32.mrf.mxu0
  %v1200 = vadd.f32 0.0, %v1199
  %v1201 = vpop.f32.mrf.mxu0
  %v1202 = vadd.f32 0.0, %v1201
  %1203 = vmatmul.bf16.gmra.mxu0 %v819
  %v1204 = vpop.f32.mrf.mxu0
  %v1205 = vadd.f32 0.0, %v1204
  %v1206 = vpop.f32.mrf.mxu0
  %v1207 = vadd.f32 0.0, %v1206
  %1208 = vmatmul.bf16.gmra.mxu0 %v820
  %v1209 = vpop.f32.mrf.mxu0
  %v1210 = vadd.f32 0.0, %v1209
  %v1211 = vpop.f32.mrf.mxu0
  %v1212 = vadd.f32 0.0, %v1211
  %1213 = vmatmul.bf16.gmra.mxu0 %v821
  %v1214 = vpop.f32.mrf.mxu0
  %v1215 = vadd.f32 0.0, %v1214
  %v1216 = vpop.f32.mrf.mxu0
  %v1217 = vadd.f32 0.0, %v1216
  %1218 = vmatmul.bf16.gmra.mxu0 %v822
  %v1219 = vpop.f32.mrf.mxu0
  %v1220 = vadd.f32 0.0, %v1219
  %v1221 = vpop.f32.mrf.mxu0
  %v1222 = vadd.f32 0.0, %v1221
  %1223 = vmatmul.bf16.gmra.mxu0 %v823
  %v1224 = vpop.f32.mrf.mxu0
  %v1225 = vadd.f32 0.0, %v1224
  %v1226 = vpop.f32.mrf.mxu0
  %v1227 = vadd.f32 0.0, %v1226
  %1228 = vmatmul.bf16.gmra.mxu0 %v824
  %v1229 = vpop.f32.mrf.mxu0
  %v1230 = vadd.f32 0.0, %v1229
  %v1231 = vpop.f32.mrf.mxu0
  %v1232 = vadd.f32 0.0, %v1231
  %1233 = vmatmul.bf16.gmra.mxu0 %v825
  %v1234 = vpop.f32.mrf.mxu0
  %v1235 = vadd.f32 0.0, %v1234
  %v1236 = vpop.f32.mrf.mxu0
  %v1237 = vadd.f32 0.0, %v1236
  %1238 = vmatmul.bf16.gmra.mxu0 %v826
  %v1239 = vpop.f32.mrf.mxu0
  %v1240 = vadd.f32 0.0, %v1239
  %v1241 = vpop.f32.mrf.mxu0
  %v1242 = vadd.f32 0.0, %v1241
  %1243 = vmatmul.bf16.gmra.mxu0 %v827
  %v1244 = vpop.f32.mrf.mxu0
  %v1245 = vadd.f32 0.0, %v1244
  %v1246 = vpop.f32.mrf.mxu0
  %v1247 = vadd.f32 0.0, %v1246
  %1248 = vmatmul.bf16.gmra.mxu0 %v828
  %v1249 = vpop.f32.mrf.mxu0
  %v1250 = vadd.f32 0.0, %v1249
  %v1251 = vpop.f32.mrf.mxu0
  %v1252 = vadd.f32 0.0, %v1251
  %1253 = vmatmul.bf16.gmra.mxu0 %v829
  %v1254 = vpop.f32.mrf.mxu0
  %v1255 = vadd.f32 0.0, %v1254
  %v1256 = vpop.f32.mrf.mxu0
  %v1257 = vadd.f32 0.0, %v1256
  %1258 = vmatmul.bf16.gmra.mxu0 %v830
  %v1259 = vpop.f32.mrf.mxu0
  %v1260 = vadd.f32 0.0, %v1259
  %v1261 = vpop.f32.mrf.mxu0
  %v1262 = vadd.f32 0.0, %v1261
  %1263 = vmatmul.bf16.gmra.mxu0 %v831
  %v1264 = vpop.f32.mrf.mxu0
  %v1265 = vadd.f32 0.0, %v1264
  %v1266 = vpop.f32.mrf.mxu0
  %v1267 = vadd.f32 0.0, %v1266
  %1268 = vmatmul.bf16.gmra.mxu0 %v832
  %v1269 = vpop.f32.mrf.mxu0
  %v1270 = vadd.f32 0.0, %v1269
  %v1271 = vpop.f32.mrf.mxu0
  %v1272 = vadd.f32 0.0, %v1271
  %1273 = vmatmul.bf16.gmra.mxu0 %v833
  %v1274 = vpop.f32.mrf.mxu0
  %v1275 = vadd.f32 0.0, %v1274
  %v1276 = vpop.f32.mrf.mxu0
  %v1277 = vadd.f32 0.0, %v1276
  %1278 = vmatmul.bf16.gmra.mxu0 %v834
  %v1279 = vpop.f32.mrf.mxu0
  %v1280 = vadd.f32 0.0, %v1279
  %v1281 = vpop.f32.mrf.mxu0
  %v1282 = vadd.f32 0.0, %v1281
  %1283 = vmatmul.bf16.gmra.mxu0 %v835
  %v1284 = vpop.f32.mrf.mxu0
  %v1285 = vadd.f32 0.0, %v1284
  %v1286 = vpop.f32.mrf.mxu0
  %v1287 = vadd.f32 0.0, %v1286
  %1288 = vmatmul.bf16.gmra.mxu0 %v836
  %v1289 = vpop.f32.mrf.mxu0
  %v1290 = vadd.f32 0.0, %v1289
  %v1291 = vpop.f32.mrf.mxu0
  %v1292 = vadd.f32 0.0, %v1291
  %1293 = vmatmul.bf16.gmra.mxu0 %v837
  %v1294 = vpop.f32.mrf.mxu0
  %v1295 = vadd.f32 0.0, %v1294
  %v1296 = vpop.f32.mrf.mxu0
  %v1297 = vadd.f32 0.0, %v1296
  %1298 = vmatmul.bf16.gmra.mxu0 %v838
  %v1299 = vpop.f32.mrf.mxu0
  %v1300 = vadd.f32 0.0, %v1299
  %v1301 = vpop.f32.mrf.mxu0
  %v1302 = vadd.f32 0.0, %v1301
  %1303 = vmatmul.bf16.gmra.mxu0 %v839
  %v1304 = vpop.f32.mrf.mxu0
  %v1305 = vadd.f32 0.0, %v1304
  %v1306 = vpop.f32.mrf.mxu0
  %v1307 = vadd.f32 0.0, %v1306
  %1308 = vmatmul.bf16.gmra.mxu0 %v840
  %v1309 = vpop.f32.mrf.mxu0
  %v1310 = vadd.f32 0.0, %v1309
  %v1311 = vpop.f32.mrf.mxu0
  %v1312 = vadd.f32 0.0, %v1311
  %1313 = vmatmul.bf16.gmra.mxu0 %v841
  %v1314 = vpop.f32.mrf.mxu0
  %v1315 = vadd.f32 0.0, %v1314
  %v1316 = vpop.f32.mrf.mxu0
  %v1317 = vadd.f32 0.0, %v1316
  %1318 = vmatmul.bf16.gmra.mxu0 %v842
  %v1319 = vpop.f32.mrf.mxu0
  %v1320 = vadd.f32 0.0, %v1319
  %v1321 = vpop.f32.mrf.mxu0
  %v1322 = vadd.f32 0.0, %v1321
  %1323 = vmatmul.bf16.gmra.mxu0 %v843
  %v1324 = vpop.f32.mrf.mxu0
  %v1325 = vadd.f32 0.0, %v1324
  %v1326 = vpop.f32.mrf.mxu0
  %v1327 = vadd.f32 0.0, %v1326
  %1328 = vmatmul.bf16.gmra.mxu0 %v844
  %v1329 = vpop.f32.mrf.mxu0
  %v1330 = vadd.f32 0.0, %v1329
  %v1331 = vpop.f32.mrf.mxu0
  %v1332 = vadd.f32 0.0, %v1331
  %1333 = vmatmul.bf16.gmra.mxu0 %v845
  %v1334 = vpop.f32.mrf.mxu0
  %v1335 = vadd.f32 0.0, %v1334
  %v1336 = vpop.f32.mrf.mxu0
  %v1337 = vadd.f32 0.0, %v1336
  %1338 = vmatmul.bf16.gmra.mxu0 %v846
  %v1339 = vpop.f32.mrf.mxu0
  %v1340 = vadd.f32 0.0, %v1339
  %v1341 = vpop.f32.mrf.mxu0
  %v1342 = vadd.f32 0.0, %v1341
  %1343 = vmatmul.bf16.gmra.mxu0 %v847
  %v1344 = vpop.f32.mrf.mxu0
  %v1345 = vadd.f32 0.0, %v1344
  %v1346 = vpop.f32.mrf.mxu0
  %v1347 = vadd.f32 0.0, %v1346
  %1348 = vmatmul.bf16.gmra.mxu0 %v848
  %v1349 = vpop.f32.mrf.mxu0
  %v1350 = vadd.f32 0.0, %v1349
  %v1351 = vpop.f32.mrf.mxu0
  %v1352 = vadd.f32 0.0, %v1351
  %1353 = vmatmul.bf16.gmra.mxu0 %v849
  %v1354 = vpop.f32.mrf.mxu0
  %v1355 = vadd.f32 0.0, %v1354
  %v1356 = vpop.f32.mrf.mxu0
  %v1357 = vadd.f32 0.0, %v1356
  %1358 = vmatmul.bf16.gmra.mxu0 %v850
  %v1359 = vpop.f32.mrf.mxu0
  %v1360 = vadd.f32 0.0, %v1359
  %v1361 = vpop.f32.mrf.mxu0
  %v1362 = vadd.f32 0.0, %v1361
  %1363 = vmatmul.bf16.gmra.mxu0 %v851
  %v1364 = vpop.f32.mrf.mxu0
  %v1365 = vadd.f32 0.0, %v1364
  %v1366 = vpop.f32.mrf.mxu0
  %v1367 = vadd.f32 0.0, %v1366
  %1368 = vmatmul.bf16.gmra.mxu0 %v852
  %v1369 = vpop.f32.mrf.mxu0
  %v1370 = vadd.f32 0.0, %v1369
  %v1371 = vpop.f32.mrf.mxu0
  %v1372 = vadd.f32 0.0, %v1371
  %1373 = vmatmul.bf16.gmra.mxu0 %v853
  %v1374 = vpop.f32.mrf.mxu0
  %v1375 = vadd.f32 0.0, %v1374
  %v1376 = vpop.f32.mrf.mxu0
  %v1377 = vadd.f32 0.0, %v1376
  %1378 = vmatmul.bf16.gmra.mxu0 %v854
  %v1379 = vpop.f32.mrf.mxu0
  %v1380 = vadd.f32 0.0, %v1379
  %v1381 = vpop.f32.mrf.mxu0
  %v1382 = vadd.f32 0.0, %v1381
  %1383 = vmatmul.bf16.gmra.mxu0 %v855
  %v1384 = vpop.f32.mrf.mxu0
  %v1385 = vadd.f32 0.0, %v1384
  %v1386 = vpop.f32.mrf.mxu0
  %v1387 = vadd.f32 0.0, %v1386
  %1388 = vmatmul.bf16.gmra.mxu0 %v856
  %v1389 = vpop.f32.mrf.mxu0
  %v1390 = vadd.f32 0.0, %v1389
  %v1391 = vpop.f32.mrf.mxu0
  %v1392 = vadd.f32 0.0, %v1391
  %1393 = vmatmul.bf16.gmra.mxu0 %v857
  %v1394 = vpop.f32.mrf.mxu0
  %v1395 = vadd.f32 0.0, %v1394
  %v1396 = vpop.f32.mrf.mxu0
  %v1397 = vadd.f32 0.0, %v1396
  %1398 = vmatmul.bf16.gmra.mxu0 %v858
  %v1399 = vpop.f32.mrf.mxu0
  %v1400 = vadd.f32 0.0, %v1399
  %v1401 = vpop.f32.mrf.mxu0
  %v1402 = vadd.f32 0.0, %v1401
  %1403 = vmatmul.bf16.gmra.mxu0 %v859
  %v1404 = vpop.f32.mrf.mxu0
  %v1405 = vadd.f32 0.0, %v1404
  %v1406 = vpop.f32.mrf.mxu0
  %v1407 = vadd.f32 0.0, %v1406
  %1408 = vmatmul.bf16.gmra.mxu0 %v860
  %v1409 = vpop.f32.mrf.mxu0
  %v1410 = vadd.f32 0.0, %v1409
  %v1411 = vpop.f32.mrf.mxu0
  %v1412 = vadd.f32 0.0, %v1411
  %1413 = vmatmul.bf16.gmra.mxu0 %v861
  %v1414 = vpop.f32.mrf.mxu0
  %v1415 = vadd.f32 0.0, %v1414
  %v1416 = vpop.f32.mrf.mxu0
  %v1417 = vadd.f32 0.0, %v1416
  %1418 = vmatmul.bf16.gmra.mxu0 %v862
  %v1419 = vpop.f32.mrf.mxu0
  %v1420 = vadd.f32 0.0, %v1419
  %v1421 = vpop.f32.mrf.mxu0
  %v1422 = vadd.f32 0.0, %v1421
  %1423 = vmatmul.bf16.gmra.mxu0 %v863
  %v1424 = vpop.f32.mrf.mxu0
  %v1425 = vadd.f32 0.0, %v1424
  %v1426 = vpop.f32.mrf.mxu0
  %v1427 = vadd.f32 0.0, %v1426
  %1428 = vmatmul.bf16.gmra.mxu0 %v864
  %v1429 = vpop.f32.mrf.mxu0
  %v1430 = vadd.f32 0.0, %v1429
  %v1431 = vpop.f32.mrf.mxu0
  %v1432 = vadd.f32 0.0, %v1431
  %1433 = vmatmul.bf16.gmra.mxu0 %v865
  %v1434 = vpop.f32.mrf.mxu0
  %v1435 = vadd.f32 0.0, %v1434
  %v1436 = vpop.f32.mrf.mxu0
  %v1437 = vadd.f32 0.0, %v1436
  %1438 = vmatmul.bf16.gmra.mxu0 %v866
  %v1439 = vpop.f32.mrf.mxu0
  %v1440 = vadd.f32 0.0, %v1439
  %v1441 = vpop.f32.mrf.mxu0
  %v1442 = vadd.f32 0.0, %v1441
  %1443 = vmatmul.bf16.gmra.mxu0 %v867
  %v1444 = vpop.f32.mrf.mxu0
  %v1445 = vadd.f32 0.0, %v1444
  %v1446 = vpop.f32.mrf.mxu0
  %v1447 = vadd.f32 0.0, %v1446
  %1448 = vmatmul.bf16.gmra.mxu0 %v868
  %v1449 = vpop.f32.mrf.mxu0
  %v1450 = vadd.f32 0.0, %v1449
  %v1451 = vpop.f32.mrf.mxu0
  %v1452 = vadd.f32 0.0, %v1451
  %1453 = vmatmul.bf16.gmra.mxu0 %v869
  %v1454 = vpop.f32.mrf.mxu0
  %v1455 = vadd.f32 0.0, %v1454
  %v1456 = vpop.f32.mrf.mxu0
  %v1457 = vadd.f32 0.0, %v1456
  %1458 = vmatmul.bf16.gmra.mxu0 %v870
  %v1459 = vpop.f32.mrf.mxu0
  %v1460 = vadd.f32 0.0, %v1459
  %v1461 = vpop.f32.mrf.mxu0
  %v1462 = vadd.f32 0.0, %v1461
  %1463 = vmatmul.bf16.gmra.mxu0 %v871
  %v1464 = vpop.f32.mrf.mxu0
  %v1465 = vadd.f32 0.0, %v1464
  %v1466 = vpop.f32.mrf.mxu0
  %v1467 = vadd.f32 0.0, %v1466
  %1468 = vmatmul.bf16.gmra.mxu0 %v872
  %v1469 = vpop.f32.mrf.mxu0
  %v1470 = vadd.f32 0.0, %v1469
  %v1471 = vpop.f32.mrf.mxu0
  %v1472 = vadd.f32 0.0, %v1471
  %1473 = vmatmul.bf16.gmra.mxu0 %v873
  %v1474 = vpop.f32.mrf.mxu0
  %v1475 = vadd.f32 0.0, %v1474
  %v1476 = vpop.f32.mrf.mxu0
  %v1477 = vadd.f32 0.0, %v1476
  %1478 = vmatmul.bf16.gmra.mxu0 %v874
  %v1479 = vpop.f32.mrf.mxu0
  %v1480 = vadd.f32 0.0, %v1479
  %v1481 = vpop.f32.mrf.mxu0
  %v1482 = vadd.f32 0.0, %v1481
  %1483 = vmatmul.bf16.gmra.mxu0 %v875
  %v1484 = vpop.f32.mrf.mxu0
  %v1485 = vadd.f32 0.0, %v1484
  %v1486 = vpop.f32.mrf.mxu0
  %v1487 = vadd.f32 0.0, %v1486
  %1488 = vmatmul.bf16.gmra.mxu0 %v876
  %v1489 = vpop.f32.mrf.mxu0
  %v1490 = vadd.f32 0.0, %v1489
  %v1491 = vpop.f32.mrf.mxu0
  %v1492 = vadd.f32 0.0, %v1491
  %1493 = vmatmul.bf16.gmra.mxu0 %v877
  %v1494 = vpop.f32.mrf.mxu0
  %v1495 = vadd.f32 0.0, %v1494
  %v1496 = vpop.f32.mrf.mxu0
  %v1497 = vadd.f32 0.0, %v1496
  %1498 = vmatmul.bf16.gmra.mxu0 %v878
  %v1499 = vpop.f32.mrf.mxu0
  %v1500 = vadd.f32 0.0, %v1499
  %v1501 = vpop.f32.mrf.mxu0
  %v1502 = vadd.f32 0.0, %v1501
  %1503 = vmatmul.bf16.gmra.mxu0 %v879
  %v1504 = vpop.f32.mrf.mxu0
  %v1505 = vadd.f32 0.0, %v1504
  %v1506 = vpop.f32.mrf.mxu0
  %v1507 = vadd.f32 0.0, %v1506
  %1508 = vmatmul.bf16.gmra.mxu0 %v880
  %v1509 = vpop.f32.mrf.mxu0
  %v1510 = vadd.f32 0.0, %v1509
  %v1511 = vpop.f32.mrf.mxu0
  %v1512 = vadd.f32 0.0, %v1511
  %1513 = vmatmul.bf16.gmra.mxu0 %v881
  %v1514 = vpop.f32.mrf.mxu0
  %v1515 = vadd.f32 0.0, %v1514
  %v1516 = vpop.f32.mrf.mxu0
  %v1517 = vadd.f32 0.0, %v1516
  %1518 = vmatmul.bf16.gmra.mxu0 %v882
  %v1519 = vpop.f32.mrf.mxu0
  %v1520 = vadd.f32 0.0, %v1519
  %v1521 = vpop.f32.mrf.mxu0
  %v1522 = vadd.f32 0.0, %v1521
  %1523 = vmatmul.bf16.gmra.mxu0 %v883
  %v1524 = vpop.f32.mrf.mxu0
  %v1525 = vadd.f32 0.0, %v1524
  %v1526 = vpop.f32.mrf.mxu0
  %v1527 = vadd.f32 0.0, %v1526
  %1528 = vmatmul.bf16.gmra.mxu0 %v884
  %v1529 = vpop.f32.mrf.mxu0
  %v1530 = vadd.f32 0.0, %v1529
  %v1531 = vpop.f32.mrf.mxu0
  %v1532 = vadd.f32 0.0, %v1531
  %1533 = vmatmul.bf16.gmra.mxu0 %v885
  %v1534 = vpop.f32.mrf.mxu0
  %v1535 = vadd.f32 0.0, %v1534
  %v1536 = vpop.f32.mrf.mxu0
  %v1537 = vadd.f32 0.0, %v1536
  %1538 = vmatmul.bf16.gmra.mxu0 %v886
  %v1539 = vpop.f32.mrf.mxu0
  %v1540 = vadd.f32 0.0, %v1539
  %v1541 = vpop.f32.mrf.mxu0
  %v1542 = vadd.f32 0.0, %v1541
  %1543 = vmatmul.bf16.gmra.mxu0 %v887
  %v1544 = vpop.f32.mrf.mxu0
  %v1545 = vadd.f32 0.0, %v1544
  %v1546 = vpop.f32.mrf.mxu0
  %v1547 = vadd.f32 0.0, %v1546
  %1548 = vmatmul.bf16.gmra.mxu0 %v888
  %v1549 = vpop.f32.mrf.mxu0
  %v1550 = vadd.f32 0.0, %v1549
  %v1551 = vpop.f32.mrf.mxu0
  %v1552 = vadd.f32 0.0, %v1551
  %1553 = vmatmul.bf16.gmra.mxu0 %v889
  %v1554 = vpop.f32.mrf.mxu0
  %v1555 = vadd.f32 0.0, %v1554
  %v1556 = vpop.f32.mrf.mxu0
  %v1557 = vadd.f32 0.0, %v1556
  %1558 = vmatmul.bf16.gmra.mxu0 %v890
  %v1559 = vpop.f32.mrf.mxu0
  %v1560 = vadd.f32 0.0, %v1559
  %v1561 = vpop.f32.mrf.mxu0
  %v1562 = vadd.f32 0.0, %v1561
  %1563 = vmatmul.bf16.gmra.mxu0 %v891
  %v1564 = vpop.f32.mrf.mxu0
  %v1565 = vadd.f32 0.0, %v1564
  %v1566 = vpop.f32.mrf.mxu0
  %v1567 = vadd.f32 0.0, %v1566
  %1568 = vmatmul.bf16.gmra.mxu0 %v892
  %v1569 = vpop.f32.mrf.mxu0
  %v1570 = vadd.f32 0.0, %v1569
  %v1571 = vpop.f32.mrf.mxu0
  %v1572 = vadd.f32 0.0, %v1571
  %1573 = vmatmul.bf16.gmra.mxu0 %v893
  %v1574 = vpop.f32.mrf.mxu0
  %v1575 = vadd.f32 0.0, %v1574
  %v1576 = vpop.f32.mrf.mxu0
  %v1577 = vadd.f32 0.0, %v1576
  %1578 = vmatmul.bf16.gmra.mxu0 %v894
  %v1579 = vpop.f32.mrf.mxu0
  %v1580 = vadd.f32 0.0, %v1579
  %v1581 = vpop.f32.mrf.mxu0
  %v1582 = vadd.f32 0.0, %v1581
  %1583 = vmatmul.bf16.gmra.mxu0 %v895
  %v1584 = vpop.f32.mrf.mxu0
  %v1585 = vadd.f32 0.0, %v1584
  %v1586 = vpop.f32.mrf.mxu0
  %v1587 = vadd.f32 0.0, %v1586
  %1588 = vmatmul.bf16.gmra.mxu0 %v896
  %v1589 = vpop.f32.mrf.mxu0
  %v1590 = vadd.f32 0.0, %v1589
  %v1591 = vpop.f32.mrf.mxu0
  %v1592 = vadd.f32 0.0, %v1591
  %1593 = vmatmul.bf16.gmra.mxu0 %v897
  %v1594 = vpop.f32.mrf.mxu0
  %v1595 = vadd.f32 0.0, %v1594
  %v1596 = vpop.f32.mrf.mxu0
  %v1597 = vadd.f32 0.0, %v1596
  %1598 = vmatmul.bf16.gmra.mxu0 %v898
  %v1599 = vpop.f32.mrf.mxu0
  %v1600 = vadd.f32 0.0, %v1599
  %v1601 = vpop.f32.mrf.mxu0
  %v1602 = vadd.f32 0.0, %v1601
  %1603 = vmatmul.bf16.gmra.mxu0 %v899
  %v1604 = vpop.f32.mrf.mxu0
  %v1605 = vadd.f32 0.0, %v1604
  %v1606 = vpop.f32.mrf.mxu0
  %v1607 = vadd.f32 0.0, %v1606
  %1608 = vmatmul.bf16.gmra.mxu0 %v900
  %v1609 = vpop.f32.mrf.mxu0
  %v1610 = vadd.f32 0.0, %v1609
  %v1611 = vpop.f32.mrf.mxu0
  %v1612 = vadd.f32 0.0, %v1611
  %1613 = vmatmul.bf16.gmra.mxu0 %v901
  %v1614 = vpop.f32.mrf.mxu0
  %v1615 = vadd.f32 0.0, %v1614
  %v1616 = vpop.f32.mrf.mxu0
  %v1617 = vadd.f32 0.0, %v1616
  %1618 = vmatmul.bf16.gmra.mxu0 %v902
  %v1619 = vpop.f32.mrf.mxu0
  %v1620 = vadd.f32 0.0, %v1619
  %v1621 = vpop.f32.mrf.mxu0
  %v1622 = vadd.f32 0.0, %v1621
  %1623 = vmatmul.bf16.gmra.mxu0 %v903
  %v1624 = vpop.f32.mrf.mxu0
  %v1625 = vadd.f32 0.0, %v1624
  %v1626 = vpop.f32.mrf.mxu0
  %v1627 = vadd.f32 0.0, %v1626
  %1628 = vmatmul.bf16.gmra.mxu0 %v904
  %v1629 = vpop.f32.mrf.mxu0
  %v1630 = vadd.f32 0.0, %v1629
  %v1631 = vpop.f32.mrf.mxu0
  %v1632 = vadd.f32 0.0, %v1631
  %1633 = vmatmul.bf16.gmra.mxu0 %v905
  %v1634 = vpop.f32.mrf.mxu0
  %v1635 = vadd.f32 0.0, %v1634
  %v1636 = vpop.f32.mrf.mxu0
  %v1637 = vadd.f32 0.0, %v1636
  %1638 = vmatmul.bf16.gmra.mxu0 %v906
  %v1639 = vpop.f32.mrf.mxu0
  %v1640 = vadd.f32 0.0, %v1639
  %v1641 = vpop.f32.mrf.mxu0
  %v1642 = vadd.f32 0.0, %v1641
  %1643 = vmatmul.bf16.gmra.mxu0 %v907
  %v1644 = vpop.f32.mrf.mxu0
  %v1645 = vadd.f32 0.0, %v1644
  %v1646 = vpop.f32.mrf.mxu0
  %v1647 = vadd.f32 0.0, %v1646
  %1648 = vmatmul.bf16.gmra.mxu0 %v908
  %v1649 = vpop.f32.mrf.mxu0
  %v1650 = vadd.f32 0.0, %v1649
  %v1651 = vpop.f32.mrf.mxu0
  %v1652 = vadd.f32 0.0, %v1651
  %1653 = vmatmul.bf16.gmra.mxu0 %v909
  %v1654 = vpop.f32.mrf.mxu0
  %v1655 = vadd.f32 0.0, %v1654
  %v1656 = vpop.f32.mrf.mxu0
  %v1657 = vadd.f32 0.0, %v1656
  %1658 = vmatmul.bf16.gmra.mxu0 %v910
  %v1659 = vpop.f32.mrf.mxu0
  %v1660 = vadd.f32 0.0, %v1659
  %v1661 = vpop.f32.mrf.mxu0
  %v1662 = vadd.f32 0.0, %v1661
  %1663 = vmatmul.bf16.gmra.mxu0 %v911
  %v1664 = vpop.f32.mrf.mxu0
  %v1665 = vadd.f32 0.0, %v1664
  %v1666 = vpop.f32.mrf.mxu0
  %v1667 = vadd.f32 0.0, %v1666
  %1668 = vmatmul.bf16.gmra.mxu0 %v912
  %v1669 = vpop.f32.mrf.mxu0
  %v1670 = vadd.f32 0.0, %v1669
  %v1671 = vpop.f32.mrf.mxu0
  %v1672 = vadd.f32 0.0, %v1671
  %1673 = vmatmul.bf16.gmra.mxu0 %v913
  %v1674 = vpop.f32.mrf.mxu0
  %v1675 = vadd.f32 0.0, %v1674
  %v1676 = vpop.f32.mrf.mxu0
  %v1677 = vadd.f32 0.0, %v1676
  %1678 = vmatmul.bf16.gmra.mxu0 %v914
  %v1679 = vpop.f32.mrf.mxu0
  %v1680 = vadd.f32 0.0, %v1679
  %v1681 = vpop.f32.mrf.mxu0
  %v1682 = vadd.f32 0.0, %v1681
  %1683 = vmatmul.bf16.gmra.mxu0 %v915
  %v1684 = vpop.f32.mrf.mxu0
  %v1685 = vadd.f32 0.0, %v1684
  %v1686 = vpop.f32.mrf.mxu0
  %v1687 = vadd.f32 0.0, %v1686
  %1688 = vmatmul.bf16.gmra.mxu0 %v916
  %v1689 = vpop.f32.mrf.mxu0
  %v1690 = vadd.f32 0.0, %v1689
  %v1691 = vpop.f32.mrf.mxu0
  %v1692 = vadd.f32 0.0, %v1691
  %1693 = vmatmul.bf16.gmra.mxu0 %v917
  %v1694 = vpop.f32.mrf.mxu0
  %v1695 = vadd.f32 0.0, %v1694
  %v1696 = vpop.f32.mrf.mxu0
  %v1697 = vadd.f32 0.0, %v1696
  %1698 = vmatmul.bf16.gmra.mxu0 %v918
  %v1699 = vpop.f32.mrf.mxu0
  %v1700 = vadd.f32 0.0, %v1699
  %v1701 = vpop.f32.mrf.mxu0
  %v1702 = vadd.f32 0.0, %v1701
  %1703 = vmatmul.bf16.gmra.mxu0 %v919
  %v1704 = vpop.f32.mrf.mxu0
  %v1705 = vadd.f32 0.0, %v1704
  %v1706 = vpop.f32.mrf.mxu0
  %v1707 = vadd.f32 0.0, %v1706
  %1708 = vmatmul.bf16.gmra.mxu0 %v920
  %v1709 = vpop.f32.mrf.mxu0
  %v1710 = vadd.f32 0.0, %v1709
  %v1711 = vpop.f32.mrf.mxu0
  %v1712 = vadd.f32 0.0, %v1711
  %1713 = vmatmul.bf16.gmra.mxu0 %v921
  %v1714 = vpop.f32.mrf.mxu0
  %v1715 = vadd.f32 0.0, %v1714
  %v1716 = vpop.f32.mrf.mxu0
  %v1717 = vadd.f32 0.0, %v1716
  %1718 = vmatmul.bf16.gmra.mxu0 %v922
  %v1719 = vpop.f32.mrf.mxu0
  %v1720 = vadd.f32 0.0, %v1719
  %v1721 = vpop.f32.mrf.mxu0
  %v1722 = vadd.f32 0.0, %v1721
  %1723 = vmatmul.bf16.gmra.mxu0 %v923
  %v1724 = vpop.f32.mrf.mxu0
  %v1725 = vadd.f32 0.0, %v1724
  %v1726 = vpop.f32.mrf.mxu0
  %v1727 = vadd.f32 0.0, %v1726
  %1728 = vmatmul.bf16.gmra.mxu0 %v924
  %v1729 = vpop.f32.mrf.mxu0
  %v1730 = vadd.f32 0.0, %v1729
  %v1731 = vpop.f32.mrf.mxu0
  %v1732 = vadd.f32 0.0, %v1731
  %1733 = vmatmul.bf16.gmra.mxu0 %v925
  %v1734 = vpop.f32.mrf.mxu0
  %v1735 = vadd.f32 0.0, %v1734
  %v1736 = vpop.f32.mrf.mxu0
  %v1737 = vadd.f32 0.0, %v1736
  %1738 = vmatmul.bf16.gmra.mxu0 %v926
  %v1739 = vpop.f32.mrf.mxu0
  %v1740 = vadd.f32 0.0, %v1739
  %v1741 = vpop.f32.mrf.mxu0
  %v1742 = vadd.f32 0.0, %v1741
  %1743 = vmatmul.bf16.gmra.mxu0 %v927
  %v1744 = vpop.f32.mrf.mxu0
  %v1745 = vadd.f32 0.0, %v1744
  %v1746 = vpop.f32.mrf.mxu0
  %v1747 = vadd.f32 0.0, %v1746
  %1748 = vmatmul.bf16.gmra.mxu0 %v928
  %v1749 = vpop.f32.mrf.mxu0
  %v1750 = vadd.f32 0.0, %v1749
  %v1751 = vpop.f32.mrf.mxu0
  %v1752 = vadd.f32 0.0, %v1751
  %1753 = vdwg.mxu0
  %v1754 = vld [vmem:[%s2] sm:$0x1]
  %v1755 = vld [vmem:[%s3] sm:$0x1]
  %v1756 = vadd.f32 %v1115, %v1117
  %v1757 = vadd.f32 %v1756, %v1120
  %v1758 = vadd.f32 %v1757, %v1122
  %v1759 = vadd.f32 %v1758, %v1125
  %v1760 = vadd.f32 %v1759, %v1127
  %v1761 = vadd.f32 %v1760, %v1130
  %v1762 = vadd.f32 %v1761, %v1132
  %v1763 = vadd.f32 %v1762, %v1135
  %v1764 = vadd.f32 %v1763, %v1137
  %v1765 = vadd.f32 %v1764, %v1140
  %v1766 = vadd.f32 %v1765, %v1142
  %v1767 = vadd.f32 %v1766, %v1145
  %v1768 = vadd.f32 %v1767, %v1147
  %v1769 = vadd.f32 %v1768, %v1150
  %v1770 = vadd.f32 %v1769, %v1152
  %v1771 = vadd.f32 %v1770, %v1155
  %v1772 = vadd.f32 %v1771, %v1157
  %v1773 = vadd.f32 %v1772, %v1160
  %v1774 = vadd.f32 %v1773, %v1162
  %v1775 = vadd.f32 %v1774, %v1165
  %v1776 = vadd.f32 %v1775, %v1167
  %v1777 = vadd.f32 %v1776, %v1170
  %v1778 = vadd.f32 %v1777, %v1172
  %v1779 = vadd.f32 %v1778, %v1175
  %v1780 = vadd.f32 %v1779, %v1177
  %v1781 = vadd.f32 %v1780, %v1180
  %v1782 = vadd.f32 %v1781, %v1182
  %v1783 = vadd.f32 %v1782, %v1185
  %v1784 = vadd.f32 %v1783, %v1187
  %v1785 = vadd.f32 %v1784, %v1190
  %v1786 = vadd.f32 %v1785, %v1192
  %v1787 = vadd.f32 %v1786, %v1195
  %v1788 = vadd.f32 %v1787, %v1197
  %v1789 = vadd.f32 %v1788, %v1200
  %v1790 = vadd.f32 %v1789, %v1202
  %v1791 = vadd.f32 %v1790, %v1205
  %v1792 = vadd.f32 %v1791, %v1207
  %v1793 = vadd.f32 %v1792, %v1210
  %v1794 = vadd.f32 %v1793, %v1212
  %v1795 = vadd.f32 %v1794, %v1215
  %v1796 = vadd.f32 %v1795, %v1217
  %v1797 = vadd.f32 %v1796, %v1220
  %v1798 = vadd.f32 %v1797, %v1222
  %v1799 = vadd.f32 %v1798, %v1225
  %v1800 = vadd.f32 %v1799, %v1227
  %v1801 = vadd.f32 %v1800, %v1230
  %v1802 = vadd.f32 %v1801, %v1232
  %v1803 = vadd.f32 %v1802, %v1235
  %v1804 = vadd.f32 %v1803, %v1237
  %v1805 = vadd.f32 %v1804, %v1240
  %v1806 = vadd.f32 %v1805, %v1242
  %v1807 = vadd.f32 %v1806, %v1245
  %v1808 = vadd.f32 %v1807, %v1247
  %v1809 = vadd.f32 %v1808, %v1250
  %v1810 = vadd.f32 %v1809, %v1252
  %v1811 = vadd.f32 %v1810, %v1255
  %v1812 = vadd.f32 %v1811, %v1257
  %v1813 = vadd.f32 %v1812, %v1260
  %v1814 = vadd.f32 %v1813, %v1262
  %v1815 = vadd.f32 %v1814, %v1265
  %v1816 = vadd.f32 %v1815, %v1267
  %v1817 = vadd.f32 %v1816, %v1270
  %v1818 = vadd.f32 %v1817, %v1272
  %v1819 = vadd.f32 %v1818, %v1275
  %v1820 = vadd.f32 %v1819, %v1277
  %v1821 = vadd.f32 %v1820, %v1280
  %v1822 = vadd.f32 %v1821, %v1282
  %v1823 = vadd.f32 %v1822, %v1285
  %v1824 = vadd.f32 %v1823, %v1287
  %v1825 = vadd.f32 %v1824, %v1290
  %v1826 = vadd.f32 %v1825, %v1292
  %v1827 = vadd.f32 %v1826, %v1295
  %v1828 = vadd.f32 %v1827, %v1297
  %v1829 = vadd.f32 %v1828, %v1300
  %v1830 = vadd.f32 %v1829, %v1302
  %v1831 = vadd.f32 %v1830, %v1305
  %v1832 = vadd.f32 %v1831, %v1307
  %v1833 = vadd.f32 %v1832, %v1310
  %v1834 = vadd.f32 %v1833, %v1312
  %v1835 = vadd.f32 %v1834, %v1315
  %v1836 = vadd.f32 %v1835, %v1317
  %v1837 = vadd.f32 %v1836, %v1320
  %v1838 = vadd.f32 %v1837, %v1322
  %v1839 = vadd.f32 %v1838, %v1325
  %v1840 = vadd.f32 %v1839, %v1327
  %v1841 = vadd.f32 %v1840, %v1330
  %v1842 = vadd.f32 %v1841, %v1332
  %v1843 = vadd.f32 %v1842, %v1335
  %v1844 = vadd.f32 %v1843, %v1337
  %v1845 = vadd.f32 %v1844, %v1340
  %v1846 = vadd.f32 %v1845, %v1342
  %v1847 = vadd.f32 %v1846, %v1345
  %v1848 = vadd.f32 %v1847, %v1347
  %v1849 = vadd.f32 %v1848, %v1350
  %v1850 = vadd.f32 %v1849, %v1352
  %v1851 = vadd.f32 %v1850, %v1355
  %v1852 = vadd.f32 %v1851, %v1357
  %v1853 = vadd.f32 %v1852, %v1360
  %v1854 = vadd.f32 %v1853, %v1362
  %v1855 = vadd.f32 %v1854, %v1365
  %v1856 = vadd.f32 %v1855, %v1367
  %v1857 = vadd.f32 %v1856, %v1370
  %v1858 = vadd.f32 %v1857, %v1372
  %v1859 = vadd.f32 %v1858, %v1375
  %v1860 = vadd.f32 %v1859, %v1377
  %v1861 = vadd.f32 %v1860, %v1380
  %v1862 = vadd.f32 %v1861, %v1382
  %v1863 = vadd.f32 %v1862, %v1385
  %v1864 = vadd.f32 %v1863, %v1387
  %v1865 = vadd.f32 %v1864, %v1390
  %v1866 = vadd.f32 %v1865, %v1392
  %v1867 = vadd.f32 %v1866, %v1395
  %v1868 = vadd.f32 %v1867, %v1397
  %v1869 = vadd.f32 %v1868, %v1400
  %v1870 = vadd.f32 %v1869, %v1402
  %v1871 = vadd.f32 %v1870, %v1405
  %v1872 = vadd.f32 %v1871, %v1407
  %v1873 = vadd.f32 %v1872, %v1410
  %v1874 = vadd.f32 %v1873, %v1412
  %v1875 = vadd.f32 %v1874, %v1415
  %v1876 = vadd.f32 %v1875, %v1417
  %v1877 = vadd.f32 %v1876, %v1420
  %v1878 = vadd.f32 %v1877, %v1422
  %v1879 = vadd.f32 %v1878, %v1425
  %v1880 = vadd.f32 %v1879, %v1427
  %v1881 = vadd.f32 %v1880, %v1430
  %v1882 = vadd.f32 %v1881, %v1432
  %v1883 = vadd.f32 %v1882, %v1435
  %v1884 = vadd.f32 %v1883, %v1437
  %v1885 = vadd.f32 %v1884, %v1440
  %v1886 = vadd.f32 %v1885, %v1442
  %v1887 = vadd.f32 %v1886, %v1445
  %v1888 = vadd.f32 %v1887, %v1447
  %v1889 = vadd.f32 %v1888, %v1450
  %v1890 = vadd.f32 %v1889, %v1452
  %v1891 = vadd.f32 %v1890, %v1455
  %v1892 = vadd.f32 %v1891, %v1457
  %v1893 = vadd.f32 %v1892, %v1460
  %v1894 = vadd.f32 %v1893, %v1462
  %v1895 = vadd.f32 %v1894, %v1465
  %v1896 = vadd.f32 %v1895, %v1467
  %v1897 = vadd.f32 %v1896, %v1470
  %v1898 = vadd.f32 %v1897, %v1472
  %v1899 = vadd.f32 %v1898, %v1475
  %v1900 = vadd.f32 %v1899, %v1477
  %v1901 = vadd.f32 %v1900, %v1480
  %v1902 = vadd.f32 %v1901, %v1482
  %v1903 = vadd.f32 %v1902, %v1485
  %v1904 = vadd.f32 %v1903, %v1487
  %v1905 = vadd.f32 %v1904, %v1490
  %v1906 = vadd.f32 %v1905, %v1492
  %v1907 = vadd.f32 %v1906, %v1495
  %v1908 = vadd.f32 %v1907, %v1497
  %v1909 = vadd.f32 %v1908, %v1500
  %v1910 = vadd.f32 %v1909, %v1502
  %v1911 = vadd.f32 %v1910, %v1505
  %v1912 = vadd.f32 %v1911, %v1507
  %v1913 = vadd.f32 %v1912, %v1510
  %v1914 = vadd.f32 %v1913, %v1512
  %v1915 = vadd.f32 %v1914, %v1515
  %v1916 = vadd.f32 %v1915, %v1517
  %v1917 = vadd.f32 %v1916, %v1520
  %v1918 = vadd.f32 %v1917, %v1522
  %v1919 = vadd.f32 %v1918, %v1525
  %v1920 = vadd.f32 %v1919, %v1527
  %v1921 = vadd.f32 %v1920, %v1530
  %v1922 = vadd.f32 %v1921, %v1532
  %v1923 = vadd.f32 %v1922, %v1535
  %v1924 = vadd.f32 %v1923, %v1537
  %v1925 = vadd.f32 %v1924, %v1540
  %v1926 = vadd.f32 %v1925, %v1542
  %v1927 = vadd.f32 %v1926, %v1545
  %v1928 = vadd.f32 %v1927, %v1547
  %v1929 = vadd.f32 %v1928, %v1550
  %v1930 = vadd.f32 %v1929, %v1552
  %v1931 = vadd.f32 %v1930, %v1555
  %v1932 = vadd.f32 %v1931, %v1557
  %v1933 = vadd.f32 %v1932, %v1560
  %v1934 = vadd.f32 %v1933, %v1562
  %v1935 = vadd.f32 %v1934, %v1565
  %v1936 = vadd.f32 %v1935, %v1567
  %v1937 = vadd.f32 %v1936, %v1570
  %v1938 = vadd.f32 %v1937, %v1572
  %v1939 = vadd.f32 %v1938, %v1575
  %v1940 = vadd.f32 %v1939, %v1577
  %v1941 = vadd.f32 %v1940, %v1580
  %v1942 = vadd.f32 %v1941, %v1582
  %v1943 = vadd.f32 %v1942, %v1585
  %v1944 = vadd.f32 %v1943, %v1587
  %v1945 = vadd.f32 %v1944, %v1590
  %v1946 = vadd.f32 %v1945, %v1592
  %v1947 = vadd.f32 %v1946, %v1595
  %v1948 = vadd.f32 %v1947, %v1597
  %v1949 = vadd.f32 %v1948, %v1600
  %v1950 = vadd.f32 %v1949, %v1602
  %v1951 = vadd.f32 %v1950, %v1605
  %v1952 = vadd.f32 %v1951, %v1607
  %v1953 = vadd.f32 %v1952, %v1610
  %v1954 = vadd.f32 %v1953, %v1612
  %v1955 = vadd.f32 %v1954, %v1615
  %v1956 = vadd.f32 %v1955, %v1617
  %v1957 = vadd.f32 %v1956, %v1620
  %v1958 = vadd.f32 %v1957, %v1622
  %v1959 = vadd.f32 %v1958, %v1625
  %v1960 = vadd.f32 %v1959, %v1627
  %v1961 = vadd.f32 %v1960, %v1630
  %v1962 = vadd.f32 %v1961, %v1632
  %v1963 = vadd.f32 %v1962, %v1635
  %v1964 = vadd.f32 %v1963, %v1637
  %v1965 = vadd.f32 %v1964, %v1640
  %v1966 = vadd.f32 %v1965, %v1642
  %v1967 = vadd.f32 %v1966, %v1645
  %v1968 = vadd.f32 %v1967, %v1647
  %v1969 = vadd.f32 %v1968, %v1650
  %v1970 = vadd.f32 %v1969, %v1652
  %v1971 = vadd.f32 %v1970, %v1655
  %v1972 = vadd.f32 %v1971, %v1657
  %v1973 = vadd.f32 %v1972, %v1660
  %v1974 = vadd.f32 %v1973, %v1662
  %v1975 = vadd.f32 %v1974, %v1665
  %v1976 = vadd.f32 %v1975, %v1667
  %v1977 = vadd.f32 %v1976, %v1670
  %v1978 = vadd.f32 %v1977, %v1672
  %v1979 = vadd.f32 %v1978, %v1675
  %v1980 = vadd.f32 %v1979, %v1677
  %v1981 = vadd.f32 %v1980, %v1680
  %v1982 = vadd.f32 %v1981, %v1682
  %v1983 = vadd.f32 %v1982, %v1685
  %v1984 = vadd.f32 %v1983, %v1687
  %v1985 = vadd.f32 %v1984, %v1690
  %v1986 = vadd.f32 %v1985, %v1692
  %v1987 = vadd.f32 %v1986, %v1695
  %v1988 = vadd.f32 %v1987, %v1697
  %v1989 = vadd.f32 %v1988, %v1700
  %v1990 = vadd.f32 %v1989, %v1702
  %v1991 = vadd.f32 %v1990, %v1705
  %v1992 = vadd.f32 %v1991, %v1707
  %v1993 = vadd.f32 %v1992, %v1710
  %v1994 = vadd.f32 %v1993, %v1712
  %v1995 = vadd.f32 %v1994, %v1715
  %v1996 = vadd.f32 %v1995, %v1717
  %v1997 = vadd.f32 %v1996, %v1720
  %v1998 = vadd.f32 %v1997, %v1722
  %v1999 = vadd.f32 %v1998, %v1725
  %v2000 = vadd.f32 %v1999, %v1727
  %v2001 = vadd.f32 %v2000, %v1730
  %v2002 = vadd.f32 %v2001, %v1732
  %v2003 = vadd.f32 %v2002, %v1735
  %v2004 = vadd.f32 %v2003, %v1737
  %v2005 = vadd.f32 %v2004, %v1740
  %v2006 = vadd.f32 %v2005, %v1742
  %v2007 = vadd.f32 %v2006, %v1745
  %v2008 = vadd.f32 %v2007, %v1747
  %v2009 = vadd.f32 %v2008, %v1750
  %v2010 = vadd.f32 %v2009, %v1752
  %v2011 = vrot.slane %v2010, 4
  %v2012 = vadd.f32 %v2010, %v2011
  %v2013 = vrot.slane %v2012, 2
  %v2014 = vadd.f32 %v2012, %v2013
  %v2015 = vrot.slane %v2014, 1
  %v2016 = vadd.f32 %v2014, %v2015
  %v2017 = vrcp.pop 2048.0
  %v2018 = vmul.f32 2048.0, %v2017
  %v2019 = vsub.f32 1.0, %v2018
  %v2020 = vmul.f32 %v2017, %v2019
  %v2021 = vadd.f32 %v2017, %v2020
  %vm2022 = vweird.f32 %v2017
  %v2023 = vsel %vm2022, %v2017, %v2021
  %v2024 = vmul.f32 %v2016, %v2023
  %v2025 = vmul.f32 %v1115, %v1115
  %v2026 = vmul.f32 %v1117, %v1117
  %v2027 = vmul.f32 %v1120, %v1120
  %v2028 = vmul.f32 %v1122, %v1122
  %v2029 = vmul.f32 %v1125, %v1125
  %v2030 = vmul.f32 %v1127, %v1127
  %v2031 = vmul.f32 %v1130, %v1130
  %v2032 = vmul.f32 %v1132, %v1132
  %v2033 = vmul.f32 %v1135, %v1135
  %v2034 = vmul.f32 %v1137, %v1137
  %v2035 = vmul.f32 %v1140, %v1140
  %v2036 = vmul.f32 %v1142, %v1142
  %v2037 = vmul.f32 %v1145, %v1145
  %v2038 = vmul.f32 %v1147, %v1147
  %v2039 = vmul.f32 %v1150, %v1150
  %v2040 = vmul.f32 %v1152, %v1152
  %v2041 = vmul.f32 %v1155, %v1155
  %v2042 = vmul.f32 %v1157, %v1157
  %v2043 = vmul.f32 %v1160, %v1160
  %v2044 = vmul.f32 %v1162, %v1162
  %v2045 = vmul.f32 %v1165, %v1165
  %v2046 = vmul.f32 %v1167, %v1167
  %v2047 = vmul.f32 %v1170, %v1170
  %v2048 = vmul.f32 %v1172, %v1172
  %v2049 = vmul.f32 %v1175, %v1175
  %v2050 = vmul.f32 %v1177, %v1177
  %v2051 = vmul.f32 %v1180, %v1180
  %v2052 = vmul.f32 %v1182, %v1182
  %v2053 = vmul.f32 %v1185, %v1185
  %v2054 = vmul.f32 %v1187, %v1187
  %v2055 = vmul.f32 %v1190, %v1190
  %v2056 = vmul.f32 %v1192, %v1192
  %v2057 = vmul.f32 %v1195, %v1195
  %v2058 = vmul.f32 %v1197, %v1197
  %v2059 = vmul.f32 %v1200, %v1200
  %v2060 = vmul.f32 %v1202, %v1202
  %v2061 = vmul.f32 %v1205, %v1205
  %v2062 = vmul.f32 %v1207, %v1207
  %v2063 = vmul.f32 %v1210, %v1210
  %v2064 = vmul.f32 %v1212, %v1212
  %v2065 = vmul.f32 %v1215, %v1215
  %v2066 = vmul.f32 %v1217, %v1217
  %v2067 = vmul.f32 %v1220, %v1220
  %v2068 = vmul.f32 %v1222, %v1222
  %v2069 = vmul.f32 %v1225, %v1225
  %v2070 = vmul.f32 %v1227, %v1227
  %v2071 = vmul.f32 %v1230, %v1230
  %v2072 = vmul.f32 %v1232, %v1232
  %v2073 = vmul.f32 %v1235, %v1235
  %v2074 = vmul.f32 %v1237, %v1237
  %v2075 = vmul.f32 %v1240, %v1240
  %v2076 = vmul.f32 %v1242, %v1242
  %v2077 = vmul.f32 %v1245, %v1245
  %v2078 = vmul.f32 %v1247, %v1247
  %v2079 = vmul.f32 %v1250, %v1250
  %v2080 = vmul.f32 %v1252, %v1252
  %v2081 = vmul.f32 %v1255, %v1255
  %v2082 = vmul.f32 %v1257, %v1257
  %v2083 = vmul.f32 %v1260, %v1260
  %v2084 = vmul.f32 %v1262, %v1262
  %v2085 = vmul.f32 %v1265, %v1265
  %v2086 = vmul.f32 %v1267, %v1267
  %v2087 = vmul.f32 %v1270, %v1270
  %v2088 = vmul.f32 %v1272, %v1272
  %v2089 = vmul.f32 %v1275, %v1275
  %v2090 = vmul.f32 %v1277, %v1277
  %v2091 = vmul.f32 %v1280, %v1280
  %v2092 = vmul.f32 %v1282, %v1282
  %v2093 = vmul.f32 %v1285, %v1285
  %v2094 = vmul.f32 %v1287, %v1287
  %v2095 = vmul.f32 %v1290, %v1290
  %v2096 = vmul.f32 %v1292, %v1292
  %v2097 = vmul.f32 %v1295, %v1295
  %v2098 = vmul.f32 %v1297, %v1297
  %v2099 = vmul.f32 %v1300, %v1300
  %v2100 = vmul.f32 %v1302, %v1302
  %v2101 = vmul.f32 %v1305, %v1305
  %v2102 = vmul.f32 %v1307, %v1307
  %v2103 = vmul.f32 %v1310, %v1310
  %v2104 = vmul.f32 %v1312, %v1312
  %v2105 = vmul.f32 %v1315, %v1315
  %v2106 = vmul.f32 %v1317, %v1317
  %v2107 = vmul.f32 %v1320, %v1320
  %v2108 = vmul.f32 %v1322, %v1322
  %v2109 = vmul.f32 %v1325, %v1325
  %v2110 = vmul.f32 %v1327, %v1327
  %v2111 = vmul.f32 %v1330, %v1330
  %v2112 = vmul.f32 %v1332, %v1332
  %v2113 = vmul.f32 %v1335, %v1335
  %v2114 = vmul.f32 %v1337, %v1337
  %v2115 = vmul.f32 %v1340, %v1340
  %v2116 = vmul.f32 %v1342, %v1342
  %v2117 = vmul.f32 %v1345, %v1345
  %v2118 = vmul.f32 %v1347, %v1347
  %v2119 = vmul.f32 %v1350, %v1350
  %v2120 = vmul.f32 %v1352, %v1352
  %v2121 = vmul.f32 %v1355, %v1355
  %v2122 = vmul.f32 %v1357, %v1357
  %v2123 = vmul.f32 %v1360, %v1360
  %v2124 = vmul.f32 %v1362, %v1362
  %v2125 = vmul.f32 %v1365, %v1365
  %v2126 = vmul.f32 %v1367, %v1367
  %v2127 = vmul.f32 %v1370, %v1370
  %v2128 = vmul.f32 %v1372, %v1372
  %v2129 = vmul.f32 %v1375, %v1375
  %v2130 = vmul.f32 %v1377, %v1377
  %v2131 = vmul.f32 %v1380, %v1380
  %v2132 = vmul.f32 %v1382, %v1382
  %v2133 = vmul.f32 %v1385, %v1385
  %v2134 = vmul.f32 %v1387, %v1387
  %v2135 = vmul.f32 %v1390, %v1390
  %v2136 = vmul.f32 %v1392, %v1392
  %v2137 = vmul.f32 %v1395, %v1395
  %v2138 = vmul.f32 %v1397, %v1397
  %v2139 = vmul.f32 %v1400, %v1400
  %v2140 = vmul.f32 %v1402, %v1402
  %v2141 = vmul.f32 %v1405, %v1405
  %v2142 = vmul.f32 %v1407, %v1407
  %v2143 = vmul.f32 %v1410, %v1410
  %v2144 = vmul.f32 %v1412, %v1412
  %v2145 = vmul.f32 %v1415, %v1415
  %v2146 = vmul.f32 %v1417, %v1417
  %v2147 = vmul.f32 %v1420, %v1420
  %v2148 = vmul.f32 %v1422, %v1422
  %v2149 = vmul.f32 %v1425, %v1425
  %v2150 = vmul.f32 %v1427, %v1427
  %v2151 = vmul.f32 %v1430, %v1430
  %v2152 = vmul.f32 %v1432, %v1432
  %v2153 = vmul.f32 %v1435, %v1435
  %v2154 = vmul.f32 %v1437, %v1437
  %v2155 = vmul.f32 %v1440, %v1440
  %v2156 = vmul.f32 %v1442, %v1442
  %v2157 = vmul.f32 %v1445, %v1445
  %v2158 = vmul.f32 %v1447, %v1447
  %v2159 = vmul.f32 %v1450, %v1450
  %v2160 = vmul.f32 %v1452, %v1452
  %v2161 = vmul.f32 %v1455, %v1455
  %v2162 = vmul.f32 %v1457, %v1457
  %v2163 = vmul.f32 %v1460, %v1460
  %v2164 = vmul.f32 %v1462, %v1462
  %v2165 = vmul.f32 %v1465, %v1465
  %v2166 = vmul.f32 %v1467, %v1467
  %v2167 = vmul.f32 %v1470, %v1470
  %v2168 = vmul.f32 %v1472, %v1472
  %v2169 = vmul.f32 %v1475, %v1475
  %v2170 = vmul.f32 %v1477, %v1477
  %v2171 = vmul.f32 %v1480, %v1480
  %v2172 = vmul.f32 %v1482, %v1482
  %v2173 = vmul.f32 %v1485, %v1485
  %v2174 = vmul.f32 %v1487, %v1487
  %v2175 = vmul.f32 %v1490, %v1490
  %v2176 = vmul.f32 %v1492, %v1492
  %v2177 = vmul.f32 %v1495, %v1495
  %v2178 = vmul.f32 %v1497, %v1497
  %v2179 = vmul.f32 %v1500, %v1500
  %v2180 = vmul.f32 %v1502, %v1502
  %v2181 = vmul.f32 %v1505, %v1505
  %v2182 = vmul.f32 %v1507, %v1507
  %v2183 = vmul.f32 %v1510, %v1510
  %v2184 = vmul.f32 %v1512, %v1512
  %v2185 = vmul.f32 %v1515, %v1515
  %v2186 = vmul.f32 %v1517, %v1517
  %v2187 = vmul.f32 %v1520, %v1520
  %v2188 = vmul.f32 %v1522, %v1522
  %v2189 = vmul.f32 %v1525, %v1525
  %v2190 = vmul.f32 %v1527, %v1527
  %v2191 = vmul.f32 %v1530, %v1530
  %v2192 = vmul.f32 %v1532, %v1532
  %v2193 = vmul.f32 %v1535, %v1535
  %v2194 = vmul.f32 %v1537, %v1537
  %v2195 = vmul.f32 %v1540, %v1540
  %v2196 = vmul.f32 %v1542, %v1542
  %v2197 = vmul.f32 %v1545, %v1545
  %v2198 = vmul.f32 %v1547, %v1547
  %v2199 = vmul.f32 %v1550, %v1550
  %v2200 = vmul.f32 %v1552, %v1552
  %v2201 = vmul.f32 %v1555, %v1555
  %v2202 = vmul.f32 %v1557, %v1557
  %v2203 = vmul.f32 %v1560, %v1560
  %v2204 = vmul.f32 %v1562, %v1562
  %v2205 = vmul.f32 %v1565, %v1565
  %v2206 = vmul.f32 %v1567, %v1567
  %v2207 = vmul.f32 %v1570, %v1570
  %v2208 = vmul.f32 %v1572, %v1572
  %v2209 = vmul.f32 %v1575, %v1575
  %v2210 = vmul.f32 %v1577, %v1577
  %v2211 = vmul.f32 %v1580, %v1580
  %v2212 = vmul.f32 %v1582, %v1582
  %v2213 = vmul.f32 %v1585, %v1585
  %v2214 = vmul.f32 %v1587, %v1587
  %v2215 = vmul.f32 %v1590, %v1590
  %v2216 = vmul.f32 %v1592, %v1592
  %v2217 = vmul.f32 %v1595, %v1595
  %v2218 = vmul.f32 %v1597, %v1597
  %v2219 = vmul.f32 %v1600, %v1600
  %v2220 = vmul.f32 %v1602, %v1602
  %v2221 = vmul.f32 %v1605, %v1605
  %v2222 = vmul.f32 %v1607, %v1607
  %v2223 = vmul.f32 %v1610, %v1610
  %v2224 = vmul.f32 %v1612, %v1612
  %v2225 = vmul.f32 %v1615, %v1615
  %v2226 = vmul.f32 %v1617, %v1617
  %v2227 = vmul.f32 %v1620, %v1620
  %v2228 = vmul.f32 %v1622, %v1622
  %v2229 = vmul.f32 %v1625, %v1625
  %v2230 = vmul.f32 %v1627, %v1627
  %v2231 = vmul.f32 %v1630, %v1630
  %v2232 = vmul.f32 %v1632, %v1632
  %v2233 = vmul.f32 %v1635, %v1635
  %v2234 = vmul.f32 %v1637, %v1637
  %v2235 = vmul.f32 %v1640, %v1640
  %v2236 = vmul.f32 %v1642, %v1642
  %v2237 = vmul.f32 %v1645, %v1645
  %v2238 = vmul.f32 %v1647, %v1647
  %v2239 = vmul.f32 %v1650, %v1650
  %v2240 = vmul.f32 %v1652, %v1652
  %v2241 = vmul.f32 %v1655, %v1655
  %v2242 = vmul.f32 %v1657, %v1657
  %v2243 = vmul.f32 %v1660, %v1660
  %v2244 = vmul.f32 %v1662, %v1662
  %v2245 = vmul.f32 %v1665, %v1665
  %v2246 = vmul.f32 %v1667, %v1667
  %v2247 = vmul.f32 %v1670, %v1670
  %v2248 = vmul.f32 %v1672, %v1672
  %v2249 = vmul.f32 %v1675, %v1675
  %v2250 = vmul.f32 %v1677, %v1677
  %v2251 = vmul.f32 %v1680, %v1680
  %v2252 = vmul.f32 %v1682, %v1682
  %v2253 = vmul.f32 %v1685, %v1685
  %v2254 = vmul.f32 %v1687, %v1687
  %v2255 = vmul.f32 %v1690, %v1690
  %v2256 = vmul.f32 %v1692, %v1692
  %v2257 = vmul.f32 %v1695, %v1695
  %v2258 = vmul.f32 %v1697, %v1697
  %v2259 = vmul.f32 %v1700, %v1700
  %v2260 = vmul.f32 %v1702, %v1702
  %v2261 = vmul.f32 %v1705, %v1705
  %v2262 = vmul.f32 %v1707, %v1707
  %v2263 = vmul.f32 %v1710, %v1710
  %v2264 = vmul.f32 %v1712, %v1712
  %v2265 = vmul.f32 %v1715, %v1715
  %v2266 = vmul.f32 %v1717, %v1717
  %v2267 = vmul.f32 %v1720, %v1720
  %v2268 = vmul.f32 %v1722, %v1722
  %v2269 = vmul.f32 %v1725, %v1725
  %v2270 = vmul.f32 %v1727, %v1727
  %v2271 = vmul.f32 %v1730, %v1730
  %v2272 = vmul.f32 %v1732, %v1732
  %v2273 = vmul.f32 %v1735, %v1735
  %v2274 = vmul.f32 %v1737, %v1737
  %v2275 = vmul.f32 %v1740, %v1740
  %v2276 = vmul.f32 %v1742, %v1742
  %v2277 = vmul.f32 %v1745, %v1745
  %v2278 = vmul.f32 %v1747, %v1747
  %v2279 = vmul.f32 %v1750, %v1750
  %v2280 = vmul.f32 %v1752, %v1752
  %v2281 = vadd.f32 %v2025, %v2026
  %v2282 = vadd.f32 %v2281, %v2027
  %v2283 = vadd.f32 %v2282, %v2028
  %v2284 = vadd.f32 %v2283, %v2029
  %v2285 = vadd.f32 %v2284, %v2030
  %v2286 = vadd.f32 %v2285, %v2031
  %v2287 = vadd.f32 %v2286, %v2032
  %v2288 = vadd.f32 %v2287, %v2033
  %v2289 = vadd.f32 %v2288, %v2034
  %v2290 = vadd.f32 %v2289, %v2035
  %v2291 = vadd.f32 %v2290, %v2036
  %v2292 = vadd.f32 %v2291, %v2037
  %v2293 = vadd.f32 %v2292, %v2038
  %v2294 = vadd.f32 %v2293, %v2039
  %v2295 = vadd.f32 %v2294, %v2040
  %v2296 = vadd.f32 %v2295, %v2041
  %v2297 = vadd.f32 %v2296, %v2042
  %v2298 = vadd.f32 %v2297, %v2043
  %v2299 = vadd.f32 %v2298, %v2044
  %v2300 = vadd.f32 %v2299, %v2045
  %v2301 = vadd.f32 %v2300, %v2046
  %v2302 = vadd.f32 %v2301, %v2047
  %v2303 = vadd.f32 %v2302, %v2048
  %v2304 = vadd.f32 %v2303, %v2049
  %v2305 = vadd.f32 %v2304, %v2050
  %v2306 = vadd.f32 %v2305, %v2051
  %v2307 = vadd.f32 %v2306, %v2052
  %v2308 = vadd.f32 %v2307, %v2053
  %v2309 = vadd.f32 %v2308, %v2054
  %v2310 = vadd.f32 %v2309, %v2055
  %v2311 = vadd.f32 %v2310, %v2056
  %v2312 = vadd.f32 %v2311, %v2057
  %v2313 = vadd.f32 %v2312, %v2058
  %v2314 = vadd.f32 %v2313, %v2059
  %v2315 = vadd.f32 %v2314, %v2060
  %v2316 = vadd.f32 %v2315, %v2061
  %v2317 = vadd.f32 %v2316, %v2062
  %v2318 = vadd.f32 %v2317, %v2063
  %v2319 = vadd.f32 %v2318, %v2064
  %v2320 = vadd.f32 %v2319, %v2065
  %v2321 = vadd.f32 %v2320, %v2066
  %v2322 = vadd.f32 %v2321, %v2067
  %v2323 = vadd.f32 %v2322, %v2068
  %v2324 = vadd.f32 %v2323, %v2069
  %v2325 = vadd.f32 %v2324, %v2070
  %v2326 = vadd.f32 %v2325, %v2071
  %v2327 = vadd.f32 %v2326, %v2072
  %v2328 = vadd.f32 %v2327, %v2073
  %v2329 = vadd.f32 %v2328, %v2074
  %v2330 = vadd.f32 %v2329, %v2075
  %v2331 = vadd.f32 %v2330, %v2076
  %v2332 = vadd.f32 %v2331, %v2077
  %v2333 = vadd.f32 %v2332, %v2078
  %v2334 = vadd.f32 %v2333, %v2079
  %v2335 = vadd.f32 %v2334, %v2080
  %v2336 = vadd.f32 %v2335, %v2081
  %v2337 = vadd.f32 %v2336, %v2082
  %v2338 = vadd.f32 %v2337, %v2083
  %v2339 = vadd.f32 %v2338, %v2084
  %v2340 = vadd.f32 %v2339, %v2085
  %v2341 = vadd.f32 %v2340, %v2086
  %v2342 = vadd.f32 %v2341, %v2087
  %v2343 = vadd.f32 %v2342, %v2088
  %v2344 = vadd.f32 %v2343, %v2089
  %v2345 = vadd.f32 %v2344, %v2090
  %v2346 = vadd.f32 %v2345, %v2091
  %v2347 = vadd.f32 %v2346, %v2092
  %v2348 = vadd.f32 %v2347, %v2093
  %v2349 = vadd.f32 %v2348, %v2094
  %v2350 = vadd.f32 %v2349, %v2095
  %v2351 = vadd.f32 %v2350, %v2096
  %v2352 = vadd.f32 %v2351, %v2097
  %v2353 = vadd.f32 %v2352, %v2098
  %v2354 = vadd.f32 %v2353, %v2099
  %v2355 = vadd.f32 %v2354, %v2100
  %v2356 = vadd.f32 %v2355, %v2101
  %v2357 = vadd.f32 %v2356, %v2102
  %v2358 = vadd.f32 %v2357, %v2103
  %v2359 = vadd.f32 %v2358, %v2104
  %v2360 = vadd.f32 %v2359, %v2105
  %v2361 = vadd.f32 %v2360, %v2106
  %v2362 = vadd.f32 %v2361, %v2107
  %v2363 = vadd.f32 %v2362, %v2108
  %v2364 = vadd.f32 %v2363, %v2109
  %v2365 = vadd.f32 %v2364, %v2110
  %v2366 = vadd.f32 %v2365, %v2111
  %v2367 = vadd.f32 %v2366, %v2112
  %v2368 = vadd.f32 %v2367, %v2113
  %v2369 = vadd.f32 %v2368, %v2114
  %v2370 = vadd.f32 %v2369, %v2115
  %v2371 = vadd.f32 %v2370, %v2116
  %v2372 = vadd.f32 %v2371, %v2117
  %v2373 = vadd.f32 %v2372, %v2118
  %v2374 = vadd.f32 %v2373, %v2119
  %v2375 = vadd.f32 %v2374, %v2120
  %v2376 = vadd.f32 %v2375, %v2121
  %v2377 = vadd.f32 %v2376, %v2122
  %v2378 = vadd.f32 %v2377, %v2123
  %v2379 = vadd.f32 %v2378, %v2124
  %v2380 = vadd.f32 %v2379, %v2125
  %v2381 = vadd.f32 %v2380, %v2126
  %v2382 = vadd.f32 %v2381, %v2127
  %v2383 = vadd.f32 %v2382, %v2128
  %v2384 = vadd.f32 %v2383, %v2129
  %v2385 = vadd.f32 %v2384, %v2130
  %v2386 = vadd.f32 %v2385, %v2131
  %v2387 = vadd.f32 %v2386, %v2132
  %v2388 = vadd.f32 %v2387, %v2133
  %v2389 = vadd.f32 %v2388, %v2134
  %v2390 = vadd.f32 %v2389, %v2135
  %v2391 = vadd.f32 %v2390, %v2136
  %v2392 = vadd.f32 %v2391, %v2137
  %v2393 = vadd.f32 %v2392, %v2138
  %v2394 = vadd.f32 %v2393, %v2139
  %v2395 = vadd.f32 %v2394, %v2140
  %v2396 = vadd.f32 %v2395, %v2141
  %v2397 = vadd.f32 %v2396, %v2142
  %v2398 = vadd.f32 %v2397, %v2143
  %v2399 = vadd.f32 %v2398, %v2144
  %v2400 = vadd.f32 %v2399, %v2145
  %v2401 = vadd.f32 %v2400, %v2146
  %v2402 = vadd.f32 %v2401, %v2147
  %v2403 = vadd.f32 %v2402, %v2148
  %v2404 = vadd.f32 %v2403, %v2149
  %v2405 = vadd.f32 %v2404, %v2150
  %v2406 = vadd.f32 %v2405, %v2151
  %v2407 = vadd.f32 %v2406, %v2152
  %v2408 = vadd.f32 %v2407, %v2153
  %v2409 = vadd.f32 %v2408, %v2154
  %v2410 = vadd.f32 %v2409, %v2155
  %v2411 = vadd.f32 %v2410, %v2156
  %v2412 = vadd.f32 %v2411, %v2157
  %v2413 = vadd.f32 %v2412, %v2158
  %v2414 = vadd.f32 %v2413, %v2159
  %v2415 = vadd.f32 %v2414, %v2160
  %v2416 = vadd.f32 %v2415, %v2161
  %v2417 = vadd.f32 %v2416, %v2162
  %v2418 = vadd.f32 %v2417, %v2163
  %v2419 = vadd.f32 %v2418, %v2164
  %v2420 = vadd.f32 %v2419, %v2165
  %v2421 = vadd.f32 %v2420, %v2166
  %v2422 = vadd.f32 %v2421, %v2167
  %v2423 = vadd.f32 %v2422, %v2168
  %v2424 = vadd.f32 %v2423, %v2169
  %v2425 = vadd.f32 %v2424, %v2170
  %v2426 = vadd.f32 %v2425, %v2171
  %v2427 = vadd.f32 %v2426, %v2172
  %v2428 = vadd.f32 %v2427, %v2173
  %v2429 = vadd.f32 %v2428, %v2174
  %v2430 = vadd.f32 %v2429, %v2175
  %v2431 = vadd.f32 %v2430, %v2176
  %v2432 = vadd.f32 %v2431, %v2177
  %v2433 = vadd.f32 %v2432, %v2178
  %v2434 = vadd.f32 %v2433, %v2179
  %v2435 = vadd.f32 %v2434, %v2180
  %v2436 = vadd.f32 %v2435, %v2181
  %v2437 = vadd.f32 %v2436, %v2182
  %v2438 = vadd.f32 %v2437, %v2183
  %v2439 = vadd.f32 %v2438, %v2184
  %v2440 = vadd.f32 %v2439, %v2185
  %v2441 = vadd.f32 %v2440, %v2186
  %v2442 = vadd.f32 %v2441, %v2187
  %v2443 = vadd.f32 %v2442, %v2188
  %v2444 = vadd.f32 %v2443, %v2189
  %v2445 = vadd.f32 %v2444, %v2190
  %v2446 = vadd.f32 %v2445, %v2191
  %v2447 = vadd.f32 %v2446, %v2192
  %v2448 = vadd.f32 %v2447, %v2193
  %v2449 = vadd.f32 %v2448, %v2194
  %v2450 = vadd.f32 %v2449, %v2195
  %v2451 = vadd.f32 %v2450, %v2196
  %v2452 = vadd.f32 %v2451, %v2197
  %v2453 = vadd.f32 %v2452, %v2198
  %v2454 = vadd.f32 %v2453, %v2199
  %v2455 = vadd.f32 %v2454, %v2200
  %v2456 = vadd.f32 %v2455, %v2201
  %v2457 = vadd.f32 %v2456, %v2202
  %v2458 = vadd.f32 %v2457, %v2203
  %v2459 = vadd.f32 %v2458, %v2204
  %v2460 = vadd.f32 %v2459, %v2205
  %v2461 = vadd.f32 %v2460, %v2206
  %v2462 = vadd.f32 %v2461, %v2207
  %v2463 = vadd.f32 %v2462, %v2208
  %v2464 = vadd.f32 %v2463, %v2209
  %v2465 = vadd.f32 %v2464, %v2210
  %v2466 = vadd.f32 %v2465, %v2211
  %v2467 = vadd.f32 %v2466, %v2212
  %v2468 = vadd.f32 %v2467, %v2213
  %v2469 = vadd.f32 %v2468, %v2214
  %v2470 = vadd.f32 %v2469, %v2215
  %v2471 = vadd.f32 %v2470, %v2216
  %v2472 = vadd.f32 %v2471, %v2217
  %v2473 = vadd.f32 %v2472, %v2218
  %v2474 = vadd.f32 %v2473, %v2219
  %v2475 = vadd.f32 %v2474, %v2220
  %v2476 = vadd.f32 %v2475, %v2221
  %v2477 = vadd.f32 %v2476, %v2222
  %v2478 = vadd.f32 %v2477, %v2223
  %v2479 = vadd.f32 %v2478, %v2224
  %v2480 = vadd.f32 %v2479, %v2225
  %v2481 = vadd.f32 %v2480, %v2226
  %v2482 = vadd.f32 %v2481, %v2227
  %v2483 = vadd.f32 %v2482, %v2228
  %v2484 = vadd.f32 %v2483, %v2229
  %v2485 = vadd.f32 %v2484, %v2230
  %v2486 = vadd.f32 %v2485, %v2231
  %v2487 = vadd.f32 %v2486, %v2232
  %v2488 = vadd.f32 %v2487, %v2233
  %v2489 = vadd.f32 %v2488, %v2234
  %v2490 = vadd.f32 %v2489, %v2235
  %v2491 = vadd.f32 %v2490, %v2236
  %v2492 = vadd.f32 %v2491, %v2237
  %v2493 = vadd.f32 %v2492, %v2238
  %v2494 = vadd.f32 %v2493, %v2239
  %v2495 = vadd.f32 %v2494, %v2240
  %v2496 = vadd.f32 %v2495, %v2241
  %v2497 = vadd.f32 %v2496, %v2242
  %v2498 = vadd.f32 %v2497, %v2243
  %v2499 = vadd.f32 %v2498, %v2244
  %v2500 = vadd.f32 %v2499, %v2245
  %v2501 = vadd.f32 %v2500, %v2246
  %v2502 = vadd.f32 %v2501, %v2247
  %v2503 = vadd.f32 %v2502, %v2248
  %v2504 = vadd.f32 %v2503, %v2249
  %v2505 = vadd.f32 %v2504, %v2250
  %v2506 = vadd.f32 %v2505, %v2251
  %v2507 = vadd.f32 %v2506, %v2252
  %v2508 = vadd.f32 %v2507, %v2253
  %v2509 = vadd.f32 %v2508, %v2254
  %v2510 = vadd.f32 %v2509, %v2255
  %v2511 = vadd.f32 %v2510, %v2256
  %v2512 = vadd.f32 %v2511, %v2257
  %v2513 = vadd.f32 %v2512, %v2258
  %v2514 = vadd.f32 %v2513, %v2259
  %v2515 = vadd.f32 %v2514, %v2260
  %v2516 = vadd.f32 %v2515, %v2261
  %v2517 = vadd.f32 %v2516, %v2262
  %v2518 = vadd.f32 %v2517, %v2263
  %v2519 = vadd.f32 %v2518, %v2264
  %v2520 = vadd.f32 %v2519, %v2265
  %v2521 = vadd.f32 %v2520, %v2266
  %v2522 = vadd.f32 %v2521, %v2267
  %v2523 = vadd.f32 %v2522, %v2268
  %v2524 = vadd.f32 %v2523, %v2269
  %v2525 = vadd.f32 %v2524, %v2270
  %v2526 = vadd.f32 %v2525, %v2271
  %v2527 = vadd.f32 %v2526, %v2272
  %v2528 = vadd.f32 %v2527, %v2273
  %v2529 = vadd.f32 %v2528, %v2274
  %v2530 = vadd.f32 %v2529, %v2275
  %v2531 = vadd.f32 %v2530, %v2276
  %v2532 = vadd.f32 %v2531, %v2277
  %v2533 = vadd.f32 %v2532, %v2278
  %v2534 = vadd.f32 %v2533, %v2279
  %v2535 = vadd.f32 %v2534, %v2280
  %v2536 = vrot.slane %v2535, 4
  %v2537 = vadd.f32 %v2535, %v2536
  %v2538 = vrot.slane %v2537, 2
  %v2539 = vadd.f32 %v2537, %v2538
  %v2540 = vrot.slane %v2539, 1
  %v2541 = vadd.f32 %v2539, %v2540
  %v2542 = vmul.f32 %v2541, %v2023
  %v2543 = vmul.f32 %v2024, %v2024
  %v2544 = vsub.f32 %v2542, %v2543
  %v2545 = vmax.f32 %v2544, 0.0
  %v2546 = vadd.f32 %v2545, 1e-05
  %v2547 = vrsqrt.pop %v2546
  %v2548 = vmul.f32 %v2547, %v2546
  %v2549 = vmul.f32 %v2548, %v2547
  %v2550 = vmul.f32 0.5, %v2549
  %v2551 = vsub.f32 1.5, %v2550
  %v2552 = vmul.f32 %v2547, %v2551
  %vm2553 = vweird.f32 %v2546
  %vm2554 = vweird.f32 %v2547
  %vm2555 = vmor %vm2553, %vm2554
  %v2556 = vsel %vm2555, %v2547, %v2552
  %v2557 = vmul.f32 %v1754, %v2556
  %v2558 = vmul.f32 %v2024, %v2557
  %v2559 = vsub.f32 %v1755, %v2558
  %v2561 = vperm.slane %v2557, 0
  %v2563 = vmul.f32 %v1115, %v2561
  %v2564 = vmul.f32 %v1117, %v2561
  %v2565 = vmul.f32 %v1120, %v2561
  %v2566 = vmul.f32 %v1122, %v2561
  %v2567 = vmul.f32 %v1125, %v2561
  %v2568 = vmul.f32 %v1127, %v2561
  %v2569 = vmul.f32 %v1130, %v2561
  %v2570 = vmul.f32 %v1132, %v2561
  %v2571 = vmul.f32 %v1135, %v2561
  %v2572 = vmul.f32 %v1137, %v2561
  %v2573 = vmul.f32 %v1140, %v2561
  %v2574 = vmul.f32 %v1142, %v2561
  %v2575 = vmul.f32 %v1145, %v2561
  %v2576 = vmul.f32 %v1147, %v2561
  %v2577 = vmul.f32 %v1150, %v2561
  %v2578 = vmul.f32 %v1152, %v2561
  %v2579 = vmul.f32 %v1155, %v2561
  %v2580 = vmul.f32 %v1157, %v2561
  %v2581 = vmul.f32 %v1160, %v2561
  %v2582 = vmul.f32 %v1162, %v2561
  %v2583 = vmul.f32 %v1165, %v2561
  %v2584 = vmul.f32 %v1167, %v2561
  %v2585 = vmul.f32 %v1170, %v2561
  %v2586 = vmul.f32 %v1172, %v2561
  %v2587 = vmul.f32 %v1175, %v2561
  %v2588 = vmul.f32 %v1177, %v2561
  %v2589 = vmul.f32 %v1180, %v2561
  %v2590 = vmul.f32 %v1182, %v2561
  %v2591 = vmul.f32 %v1185, %v2561
  %v2592 = vmul.f32 %v1187, %v2561
  %v2593 = vmul.f32 %v1190, %v2561
  %v2594 = vmul.f32 %v1192, %v2561
  %v2595 = vmul.f32 %v1195, %v2561
  %v2596 = vmul.f32 %v1197, %v2561
  %v2597 = vmul.f32 %v1200, %v2561
  %v2598 = vmul.f32 %v1202, %v2561
  %v2599 = vmul.f32 %v1205, %v2561
  %v2600 = vmul.f32 %v1207, %v2561
  %v2601 = vmul.f32 %v1210, %v2561
  %v2602 = vmul.f32 %v1212, %v2561
  %v2603 = vmul.f32 %v1215, %v2561
  %v2604 = vmul.f32 %v1217, %v2561
  %v2605 = vmul.f32 %v1220, %v2561
  %v2606 = vmul.f32 %v1222, %v2561
  %v2607 = vmul.f32 %v1225, %v2561
  %v2608 = vmul.f32 %v1227, %v2561
  %v2609 = vmul.f32 %v1230, %v2561
  %v2610 = vmul.f32 %v1232, %v2561
  %v2611 = vmul.f32 %v1235, %v2561
  %v2612 = vmul.f32 %v1237, %v2561
  %v2613 = vmul.f32 %v1240, %v2561
  %v2614 = vmul.f32 %v1242, %v2561
  %v2615 = vmul.f32 %v1245, %v2561
  %v2616 = vmul.f32 %v1247, %v2561
  %v2617 = vmul.f32 %v1250, %v2561
  %v2618 = vmul.f32 %v1252, %v2561
  %v2619 = vmul.f32 %v1255, %v2561
  %v2620 = vmul.f32 %v1257, %v2561
  %v2621 = vmul.f32 %v1260, %v2561
  %v2622 = vmul.f32 %v1262, %v2561
  %v2623 = vmul.f32 %v1265, %v2561
  %v2624 = vmul.f32 %v1267, %v2561
  %v2625 = vmul.f32 %v1270, %v2561
  %v2626 = vmul.f32 %v1272, %v2561
  %v2627 = vmul.f32 %v1275, %v2561
  %v2628 = vmul.f32 %v1277, %v2561
  %v2629 = vmul.f32 %v1280, %v2561
  %v2630 = vmul.f32 %v1282, %v2561
  %v2631 = vmul.f32 %v1285, %v2561
  %v2632 = vmul.f32 %v1287, %v2561
  %v2633 = vmul.f32 %v1290, %v2561
  %v2634 = vmul.f32 %v1292, %v2561
  %v2635 = vmul.f32 %v1295, %v2561
  %v2636 = vmul.f32 %v1297, %v2561
  %v2637 = vmul.f32 %v1300, %v2561
  %v2638 = vmul.f32 %v1302, %v2561
  %v2639 = vmul.f32 %v1305, %v2561
  %v2640 = vmul.f32 %v1307, %v2561
  %v2641 = vmul.f32 %v1310, %v2561
  %v2642 = vmul.f32 %v1312, %v2561
  %v2643 = vmul.f32 %v1315, %v2561
  %v2644 = vmul.f32 %v1317, %v2561
  %v2645 = vmul.f32 %v1320, %v2561
  %v2646 = vmul.f32 %v1322, %v2561
  %v2647 = vmul.f32 %v1325, %v2561
  %v2648 = vmul.f32 %v1327, %v2561
  %v2649 = vmul.f32 %v1330, %v2561
  %v2650 = vmul.f32 %v1332, %v2561
  %v2651 = vmul.f32 %v1335, %v2561
  %v2652 = vmul.f32 %v1337, %v2561
  %v2653 = vmul.f32 %v1340, %v2561
  %v2654 = vmul.f32 %v1342, %v2561
  %v2655 = vmul.f32 %v1345, %v2561
  %v2656 = vmul.f32 %v1347, %v2561
  %v2657 = vmul.f32 %v1350, %v2561
  %v2658 = vmul.f32 %v1352, %v2561
  %v2659 = vmul.f32 %v1355, %v2561
  %v2660 = vmul.f32 %v1357, %v2561
  %v2661 = vmul.f32 %v1360, %v2561
  %v2662 = vmul.f32 %v1362, %v2561
  %v2663 = vmul.f32 %v1365, %v2561
  %v2664 = vmul.f32 %v1367, %v2561
  %v2665 = vmul.f32 %v1370, %v2561
  %v2666 = vmul.f32 %v1372, %v2561
  %v2667 = vmul.f32 %v1375, %v2561
  %v2668 = vmul.f32 %v1377, %v2561
  %v2669 = vmul.f32 %v1380, %v2561
  %v2670 = vmul.f32 %v1382, %v2561
  %v2671 = vmul.f32 %v1385, %v2561
  %v2672 = vmul.f32 %v1387, %v2561
  %v2673 = vmul.f32 %v1390, %v2561
  %v2674 = vmul.f32 %v1392, %v2561
  %v2675 = vmul.f32 %v1395, %v2561
  %v2676 = vmul.f32 %v1397, %v2561
  %v2677 = vmul.f32 %v1400, %v2561
  %v2678 = vmul.f32 %v1402, %v2561
  %v2679 = vmul.f32 %v1405, %v2561
  %v2680 = vmul.f32 %v1407, %v2561
  %v2681 = vmul.f32 %v1410, %v2561
  %v2682 = vmul.f32 %v1412, %v2561
  %v2683 = vmul.f32 %v1415, %v2561
  %v2684 = vmul.f32 %v1417, %v2561
  %v2685 = vmul.f32 %v1420, %v2561
  %v2686 = vmul.f32 %v1422, %v2561
  %v2687 = vmul.f32 %v1425, %v2561
  %v2688 = vmul.f32 %v1427, %v2561
  %v2689 = vmul.f32 %v1430, %v2561
  %v2690 = vmul.f32 %v1432, %v2561
  %v2691 = vmul.f32 %v1435, %v2561
  %v2692 = vmul.f32 %v1437, %v2561
  %v2693 = vmul.f32 %v1440, %v2561
  %v2694 = vmul.f32 %v1442, %v2561
  %v2695 = vmul.f32 %v1445, %v2561
  %v2696 = vmul.f32 %v1447, %v2561
  %v2697 = vmul.f32 %v1450, %v2561
  %v2698 = vmul.f32 %v1452, %v2561
  %v2699 = vmul.f32 %v1455, %v2561
  %v2700 = vmul.f32 %v1457, %v2561
  %v2701 = vmul.f32 %v1460, %v2561
  %v2702 = vmul.f32 %v1462, %v2561
  %v2703 = vmul.f32 %v1465, %v2561
  %v2704 = vmul.f32 %v1467, %v2561
  %v2705 = vmul.f32 %v1470, %v2561
  %v2706 = vmul.f32 %v1472, %v2561
  %v2707 = vmul.f32 %v1475, %v2561
  %v2708 = vmul.f32 %v1477, %v2561
  %v2709 = vmul.f32 %v1480, %v2561
  %v2710 = vmul.f32 %v1482, %v2561
  %v2711 = vmul.f32 %v1485, %v2561
  %v2712 = vmul.f32 %v1487, %v2561
  %v2713 = vmul.f32 %v1490, %v2561
  %v2714 = vmul.f32 %v1492, %v2561
  %v2715 = vmul.f32 %v1495, %v2561
  %v2716 = vmul.f32 %v1497, %v2561
  %v2717 = vmul.f32 %v1500, %v2561
  %v2718 = vmul.f32 %v1502, %v2561
  %v2719 = vmul.f32 %v1505, %v2561
  %v2720 = vmul.f32 %v1507, %v2561
  %v2721 = vmul.f32 %v1510, %v2561
  %v2722 = vmul.f32 %v1512, %v2561
  %v2723 = vmul.f32 %v1515, %v2561
  %v2724 = vmul.f32 %v1517, %v2561
  %v2725 = vmul.f32 %v1520, %v2561
  %v2726 = vmul.f32 %v1522, %v2561
  %v2727 = vmul.f32 %v1525, %v2561
  %v2728 = vmul.f32 %v1527, %v2561
  %v2729 = vmul.f32 %v1530, %v2561
  %v2730 = vmul.f32 %v1532, %v2561
  %v2731 = vmul.f32 %v1535, %v2561
  %v2732 = vmul.f32 %v1537, %v2561
  %v2733 = vmul.f32 %v1540, %v2561
  %v2734 = vmul.f32 %v1542, %v2561
  %v2735 = vmul.f32 %v1545, %v2561
  %v2736 = vmul.f32 %v1547, %v2561
  %v2737 = vmul.f32 %v1550, %v2561
  %v2738 = vmul.f32 %v1552, %v2561
  %v2739 = vmul.f32 %v1555, %v2561
  %v2740 = vmul.f32 %v1557, %v2561
  %v2741 = vmul.f32 %v1560, %v2561
  %v2742 = vmul.f32 %v1562, %v2561
  %v2743 = vmul.f32 %v1565, %v2561
  %v2744 = vmul.f32 %v1567, %v2561
  %v2745 = vmul.f32 %v1570, %v2561
  %v2746 = vmul.f32 %v1572, %v2561
  %v2747 = vmul.f32 %v1575, %v2561
  %v2748 = vmul.f32 %v1577, %v2561
  %v2749 = vmul.f32 %v1580, %v2561
  %v2750 = vmul.f32 %v1582, %v2561
  %v2751 = vmul.f32 %v1585, %v2561
  %v2752 = vmul.f32 %v1587, %v2561
  %v2753 = vmul.f32 %v1590, %v2561
  %v2754 = vmul.f32 %v1592, %v2561
  %v2755 = vmul.f32 %v1595, %v2561
  %v2756 = vmul.f32 %v1597, %v2561
  %v2757 = vmul.f32 %v1600, %v2561
  %v2758 = vmul.f32 %v1602, %v2561
  %v2759 = vmul.f32 %v1605, %v2561
  %v2760 = vmul.f32 %v1607, %v2561
  %v2761 = vmul.f32 %v1610, %v2561
  %v2762 = vmul.f32 %v1612, %v2561
  %v2763 = vmul.f32 %v1615, %v2561
  %v2764 = vmul.f32 %v1617, %v2561
  %v2765 = vmul.f32 %v1620, %v2561
  %v2766 = vmul.f32 %v1622, %v2561
  %v2767 = vmul.f32 %v1625, %v2561
  %v2768 = vmul.f32 %v1627, %v2561
  %v2769 = vmul.f32 %v1630, %v2561
  %v2770 = vmul.f32 %v1632, %v2561
  %v2771 = vmul.f32 %v1635, %v2561
  %v2772 = vmul.f32 %v1637, %v2561
  %v2773 = vmul.f32 %v1640, %v2561
  %v2774 = vmul.f32 %v1642, %v2561
  %v2775 = vmul.f32 %v1645, %v2561
  %v2776 = vmul.f32 %v1647, %v2561
  %v2777 = vmul.f32 %v1650, %v2561
  %v2778 = vmul.f32 %v1652, %v2561
  %v2779 = vmul.f32 %v1655, %v2561
  %v2780 = vmul.f32 %v1657, %v2561
  %v2781 = vmul.f32 %v1660, %v2561
  %v2782 = vmul.f32 %v1662, %v2561
  %v2783 = vmul.f32 %v1665, %v2561
  %v2784 = vmul.f32 %v1667, %v2561
  %v2785 = vmul.f32 %v1670, %v2561
  %v2786 = vmul.f32 %v1672, %v2561
  %v2787 = vmul.f32 %v1675, %v2561
  %v2788 = vmul.f32 %v1677, %v2561
  %v2789 = vmul.f32 %v1680, %v2561
  %v2790 = vmul.f32 %v1682, %v2561
  %v2791 = vmul.f32 %v1685, %v2561
  %v2792 = vmul.f32 %v1687, %v2561
  %v2793 = vmul.f32 %v1690, %v2561
  %v2794 = vmul.f32 %v1692, %v2561
  %v2795 = vmul.f32 %v1695, %v2561
  %v2796 = vmul.f32 %v1697, %v2561
  %v2797 = vmul.f32 %v1700, %v2561
  %v2798 = vmul.f32 %v1702, %v2561
  %v2799 = vmul.f32 %v1705, %v2561
  %v2800 = vmul.f32 %v1707, %v2561
  %v2801 = vmul.f32 %v1710, %v2561
  %v2802 = vmul.f32 %v1712, %v2561
  %v2803 = vmul.f32 %v1715, %v2561
  %v2804 = vmul.f32 %v1717, %v2561
  %v2805 = vmul.f32 %v1720, %v2561
  %v2806 = vmul.f32 %v1722, %v2561
  %v2807 = vmul.f32 %v1725, %v2561
  %v2808 = vmul.f32 %v1727, %v2561
  %v2809 = vmul.f32 %v1730, %v2561
  %v2810 = vmul.f32 %v1732, %v2561
  %v2811 = vmul.f32 %v1735, %v2561
  %v2812 = vmul.f32 %v1737, %v2561
  %v2813 = vmul.f32 %v1740, %v2561
  %v2814 = vmul.f32 %v1742, %v2561
  %v2815 = vmul.f32 %v1745, %v2561
  %v2816 = vmul.f32 %v1747, %v2561
  %v2817 = vmul.f32 %v1750, %v2561
  %v2818 = vmul.f32 %v1752, %v2561
  %v2820 = vperm.slane %v2559, 0
  %v2822 = vadd.f32 %v2563, %v2820
  %v2823 = vadd.f32 %v2564, %v2820
  %v2824 = vadd.f32 %v2565, %v2820
  %v2825 = vadd.f32 %v2566, %v2820
  %v2826 = vadd.f32 %v2567, %v2820
  %v2827 = vadd.f32 %v2568, %v2820
  %v2828 = vadd.f32 %v2569, %v2820
  %v2829 = vadd.f32 %v2570, %v2820
  %v2830 = vadd.f32 %v2571, %v2820
  %v2831 = vadd.f32 %v2572, %v2820
  %v2832 = vadd.f32 %v2573, %v2820
  %v2833 = vadd.f32 %v2574, %v2820
  %v2834 = vadd.f32 %v2575, %v2820
  %v2835 = vadd.f32 %v2576, %v2820
  %v2836 = vadd.f32 %v2577, %v2820
  %v2837 = vadd.f32 %v2578, %v2820
  %v2838 = vadd.f32 %v2579, %v2820
  %v2839 = vadd.f32 %v2580, %v2820
  %v2840 = vadd.f32 %v2581, %v2820
  %v2841 = vadd.f32 %v2582, %v2820
  %v2842 = vadd.f32 %v2583, %v2820
  %v2843 = vadd.f32 %v2584, %v2820
  %v2844 = vadd.f32 %v2585, %v2820
  %v2845 = vadd.f32 %v2586, %v2820
  %v2846 = vadd.f32 %v2587, %v2820
  %v2847 = vadd.f32 %v2588, %v2820
  %v2848 = vadd.f32 %v2589, %v2820
  %v2849 = vadd.f32 %v2590, %v2820
  %v2850 = vadd.f32 %v2591, %v2820
  %v2851 = vadd.f32 %v2592, %v2820
  %v2852 = vadd.f32 %v2593, %v2820
  %v2853 = vadd.f32 %v2594, %v2820
  %v2854 = vadd.f32 %v2595, %v2820
  %v2855 = vadd.f32 %v2596, %v2820
  %v2856 = vadd.f32 %v2597, %v2820
  %v2857 = vadd.f32 %v2598, %v2820
  %v2858 = vadd.f32 %v2599, %v2820
  %v2859 = vadd.f32 %v2600, %v2820
  %v2860 = vadd.f32 %v2601, %v2820
  %v2861 = vadd.f32 %v2602, %v2820
  %v2862 = vadd.f32 %v2603, %v2820
  %v2863 = vadd.f32 %v2604, %v2820
  %v2864 = vadd.f32 %v2605, %v2820
  %v2865 = vadd.f32 %v2606, %v2820
  %v2866 = vadd.f32 %v2607, %v2820
  %v2867 = vadd.f32 %v2608, %v2820
  %v2868 = vadd.f32 %v2609, %v2820
  %v2869 = vadd.f32 %v2610, %v2820
  %v2870 = vadd.f32 %v2611, %v2820
  %v2871 = vadd.f32 %v2612, %v2820
  %v2872 = vadd.f32 %v2613, %v2820
  %v2873 = vadd.f32 %v2614, %v2820
  %v2874 = vadd.f32 %v2615, %v2820
  %v2875 = vadd.f32 %v2616, %v2820
  %v2876 = vadd.f32 %v2617, %v2820
  %v2877 = vadd.f32 %v2618, %v2820
  %v2878 = vadd.f32 %v2619, %v2820
  %v2879 = vadd.f32 %v2620, %v2820
  %v2880 = vadd.f32 %v2621, %v2820
  %v2881 = vadd.f32 %v2622, %v2820
  %v2882 = vadd.f32 %v2623, %v2820
  %v2883 = vadd.f32 %v2624, %v2820
  %v2884 = vadd.f32 %v2625, %v2820
  %v2885 = vadd.f32 %v2626, %v2820
  %v2886 = vadd.f32 %v2627, %v2820
  %v2887 = vadd.f32 %v2628, %v2820
  %v2888 = vadd.f32 %v2629, %v2820
  %v2889 = vadd.f32 %v2630, %v2820
  %v2890 = vadd.f32 %v2631, %v2820
  %v2891 = vadd.f32 %v2632, %v2820
  %v2892 = vadd.f32 %v2633, %v2820
  %v2893 = vadd.f32 %v2634, %v2820
  %v2894 = vadd.f32 %v2635, %v2820
  %v2895 = vadd.f32 %v2636, %v2820
  %v2896 = vadd.f32 %v2637, %v2820
  %v2897 = vadd.f32 %v2638, %v2820
  %v2898 = vadd.f32 %v2639, %v2820
  %v2899 = vadd.f32 %v2640, %v2820
  %v2900 = vadd.f32 %v2641, %v2820
  %v2901 = vadd.f32 %v2642, %v2820
  %v2902 = vadd.f32 %v2643, %v2820
  %v2903 = vadd.f32 %v2644, %v2820
  %v2904 = vadd.f32 %v2645, %v2820
  %v2905 = vadd.f32 %v2646, %v2820
  %v2906 = vadd.f32 %v2647, %v2820
  %v2907 = vadd.f32 %v2648, %v2820
  %v2908 = vadd.f32 %v2649, %v2820
  %v2909 = vadd.f32 %v2650, %v2820
  %v2910 = vadd.f32 %v2651, %v2820
  %v2911 = vadd.f32 %v2652, %v2820
  %v2912 = vadd.f32 %v2653, %v2820
  %v2913 = vadd.f32 %v2654, %v2820
  %v2914 = vadd.f32 %v2655, %v2820
  %v2915 = vadd.f32 %v2656, %v2820
  %v2916 = vadd.f32 %v2657, %v2820
  %v2917 = vadd.f32 %v2658, %v2820
  %v2918 = vadd.f32 %v2659, %v2820
  %v2919 = vadd.f32 %v2660, %v2820
  %v2920 = vadd.f32 %v2661, %v2820
  %v2921 = vadd.f32 %v2662, %v2820
  %v2922 = vadd.f32 %v2663, %v2820
  %v2923 = vadd.f32 %v2664, %v2820
  %v2924 = vadd.f32 %v2665, %v2820
  %v2925 = vadd.f32 %v2666, %v2820
  %v2926 = vadd.f32 %v2667, %v2820
  %v2927 = vadd.f32 %v2668, %v2820
  %v2928 = vadd.f32 %v2669, %v2820
  %v2929 = vadd.f32 %v2670, %v2820
  %v2930 = vadd.f32 %v2671, %v2820
  %v2931 = vadd.f32 %v2672, %v2820
  %v2932 = vadd.f32 %v2673, %v2820
  %v2933 = vadd.f32 %v2674, %v2820
  %v2934 = vadd.f32 %v2675, %v2820
  %v2935 = vadd.f32 %v2676, %v2820
  %v2936 = vadd.f32 %v2677, %v2820
  %v2937 = vadd.f32 %v2678, %v2820
  %v2938 = vadd.f32 %v2679, %v2820
  %v2939 = vadd.f32 %v2680, %v2820
  %v2940 = vadd.f32 %v2681, %v2820
  %v2941 = vadd.f32 %v2682, %v2820
  %v2942 = vadd.f32 %v2683, %v2820
  %v2943 = vadd.f32 %v2684, %v2820
  %v2944 = vadd.f32 %v2685, %v2820
  %v2945 = vadd.f32 %v2686, %v2820
  %v2946 = vadd.f32 %v2687, %v2820
  %v2947 = vadd.f32 %v2688, %v2820
  %v2948 = vadd.f32 %v2689, %v2820
  %v2949 = vadd.f32 %v2690, %v2820
  %v2950 = vadd.f32 %v2691, %v2820
  %v2951 = vadd.f32 %v2692, %v2820
  %v2952 = vadd.f32 %v2693, %v2820
  %v2953 = vadd.f32 %v2694, %v2820
  %v2954 = vadd.f32 %v2695, %v2820
  %v2955 = vadd.f32 %v2696, %v2820
  %v2956 = vadd.f32 %v2697, %v2820
  %v2957 = vadd.f32 %v2698, %v2820
  %v2958 = vadd.f32 %v2699, %v2820
  %v2959 = vadd.f32 %v2700, %v2820
  %v2960 = vadd.f32 %v2701, %v2820
  %v2961 = vadd.f32 %v2702, %v2820
  %v2962 = vadd.f32 %v2703, %v2820
  %v2963 = vadd.f32 %v2704, %v2820
  %v2964 = vadd.f32 %v2705, %v2820
  %v2965 = vadd.f32 %v2706, %v2820
  %v2966 = vadd.f32 %v2707, %v2820
  %v2967 = vadd.f32 %v2708, %v2820
  %v2968 = vadd.f32 %v2709, %v2820
  %v2969 = vadd.f32 %v2710, %v2820
  %v2970 = vadd.f32 %v2711, %v2820
  %v2971 = vadd.f32 %v2712, %v2820
  %v2972 = vadd.f32 %v2713, %v2820
  %v2973 = vadd.f32 %v2714, %v2820
  %v2974 = vadd.f32 %v2715, %v2820
  %v2975 = vadd.f32 %v2716, %v2820
  %v2976 = vadd.f32 %v2717, %v2820
  %v2977 = vadd.f32 %v2718, %v2820
  %v2978 = vadd.f32 %v2719, %v2820
  %v2979 = vadd.f32 %v2720, %v2820
  %v2980 = vadd.f32 %v2721, %v2820
  %v2981 = vadd.f32 %v2722, %v2820
  %v2982 = vadd.f32 %v2723, %v2820
  %v2983 = vadd.f32 %v2724, %v2820
  %v2984 = vadd.f32 %v2725, %v2820
  %v2985 = vadd.f32 %v2726, %v2820
  %v2986 = vadd.f32 %v2727, %v2820
  %v2987 = vadd.f32 %v2728, %v2820
  %v2988 = vadd.f32 %v2729, %v2820
  %v2989 = vadd.f32 %v2730, %v2820
  %v2990 = vadd.f32 %v2731, %v2820
  %v2991 = vadd.f32 %v2732, %v2820
  %v2992 = vadd.f32 %v2733, %v2820
  %v2993 = vadd.f32 %v2734, %v2820
  %v2994 = vadd.f32 %v2735, %v2820
  %v2995 = vadd.f32 %v2736, %v2820
  %v2996 = vadd.f32 %v2737, %v2820
  %v2997 = vadd.f32 %v2738, %v2820
  %v2998 = vadd.f32 %v2739, %v2820
  %v2999 = vadd.f32 %v2740, %v2820
  %v3000 = vadd.f32 %v2741, %v2820
  %v3001 = vadd.f32 %v2742, %v2820
  %v3002 = vadd.f32 %v2743, %v2820
  %v3003 = vadd.f32 %v2744, %v2820
  %v3004 = vadd.f32 %v2745, %v2820
  %v3005 = vadd.f32 %v2746, %v2820
  %v3006 = vadd.f32 %v2747, %v2820
  %v3007 = vadd.f32 %v2748, %v2820
  %v3008 = vadd.f32 %v2749, %v2820
  %v3009 = vadd.f32 %v2750, %v2820
  %v3010 = vadd.f32 %v2751, %v2820
  %v3011 = vadd.f32 %v2752, %v2820
  %v3012 = vadd.f32 %v2753, %v2820
  %v3013 = vadd.f32 %v2754, %v2820
  %v3014 = vadd.f32 %v2755, %v2820
  %v3015 = vadd.f32 %v2756, %v2820
  %v3016 = vadd.f32 %v2757, %v2820
  %v3017 = vadd.f32 %v2758, %v2820
  %v3018 = vadd.f32 %v2759, %v2820
  %v3019 = vadd.f32 %v2760, %v2820
  %v3020 = vadd.f32 %v2761, %v2820
  %v3021 = vadd.f32 %v2762, %v2820
  %v3022 = vadd.f32 %v2763, %v2820
  %v3023 = vadd.f32 %v2764, %v2820
  %v3024 = vadd.f32 %v2765, %v2820
  %v3025 = vadd.f32 %v2766, %v2820
  %v3026 = vadd.f32 %v2767, %v2820
  %v3027 = vadd.f32 %v2768, %v2820
  %v3028 = vadd.f32 %v2769, %v2820
  %v3029 = vadd.f32 %v2770, %v2820
  %v3030 = vadd.f32 %v2771, %v2820
  %v3031 = vadd.f32 %v2772, %v2820
  %v3032 = vadd.f32 %v2773, %v2820
  %v3033 = vadd.f32 %v2774, %v2820
  %v3034 = vadd.f32 %v2775, %v2820
  %v3035 = vadd.f32 %v2776, %v2820
  %v3036 = vadd.f32 %v2777, %v2820
  %v3037 = vadd.f32 %v2778, %v2820
  %v3038 = vadd.f32 %v2779, %v2820
  %v3039 = vadd.f32 %v2780, %v2820
  %v3040 = vadd.f32 %v2781, %v2820
  %v3041 = vadd.f32 %v2782, %v2820
  %v3042 = vadd.f32 %v2783, %v2820
  %v3043 = vadd.f32 %v2784, %v2820
  %v3044 = vadd.f32 %v2785, %v2820
  %v3045 = vadd.f32 %v2786, %v2820
  %v3046 = vadd.f32 %v2787, %v2820
  %v3047 = vadd.f32 %v2788, %v2820
  %v3048 = vadd.f32 %v2789, %v2820
  %v3049 = vadd.f32 %v2790, %v2820
  %v3050 = vadd.f32 %v2791, %v2820
  %v3051 = vadd.f32 %v2792, %v2820
  %v3052 = vadd.f32 %v2793, %v2820
  %v3053 = vadd.f32 %v2794, %v2820
  %v3054 = vadd.f32 %v2795, %v2820
  %v3055 = vadd.f32 %v2796, %v2820
  %v3056 = vadd.f32 %v2797, %v2820
  %v3057 = vadd.f32 %v2798, %v2820
  %v3058 = vadd.f32 %v2799, %v2820
  %v3059 = vadd.f32 %v2800, %v2820
  %v3060 = vadd.f32 %v2801, %v2820
  %v3061 = vadd.f32 %v2802, %v2820
  %v3062 = vadd.f32 %v2803, %v2820
  %v3063 = vadd.f32 %v2804, %v2820
  %v3064 = vadd.f32 %v2805, %v2820
  %v3065 = vadd.f32 %v2806, %v2820
  %v3066 = vadd.f32 %v2807, %v2820
  %v3067 = vadd.f32 %v2808, %v2820
  %v3068 = vadd.f32 %v2809, %v2820
  %v3069 = vadd.f32 %v2810, %v2820
  %v3070 = vadd.f32 %v2811, %v2820
  %v3071 = vadd.f32 %v2812, %v2820
  %v3072 = vadd.f32 %v2813, %v2820
  %v3073 = vadd.f32 %v2814, %v2820
  %v3074 = vadd.f32 %v2815, %v2820
  %v3075 = vadd.f32 %v2816, %v2820
  %v3076 = vadd.f32 %v2817, %v2820
  %v3077 = vadd.f32 %v2818, %v2820
  %v3078 = vmul.f32 %v2822, 0.2
  %v3079 = vmul.f32 %v2823, 0.2
  %v3080 = vmul.f32 %v2824, 0.2
  %v3081 = vmul.f32 %v2825, 0.2
  %v3082 = vmul.f32 %v2826, 0.2
  %v3083 = vmul.f32 %v2827, 0.2
  %v3084 = vmul.f32 %v2828, 0.2
  %v3085 = vmul.f32 %v2829, 0.2
  %v3086 = vmul.f32 %v2830, 0.2
  %v3087 = vmul.f32 %v2831, 0.2
  %v3088 = vmul.f32 %v2832, 0.2
  %v3089 = vmul.f32 %v2833, 0.2
  %v3090 = vmul.f32 %v2834, 0.2
  %v3091 = vmul.f32 %v2835, 0.2
  %v3092 = vmul.f32 %v2836, 0.2
  %v3093 = vmul.f32 %v2837, 0.2
  %v3094 = vmul.f32 %v2838, 0.2
  %v3095 = vmul.f32 %v2839, 0.2
  %v3096 = vmul.f32 %v2840, 0.2
  %v3097 = vmul.f32 %v2841, 0.2
  %v3098 = vmul.f32 %v2842, 0.2
  %v3099 = vmul.f32 %v2843, 0.2
  %v3100 = vmul.f32 %v2844, 0.2
  %v3101 = vmul.f32 %v2845, 0.2
  %v3102 = vmul.f32 %v2846, 0.2
  %v3103 = vmul.f32 %v2847, 0.2
  %v3104 = vmul.f32 %v2848, 0.2
  %v3105 = vmul.f32 %v2849, 0.2
  %v3106 = vmul.f32 %v2850, 0.2
  %v3107 = vmul.f32 %v2851, 0.2
  %v3108 = vmul.f32 %v2852, 0.2
  %v3109 = vmul.f32 %v2853, 0.2
  %v3110 = vmul.f32 %v2854, 0.2
  %v3111 = vmul.f32 %v2855, 0.2
  %v3112 = vmul.f32 %v2856, 0.2
  %v3113 = vmul.f32 %v2857, 0.2
  %v3114 = vmul.f32 %v2858, 0.2
  %v3115 = vmul.f32 %v2859, 0.2
  %v3116 = vmul.f32 %v2860, 0.2
  %v3117 = vmul.f32 %v2861, 0.2
  %v3118 = vmul.f32 %v2862, 0.2
  %v3119 = vmul.f32 %v2863, 0.2
  %v3120 = vmul.f32 %v2864, 0.2
  %v3121 = vmul.f32 %v2865, 0.2
  %v3122 = vmul.f32 %v2866, 0.2
  %v3123 = vmul.f32 %v2867, 0.2
  %v3124 = vmul.f32 %v2868, 0.2
  %v3125 = vmul.f32 %v2869, 0.2
  %v3126 = vmul.f32 %v2870, 0.2
  %v3127 = vmul.f32 %v2871, 0.2
  %v3128 = vmul.f32 %v2872, 0.2
  %v3129 = vmul.f32 %v2873, 0.2
  %v3130 = vmul.f32 %v2874, 0.2
  %v3131 = vmul.f32 %v2875, 0.2
  %v3132 = vmul.f32 %v2876, 0.2
  %v3133 = vmul.f32 %v2877, 0.2
  %v3134 = vmul.f32 %v2878, 0.2
  %v3135 = vmul.f32 %v2879, 0.2
  %v3136 = vmul.f32 %v2880, 0.2
  %v3137 = vmul.f32 %v2881, 0.2
  %v3138 = vmul.f32 %v2882, 0.2
  %v3139 = vmul.f32 %v2883, 0.2
  %v3140 = vmul.f32 %v2884, 0.2
  %v3141 = vmul.f32 %v2885, 0.2
  %v3142 = vmul.f32 %v2886, 0.2
  %v3143 = vmul.f32 %v2887, 0.2
  %v3144 = vmul.f32 %v2888, 0.2
  %v3145 = vmul.f32 %v2889, 0.2
  %v3146 = vmul.f32 %v2890, 0.2
  %v3147 = vmul.f32 %v2891, 0.2
  %v3148 = vmul.f32 %v2892, 0.2
  %v3149 = vmul.f32 %v2893, 0.2
  %v3150 = vmul.f32 %v2894, 0.2
  %v3151 = vmul.f32 %v2895, 0.2
  %v3152 = vmul.f32 %v2896, 0.2
  %v3153 = vmul.f32 %v2897, 0.2
  %v3154 = vmul.f32 %v2898, 0.2
  %v3155 = vmul.f32 %v2899, 0.2
  %v3156 = vmul.f32 %v2900, 0.2
  %v3157 = vmul.f32 %v2901, 0.2
  %v3158 = vmul.f32 %v2902, 0.2
  %v3159 = vmul.f32 %v2903, 0.2
  %v3160 = vmul.f32 %v2904, 0.2
  %v3161 = vmul.f32 %v2905, 0.2
  %v3162 = vmul.f32 %v2906, 0.2
  %v3163 = vmul.f32 %v2907, 0.2
  %v3164 = vmul.f32 %v2908, 0.2
  %v3165 = vmul.f32 %v2909, 0.2
  %v3166 = vmul.f32 %v2910, 0.2
  %v3167 = vmul.f32 %v2911, 0.2
  %v3168 = vmul.f32 %v2912, 0.2
  %v3169 = vmul.f32 %v2913, 0.2
  %v3170 = vmul.f32 %v2914, 0.2
  %v3171 = vmul.f32 %v2915, 0.2
  %v3172 = vmul.f32 %v2916, 0.2
  %v3173 = vmul.f32 %v2917, 0.2
  %v3174 = vmul.f32 %v2918, 0.2
  %v3175 = vmul.f32 %v2919, 0.2
  %v3176 = vmul.f32 %v2920, 0.2
  %v3177 = vmul.f32 %v2921, 0.2
  %v3178 = vmul.f32 %v2922, 0.2
  %v3179 = vmul.f32 %v2923, 0.2
  %v3180 = vmul.f32 %v2924, 0.2
  %v3181 = vmul.f32 %v2925, 0.2
  %v3182 = vmul.f32 %v2926, 0.2
  %v3183 = vmul.f32 %v2927, 0.2
  %v3184 = vmul.f32 %v2928, 0.2
  %v3185 = vmul.f32 %v2929, 0.2
  %v3186 = vmul.f32 %v2930, 0.2
  %v3187 = vmul.f32 %v2931, 0.2
  %v3188 = vmul.f32 %v2932, 0.2
  %v3189 = vmul.f32 %v2933, 0.2
  %v3190 = vmul.f32 %v2934, 0.2
  %v3191 = vmul.f32 %v2935, 0.2
  %v3192 = vmul.f32 %v2936, 0.2
  %v3193 = vmul.f32 %v2937, 0.2
  %v3194 = vmul.f32 %v2938, 0.2
  %v3195 = vmul.f32 %v2939, 0.2
  %v3196 = vmul.f32 %v2940, 0.2
  %v3197 = vmul.f32 %v2941, 0.2
  %v3198 = vmul.f32 %v2942, 0.2
  %v3199 = vmul.f32 %v2943, 0.2
  %v3200 = vmul.f32 %v2944, 0.2
  %v3201 = vmul.f32 %v2945, 0.2
  %v3202 = vmul.f32 %v2946, 0.2
  %v3203 = vmul.f32 %v2947, 0.2
  %v3204 = vmul.f32 %v2948, 0.2
  %v3205 = vmul.f32 %v2949, 0.2
  %v3206 = vmul.f32 %v2950, 0.2
  %v3207 = vmul.f32 %v2951, 0.2
  %v3208 = vmul.f32 %v2952, 0.2
  %v3209 = vmul.f32 %v2953, 0.2
  %v3210 = vmul.f32 %v2954, 0.2
  %v3211 = vmul.f32 %v2955, 0.2
  %v3212 = vmul.f32 %v2956, 0.2
  %v3213 = vmul.f32 %v2957, 0.2
  %v3214 = vmul.f32 %v2958, 0.2
  %v3215 = vmul.f32 %v2959, 0.2
  %v3216 = vmul.f32 %v2960, 0.2
  %v3217 = vmul.f32 %v2961, 0.2
  %v3218 = vmul.f32 %v2962, 0.2
  %v3219 = vmul.f32 %v2963, 0.2
  %v3220 = vmul.f32 %v2964, 0.2
  %v3221 = vmul.f32 %v2965, 0.2
  %v3222 = vmul.f32 %v2966, 0.2
  %v3223 = vmul.f32 %v2967, 0.2
  %v3224 = vmul.f32 %v2968, 0.2
  %v3225 = vmul.f32 %v2969, 0.2
  %v3226 = vmul.f32 %v2970, 0.2
  %v3227 = vmul.f32 %v2971, 0.2
  %v3228 = vmul.f32 %v2972, 0.2
  %v3229 = vmul.f32 %v2973, 0.2
  %v3230 = vmul.f32 %v2974, 0.2
  %v3231 = vmul.f32 %v2975, 0.2
  %v3232 = vmul.f32 %v2976, 0.2
  %v3233 = vmul.f32 %v2977, 0.2
  %v3234 = vmul.f32 %v2978, 0.2
  %v3235 = vmul.f32 %v2979, 0.2
  %v3236 = vmul.f32 %v2980, 0.2
  %v3237 = vmul.f32 %v2981, 0.2
  %v3238 = vmul.f32 %v2982, 0.2
  %v3239 = vmul.f32 %v2983, 0.2
  %v3240 = vmul.f32 %v2984, 0.2
  %v3241 = vmul.f32 %v2985, 0.2
  %v3242 = vmul.f32 %v2986, 0.2
  %v3243 = vmul.f32 %v2987, 0.2
  %v3244 = vmul.f32 %v2988, 0.2
  %v3245 = vmul.f32 %v2989, 0.2
  %v3246 = vmul.f32 %v2990, 0.2
  %v3247 = vmul.f32 %v2991, 0.2
  %v3248 = vmul.f32 %v2992, 0.2
  %v3249 = vmul.f32 %v2993, 0.2
  %v3250 = vmul.f32 %v2994, 0.2
  %v3251 = vmul.f32 %v2995, 0.2
  %v3252 = vmul.f32 %v2996, 0.2
  %v3253 = vmul.f32 %v2997, 0.2
  %v3254 = vmul.f32 %v2998, 0.2
  %v3255 = vmul.f32 %v2999, 0.2
  %v3256 = vmul.f32 %v3000, 0.2
  %v3257 = vmul.f32 %v3001, 0.2
  %v3258 = vmul.f32 %v3002, 0.2
  %v3259 = vmul.f32 %v3003, 0.2
  %v3260 = vmul.f32 %v3004, 0.2
  %v3261 = vmul.f32 %v3005, 0.2
  %v3262 = vmul.f32 %v3006, 0.2
  %v3263 = vmul.f32 %v3007, 0.2
  %v3264 = vmul.f32 %v3008, 0.2
  %v3265 = vmul.f32 %v3009, 0.2
  %v3266 = vmul.f32 %v3010, 0.2
  %v3267 = vmul.f32 %v3011, 0.2
  %v3268 = vmul.f32 %v3012, 0.2
  %v3269 = vmul.f32 %v3013, 0.2
  %v3270 = vmul.f32 %v3014, 0.2
  %v3271 = vmul.f32 %v3015, 0.2
  %v3272 = vmul.f32 %v3016, 0.2
  %v3273 = vmul.f32 %v3017, 0.2
  %v3274 = vmul.f32 %v3018, 0.2
  %v3275 = vmul.f32 %v3019, 0.2
  %v3276 = vmul.f32 %v3020, 0.2
  %v3277 = vmul.f32 %v3021, 0.2
  %v3278 = vmul.f32 %v3022, 0.2
  %v3279 = vmul.f32 %v3023, 0.2
  %v3280 = vmul.f32 %v3024, 0.2
  %v3281 = vmul.f32 %v3025, 0.2
  %v3282 = vmul.f32 %v3026, 0.2
  %v3283 = vmul.f32 %v3027, 0.2
  %v3284 = vmul.f32 %v3028, 0.2
  %v3285 = vmul.f32 %v3029, 0.2
  %v3286 = vmul.f32 %v3030, 0.2
  %v3287 = vmul.f32 %v3031, 0.2
  %v3288 = vmul.f32 %v3032, 0.2
  %v3289 = vmul.f32 %v3033, 0.2
  %v3290 = vmul.f32 %v3034, 0.2
  %v3291 = vmul.f32 %v3035, 0.2
  %v3292 = vmul.f32 %v3036, 0.2
  %v3293 = vmul.f32 %v3037, 0.2
  %v3294 = vmul.f32 %v3038, 0.2
  %v3295 = vmul.f32 %v3039, 0.2
  %v3296 = vmul.f32 %v3040, 0.2
  %v3297 = vmul.f32 %v3041, 0.2
  %v3298 = vmul.f32 %v3042, 0.2
  %v3299 = vmul.f32 %v3043, 0.2
  %v3300 = vmul.f32 %v3044, 0.2
  %v3301 = vmul.f32 %v3045, 0.2
  %v3302 = vmul.f32 %v3046, 0.2
  %v3303 = vmul.f32 %v3047, 0.2
  %v3304 = vmul.f32 %v3048, 0.2
  %v3305 = vmul.f32 %v3049, 0.2
  %v3306 = vmul.f32 %v3050, 0.2
  %v3307 = vmul.f32 %v3051, 0.2
  %v3308 = vmul.f32 %v3052, 0.2
  %v3309 = vmul.f32 %v3053, 0.2
  %v3310 = vmul.f32 %v3054, 0.2
  %v3311 = vmul.f32 %v3055, 0.2
  %v3312 = vmul.f32 %v3056, 0.2
  %v3313 = vmul.f32 %v3057, 0.2
  %v3314 = vmul.f32 %v3058, 0.2
  %v3315 = vmul.f32 %v3059, 0.2
  %v3316 = vmul.f32 %v3060, 0.2
  %v3317 = vmul.f32 %v3061, 0.2
  %v3318 = vmul.f32 %v3062, 0.2
  %v3319 = vmul.f32 %v3063, 0.2
  %v3320 = vmul.f32 %v3064, 0.2
  %v3321 = vmul.f32 %v3065, 0.2
  %v3322 = vmul.f32 %v3066, 0.2
  %v3323 = vmul.f32 %v3067, 0.2
  %v3324 = vmul.f32 %v3068, 0.2
  %v3325 = vmul.f32 %v3069, 0.2
  %v3326 = vmul.f32 %v3070, 0.2
  %v3327 = vmul.f32 %v3071, 0.2
  %v3328 = vmul.f32 %v3072, 0.2
  %v3329 = vmul.f32 %v3073, 0.2
  %v3330 = vmul.f32 %v3074, 0.2
  %v3331 = vmul.f32 %v3075, 0.2
  %v3332 = vmul.f32 %v3076, 0.2
  %v3333 = vmul.f32 %v3077, 0.2
  %v3334 = vmax.f32 %v2822, %v3078
  %v3335 = vmax.f32 %v2823, %v3079
  %v3336 = vmax.f32 %v2824, %v3080
  %v3337 = vmax.f32 %v2825, %v3081
  %v3338 = vmax.f32 %v2826, %v3082
  %v3339 = vmax.f32 %v2827, %v3083
  %v3340 = vmax.f32 %v2828, %v3084
  %v3341 = vmax.f32 %v2829, %v3085
  %v3342 = vmax.f32 %v2830, %v3086
  %v3343 = vmax.f32 %v2831, %v3087
  %v3344 = vmax.f32 %v2832, %v3088
  %v3345 = vmax.f32 %v2833, %v3089
  %v3346 = vmax.f32 %v2834, %v3090
  %v3347 = vmax.f32 %v2835, %v3091
  %v3348 = vmax.f32 %v2836, %v3092
  %v3349 = vmax.f32 %v2837, %v3093
  %v3350 = vmax.f32 %v2838, %v3094
  %v3351 = vmax.f32 %v2839, %v3095
  %v3352 = vmax.f32 %v2840, %v3096
  %v3353 = vmax.f32 %v2841, %v3097
  %v3354 = vmax.f32 %v2842, %v3098
  %v3355 = vmax.f32 %v2843, %v3099
  %v3356 = vmax.f32 %v2844, %v3100
  %v3357 = vmax.f32 %v2845, %v3101
  %v3358 = vmax.f32 %v2846, %v3102
  %v3359 = vmax.f32 %v2847, %v3103
  %v3360 = vmax.f32 %v2848, %v3104
  %v3361 = vmax.f32 %v2849, %v3105
  %v3362 = vmax.f32 %v2850, %v3106
  %v3363 = vmax.f32 %v2851, %v3107
  %v3364 = vmax.f32 %v2852, %v3108
  %v3365 = vmax.f32 %v2853, %v3109
  %v3366 = vmax.f32 %v2854, %v3110
  %v3367 = vmax.f32 %v2855, %v3111
  %v3368 = vmax.f32 %v2856, %v3112
  %v3369 = vmax.f32 %v2857, %v3113
  %v3370 = vmax.f32 %v2858, %v3114
  %v3371 = vmax.f32 %v2859, %v3115
  %v3372 = vmax.f32 %v2860, %v3116
  %v3373 = vmax.f32 %v2861, %v3117
  %v3374 = vmax.f32 %v2862, %v3118
  %v3375 = vmax.f32 %v2863, %v3119
  %v3376 = vmax.f32 %v2864, %v3120
  %v3377 = vmax.f32 %v2865, %v3121
  %v3378 = vmax.f32 %v2866, %v3122
  %v3379 = vmax.f32 %v2867, %v3123
  %v3380 = vmax.f32 %v2868, %v3124
  %v3381 = vmax.f32 %v2869, %v3125
  %v3382 = vmax.f32 %v2870, %v3126
  %v3383 = vmax.f32 %v2871, %v3127
  %v3384 = vmax.f32 %v2872, %v3128
  %v3385 = vmax.f32 %v2873, %v3129
  %v3386 = vmax.f32 %v2874, %v3130
  %v3387 = vmax.f32 %v2875, %v3131
  %v3388 = vmax.f32 %v2876, %v3132
  %v3389 = vmax.f32 %v2877, %v3133
  %v3390 = vmax.f32 %v2878, %v3134
  %v3391 = vmax.f32 %v2879, %v3135
  %v3392 = vmax.f32 %v2880, %v3136
  %v3393 = vmax.f32 %v2881, %v3137
  %v3394 = vmax.f32 %v2882, %v3138
  %v3395 = vmax.f32 %v2883, %v3139
  %v3396 = vmax.f32 %v2884, %v3140
  %v3397 = vmax.f32 %v2885, %v3141
  %v3398 = vmax.f32 %v2886, %v3142
  %v3399 = vmax.f32 %v2887, %v3143
  %v3400 = vmax.f32 %v2888, %v3144
  %v3401 = vmax.f32 %v2889, %v3145
  %v3402 = vmax.f32 %v2890, %v3146
  %v3403 = vmax.f32 %v2891, %v3147
  %v3404 = vmax.f32 %v2892, %v3148
  %v3405 = vmax.f32 %v2893, %v3149
  %v3406 = vmax.f32 %v2894, %v3150
  %v3407 = vmax.f32 %v2895, %v3151
  %v3408 = vmax.f32 %v2896, %v3152
  %v3409 = vmax.f32 %v2897, %v3153
  %v3410 = vmax.f32 %v2898, %v3154
  %v3411 = vmax.f32 %v2899, %v3155
  %v3412 = vmax.f32 %v2900, %v3156
  %v3413 = vmax.f32 %v2901, %v3157
  %v3414 = vmax.f32 %v2902, %v3158
  %v3415 = vmax.f32 %v2903, %v3159
  %v3416 = vmax.f32 %v2904, %v3160
  %v3417 = vmax.f32 %v2905, %v3161
  %v3418 = vmax.f32 %v2906, %v3162
  %v3419 = vmax.f32 %v2907, %v3163
  %v3420 = vmax.f32 %v2908, %v3164
  %v3421 = vmax.f32 %v2909, %v3165
  %v3422 = vmax.f32 %v2910, %v3166
  %v3423 = vmax.f32 %v2911, %v3167
  %v3424 = vmax.f32 %v2912, %v3168
  %v3425 = vmax.f32 %v2913, %v3169
  %v3426 = vmax.f32 %v2914, %v3170
  %v3427 = vmax.f32 %v2915, %v3171
  %v3428 = vmax.f32 %v2916, %v3172
  %v3429 = vmax.f32 %v2917, %v3173
  %v3430 = vmax.f32 %v2918, %v3174
  %v3431 = vmax.f32 %v2919, %v3175
  %v3432 = vmax.f32 %v2920, %v3176
  %v3433 = vmax.f32 %v2921, %v3177
  %v3434 = vmax.f32 %v2922, %v3178
  %v3435 = vmax.f32 %v2923, %v3179
  %v3436 = vmax.f32 %v2924, %v3180
  %v3437 = vmax.f32 %v2925, %v3181
  %v3438 = vmax.f32 %v2926, %v3182
  %v3439 = vmax.f32 %v2927, %v3183
  %v3440 = vmax.f32 %v2928, %v3184
  %v3441 = vmax.f32 %v2929, %v3185
  %v3442 = vmax.f32 %v2930, %v3186
  %v3443 = vmax.f32 %v2931, %v3187
  %v3444 = vmax.f32 %v2932, %v3188
  %v3445 = vmax.f32 %v2933, %v3189
  %v3446 = vmax.f32 %v2934, %v3190
  %v3447 = vmax.f32 %v2935, %v3191
  %v3448 = vmax.f32 %v2936, %v3192
  %v3449 = vmax.f32 %v2937, %v3193
  %v3450 = vmax.f32 %v2938, %v3194
  %v3451 = vmax.f32 %v2939, %v3195
  %v3452 = vmax.f32 %v2940, %v3196
  %v3453 = vmax.f32 %v2941, %v3197
  %v3454 = vmax.f32 %v2942, %v3198
  %v3455 = vmax.f32 %v2943, %v3199
  %v3456 = vmax.f32 %v2944, %v3200
  %v3457 = vmax.f32 %v2945, %v3201
  %v3458 = vmax.f32 %v2946, %v3202
  %v3459 = vmax.f32 %v2947, %v3203
  %v3460 = vmax.f32 %v2948, %v3204
  %v3461 = vmax.f32 %v2949, %v3205
  %v3462 = vmax.f32 %v2950, %v3206
  %v3463 = vmax.f32 %v2951, %v3207
  %v3464 = vmax.f32 %v2952, %v3208
  %v3465 = vmax.f32 %v2953, %v3209
  %v3466 = vmax.f32 %v2954, %v3210
  %v3467 = vmax.f32 %v2955, %v3211
  %v3468 = vmax.f32 %v2956, %v3212
  %v3469 = vmax.f32 %v2957, %v3213
  %v3470 = vmax.f32 %v2958, %v3214
  %v3471 = vmax.f32 %v2959, %v3215
  %v3472 = vmax.f32 %v2960, %v3216
  %v3473 = vmax.f32 %v2961, %v3217
  %v3474 = vmax.f32 %v2962, %v3218
  %v3475 = vmax.f32 %v2963, %v3219
  %v3476 = vmax.f32 %v2964, %v3220
  %v3477 = vmax.f32 %v2965, %v3221
  %v3478 = vmax.f32 %v2966, %v3222
  %v3479 = vmax.f32 %v2967, %v3223
  %v3480 = vmax.f32 %v2968, %v3224
  %v3481 = vmax.f32 %v2969, %v3225
  %v3482 = vmax.f32 %v2970, %v3226
  %v3483 = vmax.f32 %v2971, %v3227
  %v3484 = vmax.f32 %v2972, %v3228
  %v3485 = vmax.f32 %v2973, %v3229
  %v3486 = vmax.f32 %v2974, %v3230
  %v3487 = vmax.f32 %v2975, %v3231
  %v3488 = vmax.f32 %v2976, %v3232
  %v3489 = vmax.f32 %v2977, %v3233
  %v3490 = vmax.f32 %v2978, %v3234
  %v3491 = vmax.f32 %v2979, %v3235
  %v3492 = vmax.f32 %v2980, %v3236
  %v3493 = vmax.f32 %v2981, %v3237
  %v3494 = vmax.f32 %v2982, %v3238
  %v3495 = vmax.f32 %v2983, %v3239
  %v3496 = vmax.f32 %v2984, %v3240
  %v3497 = vmax.f32 %v2985, %v3241
  %v3498 = vmax.f32 %v2986, %v3242
  %v3499 = vmax.f32 %v2987, %v3243
  %v3500 = vmax.f32 %v2988, %v3244
  %v3501 = vmax.f32 %v2989, %v3245
  %v3502 = vmax.f32 %v2990, %v3246
  %v3503 = vmax.f32 %v2991, %v3247
  %v3504 = vmax.f32 %v2992, %v3248
  %v3505 = vmax.f32 %v2993, %v3249
  %v3506 = vmax.f32 %v2994, %v3250
  %v3507 = vmax.f32 %v2995, %v3251
  %v3508 = vmax.f32 %v2996, %v3252
  %v3509 = vmax.f32 %v2997, %v3253
  %v3510 = vmax.f32 %v2998, %v3254
  %v3511 = vmax.f32 %v2999, %v3255
  %v3512 = vmax.f32 %v3000, %v3256
  %v3513 = vmax.f32 %v3001, %v3257
  %v3514 = vmax.f32 %v3002, %v3258
  %v3515 = vmax.f32 %v3003, %v3259
  %v3516 = vmax.f32 %v3004, %v3260
  %v3517 = vmax.f32 %v3005, %v3261
  %v3518 = vmax.f32 %v3006, %v3262
  %v3519 = vmax.f32 %v3007, %v3263
  %v3520 = vmax.f32 %v3008, %v3264
  %v3521 = vmax.f32 %v3009, %v3265
  %v3522 = vmax.f32 %v3010, %v3266
  %v3523 = vmax.f32 %v3011, %v3267
  %v3524 = vmax.f32 %v3012, %v3268
  %v3525 = vmax.f32 %v3013, %v3269
  %v3526 = vmax.f32 %v3014, %v3270
  %v3527 = vmax.f32 %v3015, %v3271
  %v3528 = vmax.f32 %v3016, %v3272
  %v3529 = vmax.f32 %v3017, %v3273
  %v3530 = vmax.f32 %v3018, %v3274
  %v3531 = vmax.f32 %v3019, %v3275
  %v3532 = vmax.f32 %v3020, %v3276
  %v3533 = vmax.f32 %v3021, %v3277
  %v3534 = vmax.f32 %v3022, %v3278
  %v3535 = vmax.f32 %v3023, %v3279
  %v3536 = vmax.f32 %v3024, %v3280
  %v3537 = vmax.f32 %v3025, %v3281
  %v3538 = vmax.f32 %v3026, %v3282
  %v3539 = vmax.f32 %v3027, %v3283
  %v3540 = vmax.f32 %v3028, %v3284
  %v3541 = vmax.f32 %v3029, %v3285
  %v3542 = vmax.f32 %v3030, %v3286
  %v3543 = vmax.f32 %v3031, %v3287
  %v3544 = vmax.f32 %v3032, %v3288
  %v3545 = vmax.f32 %v3033, %v3289
  %v3546 = vmax.f32 %v3034, %v3290
  %v3547 = vmax.f32 %v3035, %v3291
  %v3548 = vmax.f32 %v3036, %v3292
  %v3549 = vmax.f32 %v3037, %v3293
  %v3550 = vmax.f32 %v3038, %v3294
  %v3551 = vmax.f32 %v3039, %v3295
  %v3552 = vmax.f32 %v3040, %v3296
  %v3553 = vmax.f32 %v3041, %v3297
  %v3554 = vmax.f32 %v3042, %v3298
  %v3555 = vmax.f32 %v3043, %v3299
  %v3556 = vmax.f32 %v3044, %v3300
  %v3557 = vmax.f32 %v3045, %v3301
  %v3558 = vmax.f32 %v3046, %v3302
  %v3559 = vmax.f32 %v3047, %v3303
  %v3560 = vmax.f32 %v3048, %v3304
  %v3561 = vmax.f32 %v3049, %v3305
  %v3562 = vmax.f32 %v3050, %v3306
  %v3563 = vmax.f32 %v3051, %v3307
  %v3564 = vmax.f32 %v3052, %v3308
  %v3565 = vmax.f32 %v3053, %v3309
  %v3566 = vmax.f32 %v3054, %v3310
  %v3567 = vmax.f32 %v3055, %v3311
  %v3568 = vmax.f32 %v3056, %v3312
  %v3569 = vmax.f32 %v3057, %v3313
  %v3570 = vmax.f32 %v3058, %v3314
  %v3571 = vmax.f32 %v3059, %v3315
  %v3572 = vmax.f32 %v3060, %v3316
  %v3573 = vmax.f32 %v3061, %v3317
  %v3574 = vmax.f32 %v3062, %v3318
  %v3575 = vmax.f32 %v3063, %v3319
  %v3576 = vmax.f32 %v3064, %v3320
  %v3577 = vmax.f32 %v3065, %v3321
  %v3578 = vmax.f32 %v3066, %v3322
  %v3579 = vmax.f32 %v3067, %v3323
  %v3580 = vmax.f32 %v3068, %v3324
  %v3581 = vmax.f32 %v3069, %v3325
  %v3582 = vmax.f32 %v3070, %v3326
  %v3583 = vmax.f32 %v3071, %v3327
  %v3584 = vmax.f32 %v3072, %v3328
  %v3585 = vmax.f32 %v3073, %v3329
  %v3586 = vmax.f32 %v3074, %v3330
  %v3587 = vmax.f32 %v3075, %v3331
  %v3588 = vmax.f32 %v3076, %v3332
  %v3589 = vmax.f32 %v3077, %v3333
  %v3590 = vpack.c.bf16 %v3334, %v3334
  %v3591 = vpack.c.bf16 %v3335, %v3335
  %v3592 = vpack.c.bf16 %v3336, %v3336
  %v3593 = vpack.c.bf16 %v3337, %v3337
  %v3594 = vpack.c.bf16 %v3338, %v3338
  %v3595 = vpack.c.bf16 %v3339, %v3339
  %v3596 = vpack.c.bf16 %v3340, %v3340
  %v3597 = vpack.c.bf16 %v3341, %v3341
  %v3598 = vpack.c.bf16 %v3342, %v3342
  %v3599 = vpack.c.bf16 %v3343, %v3343
  %v3600 = vpack.c.bf16 %v3344, %v3344
  %v3601 = vpack.c.bf16 %v3345, %v3345
  %v3602 = vpack.c.bf16 %v3346, %v3346
  %v3603 = vpack.c.bf16 %v3347, %v3347
  %v3604 = vpack.c.bf16 %v3348, %v3348
  %v3605 = vpack.c.bf16 %v3349, %v3349
  %v3606 = vpack.c.bf16 %v3350, %v3350
  %v3607 = vpack.c.bf16 %v3351, %v3351
  %v3608 = vpack.c.bf16 %v3352, %v3352
  %v3609 = vpack.c.bf16 %v3353, %v3353
  %v3610 = vpack.c.bf16 %v3354, %v3354
  %v3611 = vpack.c.bf16 %v3355, %v3355
  %v3612 = vpack.c.bf16 %v3356, %v3356
  %v3613 = vpack.c.bf16 %v3357, %v3357
  %v3614 = vpack.c.bf16 %v3358, %v3358
  %v3615 = vpack.c.bf16 %v3359, %v3359
  %v3616 = vpack.c.bf16 %v3360, %v3360
  %v3617 = vpack.c.bf16 %v3361, %v3361
  %v3618 = vpack.c.bf16 %v3362, %v3362
  %v3619 = vpack.c.bf16 %v3363, %v3363
  %v3620 = vpack.c.bf16 %v3364, %v3364
  %v3621 = vpack.c.bf16 %v3365, %v3365
  %v3622 = vpack.c.bf16 %v3366, %v3366
  %v3623 = vpack.c.bf16 %v3367, %v3367
  %v3624 = vpack.c.bf16 %v3368, %v3368
  %v3625 = vpack.c.bf16 %v3369, %v3369
  %v3626 = vpack.c.bf16 %v3370, %v3370
  %v3627 = vpack.c.bf16 %v3371, %v3371
  %v3628 = vpack.c.bf16 %v3372, %v3372
  %v3629 = vpack.c.bf16 %v3373, %v3373
  %v3630 = vpack.c.bf16 %v3374, %v3374
  %v3631 = vpack.c.bf16 %v3375, %v3375
  %v3632 = vpack.c.bf16 %v3376, %v3376
  %v3633 = vpack.c.bf16 %v3377, %v3377
  %v3634 = vpack.c.bf16 %v3378, %v3378
  %v3635 = vpack.c.bf16 %v3379, %v3379
  %v3636 = vpack.c.bf16 %v3380, %v3380
  %v3637 = vpack.c.bf16 %v3381, %v3381
  %v3638 = vpack.c.bf16 %v3382, %v3382
  %v3639 = vpack.c.bf16 %v3383, %v3383
  %v3640 = vpack.c.bf16 %v3384, %v3384
  %v3641 = vpack.c.bf16 %v3385, %v3385
  %v3642 = vpack.c.bf16 %v3386, %v3386
  %v3643 = vpack.c.bf16 %v3387, %v3387
  %v3644 = vpack.c.bf16 %v3388, %v3388
  %v3645 = vpack.c.bf16 %v3389, %v3389
  %v3646 = vpack.c.bf16 %v3390, %v3390
  %v3647 = vpack.c.bf16 %v3391, %v3391
  %v3648 = vpack.c.bf16 %v3392, %v3392
  %v3649 = vpack.c.bf16 %v3393, %v3393
  %v3650 = vpack.c.bf16 %v3394, %v3394
  %v3651 = vpack.c.bf16 %v3395, %v3395
  %v3652 = vpack.c.bf16 %v3396, %v3396
  %v3653 = vpack.c.bf16 %v3397, %v3397
  %v3654 = vpack.c.bf16 %v3398, %v3398
  %v3655 = vpack.c.bf16 %v3399, %v3399
  %v3656 = vpack.c.bf16 %v3400, %v3400
  %v3657 = vpack.c.bf16 %v3401, %v3401
  %v3658 = vpack.c.bf16 %v3402, %v3402
  %v3659 = vpack.c.bf16 %v3403, %v3403
  %v3660 = vpack.c.bf16 %v3404, %v3404
  %v3661 = vpack.c.bf16 %v3405, %v3405
  %v3662 = vpack.c.bf16 %v3406, %v3406
  %v3663 = vpack.c.bf16 %v3407, %v3407
  %v3664 = vpack.c.bf16 %v3408, %v3408
  %v3665 = vpack.c.bf16 %v3409, %v3409
  %v3666 = vpack.c.bf16 %v3410, %v3410
  %v3667 = vpack.c.bf16 %v3411, %v3411
  %v3668 = vpack.c.bf16 %v3412, %v3412
  %v3669 = vpack.c.bf16 %v3413, %v3413
  %v3670 = vpack.c.bf16 %v3414, %v3414
  %v3671 = vpack.c.bf16 %v3415, %v3415
  %v3672 = vpack.c.bf16 %v3416, %v3416
  %v3673 = vpack.c.bf16 %v3417, %v3417
  %v3674 = vpack.c.bf16 %v3418, %v3418
  %v3675 = vpack.c.bf16 %v3419, %v3419
  %v3676 = vpack.c.bf16 %v3420, %v3420
  %v3677 = vpack.c.bf16 %v3421, %v3421
  %v3678 = vpack.c.bf16 %v3422, %v3422
  %v3679 = vpack.c.bf16 %v3423, %v3423
  %v3680 = vpack.c.bf16 %v3424, %v3424
  %v3681 = vpack.c.bf16 %v3425, %v3425
  %v3682 = vpack.c.bf16 %v3426, %v3426
  %v3683 = vpack.c.bf16 %v3427, %v3427
  %v3684 = vpack.c.bf16 %v3428, %v3428
  %v3685 = vpack.c.bf16 %v3429, %v3429
  %v3686 = vpack.c.bf16 %v3430, %v3430
  %v3687 = vpack.c.bf16 %v3431, %v3431
  %v3688 = vpack.c.bf16 %v3432, %v3432
  %v3689 = vpack.c.bf16 %v3433, %v3433
  %v3690 = vpack.c.bf16 %v3434, %v3434
  %v3691 = vpack.c.bf16 %v3435, %v3435
  %v3692 = vpack.c.bf16 %v3436, %v3436
  %v3693 = vpack.c.bf16 %v3437, %v3437
  %v3694 = vpack.c.bf16 %v3438, %v3438
  %v3695 = vpack.c.bf16 %v3439, %v3439
  %v3696 = vpack.c.bf16 %v3440, %v3440
  %v3697 = vpack.c.bf16 %v3441, %v3441
  %v3698 = vpack.c.bf16 %v3442, %v3442
  %v3699 = vpack.c.bf16 %v3443, %v3443
  %v3700 = vpack.c.bf16 %v3444, %v3444
  %v3701 = vpack.c.bf16 %v3445, %v3445
  %v3702 = vpack.c.bf16 %v3446, %v3446
  %v3703 = vpack.c.bf16 %v3447, %v3447
  %v3704 = vpack.c.bf16 %v3448, %v3448
  %v3705 = vpack.c.bf16 %v3449, %v3449
  %v3706 = vpack.c.bf16 %v3450, %v3450
  %v3707 = vpack.c.bf16 %v3451, %v3451
  %v3708 = vpack.c.bf16 %v3452, %v3452
  %v3709 = vpack.c.bf16 %v3453, %v3453
  %v3710 = vpack.c.bf16 %v3454, %v3454
  %v3711 = vpack.c.bf16 %v3455, %v3455
  %v3712 = vpack.c.bf16 %v3456, %v3456
  %v3713 = vpack.c.bf16 %v3457, %v3457
  %v3714 = vpack.c.bf16 %v3458, %v3458
  %v3715 = vpack.c.bf16 %v3459, %v3459
  %v3716 = vpack.c.bf16 %v3460, %v3460
  %v3717 = vpack.c.bf16 %v3461, %v3461
  %v3718 = vpack.c.bf16 %v3462, %v3462
  %v3719 = vpack.c.bf16 %v3463, %v3463
  %v3720 = vpack.c.bf16 %v3464, %v3464
  %v3721 = vpack.c.bf16 %v3465, %v3465
  %v3722 = vpack.c.bf16 %v3466, %v3466
  %v3723 = vpack.c.bf16 %v3467, %v3467
  %v3724 = vpack.c.bf16 %v3468, %v3468
  %v3725 = vpack.c.bf16 %v3469, %v3469
  %v3726 = vpack.c.bf16 %v3470, %v3470
  %v3727 = vpack.c.bf16 %v3471, %v3471
  %v3728 = vpack.c.bf16 %v3472, %v3472
  %v3729 = vpack.c.bf16 %v3473, %v3473
  %v3730 = vpack.c.bf16 %v3474, %v3474
  %v3731 = vpack.c.bf16 %v3475, %v3475
  %v3732 = vpack.c.bf16 %v3476, %v3476
  %v3733 = vpack.c.bf16 %v3477, %v3477
  %v3734 = vpack.c.bf16 %v3478, %v3478
  %v3735 = vpack.c.bf16 %v3479, %v3479
  %v3736 = vpack.c.bf16 %v3480, %v3480
  %v3737 = vpack.c.bf16 %v3481, %v3481
  %v3738 = vpack.c.bf16 %v3482, %v3482
  %v3739 = vpack.c.bf16 %v3483, %v3483
  %v3740 = vpack.c.bf16 %v3484, %v3484
  %v3741 = vpack.c.bf16 %v3485, %v3485
  %v3742 = vpack.c.bf16 %v3486, %v3486
  %v3743 = vpack.c.bf16 %v3487, %v3487
  %v3744 = vpack.c.bf16 %v3488, %v3488
  %v3745 = vpack.c.bf16 %v3489, %v3489
  %v3746 = vpack.c.bf16 %v3490, %v3490
  %v3747 = vpack.c.bf16 %v3491, %v3491
  %v3748 = vpack.c.bf16 %v3492, %v3492
  %v3749 = vpack.c.bf16 %v3493, %v3493
  %v3750 = vpack.c.bf16 %v3494, %v3494
  %v3751 = vpack.c.bf16 %v3495, %v3495
  %v3752 = vpack.c.bf16 %v3496, %v3496
  %v3753 = vpack.c.bf16 %v3497, %v3497
  %v3754 = vpack.c.bf16 %v3498, %v3498
  %v3755 = vpack.c.bf16 %v3499, %v3499
  %v3756 = vpack.c.bf16 %v3500, %v3500
  %v3757 = vpack.c.bf16 %v3501, %v3501
  %v3758 = vpack.c.bf16 %v3502, %v3502
  %v3759 = vpack.c.bf16 %v3503, %v3503
  %v3760 = vpack.c.bf16 %v3504, %v3504
  %v3761 = vpack.c.bf16 %v3505, %v3505
  %v3762 = vpack.c.bf16 %v3506, %v3506
  %v3763 = vpack.c.bf16 %v3507, %v3507
  %v3764 = vpack.c.bf16 %v3508, %v3508
  %v3765 = vpack.c.bf16 %v3509, %v3509
  %v3766 = vpack.c.bf16 %v3510, %v3510
  %v3767 = vpack.c.bf16 %v3511, %v3511
  %v3768 = vpack.c.bf16 %v3512, %v3512
  %v3769 = vpack.c.bf16 %v3513, %v3513
  %v3770 = vpack.c.bf16 %v3514, %v3514
  %v3771 = vpack.c.bf16 %v3515, %v3515
  %v3772 = vpack.c.bf16 %v3516, %v3516
  %v3773 = vpack.c.bf16 %v3517, %v3517
  %v3774 = vpack.c.bf16 %v3518, %v3518
  %v3775 = vpack.c.bf16 %v3519, %v3519
  %v3776 = vpack.c.bf16 %v3520, %v3520
  %v3777 = vpack.c.bf16 %v3521, %v3521
  %v3778 = vpack.c.bf16 %v3522, %v3522
  %v3779 = vpack.c.bf16 %v3523, %v3523
  %v3780 = vpack.c.bf16 %v3524, %v3524
  %v3781 = vpack.c.bf16 %v3525, %v3525
  %v3782 = vpack.c.bf16 %v3526, %v3526
  %v3783 = vpack.c.bf16 %v3527, %v3527
  %v3784 = vpack.c.bf16 %v3528, %v3528
  %v3785 = vpack.c.bf16 %v3529, %v3529
  %v3786 = vpack.c.bf16 %v3530, %v3530
  %v3787 = vpack.c.bf16 %v3531, %v3531
  %v3788 = vpack.c.bf16 %v3532, %v3532
  %v3789 = vpack.c.bf16 %v3533, %v3533
  %v3790 = vpack.c.bf16 %v3534, %v3534
  %v3791 = vpack.c.bf16 %v3535, %v3535
  %v3792 = vpack.c.bf16 %v3536, %v3536
  %v3793 = vpack.c.bf16 %v3537, %v3537
  %v3794 = vpack.c.bf16 %v3538, %v3538
  %v3795 = vpack.c.bf16 %v3539, %v3539
  %v3796 = vpack.c.bf16 %v3540, %v3540
  %v3797 = vpack.c.bf16 %v3541, %v3541
  %v3798 = vpack.c.bf16 %v3542, %v3542
  %v3799 = vpack.c.bf16 %v3543, %v3543
  %v3800 = vpack.c.bf16 %v3544, %v3544
  %v3801 = vpack.c.bf16 %v3545, %v3545
  %v3802 = vpack.c.bf16 %v3546, %v3546
  %v3803 = vpack.c.bf16 %v3547, %v3547
  %v3804 = vpack.c.bf16 %v3548, %v3548
  %v3805 = vpack.c.bf16 %v3549, %v3549
  %v3806 = vpack.c.bf16 %v3550, %v3550
  %v3807 = vpack.c.bf16 %v3551, %v3551
  %v3808 = vpack.c.bf16 %v3552, %v3552
  %v3809 = vpack.c.bf16 %v3553, %v3553
  %v3810 = vpack.c.bf16 %v3554, %v3554
  %v3811 = vpack.c.bf16 %v3555, %v3555
  %v3812 = vpack.c.bf16 %v3556, %v3556
  %v3813 = vpack.c.bf16 %v3557, %v3557
  %v3814 = vpack.c.bf16 %v3558, %v3558
  %v3815 = vpack.c.bf16 %v3559, %v3559
  %v3816 = vpack.c.bf16 %v3560, %v3560
  %v3817 = vpack.c.bf16 %v3561, %v3561
  %v3818 = vpack.c.bf16 %v3562, %v3562
  %v3819 = vpack.c.bf16 %v3563, %v3563
  %v3820 = vpack.c.bf16 %v3564, %v3564
  %v3821 = vpack.c.bf16 %v3565, %v3565
  %v3822 = vpack.c.bf16 %v3566, %v3566
  %v3823 = vpack.c.bf16 %v3567, %v3567
  %v3824 = vpack.c.bf16 %v3568, %v3568
  %v3825 = vpack.c.bf16 %v3569, %v3569
  %v3826 = vpack.c.bf16 %v3570, %v3570
  %v3827 = vpack.c.bf16 %v3571, %v3571
  %v3828 = vpack.c.bf16 %v3572, %v3572
  %v3829 = vpack.c.bf16 %v3573, %v3573
  %v3830 = vpack.c.bf16 %v3574, %v3574
  %v3831 = vpack.c.bf16 %v3575, %v3575
  %v3832 = vpack.c.bf16 %v3576, %v3576
  %v3833 = vpack.c.bf16 %v3577, %v3577
  %v3834 = vpack.c.bf16 %v3578, %v3578
  %v3835 = vpack.c.bf16 %v3579, %v3579
  %v3836 = vpack.c.bf16 %v3580, %v3580
  %v3837 = vpack.c.bf16 %v3581, %v3581
  %v3838 = vpack.c.bf16 %v3582, %v3582
  %v3839 = vpack.c.bf16 %v3583, %v3583
  %v3840 = vpack.c.bf16 %v3584, %v3584
  %v3841 = vpack.c.bf16 %v3585, %v3585
  %v3842 = vpack.c.bf16 %v3586, %v3586
  %v3843 = vpack.c.bf16 %v3587, %v3587
  %v3844 = vpack.c.bf16 %v3588, %v3588
  %v3845 = vpack.c.bf16 %v3589, %v3589
  %3846 = vst [vmem:[%s4] sm:$0xf] %v3590
  %3847 = vst [vmem:[%s4 + $0x4] sm:$0xf] %v3591
  %3848 = vst [vmem:[%s4 + $0x8] sm:$0xf] %v3592
  %3849 = vst [vmem:[%s4 + $0xc] sm:$0xf] %v3593
  %3850 = vst [vmem:[%s4 + $0x10] sm:$0xf] %v3594
  %3851 = vst [vmem:[%s4 + $0x14] sm:$0xf] %v3595
  %3852 = vst [vmem:[%s4 + $0x18] sm:$0xf] %v3596
  %3853 = vst [vmem:[%s4 + $0x1c] sm:$0xf] %v3597
  %3854 = vst [vmem:[%s4 + $0x20] sm:$0xf] %v3598
  %3855 = vst [vmem:[%s4 + $0x24] sm:$0xf] %v3599
  %3856 = vst [vmem:[%s4 + $0x28] sm:$0xf] %v3600
  %3857 = vst [vmem:[%s4 + $0x2c] sm:$0xf] %v3601
  %3858 = vst [vmem:[%s4 + $0x30] sm:$0xf] %v3602
  %3859 = vst [vmem:[%s4 + $0x34] sm:$0xf] %v3603
  %3860 = vst [vmem:[%s4 + $0x38] sm:$0xf] %v3604
  %3861 = vst [vmem:[%s4 + $0x3c] sm:$0xf] %v3605
  %3862 = vst [vmem:[%s4 + $0x40] sm:$0xf] %v3606
  %3863 = vst [vmem:[%s4 + $0x44] sm:$0xf] %v3607
  %3864 = vst [vmem:[%s4 + $0x48] sm:$0xf] %v3608
  %3865 = vst [vmem:[%s4 + $0x4c] sm:$0xf] %v3609
  %3866 = vst [vmem:[%s4 + $0x50] sm:$0xf] %v3610
  %3867 = vst [vmem:[%s4 + $0x54] sm:$0xf] %v3611
  %3868 = vst [vmem:[%s4 + $0x58] sm:$0xf] %v3612
  %3869 = vst [vmem:[%s4 + $0x5c] sm:$0xf] %v3613
  %3870 = vst [vmem:[%s4 + $0x60] sm:$0xf] %v3614
  %3871 = vst [vmem:[%s4 + $0x64] sm:$0xf] %v3615
  %3872 = vst [vmem:[%s4 + $0x68] sm:$0xf] %v3616
  %3873 = vst [vmem:[%s4 + $0x6c] sm:$0xf] %v3617
  %3874 = vst [vmem:[%s4 + $0x70] sm:$0xf] %v3618
  %3875 = vst [vmem:[%s4 + $0x74] sm:$0xf] %v3619
  %3876 = vst [vmem:[%s4 + $0x78] sm:$0xf] %v3620
  %3877 = vst [vmem:[%s4 + $0x7c] sm:$0xf] %v3621
  %3878 = vst [vmem:[%s4 + $0x80] sm:$0xf] %v3622
  %3879 = vst [vmem:[%s4 + $0x84] sm:$0xf] %v3623
  %3880 = vst [vmem:[%s4 + $0x88] sm:$0xf] %v3624
  %3881 = vst [vmem:[%s4 + $0x8c] sm:$0xf] %v3625
  %3882 = vst [vmem:[%s4 + $0x90] sm:$0xf] %v3626
  %3883 = vst [vmem:[%s4 + $0x94] sm:$0xf] %v3627
  %3884 = vst [vmem:[%s4 + $0x98] sm:$0xf] %v3628
  %3885 = vst [vmem:[%s4 + $0x9c] sm:$0xf] %v3629
  %3886 = vst [vmem:[%s4 + $0xa0] sm:$0xf] %v3630
  %3887 = vst [vmem:[%s4 + $0xa4] sm:$0xf] %v3631
  %3888 = vst [vmem:[%s4 + $0xa8] sm:$0xf] %v3632
  %3889 = vst [vmem:[%s4 + $0xac] sm:$0xf] %v3633
  %3890 = vst [vmem:[%s4 + $0xb0] sm:$0xf] %v3634
  %3891 = vst [vmem:[%s4 + $0xb4] sm:$0xf] %v3635
  %3892 = vst [vmem:[%s4 + $0xb8] sm:$0xf] %v3636
  %3893 = vst [vmem:[%s4 + $0xbc] sm:$0xf] %v3637
  %3894 = vst [vmem:[%s4 + $0xc0] sm:$0xf] %v3638
  %3895 = vst [vmem:[%s4 + $0xc4] sm:$0xf] %v3639
  %3896 = vst [vmem:[%s4 + $0xc8] sm:$0xf] %v3640
  %3897 = vst [vmem:[%s4 + $0xcc] sm:$0xf] %v3641
  %3898 = vst [vmem:[%s4 + $0xd0] sm:$0xf] %v3642
  %3899 = vst [vmem:[%s4 + $0xd4] sm:$0xf] %v3643
  %3900 = vst [vmem:[%s4 + $0xd8] sm:$0xf] %v3644
  %3901 = vst [vmem:[%s4 + $0xdc] sm:$0xf] %v3645
  %3902 = vst [vmem:[%s4 + $0xe0] sm:$0xf] %v3646
  %3903 = vst [vmem:[%s4 + $0xe4] sm:$0xf] %v3647
  %3904 = vst [vmem:[%s4 + $0xe8] sm:$0xf] %v3648
  %3905 = vst [vmem:[%s4 + $0xec] sm:$0xf] %v3649
  %3906 = vst [vmem:[%s4 + $0xf0] sm:$0xf] %v3650
  %3907 = vst [vmem:[%s4 + $0xf4] sm:$0xf] %v3651
  %3908 = vst [vmem:[%s4 + $0xf8] sm:$0xf] %v3652
  %3909 = vst [vmem:[%s4 + $0xfc] sm:$0xf] %v3653
  %3910 = vst [vmem:[%s4 + $0x100] sm:$0xf] %v3654
  %3911 = vst [vmem:[%s4 + $0x104] sm:$0xf] %v3655
  %3912 = vst [vmem:[%s4 + $0x108] sm:$0xf] %v3656
  %3913 = vst [vmem:[%s4 + $0x10c] sm:$0xf] %v3657
  %3914 = vst [vmem:[%s4 + $0x110] sm:$0xf] %v3658
  %3915 = vst [vmem:[%s4 + $0x114] sm:$0xf] %v3659
  %3916 = vst [vmem:[%s4 + $0x118] sm:$0xf] %v3660
  %3917 = vst [vmem:[%s4 + $0x11c] sm:$0xf] %v3661
  %3918 = vst [vmem:[%s4 + $0x120] sm:$0xf] %v3662
  %3919 = vst [vmem:[%s4 + $0x124] sm:$0xf] %v3663
  %3920 = vst [vmem:[%s4 + $0x128] sm:$0xf] %v3664
  %3921 = vst [vmem:[%s4 + $0x12c] sm:$0xf] %v3665
  %3922 = vst [vmem:[%s4 + $0x130] sm:$0xf] %v3666
  %3923 = vst [vmem:[%s4 + $0x134] sm:$0xf] %v3667
  %3924 = vst [vmem:[%s4 + $0x138] sm:$0xf] %v3668
  %3925 = vst [vmem:[%s4 + $0x13c] sm:$0xf] %v3669
  %3926 = vst [vmem:[%s4 + $0x140] sm:$0xf] %v3670
  %3927 = vst [vmem:[%s4 + $0x144] sm:$0xf] %v3671
  %3928 = vst [vmem:[%s4 + $0x148] sm:$0xf] %v3672
  %3929 = vst [vmem:[%s4 + $0x14c] sm:$0xf] %v3673
  %3930 = vst [vmem:[%s4 + $0x150] sm:$0xf] %v3674
  %3931 = vst [vmem:[%s4 + $0x154] sm:$0xf] %v3675
  %3932 = vst [vmem:[%s4 + $0x158] sm:$0xf] %v3676
  %3933 = vst [vmem:[%s4 + $0x15c] sm:$0xf] %v3677
  %3934 = vst [vmem:[%s4 + $0x160] sm:$0xf] %v3678
  %3935 = vst [vmem:[%s4 + $0x164] sm:$0xf] %v3679
  %3936 = vst [vmem:[%s4 + $0x168] sm:$0xf] %v3680
  %3937 = vst [vmem:[%s4 + $0x16c] sm:$0xf] %v3681
  %3938 = vst [vmem:[%s4 + $0x170] sm:$0xf] %v3682
  %3939 = vst [vmem:[%s4 + $0x174] sm:$0xf] %v3683
  %3940 = vst [vmem:[%s4 + $0x178] sm:$0xf] %v3684
  %3941 = vst [vmem:[%s4 + $0x17c] sm:$0xf] %v3685
  %3942 = vst [vmem:[%s4 + $0x180] sm:$0xf] %v3686
  %3943 = vst [vmem:[%s4 + $0x184] sm:$0xf] %v3687
  %3944 = vst [vmem:[%s4 + $0x188] sm:$0xf] %v3688
  %3945 = vst [vmem:[%s4 + $0x18c] sm:$0xf] %v3689
  %3946 = vst [vmem:[%s4 + $0x190] sm:$0xf] %v3690
  %3947 = vst [vmem:[%s4 + $0x194] sm:$0xf] %v3691
  %3948 = vst [vmem:[%s4 + $0x198] sm:$0xf] %v3692
  %3949 = vst [vmem:[%s4 + $0x19c] sm:$0xf] %v3693
  %3950 = vst [vmem:[%s4 + $0x1a0] sm:$0xf] %v3694
  %3951 = vst [vmem:[%s4 + $0x1a4] sm:$0xf] %v3695
  %3952 = vst [vmem:[%s4 + $0x1a8] sm:$0xf] %v3696
  %3953 = vst [vmem:[%s4 + $0x1ac] sm:$0xf] %v3697
  %3954 = vst [vmem:[%s4 + $0x1b0] sm:$0xf] %v3698
  %3955 = vst [vmem:[%s4 + $0x1b4] sm:$0xf] %v3699
  %3956 = vst [vmem:[%s4 + $0x1b8] sm:$0xf] %v3700
  %3957 = vst [vmem:[%s4 + $0x1bc] sm:$0xf] %v3701
  %3958 = vst [vmem:[%s4 + $0x1c0] sm:$0xf] %v3702
  %3959 = vst [vmem:[%s4 + $0x1c4] sm:$0xf] %v3703
  %3960 = vst [vmem:[%s4 + $0x1c8] sm:$0xf] %v3704
  %3961 = vst [vmem:[%s4 + $0x1cc] sm:$0xf] %v3705
  %3962 = vst [vmem:[%s4 + $0x1d0] sm:$0xf] %v3706
  %3963 = vst [vmem:[%s4 + $0x1d4] sm:$0xf] %v3707
  %3964 = vst [vmem:[%s4 + $0x1d8] sm:$0xf] %v3708
  %3965 = vst [vmem:[%s4 + $0x1dc] sm:$0xf] %v3709
  %3966 = vst [vmem:[%s4 + $0x1e0] sm:$0xf] %v3710
  %3967 = vst [vmem:[%s4 + $0x1e4] sm:$0xf] %v3711
  %3968 = vst [vmem:[%s4 + $0x1e8] sm:$0xf] %v3712
  %3969 = vst [vmem:[%s4 + $0x1ec] sm:$0xf] %v3713
  %3970 = vst [vmem:[%s4 + $0x1f0] sm:$0xf] %v3714
  %3971 = vst [vmem:[%s4 + $0x1f4] sm:$0xf] %v3715
  %3972 = vst [vmem:[%s4 + $0x1f8] sm:$0xf] %v3716
  %3973 = vst [vmem:[%s4 + $0x1fc] sm:$0xf] %v3717
  %3974 = vst [vmem:[%s4 + $0x200] sm:$0xf] %v3718
  %3975 = vst [vmem:[%s4 + $0x204] sm:$0xf] %v3719
  %3976 = vst [vmem:[%s4 + $0x208] sm:$0xf] %v3720
  %3977 = vst [vmem:[%s4 + $0x20c] sm:$0xf] %v3721
  %3978 = vst [vmem:[%s4 + $0x210] sm:$0xf] %v3722
  %3979 = vst [vmem:[%s4 + $0x214] sm:$0xf] %v3723
  %3980 = vst [vmem:[%s4 + $0x218] sm:$0xf] %v3724
  %3981 = vst [vmem:[%s4 + $0x21c] sm:$0xf] %v3725
  %3982 = vst [vmem:[%s4 + $0x220] sm:$0xf] %v3726
  %3983 = vst [vmem:[%s4 + $0x224] sm:$0xf] %v3727
  %3984 = vst [vmem:[%s4 + $0x228] sm:$0xf] %v3728
  %3985 = vst [vmem:[%s4 + $0x22c] sm:$0xf] %v3729
  %3986 = vst [vmem:[%s4 + $0x230] sm:$0xf] %v3730
  %3987 = vst [vmem:[%s4 + $0x234] sm:$0xf] %v3731
  %3988 = vst [vmem:[%s4 + $0x238] sm:$0xf] %v3732
  %3989 = vst [vmem:[%s4 + $0x23c] sm:$0xf] %v3733
  %3990 = vst [vmem:[%s4 + $0x240] sm:$0xf] %v3734
  %3991 = vst [vmem:[%s4 + $0x244] sm:$0xf] %v3735
  %3992 = vst [vmem:[%s4 + $0x248] sm:$0xf] %v3736
  %3993 = vst [vmem:[%s4 + $0x24c] sm:$0xf] %v3737
  %3994 = vst [vmem:[%s4 + $0x250] sm:$0xf] %v3738
  %3995 = vst [vmem:[%s4 + $0x254] sm:$0xf] %v3739
  %3996 = vst [vmem:[%s4 + $0x258] sm:$0xf] %v3740
  %3997 = vst [vmem:[%s4 + $0x25c] sm:$0xf] %v3741
  %3998 = vst [vmem:[%s4 + $0x260] sm:$0xf] %v3742
  %3999 = vst [vmem:[%s4 + $0x264] sm:$0xf] %v3743
  %4000 = vst [vmem:[%s4 + $0x268] sm:$0xf] %v3744
  %4001 = vst [vmem:[%s4 + $0x26c] sm:$0xf] %v3745
  %4002 = vst [vmem:[%s4 + $0x270] sm:$0xf] %v3746
  %4003 = vst [vmem:[%s4 + $0x274] sm:$0xf] %v3747
  %4004 = vst [vmem:[%s4 + $0x278] sm:$0xf] %v3748
  %4005 = vst [vmem:[%s4 + $0x27c] sm:$0xf] %v3749
  %4006 = vst [vmem:[%s4 + $0x280] sm:$0xf] %v3750
  %4007 = vst [vmem:[%s4 + $0x284] sm:$0xf] %v3751
  %4008 = vst [vmem:[%s4 + $0x288] sm:$0xf] %v3752
  %4009 = vst [vmem:[%s4 + $0x28c] sm:$0xf] %v3753
  %4010 = vst [vmem:[%s4 + $0x290] sm:$0xf] %v3754
  %4011 = vst [vmem:[%s4 + $0x294] sm:$0xf] %v3755
  %4012 = vst [vmem:[%s4 + $0x298] sm:$0xf] %v3756
  %4013 = vst [vmem:[%s4 + $0x29c] sm:$0xf] %v3757
  %4014 = vst [vmem:[%s4 + $0x2a0] sm:$0xf] %v3758
  %4015 = vst [vmem:[%s4 + $0x2a4] sm:$0xf] %v3759
  %4016 = vst [vmem:[%s4 + $0x2a8] sm:$0xf] %v3760
  %4017 = vst [vmem:[%s4 + $0x2ac] sm:$0xf] %v3761
  %4018 = vst [vmem:[%s4 + $0x2b0] sm:$0xf] %v3762
  %4019 = vst [vmem:[%s4 + $0x2b4] sm:$0xf] %v3763
  %4020 = vst [vmem:[%s4 + $0x2b8] sm:$0xf] %v3764
  %4021 = vst [vmem:[%s4 + $0x2bc] sm:$0xf] %v3765
  %4022 = vst [vmem:[%s4 + $0x2c0] sm:$0xf] %v3766
  %4023 = vst [vmem:[%s4 + $0x2c4] sm:$0xf] %v3767
  %4024 = vst [vmem:[%s4 + $0x2c8] sm:$0xf] %v3768
  %4025 = vst [vmem:[%s4 + $0x2cc] sm:$0xf] %v3769
  %4026 = vst [vmem:[%s4 + $0x2d0] sm:$0xf] %v3770
  %4027 = vst [vmem:[%s4 + $0x2d4] sm:$0xf] %v3771
  %4028 = vst [vmem:[%s4 + $0x2d8] sm:$0xf] %v3772
  %4029 = vst [vmem:[%s4 + $0x2dc] sm:$0xf] %v3773
  %4030 = vst [vmem:[%s4 + $0x2e0] sm:$0xf] %v3774
  %4031 = vst [vmem:[%s4 + $0x2e4] sm:$0xf] %v3775
  %4032 = vst [vmem:[%s4 + $0x2e8] sm:$0xf] %v3776
  %4033 = vst [vmem:[%s4 + $0x2ec] sm:$0xf] %v3777
  %4034 = vst [vmem:[%s4 + $0x2f0] sm:$0xf] %v3778
  %4035 = vst [vmem:[%s4 + $0x2f4] sm:$0xf] %v3779
  %4036 = vst [vmem:[%s4 + $0x2f8] sm:$0xf] %v3780
  %4037 = vst [vmem:[%s4 + $0x2fc] sm:$0xf] %v3781
  %4038 = vst [vmem:[%s4 + $0x300] sm:$0xf] %v3782
  %4039 = vst [vmem:[%s4 + $0x304] sm:$0xf] %v3783
  %4040 = vst [vmem:[%s4 + $0x308] sm:$0xf] %v3784
  %4041 = vst [vmem:[%s4 + $0x30c] sm:$0xf] %v3785
  %4042 = vst [vmem:[%s4 + $0x310] sm:$0xf] %v3786
  %4043 = vst [vmem:[%s4 + $0x314] sm:$0xf] %v3787
  %4044 = vst [vmem:[%s4 + $0x318] sm:$0xf] %v3788
  %4045 = vst [vmem:[%s4 + $0x31c] sm:$0xf] %v3789
  %4046 = vst [vmem:[%s4 + $0x320] sm:$0xf] %v3790
  %4047 = vst [vmem:[%s4 + $0x324] sm:$0xf] %v3791
  %4048 = vst [vmem:[%s4 + $0x328] sm:$0xf] %v3792
  %4049 = vst [vmem:[%s4 + $0x32c] sm:$0xf] %v3793
  %4050 = vst [vmem:[%s4 + $0x330] sm:$0xf] %v3794
  %4051 = vst [vmem:[%s4 + $0x334] sm:$0xf] %v3795
  %4052 = vst [vmem:[%s4 + $0x338] sm:$0xf] %v3796
  %4053 = vst [vmem:[%s4 + $0x33c] sm:$0xf] %v3797
  %4054 = vst [vmem:[%s4 + $0x340] sm:$0xf] %v3798
  %4055 = vst [vmem:[%s4 + $0x344] sm:$0xf] %v3799
  %4056 = vst [vmem:[%s4 + $0x348] sm:$0xf] %v3800
  %4057 = vst [vmem:[%s4 + $0x34c] sm:$0xf] %v3801
  %4058 = vst [vmem:[%s4 + $0x350] sm:$0xf] %v3802
  %4059 = vst [vmem:[%s4 + $0x354] sm:$0xf] %v3803
  %4060 = vst [vmem:[%s4 + $0x358] sm:$0xf] %v3804
  %4061 = vst [vmem:[%s4 + $0x35c] sm:$0xf] %v3805
  %4062 = vst [vmem:[%s4 + $0x360] sm:$0xf] %v3806
  %4063 = vst [vmem:[%s4 + $0x364] sm:$0xf] %v3807
  %4064 = vst [vmem:[%s4 + $0x368] sm:$0xf] %v3808
  %4065 = vst [vmem:[%s4 + $0x36c] sm:$0xf] %v3809
  %4066 = vst [vmem:[%s4 + $0x370] sm:$0xf] %v3810
  %4067 = vst [vmem:[%s4 + $0x374] sm:$0xf] %v3811
  %4068 = vst [vmem:[%s4 + $0x378] sm:$0xf] %v3812
  %4069 = vst [vmem:[%s4 + $0x37c] sm:$0xf] %v3813
  %4070 = vst [vmem:[%s4 + $0x380] sm:$0xf] %v3814
  %4071 = vst [vmem:[%s4 + $0x384] sm:$0xf] %v3815
  %4072 = vst [vmem:[%s4 + $0x388] sm:$0xf] %v3816
  %4073 = vst [vmem:[%s4 + $0x38c] sm:$0xf] %v3817
  %4074 = vst [vmem:[%s4 + $0x390] sm:$0xf] %v3818
  %4075 = vst [vmem:[%s4 + $0x394] sm:$0xf] %v3819
  %4076 = vst [vmem:[%s4 + $0x398] sm:$0xf] %v3820
  %4077 = vst [vmem:[%s4 + $0x39c] sm:$0xf] %v3821
  %4078 = vst [vmem:[%s4 + $0x3a0] sm:$0xf] %v3822
  %4079 = vst [vmem:[%s4 + $0x3a4] sm:$0xf] %v3823
  %4080 = vst [vmem:[%s4 + $0x3a8] sm:$0xf] %v3824
  %4081 = vst [vmem:[%s4 + $0x3ac] sm:$0xf] %v3825
  %4082 = vst [vmem:[%s4 + $0x3b0] sm:$0xf] %v3826
  %4083 = vst [vmem:[%s4 + $0x3b4] sm:$0xf] %v3827
  %4084 = vst [vmem:[%s4 + $0x3b8] sm:$0xf] %v3828
  %4085 = vst [vmem:[%s4 + $0x3bc] sm:$0xf] %v3829
  %4086 = vst [vmem:[%s4 + $0x3c0] sm:$0xf] %v3830
  %4087 = vst [vmem:[%s4 + $0x3c4] sm:$0xf] %v3831
  %4088 = vst [vmem:[%s4 + $0x3c8] sm:$0xf] %v3832
  %4089 = vst [vmem:[%s4 + $0x3cc] sm:$0xf] %v3833
  %4090 = vst [vmem:[%s4 + $0x3d0] sm:$0xf] %v3834
  %4091 = vst [vmem:[%s4 + $0x3d4] sm:$0xf] %v3835
  %4092 = vst [vmem:[%s4 + $0x3d8] sm:$0xf] %v3836
  %4093 = vst [vmem:[%s4 + $0x3dc] sm:$0xf] %v3837
  %4094 = vst [vmem:[%s4 + $0x3e0] sm:$0xf] %v3838
  %4095 = vst [vmem:[%s4 + $0x3e4] sm:$0xf] %v3839
  %4096 = vst [vmem:[%s4 + $0x3e8] sm:$0xf] %v3840
  %4097 = vst [vmem:[%s4 + $0x3ec] sm:$0xf] %v3841
  %4098 = vst [vmem:[%s4 + $0x3f0] sm:$0xf] %v3842
  %4099 = vst [vmem:[%s4 + $0x3f4] sm:$0xf] %v3843
  %4100 = vst [vmem:[%s4 + $0x3f8] sm:$0xf] %v3844
  %4101 = vst [vmem:[%s4 + $0x3fc] sm:$0xf] %v3845
  // Predicated region
  $region18: #{_lambda_.6} parent=0 // pred_check
    _
  $region19: #{_lambda_.6} parent=0 // pred_check_branch
    %4103 = sbr.rel (0) target = $region21
  $region20: #{_lambda_.6} parent=0 // pred_region
    _
  $region21: #{_lambda_.6} parent=0 // pred_fallthru
    _
  // Predicated region
  $region22: #{_lambda_.6} parent=0 // pred_check
    _
  $region23: #{_lambda_.6} parent=0 // pred_check_branch
    %4105 = sbr.rel (0) target = $region25
  $region24: #{_lambda_.6} parent=0 // pred_region
    _
  $region25: #{_lambda_.6} parent=0 // pred_fallthru
    _

// kernel: _lambda_.7
$region0: #{_lambda_.7}
  #allocation0 [shape = 'u32[]', space=smem, size = 0x4, offset = 0x4, fixed_abs, tag = 'smem constant byte address 0x4 - core index']
  #allocation1 [shape = 'u32[72,128]{1,0:T(1,128)}', space=vmem, size = 0x9000, scoped, tag = 'internal scratch']
  %s0 = inlined_call_operand.vmem [shape: bf16[512,256], index: 0, kind: input, shape index: {}]
  %s1 = inlined_call_operand.vmem [shape: bf16[256,128], index: 1, kind: input, shape index: {}]
  %s2 = inlined_call_operand.vmem [shape: f32[1,128], index: 2, kind: input, shape index: {}]
  %s3 = inlined_call_operand.vmem [shape: f32[1,128], index: 3, kind: input, shape index: {}]
  %s4 = inlined_call_operand.vmem [shape: bf16[512,128], index: 4, kind: output, shape index: {}]
  %s5 = sld [smem:[#allocation0]]
  $region26: #{_lambda_.7} parent=0
    _
  %s7 = ssub.s32 1, %s5
  %s8 = scalar_select 0, %s7, %s5
  // Predicated region
  $region2: #{_lambda_.7} parent=0 // pred_check
    _
  $region3: #{_lambda_.7} parent=0 // pred_check_branch
    %10 = sbr.rel (0) target = $region5
  $region4: #{_lambda_.7} parent=0 // pred_region
    _
  $region5: #{_lambda_.7} parent=0 // pred_fallthru
    _
  // Predicated region
  $region6: #{_lambda_.7} parent=0 // pred_check
    _
  $region7: #{_lambda_.7} parent=0 // pred_check_branch
    %12 = sbr.rel (0) target = $region9
  $region8: #{_lambda_.7} parent=0 // pred_region
    _
  $region9: #{_lambda_.7} parent=0 // pred_fallthru
    _
  // Predicated region
  $region10: #{_lambda_.7} parent=0 // pred_check
    _
  $region11: #{_lambda_.7} parent=0 // pred_check_branch
    %14 = sbr.rel (0) target = $region13
  $region12: #{_lambda_.7} parent=0 // pred_region
    _
  $region13: #{_lambda_.7} parent=0 // pred_fallthru
    _
  // Predicated region
  $region14: #{_lambda_.7} parent=0 // pred_check
    _
  $region15: #{_lambda_.7} parent=0 // pred_check_branch
    %16 = sbr.rel (0) target = $region17
  $region16: #{_lambda_.7} parent=0 // pred_region
    _
  $region17: #{_lambda_.7} parent=0 // pred_fallthru
    _
  %v17 = vld [vmem:[%s0] sm:$0xff]
  %v18 = vld [vmem:[%s0 + $0x8] sm:$0xff]
  %v19 = vld [vmem:[%s0 + $0x10] sm:$0xff]
  %v20 = vld [vmem:[%s0 + $0x18] sm:$0xff]
  %v21 = vld [vmem:[%s0 + $0x20] sm:$0xff]
  %v22 = vld [vmem:[%s0 + $0x28] sm:$0xff]
  %v23 = vld [vmem:[%s0 + $0x30] sm:$0xff]
  %v24 = vld [vmem:[%s0 + $0x38] sm:$0xff]
  %v25 = vld [vmem:[%s0 + $0x40] sm:$0xff]
  %v26 = vld [vmem:[%s0 + $0x48] sm:$0xff]
  %v27 = vld [vmem:[%s0 + $0x50] sm:$0xff]
  %v28 = vld [vmem:[%s0 + $0x58] sm:$0xff]
  %v29 = vld [vmem:[%s0 + $0x60] sm:$0xff]
  %v30 = vld [vmem:[%s0 + $0x68] sm:$0xff]
  %v31 = vld [vmem:[%s0 + $0x70] sm:$0xff]
  %v32 = vld [vmem:[%s0 + $0x78] sm:$0xff]
  %v33 = vld [vmem:[%s0 + $0x80] sm:$0xff]
  %v34 = vld [vmem:[%s0 + $0x88] sm:$0xff]
  %v35 = vld [vmem:[%s0 + $0x90] sm:$0xff]
  %v36 = vld [vmem:[%s0 + $0x98] sm:$0xff]
  %v37 = vld [vmem:[%s0 + $0xa0] sm:$0xff]
  %v38 = vld [vmem:[%s0 + $0xa8] sm:$0xff]
  %v39 = vld [vmem:[%s0 + $0xb0] sm:$0xff]
  %v40 = vld [vmem:[%s0 + $0xb8] sm:$0xff]
  %v41 = vld [vmem:[%s0 + $0xc0] sm:$0xff]
  %v42 = vld [vmem:[%s0 + $0xc8] sm:$0xff]
  %v43 = vld [vmem:[%s0 + $0xd0] sm:$0xff]
  %v44 = vld [vmem:[%s0 + $0xd8] sm:$0xff]
  %v45 = vld [vmem:[%s0 + $0xe0] sm:$0xff]
  %v46 = vld [vmem:[%s0 + $0xe8] sm:$0xff]
  %v47 = vld [vmem:[%s0 + $0xf0] sm:$0xff]
  %v48 = vld [vmem:[%s0 + $0xf8] sm:$0xff]
  %v49 = vld [vmem:[%s0 + $0x100] sm:$0xff]
  %v50 = vld [vmem:[%s0 + $0x108] sm:$0xff]
  %v51 = vld [vmem:[%s0 + $0x110] sm:$0xff]
  %v52 = vld [vmem:[%s0 + $0x118] sm:$0xff]
  %v53 = vld [vmem:[%s0 + $0x120] sm:$0xff]
  %v54 = vld [vmem:[%s0 + $0x128] sm:$0xff]
  %v55 = vld [vmem:[%s0 + $0x130] sm:$0xff]
  %v56 = vld [vmem:[%s0 + $0x138] sm:$0xff]
  %v57 = vld [vmem:[%s0 + $0x140] sm:$0xff]
  %v58 = vld [vmem:[%s0 + $0x148] sm:$0xff]
  %v59 = vld [vmem:[%s0 + $0x150] sm:$0xff]
  %v60 = vld [vmem:[%s0 + $0x158] sm:$0xff]
  %v61 = vld [vmem:[%s0 + $0x160] sm:$0xff]
  %v62 = vld [vmem:[%s0 + $0x168] sm:$0xff]
  %v63 = vld [vmem:[%s0 + $0x170] sm:$0xff]
  %v64 = vld [vmem:[%s0 + $0x178] sm:$0xff]
  %v65 = vld [vmem:[%s0 + $0x180] sm:$0xff]
  %v66 = vld [vmem:[%s0 + $0x188] sm:$0xff]
  %v67 = vld [vmem:[%s0 + $0x190] sm:$0xff]
  %v68 = vld [vmem:[%s0 + $0x198] sm:$0xff]
  %v69 = vld [vmem:[%s0 + $0x1a0] sm:$0xff]
  %v70 = vld [vmem:[%s0 + $0x1a8] sm:$0xff]
  %v71 = vld [vmem:[%s0 + $0x1b0] sm:$0xff]
  %v72 = vld [vmem:[%s0 + $0x1b8] sm:$0xff]
  %v73 = vld [vmem:[%s0 + $0x1c0] sm:$0xff]
  %v74 = vld [vmem:[%s0 + $0x1c8] sm:$0xff]
  %v75 = vld [vmem:[%s0 + $0x1d0] sm:$0xff]
  %v76 = vld [vmem:[%s0 + $0x1d8] sm:$0xff]
  %v77 = vld [vmem:[%s0 + $0x1e0] sm:$0xff]
  %v78 = vld [vmem:[%s0 + $0x1e8] sm:$0xff]
  %v79 = vld [vmem:[%s0 + $0x1f0] sm:$0xff]
  %v80 = vld [vmem:[%s0 + $0x1f8] sm:$0xff]
  %v81 = vld [vmem:[%s1] sm:$0xf]
  %v82 = vld [vmem:[%s1 + $0x4] sm:$0xf]
  %v83 = vld [vmem:[%s1 + $0x8] sm:$0xf]
  %v84 = vld [vmem:[%s1 + $0xc] sm:$0xf]
  %v85 = vld [vmem:[%s1 + $0x10] sm:$0xf]
  %v86 = vld [vmem:[%s1 + $0x14] sm:$0xf]
  %v87 = vld [vmem:[%s1 + $0x18] sm:$0xf]
  %v88 = vld [vmem:[%s1 + $0x1c] sm:$0xf]
  %v89 = vld [vmem:[%s1 + $0x20] sm:$0xf]
  %v90 = vld [vmem:[%s1 + $0x24] sm:$0xf]
  %v91 = vld [vmem:[%s1 + $0x28] sm:$0xf]
  %v92 = vld [vmem:[%s1 + $0x2c] sm:$0xf]
  %v93 = vld [vmem:[%s1 + $0x30] sm:$0xf]
  %v94 = vld [vmem:[%s1 + $0x34] sm:$0xf]
  %v95 = vld [vmem:[%s1 + $0x38] sm:$0xf]
  %v96 = vld [vmem:[%s1 + $0x3c] sm:$0xf]
  %v97 = vld [vmem:[%s1 + $0x40] sm:$0xf]
  %v98 = vld [vmem:[%s1 + $0x44] sm:$0xf]
  %v99 = vld [vmem:[%s1 + $0x48] sm:$0xf]
  %v100 = vld [vmem:[%s1 + $0x4c] sm:$0xf]
  %v101 = vld [vmem:[%s1 + $0x50] sm:$0xf]
  %v102 = vld [vmem:[%s1 + $0x54] sm:$0xf]
  %v103 = vld [vmem:[%s1 + $0x58] sm:$0xf]
  %v104 = vld [vmem:[%s1 + $0x5c] sm:$0xf]
  %v105 = vld [vmem:[%s1 + $0x60] sm:$0xf]
  %v106 = vld [vmem:[%s1 + $0x64] sm:$0xf]
  %v107 = vld [vmem:[%s1 + $0x68] sm:$0xf]
  %v108 = vld [vmem:[%s1 + $0x6c] sm:$0xf]
  %v109 = vld [vmem:[%s1 + $0x70] sm:$0xf]
  %v110 = vld [vmem:[%s1 + $0x74] sm:$0xf]
  %v111 = vld [vmem:[%s1 + $0x78] sm:$0xf]
  %v112 = vld [vmem:[%s1 + $0x7c] sm:$0xf]
  %v177 = vunpack.c.l.b16 %v17
  %v178 = vunpack.c.h.b16 %v17
  %v179 = vunpack.c.l.b16 %v18
  %v180 = vunpack.c.h.b16 %v18
  %v181 = vunpack.c.l.b16 %v19
  %v182 = vunpack.c.h.b16 %v19
  %v183 = vunpack.c.l.b16 %v20
  %v184 = vunpack.c.h.b16 %v20
  %v185 = vunpack.c.l.b16 %v21
  %v186 = vunpack.c.h.b16 %v21
  %v187 = vunpack.c.l.b16 %v22
  %v188 = vunpack.c.h.b16 %v22
  %v189 = vunpack.c.l.b16 %v23
  %v190 = vunpack.c.h.b16 %v23
  %v191 = vunpack.c.l.b16 %v24
  %v192 = vunpack.c.h.b16 %v24
  %v193 = vunpack.c.l.b16 %v25
  %v194 = vunpack.c.h.b16 %v25
  %v195 = vunpack.c.l.b16 %v26
  %v196 = vunpack.c.h.b16 %v26
  %v197 = vunpack.c.l.b16 %v27
  %v198 = vunpack.c.h.b16 %v27
  %v199 = vunpack.c.l.b16 %v28
  %v200 = vunpack.c.h.b16 %v28
  %v201 = vunpack.c.l.b16 %v29
  %v202 = vunpack.c.h.b16 %v29
  %v203 = vunpack.c.l.b16 %v30
  %v204 = vunpack.c.h.b16 %v30
  %v205 = vunpack.c.l.b16 %v31
  %v206 = vunpack.c.h.b16 %v31
  %v207 = vunpack.c.l.b16 %v32
  %v208 = vunpack.c.h.b16 %v32
  %v209 = vunpack.c.l.b16 %v33
  %v210 = vunpack.c.h.b16 %v33
  %v211 = vunpack.c.l.b16 %v34
  %v212 = vunpack.c.h.b16 %v34
  %v213 = vunpack.c.l.b16 %v35
  %v214 = vunpack.c.h.b16 %v35
  %v215 = vunpack.c.l.b16 %v36
  %v216 = vunpack.c.h.b16 %v36
  %v217 = vunpack.c.l.b16 %v37
  %v218 = vunpack.c.h.b16 %v37
  %v219 = vunpack.c.l.b16 %v38
  %v220 = vunpack.c.h.b16 %v38
  %v221 = vunpack.c.l.b16 %v39
  %v222 = vunpack.c.h.b16 %v39
  %v223 = vunpack.c.l.b16 %v40
  %v224 = vunpack.c.h.b16 %v40
  %v225 = vunpack.c.l.b16 %v41
  %v226 = vunpack.c.h.b16 %v41
  %v227 = vunpack.c.l.b16 %v42
  %v228 = vunpack.c.h.b16 %v42
  %v229 = vunpack.c.l.b16 %v43
  %v230 = vunpack.c.h.b16 %v43
  %v231 = vunpack.c.l.b16 %v44
  %v232 = vunpack.c.h.b16 %v44
  %v233 = vunpack.c.l.b16 %v45
  %v234 = vunpack.c.h.b16 %v45
  %v235 = vunpack.c.l.b16 %v46
  %v236 = vunpack.c.h.b16 %v46
  %v237 = vunpack.c.l.b16 %v47
  %v238 = vunpack.c.h.b16 %v47
  %v239 = vunpack.c.l.b16 %v48
  %v240 = vunpack.c.h.b16 %v48
  %v241 = vunpack.c.l.b16 %v49
  %v242 = vunpack.c.h.b16 %v49
  %v243 = vunpack.c.l.b16 %v50
  %v244 = vunpack.c.h.b16 %v50
  %v245 = vunpack.c.l.b16 %v51
  %v246 = vunpack.c.h.b16 %v51
  %v247 = vunpack.c.l.b16 %v52
  %v248 = vunpack.c.h.b16 %v52
  %v249 = vunpack.c.l.b16 %v53
  %v250 = vunpack.c.h.b16 %v53
  %v251 = vunpack.c.l.b16 %v54
  %v252 = vunpack.c.h.b16 %v54
  %v253 = vunpack.c.l.b16 %v55
  %v254 = vunpack.c.h.b16 %v55
  %v255 = vunpack.c.l.b16 %v56
  %v256 = vunpack.c.h.b16 %v56
  %v257 = vunpack.c.l.b16 %v57
  %v258 = vunpack.c.h.b16 %v57
  %v259 = vunpack.c.l.b16 %v58
  %v260 = vunpack.c.h.b16 %v58
  %v261 = vunpack.c.l.b16 %v59
  %v262 = vunpack.c.h.b16 %v59
  %v263 = vunpack.c.l.b16 %v60
  %v264 = vunpack.c.h.b16 %v60
  %v265 = vunpack.c.l.b16 %v61
  %v266 = vunpack.c.h.b16 %v61
  %v267 = vunpack.c.l.b16 %v62
  %v268 = vunpack.c.h.b16 %v62
  %v269 = vunpack.c.l.b16 %v63
  %v270 = vunpack.c.h.b16 %v63
  %v271 = vunpack.c.l.b16 %v64
  %v272 = vunpack.c.h.b16 %v64
  %v273 = vunpack.c.l.b16 %v65
  %v274 = vunpack.c.h.b16 %v65
  %v275 = vunpack.c.l.b16 %v66
  %v276 = vunpack.c.h.b16 %v66
  %v277 = vunpack.c.l.b16 %v67
  %v278 = vunpack.c.h.b16 %v67
  %v279 = vunpack.c.l.b16 %v68
  %v280 = vunpack.c.h.b16 %v68
  %v281 = vunpack.c.l.b16 %v69
  %v282 = vunpack.c.h.b16 %v69
  %v283 = vunpack.c.l.b16 %v70
  %v284 = vunpack.c.h.b16 %v70
  %v285 = vunpack.c.l.b16 %v71
  %v286 = vunpack.c.h.b16 %v71
  %v287 = vunpack.c.l.b16 %v72
  %v288 = vunpack.c.h.b16 %v72
  %v289 = vunpack.c.l.b16 %v73
  %v290 = vunpack.c.h.b16 %v73
  %v291 = vunpack.c.l.b16 %v74
  %v292 = vunpack.c.h.b16 %v74
  %v293 = vunpack.c.l.b16 %v75
  %v294 = vunpack.c.h.b16 %v75
  %v295 = vunpack.c.l.b16 %v76
  %v296 = vunpack.c.h.b16 %v76
  %v297 = vunpack.c.l.b16 %v77
  %v298 = vunpack.c.h.b16 %v77
  %v299 = vunpack.c.l.b16 %v78
  %v300 = vunpack.c.h.b16 %v78
  %v301 = vunpack.c.l.b16 %v79
  %v302 = vunpack.c.h.b16 %v79
  %v303 = vunpack.c.l.b16 %v80
  %v304 = vunpack.c.h.b16 %v80
  %v305 = vpack.c.b16 %v179, %v177
  %v306 = vpack.c.b16 %v180, %v178
  %v307 = vpack.c.b16 %v183, %v181
  %v308 = vpack.c.b16 %v184, %v182
  %v309 = vpack.c.b16 %v187, %v185
  %v310 = vpack.c.b16 %v188, %v186
  %v311 = vpack.c.b16 %v191, %v189
  %v312 = vpack.c.b16 %v192, %v190
  %v313 = vpack.c.b16 %v195, %v193
  %v314 = vpack.c.b16 %v196, %v194
  %v315 = vpack.c.b16 %v199, %v197
  %v316 = vpack.c.b16 %v200, %v198
  %v317 = vpack.c.b16 %v203, %v201
  %v318 = vpack.c.b16 %v204, %v202
  %v319 = vpack.c.b16 %v207, %v205
  %v320 = vpack.c.b16 %v208, %v206
  %v321 = vpack.c.b16 %v211, %v209
  %v322 = vpack.c.b16 %v212, %v210
  %v323 = vpack.c.b16 %v215, %v213
  %v324 = vpack.c.b16 %v216, %v214
  %v325 = vpack.c.b16 %v219, %v217
  %v326 = vpack.c.b16 %v220, %v218
  %v327 = vpack.c.b16 %v223, %v221
  %v328 = vpack.c.b16 %v224, %v222
  %v329 = vpack.c.b16 %v227, %v225
  %v330 = vpack.c.b16 %v228, %v226
  %v331 = vpack.c.b16 %v231, %v229
  %v332 = vpack.c.b16 %v232, %v230
  %v333 = vpack.c.b16 %v235, %v233
  %v334 = vpack.c.b16 %v236, %v234
  %v335 = vpack.c.b16 %v239, %v237
  %v336 = vpack.c.b16 %v240, %v238
  %v337 = vpack.c.b16 %v243, %v241
  %v338 = vpack.c.b16 %v244, %v242
  %v339 = vpack.c.b16 %v247, %v245
  %v340 = vpack.c.b16 %v248, %v246
  %v341 = vpack.c.b16 %v251, %v249
  %v342 = vpack.c.b16 %v252, %v250
  %v343 = vpack.c.b16 %v255, %v253
  %v344 = vpack.c.b16 %v256, %v254
  %v345 = vpack.c.b16 %v259, %v257
  %v346 = vpack.c.b16 %v260, %v258
  %v347 = vpack.c.b16 %v263, %v261
  %v348 = vpack.c.b16 %v264, %v262
  %v349 = vpack.c.b16 %v267, %v265
  %v350 = vpack.c.b16 %v268, %v266
  %v351 = vpack.c.b16 %v271, %v269
  %v352 = vpack.c.b16 %v272, %v270
  %v353 = vpack.c.b16 %v275, %v273
  %v354 = vpack.c.b16 %v276, %v274
  %v355 = vpack.c.b16 %v279, %v277
  %v356 = vpack.c.b16 %v280, %v278
  %v357 = vpack.c.b16 %v283, %v281
  %v358 = vpack.c.b16 %v284, %v282
  %v359 = vpack.c.b16 %v287, %v285
  %v360 = vpack.c.b16 %v288, %v286
  %v361 = vpack.c.b16 %v291, %v289
  %v362 = vpack.c.b16 %v292, %v290
  %v363 = vpack.c.b16 %v295, %v293
  %v364 = vpack.c.b16 %v296, %v294
  %v365 = vpack.c.b16 %v299, %v297
  %v366 = vpack.c.b16 %v300, %v298
  %v367 = vpack.c.b16 %v303, %v301
  %v368 = vpack.c.b16 %v304, %v302
  %v465 = vunpack.c.l.b16 %v81
  %v466 = vunpack.c.l.b16 %v82
  %v467 = vunpack.c.l.b16 %v83
  %v468 = vunpack.c.l.b16 %v84
  %v469 = vunpack.c.l.b16 %v85
  %v470 = vunpack.c.l.b16 %v86
  %v471 = vunpack.c.l.b16 %v87
  %v472 = vunpack.c.l.b16 %v88
  %v473 = vunpack.c.l.b16 %v89
  %v474 = vunpack.c.l.b16 %v90
  %v475 = vunpack.c.l.b16 %v91
  %v476 = vunpack.c.l.b16 %v92
  %v477 = vunpack.c.l.b16 %v93
  %v478 = vunpack.c.l.b16 %v94
  %v479 = vunpack.c.l.b16 %v95
  %v480 = vunpack.c.l.b16 %v96
  %v481 = vunpack.c.l.b16 %v97
  %v482 = vunpack.c.l.b16 %v98
  %v483 = vunpack.c.l.b16 %v99
  %v484 = vunpack.c.l.b16 %v100
  %v485 = vunpack.c.l.b16 %v101
  %v486 = vunpack.c.l.b16 %v102
  %v487 = vunpack.c.l.b16 %v103
  %v488 = vunpack.c.l.b16 %v104
  %v489 = vunpack.c.l.b16 %v105
  %v490 = vunpack.c.l.b16 %v106
  %v491 = vunpack.c.l.b16 %v107
  %v492 = vunpack.c.l.b16 %v108
  %v493 = vunpack.c.l.b16 %v109
  %v494 = vunpack.c.l.b16 %v110
  %v495 = vunpack.c.l.b16 %v111
  %v496 = vunpack.c.l.b16 %v112
  %v497 = vpack.c.b16 %v466, %v465
  %v498 = vpack.c.b16 %v468, %v467
  %v499 = vpack.c.b16 %v470, %v469
  %v500 = vpack.c.b16 %v472, %v471
  %v501 = vpack.c.b16 %v474, %v473
  %v502 = vpack.c.b16 %v476, %v475
  %v503 = vpack.c.b16 %v478, %v477
  %v504 = vpack.c.b16 %v480, %v479
  %v505 = vpack.c.b16 %v482, %v481
  %v506 = vpack.c.b16 %v484, %v483
  %v507 = vpack.c.b16 %v486, %v485
  %v508 = vpack.c.b16 %v488, %v487
  %v509 = vpack.c.b16 %v490, %v489
  %v510 = vpack.c.b16 %v492, %v491
  %v511 = vpack.c.b16 %v494, %v493
  %v512 = vpack.c.b16 %v496, %v495
  %529 = vmatpush.bf16.msra.mxu0 %v504
  %530 = vmatpush.bf16.msra.mxu0 %v503
  %531 = vmatpush.bf16.msra.mxu0 %v502
  %532 = vmatpush.bf16.msra.mxu0 %v501
  %533 = vmatpush.bf16.msra.mxu0 %v500
  %534 = vmatpush.bf16.msra.mxu0 %v499
  %535 = vmatpush.bf16.msra.mxu0 %v498
  %536 = vmatpush.bf16.msra.mxu0 %v497
  %537 = vmatmul.bf16.gmra.mxu0 %v305
  %v538 = vpop.f32.mrf.mxu0
  %v539 = vadd.f32 0.0, %v538
  %v540 = vpop.f32.mrf.mxu0
  %v541 = vadd.f32 0.0, %v540
  %542 = vmatmul.bf16.gmra.mxu0 %v307
  %v543 = vpop.f32.mrf.mxu0
  %v544 = vadd.f32 0.0, %v543
  %v545 = vpop.f32.mrf.mxu0
  %v546 = vadd.f32 0.0, %v545
  %547 = vmatmul.bf16.gmra.mxu0 %v309
  %v548 = vpop.f32.mrf.mxu0
  %v549 = vadd.f32 0.0, %v548
  %v550 = vpop.f32.mrf.mxu0
  %v551 = vadd.f32 0.0, %v550
  %552 = vmatmul.bf16.gmra.mxu0 %v311
  %v553 = vpop.f32.mrf.mxu0
  %v554 = vadd.f32 0.0, %v553
  %v555 = vpop.f32.mrf.mxu0
  %v556 = vadd.f32 0.0, %v555
  %557 = vmatmul.bf16.gmra.mxu0 %v313
  %v558 = vpop.f32.mrf.mxu0
  %v559 = vadd.f32 0.0, %v558
  %v560 = vpop.f32.mrf.mxu0
  %v561 = vadd.f32 0.0, %v560
  %562 = vmatmul.bf16.gmra.mxu0 %v315
  %v563 = vpop.f32.mrf.mxu0
  %v564 = vadd.f32 0.0, %v563
  %v565 = vpop.f32.mrf.mxu0
  %v566 = vadd.f32 0.0, %v565
  %567 = vmatmul.bf16.gmra.mxu0 %v317
  %v568 = vpop.f32.mrf.mxu0
  %v569 = vadd.f32 0.0, %v568
  %v570 = vpop.f32.mrf.mxu0
  %v571 = vadd.f32 0.0, %v570
  %572 = vmatmul.bf16.gmra.mxu0 %v319
  %v573 = vpop.f32.mrf.mxu0
  %v574 = vadd.f32 0.0, %v573
  %v575 = vpop.f32.mrf.mxu0
  %v576 = vadd.f32 0.0, %v575
  %577 = vmatmul.bf16.gmra.mxu0 %v321
  %v578 = vpop.f32.mrf.mxu0
  %v579 = vadd.f32 0.0, %v578
  %v580 = vpop.f32.mrf.mxu0
  %v581 = vadd.f32 0.0, %v580
  %582 = vmatmul.bf16.gmra.mxu0 %v323
  %v583 = vpop.f32.mrf.mxu0
  %v584 = vadd.f32 0.0, %v583
  %v585 = vpop.f32.mrf.mxu0
  %v586 = vadd.f32 0.0, %v585
  %587 = vmatmul.bf16.gmra.mxu0 %v325
  %v588 = vpop.f32.mrf.mxu0
  %v589 = vadd.f32 0.0, %v588
  %v590 = vpop.f32.mrf.mxu0
  %v591 = vadd.f32 0.0, %v590
  %592 = vmatmul.bf16.gmra.mxu0 %v327
  %v593 = vpop.f32.mrf.mxu0
  %v594 = vadd.f32 0.0, %v593
  %v595 = vpop.f32.mrf.mxu0
  %v596 = vadd.f32 0.0, %v595
  %597 = vmatmul.bf16.gmra.mxu0 %v329
  %v598 = vpop.f32.mrf.mxu0
  %v599 = vadd.f32 0.0, %v598
  %v600 = vpop.f32.mrf.mxu0
  %v601 = vadd.f32 0.0, %v600
  %602 = vmatmul.bf16.gmra.mxu0 %v331
  %v603 = vpop.f32.mrf.mxu0
  %v604 = vadd.f32 0.0, %v603
  %v605 = vpop.f32.mrf.mxu0
  %v606 = vadd.f32 0.0, %v605
  %607 = vmatmul.bf16.gmra.mxu0 %v333
  %v608 = vpop.f32.mrf.mxu0
  %v609 = vadd.f32 0.0, %v608
  %v610 = vpop.f32.mrf.mxu0
  %v611 = vadd.f32 0.0, %v610
  %612 = vmatmul.bf16.gmra.mxu0 %v335
  %v613 = vpop.f32.mrf.mxu0
  %v614 = vadd.f32 0.0, %v613
  %v615 = vpop.f32.mrf.mxu0
  %v616 = vadd.f32 0.0, %v615
  %617 = vmatmul.bf16.gmra.mxu0 %v337
  %v618 = vpop.f32.mrf.mxu0
  %v619 = vadd.f32 0.0, %v618
  %v620 = vpop.f32.mrf.mxu0
  %v621 = vadd.f32 0.0, %v620
  %622 = vmatmul.bf16.gmra.mxu0 %v339
  %v623 = vpop.f32.mrf.mxu0
  %v624 = vadd.f32 0.0, %v623
  %v625 = vpop.f32.mrf.mxu0
  %v626 = vadd.f32 0.0, %v625
  %627 = vmatmul.bf16.gmra.mxu0 %v341
  %v628 = vpop.f32.mrf.mxu0
  %v629 = vadd.f32 0.0, %v628
  %v630 = vpop.f32.mrf.mxu0
  %v631 = vadd.f32 0.0, %v630
  %632 = vmatmul.bf16.gmra.mxu0 %v343
  %v633 = vpop.f32.mrf.mxu0
  %v634 = vadd.f32 0.0, %v633
  %v635 = vpop.f32.mrf.mxu0
  %v636 = vadd.f32 0.0, %v635
  %637 = vmatmul.bf16.gmra.mxu0 %v345
  %v638 = vpop.f32.mrf.mxu0
  %v639 = vadd.f32 0.0, %v638
  %v640 = vpop.f32.mrf.mxu0
  %v641 = vadd.f32 0.0, %v640
  %642 = vmatmul.bf16.gmra.mxu0 %v347
  %v643 = vpop.f32.mrf.mxu0
  %v644 = vadd.f32 0.0, %v643
  %v645 = vpop.f32.mrf.mxu0
  %v646 = vadd.f32 0.0, %v645
  %647 = vmatmul.bf16.gmra.mxu0 %v349
  %v648 = vpop.f32.mrf.mxu0
  %v649 = vadd.f32 0.0, %v648
  %v650 = vpop.f32.mrf.mxu0
  %v651 = vadd.f32 0.0, %v650
  %652 = vmatmul.bf16.gmra.mxu0 %v351
  %v653 = vpop.f32.mrf.mxu0
  %v654 = vadd.f32 0.0, %v653
  %v655 = vpop.f32.mrf.mxu0
  %v656 = vadd.f32 0.0, %v655
  %657 = vmatmul.bf16.gmra.mxu0 %v353
  %v658 = vpop.f32.mrf.mxu0
  %v659 = vadd.f32 0.0, %v658
  %v660 = vpop.f32.mrf.mxu0
  %v661 = vadd.f32 0.0, %v660
  %662 = vmatmul.bf16.gmra.mxu0 %v355
  %v663 = vpop.f32.mrf.mxu0
  %v664 = vadd.f32 0.0, %v663
  %v665 = vpop.f32.mrf.mxu0
  %v666 = vadd.f32 0.0, %v665
  %667 = vmatmul.bf16.gmra.mxu0 %v357
  %v668 = vpop.f32.mrf.mxu0
  %v669 = vadd.f32 0.0, %v668
  %v670 = vpop.f32.mrf.mxu0
  %v671 = vadd.f32 0.0, %v670
  %672 = vmatmul.bf16.gmra.mxu0 %v359
  %v673 = vpop.f32.mrf.mxu0
  %v674 = vadd.f32 0.0, %v673
  %v675 = vpop.f32.mrf.mxu0
  %v676 = vadd.f32 0.0, %v675
  %677 = vmatmul.bf16.gmra.mxu0 %v361
  %v678 = vpop.f32.mrf.mxu0
  %v679 = vadd.f32 0.0, %v678
  %v680 = vpop.f32.mrf.mxu0
  %v681 = vadd.f32 0.0, %v680
  %682 = vmatmul.bf16.gmra.mxu0 %v363
  %v683 = vpop.f32.mrf.mxu0
  %v684 = vadd.f32 0.0, %v683
  %v685 = vpop.f32.mrf.mxu0
  %v686 = vadd.f32 0.0, %v685
  %687 = vmatmul.bf16.gmra.mxu0 %v365
  %v688 = vpop.f32.mrf.mxu0
  %v689 = vadd.f32 0.0, %v688
  %v690 = vpop.f32.mrf.mxu0
  %v691 = vadd.f32 0.0, %v690
  %692 = vmatmul.bf16.gmra.mxu0 %v367
  %v693 = vpop.f32.mrf.mxu0
  %v694 = vadd.f32 0.0, %v693
  %v695 = vpop.f32.mrf.mxu0
  %v696 = vadd.f32 0.0, %v695
  %697 = vdwg.mxu0
  %698 = vmatpush.bf16.msra.mxu0 %v512
  %699 = vmatpush.bf16.msra.mxu0 %v511
  %700 = vmatpush.bf16.msra.mxu0 %v510
  %701 = vmatpush.bf16.msra.mxu0 %v509
  %702 = vmatpush.bf16.msra.mxu0 %v508
  %703 = vmatpush.bf16.msra.mxu0 %v507
  %704 = vmatpush.bf16.msra.mxu0 %v506
  %705 = vmatpush.bf16.msra.mxu0 %v505
  %706 = vmatmul.bf16.gmra.mxu0 %v306
  %v707 = vpop.f32.mrf.mxu0
  %v708 = vadd.f32 %v539, %v707
  %v709 = vpop.f32.mrf.mxu0
  %v710 = vadd.f32 %v541, %v709
  %711 = vmatmul.bf16.gmra.mxu0 %v308
  %v712 = vpop.f32.mrf.mxu0
  %v713 = vadd.f32 %v544, %v712
  %v714 = vpop.f32.mrf.mxu0
  %v715 = vadd.f32 %v546, %v714
  %716 = vmatmul.bf16.gmra.mxu0 %v310
  %v717 = vpop.f32.mrf.mxu0
  %v718 = vadd.f32 %v549, %v717
  %v719 = vpop.f32.mrf.mxu0
  %v720 = vadd.f32 %v551, %v719
  %721 = vmatmul.bf16.gmra.mxu0 %v312
  %v722 = vpop.f32.mrf.mxu0
  %v723 = vadd.f32 %v554, %v722
  %v724 = vpop.f32.mrf.mxu0
  %v725 = vadd.f32 %v556, %v724
  %726 = vmatmul.bf16.gmra.mxu0 %v314
  %v727 = vpop.f32.mrf.mxu0
  %v728 = vadd.f32 %v559, %v727
  %v729 = vpop.f32.mrf.mxu0
  %v730 = vadd.f32 %v561, %v729
  %731 = vmatmul.bf16.gmra.mxu0 %v316
  %v732 = vpop.f32.mrf.mxu0
  %v733 = vadd.f32 %v564, %v732
  %v734 = vpop.f32.mrf.mxu0
  %v735 = vadd.f32 %v566, %v734
  %736 = vmatmul.bf16.gmra.mxu0 %v318
  %v737 = vpop.f32.mrf.mxu0
  %v738 = vadd.f32 %v569, %v737
  %v739 = vpop.f32.mrf.mxu0
  %v740 = vadd.f32 %v571, %v739
  %741 = vmatmul.bf16.gmra.mxu0 %v320
  %v742 = vpop.f32.mrf.mxu0
  %v743 = vadd.f32 %v574, %v742
  %v744 = vpop.f32.mrf.mxu0
  %v745 = vadd.f32 %v576, %v744
  %746 = vmatmul.bf16.gmra.mxu0 %v322
  %v747 = vpop.f32.mrf.mxu0
  %v748 = vadd.f32 %v579, %v747
  %v749 = vpop.f32.mrf.mxu0
  %v750 = vadd.f32 %v581, %v749
  %751 = vmatmul.bf16.gmra.mxu0 %v324
  %v752 = vpop.f32.mrf.mxu0
  %v753 = vadd.f32 %v584, %v752
  %v754 = vpop.f32.mrf.mxu0
  %v755 = vadd.f32 %v586, %v754
  %756 = vmatmul.bf16.gmra.mxu0 %v326
  %v757 = vpop.f32.mrf.mxu0
  %v758 = vadd.f32 %v589, %v757
  %v759 = vpop.f32.mrf.mxu0
  %v760 = vadd.f32 %v591, %v759
  %761 = vmatmul.bf16.gmra.mxu0 %v328
  %v762 = vpop.f32.mrf.mxu0
  %v763 = vadd.f32 %v594, %v762
  %v764 = vpop.f32.mrf.mxu0
  %v765 = vadd.f32 %v596, %v764
  %766 = vmatmul.bf16.gmra.mxu0 %v330
  %v767 = vpop.f32.mrf.mxu0
  %v768 = vadd.f32 %v599, %v767
  %v769 = vpop.f32.mrf.mxu0
  %v770 = vadd.f32 %v601, %v769
  %771 = vmatmul.bf16.gmra.mxu0 %v332
  %v772 = vpop.f32.mrf.mxu0
  %v773 = vadd.f32 %v604, %v772
  %v774 = vpop.f32.mrf.mxu0
  %v775 = vadd.f32 %v606, %v774
  %776 = vmatmul.bf16.gmra.mxu0 %v334
  %v777 = vpop.f32.mrf.mxu0
  %v778 = vadd.f32 %v609, %v777
  %v779 = vpop.f32.mrf.mxu0
  %v780 = vadd.f32 %v611, %v779
  %781 = vmatmul.bf16.gmra.mxu0 %v336
  %v782 = vpop.f32.mrf.mxu0
  %v783 = vadd.f32 %v614, %v782
  %v784 = vpop.f32.mrf.mxu0
  %v785 = vadd.f32 %v616, %v784
  %786 = vmatmul.bf16.gmra.mxu0 %v338
  %v787 = vpop.f32.mrf.mxu0
  %v788 = vadd.f32 %v619, %v787
  %v789 = vpop.f32.mrf.mxu0
  %v790 = vadd.f32 %v621, %v789
  %791 = vmatmul.bf16.gmra.mxu0 %v340
  %v792 = vpop.f32.mrf.mxu0
  %v793 = vadd.f32 %v624, %v792
  %v794 = vpop.f32.mrf.mxu0
  %v795 = vadd.f32 %v626, %v794
  %796 = vmatmul.bf16.gmra.mxu0 %v342
  %v797 = vpop.f32.mrf.mxu0
  %v798 = vadd.f32 %v629, %v797
  %v799 = vpop.f32.mrf.mxu0
  %v800 = vadd.f32 %v631, %v799
  %801 = vmatmul.bf16.gmra.mxu0 %v344
  %v802 = vpop.f32.mrf.mxu0
  %v803 = vadd.f32 %v634, %v802
  %v804 = vpop.f32.mrf.mxu0
  %v805 = vadd.f32 %v636, %v804
  %806 = vmatmul.bf16.gmra.mxu0 %v346
  %v807 = vpop.f32.mrf.mxu0
  %v808 = vadd.f32 %v639, %v807
  %v809 = vpop.f32.mrf.mxu0
  %v810 = vadd.f32 %v641, %v809
  %811 = vmatmul.bf16.gmra.mxu0 %v348
  %v812 = vpop.f32.mrf.mxu0
  %v813 = vadd.f32 %v644, %v812
  %v814 = vpop.f32.mrf.mxu0
  %v815 = vadd.f32 %v646, %v814
  %816 = vmatmul.bf16.gmra.mxu0 %v350
  %v817 = vpop.f32.mrf.mxu0
  %v818 = vadd.f32 %v649, %v817
  %v819 = vpop.f32.mrf.mxu0
  %v820 = vadd.f32 %v651, %v819
  %821 = vmatmul.bf16.gmra.mxu0 %v352
  %v822 = vpop.f32.mrf.mxu0
  %v823 = vadd.f32 %v654, %v822
  %v824 = vpop.f32.mrf.mxu0
  %v825 = vadd.f32 %v656, %v824
  %826 = vmatmul.bf16.gmra.mxu0 %v354
  %v827 = vpop.f32.mrf.mxu0
  %v828 = vadd.f32 %v659, %v827
  %v829 = vpop.f32.mrf.mxu0
  %v830 = vadd.f32 %v661, %v829
  %831 = vmatmul.bf16.gmra.mxu0 %v356
  %v832 = vpop.f32.mrf.mxu0
  %v833 = vadd.f32 %v664, %v832
  %v834 = vpop.f32.mrf.mxu0
  %v835 = vadd.f32 %v666, %v834
  %836 = vmatmul.bf16.gmra.mxu0 %v358
  %v837 = vpop.f32.mrf.mxu0
  %v838 = vadd.f32 %v669, %v837
  %v839 = vpop.f32.mrf.mxu0
  %v840 = vadd.f32 %v671, %v839
  %841 = vmatmul.bf16.gmra.mxu0 %v360
  %v842 = vpop.f32.mrf.mxu0
  %v843 = vadd.f32 %v674, %v842
  %v844 = vpop.f32.mrf.mxu0
  %v845 = vadd.f32 %v676, %v844
  %846 = vmatmul.bf16.gmra.mxu0 %v362
  %v847 = vpop.f32.mrf.mxu0
  %v848 = vadd.f32 %v679, %v847
  %v849 = vpop.f32.mrf.mxu0
  %v850 = vadd.f32 %v681, %v849
  %851 = vmatmul.bf16.gmra.mxu0 %v364
  %v852 = vpop.f32.mrf.mxu0
  %v853 = vadd.f32 %v684, %v852
  %v854 = vpop.f32.mrf.mxu0
  %v855 = vadd.f32 %v686, %v854
  %856 = vmatmul.bf16.gmra.mxu0 %v366
  %v857 = vpop.f32.mrf.mxu0
  %v858 = vadd.f32 %v689, %v857
  %v859 = vpop.f32.mrf.mxu0
  %v860 = vadd.f32 %v691, %v859
  %861 = vmatmul.bf16.gmra.mxu0 %v368
  %v862 = vpop.f32.mrf.mxu0
  %v863 = vadd.f32 %v694, %v862
  %v864 = vpop.f32.mrf.mxu0
  %v865 = vadd.f32 %v696, %v864
  %866 = vdwg.mxu0
  %v867 = vld [vmem:[%s2] sm:$0x1]
  %v868 = vld [vmem:[%s3] sm:$0x1]
  %v869 = vadd.f32 %v708, %v710
  %v870 = vadd.f32 %v869, %v713
  %v871 = vadd.f32 %v870, %v715
  %v872 = vadd.f32 %v871, %v718
  %v873 = vadd.f32 %v872, %v720
  %v874 = vadd.f32 %v873, %v723
  %v875 = vadd.f32 %v874, %v725
  %v876 = vadd.f32 %v875, %v728
  %v877 = vadd.f32 %v876, %v730
  %v878 = vadd.f32 %v877, %v733
  %v879 = vadd.f32 %v878, %v735
  %v880 = vadd.f32 %v879, %v738
  %v881 = vadd.f32 %v880, %v740
  %v882 = vadd.f32 %v881, %v743
  %v883 = vadd.f32 %v882, %v745
  %v884 = vadd.f32 %v883, %v748
  %v885 = vadd.f32 %v884, %v750
  %v886 = vadd.f32 %v885, %v753
  %v887 = vadd.f32 %v886, %v755
  %v888 = vadd.f32 %v887, %v758
  %v889 = vadd.f32 %v888, %v760
  %v890 = vadd.f32 %v889, %v763
  %v891 = vadd.f32 %v890, %v765
  %v892 = vadd.f32 %v891, %v768
  %v893 = vadd.f32 %v892, %v770
  %v894 = vadd.f32 %v893, %v773
  %v895 = vadd.f32 %v894, %v775
  %v896 = vadd.f32 %v895, %v778
  %v897 = vadd.f32 %v896, %v780
  %v898 = vadd.f32 %v897, %v783
  %v899 = vadd.f32 %v898, %v785
  %v900 = vadd.f32 %v899, %v788
  %v901 = vadd.f32 %v900, %v790
  %v902 = vadd.f32 %v901, %v793
  %v903 = vadd.f32 %v902, %v795
  %v904 = vadd.f32 %v903, %v798
  %v905 = vadd.f32 %v904, %v800
  %v906 = vadd.f32 %v905, %v803
  %v907 = vadd.f32 %v906, %v805
  %v908 = vadd.f32 %v907, %v808
  %v909 = vadd.f32 %v908, %v810
  %v910 = vadd.f32 %v909, %v813
  %v911 = vadd.f32 %v910, %v815
  %v912 = vadd.f32 %v911, %v818
  %v913 = vadd.f32 %v912, %v820
  %v914 = vadd.f32 %v913, %v823
  %v915 = vadd.f32 %v914, %v825
  %v916 = vadd.f32 %v915, %v828
  %v917 = vadd.f32 %v916, %v830
  %v918 = vadd.f32 %v917, %v833
  %v919 = vadd.f32 %v918, %v835
  %v920 = vadd.f32 %v919, %v838
  %v921 = vadd.f32 %v920, %v840
  %v922 = vadd.f32 %v921, %v843
  %v923 = vadd.f32 %v922, %v845
  %v924 = vadd.f32 %v923, %v848
  %v925 = vadd.f32 %v924, %v850
  %v926 = vadd.f32 %v925, %v853
  %v927 = vadd.f32 %v926, %v855
  %v928 = vadd.f32 %v927, %v858
  %v929 = vadd.f32 %v928, %v860
  %v930 = vadd.f32 %v929, %v863
  %v931 = vadd.f32 %v930, %v865
  %v932 = vrot.slane %v931, 4
  %v933 = vadd.f32 %v931, %v932
  %v934 = vrot.slane %v933, 2
  %v935 = vadd.f32 %v933, %v934
  %v936 = vrot.slane %v935, 1
  %v937 = vadd.f32 %v935, %v936
  %v938 = vrcp.pop 512.0
  %v939 = vmul.f32 512.0, %v938
  %v940 = vsub.f32 1.0, %v939
  %v941 = vmul.f32 %v938, %v940
  %v942 = vadd.f32 %v938, %v941
  %vm943 = vweird.f32 %v938
  %v944 = vsel %vm943, %v938, %v942
  %v945 = vmul.f32 %v937, %v944
  %v946 = vmul.f32 %v708, %v708
  %v947 = vmul.f32 %v710, %v710
  %v948 = vmul.f32 %v713, %v713
  %v949 = vmul.f32 %v715, %v715
  %v950 = vmul.f32 %v718, %v718
  %v951 = vmul.f32 %v720, %v720
  %v952 = vmul.f32 %v723, %v723
  %v953 = vmul.f32 %v725, %v725
  %v954 = vmul.f32 %v728, %v728
  %v955 = vmul.f32 %v730, %v730
  %v956 = vmul.f32 %v733, %v733
  %v957 = vmul.f32 %v735, %v735
  %v958 = vmul.f32 %v738, %v738
  %v959 = vmul.f32 %v740, %v740
  %v960 = vmul.f32 %v743, %v743
  %v961 = vmul.f32 %v745, %v745
  %v962 = vmul.f32 %v748, %v748
  %v963 = vmul.f32 %v750, %v750
  %v964 = vmul.f32 %v753, %v753
  %v965 = vmul.f32 %v755, %v755
  %v966 = vmul.f32 %v758, %v758
  %v967 = vmul.f32 %v760, %v760
  %v968 = vmul.f32 %v763, %v763
  %v969 = vmul.f32 %v765, %v765
  %v970 = vmul.f32 %v768, %v768
  %v971 = vmul.f32 %v770, %v770
  %v972 = vmul.f32 %v773, %v773
  %v973 = vmul.f32 %v775, %v775
  %v974 = vmul.f32 %v778, %v778
  %v975 = vmul.f32 %v780, %v780
  %v976 = vmul.f32 %v783, %v783
  %v977 = vmul.f32 %v785, %v785
  %v978 = vmul.f32 %v788, %v788
  %v979 = vmul.f32 %v790, %v790
  %v980 = vmul.f32 %v793, %v793
  %v981 = vmul.f32 %v795, %v795
  %v982 = vmul.f32 %v798, %v798
  %v983 = vmul.f32 %v800, %v800
  %v984 = vmul.f32 %v803, %v803
  %v985 = vmul.f32 %v805, %v805
  %v986 = vmul.f32 %v808, %v808
  %v987 = vmul.f32 %v810, %v810
  %v988 = vmul.f32 %v813, %v813
  %v989 = vmul.f32 %v815, %v815
  %v990 = vmul.f32 %v818, %v818
  %v991 = vmul.f32 %v820, %v820
  %v992 = vmul.f32 %v823, %v823
  %v993 = vmul.f32 %v825, %v825
  %v994 = vmul.f32 %v828, %v828
  %v995 = vmul.f32 %v830, %v830
  %v996 = vmul.f32 %v833, %v833
  %v997 = vmul.f32 %v835, %v835
  %v998 = vmul.f32 %v838, %v838
  %v999 = vmul.f32 %v840, %v840
  %v1000 = vmul.f32 %v843, %v843
  %v1001 = vmul.f32 %v845, %v845
  %v1002 = vmul.f32 %v848, %v848
  %v1003 = vmul.f32 %v850, %v850
  %v1004 = vmul.f32 %v853, %v853
  %v1005 = vmul.f32 %v855, %v855
  %v1006 = vmul.f32 %v858, %v858
  %v1007 = vmul.f32 %v860, %v860
  %v1008 = vmul.f32 %v863, %v863
  %v1009 = vmul.f32 %v865, %v865
  %v1010 = vadd.f32 %v946, %v947
  %v1011 = vadd.f32 %v1010, %v948
  %v1012 = vadd.f32 %v1011, %v949
  %v1013 = vadd.f32 %v1012, %v950
  %v1014 = vadd.f32 %v1013, %v951
  %v1015 = vadd.f32 %v1014, %v952
  %v1016 = vadd.f32 %v1015, %v953
  %v1017 = vadd.f32 %v1016, %v954
  %v1018 = vadd.f32 %v1017, %v955
  %v1019 = vadd.f32 %v1018, %v956
  %v1020 = vadd.f32 %v1019, %v957
  %v1021 = vadd.f32 %v1020, %v958
  %v1022 = vadd.f32 %v1021, %v959
  %v1023 = vadd.f32 %v1022, %v960
  %v1024 = vadd.f32 %v1023, %v961
  %v1025 = vadd.f32 %v1024, %v962
  %v1026 = vadd.f32 %v1025, %v963
  %v1027 = vadd.f32 %v1026, %v964
  %v1028 = vadd.f32 %v1027, %v965
  %v1029 = vadd.f32 %v1028, %v966
  %v1030 = vadd.f32 %v1029, %v967
  %v1031 = vadd.f32 %v1030, %v968
  %v1032 = vadd.f32 %v1031, %v969
  %v1033 = vadd.f32 %v1032, %v970
  %v1034 = vadd.f32 %v1033, %v971
  %v1035 = vadd.f32 %v1034, %v972
  %v1036 = vadd.f32 %v1035, %v973
  %v1037 = vadd.f32 %v1036, %v974
  %v1038 = vadd.f32 %v1037, %v975
  %v1039 = vadd.f32 %v1038, %v976
  %v1040 = vadd.f32 %v1039, %v977
  %v1041 = vadd.f32 %v1040, %v978
  %v1042 = vadd.f32 %v1041, %v979
  %v1043 = vadd.f32 %v1042, %v980
  %v1044 = vadd.f32 %v1043, %v981
  %v1045 = vadd.f32 %v1044, %v982
  %v1046 = vadd.f32 %v1045, %v983
  %v1047 = vadd.f32 %v1046, %v984
  %v1048 = vadd.f32 %v1047, %v985
  %v1049 = vadd.f32 %v1048, %v986
  %v1050 = vadd.f32 %v1049, %v987
  %v1051 = vadd.f32 %v1050, %v988
  %v1052 = vadd.f32 %v1051, %v989
  %v1053 = vadd.f32 %v1052, %v990
  %v1054 = vadd.f32 %v1053, %v991
  %v1055 = vadd.f32 %v1054, %v992
  %v1056 = vadd.f32 %v1055, %v993
  %v1057 = vadd.f32 %v1056, %v994
  %v1058 = vadd.f32 %v1057, %v995
  %v1059 = vadd.f32 %v1058, %v996
  %v1060 = vadd.f32 %v1059, %v997
  %v1061 = vadd.f32 %v1060, %v998
  %v1062 = vadd.f32 %v1061, %v999
  %v1063 = vadd.f32 %v1062, %v1000
  %v1064 = vadd.f32 %v1063, %v1001
  %v1065 = vadd.f32 %v1064, %v1002
  %v1066 = vadd.f32 %v1065, %v1003
  %v1067 = vadd.f32 %v1066, %v1004
  %v1068 = vadd.f32 %v1067, %v1005
  %v1069 = vadd.f32 %v1068, %v1006
  %v1070 = vadd.f32 %v1069, %v1007
  %v1071 = vadd.f32 %v1070, %v1008
  %v1072 = vadd.f32 %v1071, %v1009
  %v1073 = vrot.slane %v1072, 4
  %v1074 = vadd.f32 %v1072, %v1073
  %v1075 = vrot.slane %v1074, 2
  %v1076 = vadd.f32 %v1074, %v1075
  %v1077 = vrot.slane %v1076, 1
  %v1078 = vadd.f32 %v1076, %v1077
  %v1079 = vmul.f32 %v1078, %v944
  %v1080 = vmul.f32 %v945, %v945
  %v1081 = vsub.f32 %v1079, %v1080
  %v1082 = vmax.f32 %v1081, 0.0
  %v1083 = vadd.f32 %v1082, 1e-05
  %v1084 = vrsqrt.pop %v1083
  %v1085 = vmul.f32 %v1084, %v1083
  %v1086 = vmul.f32 %v1085, %v1084
  %v1087 = vmul.f32 0.5, %v1086
  %v1088 = vsub.f32 1.5, %v1087
  %v1089 = vmul.f32 %v1084, %v1088
  %vm1090 = vweird.f32 %v1083
  %vm1091 = vweird.f32 %v1084
  %vm1092 = vmor %vm1090, %vm1091
  %v1093 = vsel %vm1092, %v1084, %v1089
  %v1094 = vmul.f32 %v867, %v1093
  %v1095 = vmul.f32 %v945, %v1094
  %v1096 = vsub.f32 %v868, %v1095
  %v1098 = vperm.slane %v1094, 0
  %v1100 = vmul.f32 %v708, %v1098
  %v1101 = vmul.f32 %v710, %v1098
  %v1102 = vmul.f32 %v713, %v1098
  %v1103 = vmul.f32 %v715, %v1098
  %v1104 = vmul.f32 %v718, %v1098
  %v1105 = vmul.f32 %v720, %v1098
  %v1106 = vmul.f32 %v723, %v1098
  %v1107 = vmul.f32 %v725, %v1098
  %v1108 = vmul.f32 %v728, %v1098
  %v1109 = vmul.f32 %v730, %v1098
  %v1110 = vmul.f32 %v733, %v1098
  %v1111 = vmul.f32 %v735, %v1098
  %v1112 = vmul.f32 %v738, %v1098
  %v1113 = vmul.f32 %v740, %v1098
  %v1114 = vmul.f32 %v743, %v1098
  %v1115 = vmul.f32 %v745, %v1098
  %v1116 = vmul.f32 %v748, %v1098
  %v1117 = vmul.f32 %v750, %v1098
  %v1118 = vmul.f32 %v753, %v1098
  %v1119 = vmul.f32 %v755, %v1098
  %v1120 = vmul.f32 %v758, %v1098
  %v1121 = vmul.f32 %v760, %v1098
  %v1122 = vmul.f32 %v763, %v1098
  %v1123 = vmul.f32 %v765, %v1098
  %v1124 = vmul.f32 %v768, %v1098
  %v1125 = vmul.f32 %v770, %v1098
  %v1126 = vmul.f32 %v773, %v1098
  %v1127 = vmul.f32 %v775, %v1098
  %v1128 = vmul.f32 %v778, %v1098
  %v1129 = vmul.f32 %v780, %v1098
  %v1130 = vmul.f32 %v783, %v1098
  %v1131 = vmul.f32 %v785, %v1098
  %v1132 = vmul.f32 %v788, %v1098
  %v1133 = vmul.f32 %v790, %v1098
  %v1134 = vmul.f32 %v793, %v1098
  %v1135 = vmul.f32 %v795, %v1098
  %v1136 = vmul.f32 %v798, %v1098
  %v1137 = vmul.f32 %v800, %v1098
  %v1138 = vmul.f32 %v803, %v1098
  %v1139 = vmul.f32 %v805, %v1098
  %v1140 = vmul.f32 %v808, %v1098
  %v1141 = vmul.f32 %v810, %v1098
  %v1142 = vmul.f32 %v813, %v1098
  %v1143 = vmul.f32 %v815, %v1098
  %v1144 = vmul.f32 %v818, %v1098
  %v1145 = vmul.f32 %v820, %v1098
  %v1146 = vmul.f32 %v823, %v1098
  %v1147 = vmul.f32 %v825, %v1098
  %v1148 = vmul.f32 %v828, %v1098
  %v1149 = vmul.f32 %v830, %v1098
  %v1150 = vmul.f32 %v833, %v1098
  %v1151 = vmul.f32 %v835, %v1098
  %v1152 = vmul.f32 %v838, %v1098
  %v1153 = vmul.f32 %v840, %v1098
  %v1154 = vmul.f32 %v843, %v1098
  %v1155 = vmul.f32 %v845, %v1098
  %v1156 = vmul.f32 %v848, %v1098
  %v1157 = vmul.f32 %v850, %v1098
  %v1158 = vmul.f32 %v853, %v1098
  %v1159 = vmul.f32 %v855, %v1098
  %v1160 = vmul.f32 %v858, %v1098
  %v1161 = vmul.f32 %v860, %v1098
  %v1162 = vmul.f32 %v863, %v1098
  %v1163 = vmul.f32 %v865, %v1098
  %v1165 = vperm.slane %v1096, 0
  %v1167 = vadd.f32 %v1100, %v1165
  %v1168 = vadd.f32 %v1101, %v1165
  %v1169 = vadd.f32 %v1102, %v1165
  %v1170 = vadd.f32 %v1103, %v1165
  %v1171 = vadd.f32 %v1104, %v1165
  %v1172 = vadd.f32 %v1105, %v1165
  %v1173 = vadd.f32 %v1106, %v1165
  %v1174 = vadd.f32 %v1107, %v1165
  %v1175 = vadd.f32 %v1108, %v1165
  %v1176 = vadd.f32 %v1109, %v1165
  %v1177 = vadd.f32 %v1110, %v1165
  %v1178 = vadd.f32 %v1111, %v1165
  %v1179 = vadd.f32 %v1112, %v1165
  %v1180 = vadd.f32 %v1113, %v1165
  %v1181 = vadd.f32 %v1114, %v1165
  %v1182 = vadd.f32 %v1115, %v1165
  %v1183 = vadd.f32 %v1116, %v1165
  %v1184 = vadd.f32 %v1117, %v1165
  %v1185 = vadd.f32 %v1118, %v1165
  %v1186 = vadd.f32 %v1119, %v1165
  %v1187 = vadd.f32 %v1120, %v1165
  %v1188 = vadd.f32 %v1121, %v1165
  %v1189 = vadd.f32 %v1122, %v1165
  %v1190 = vadd.f32 %v1123, %v1165
  %v1191 = vadd.f32 %v1124, %v1165
  %v1192 = vadd.f32 %v1125, %v1165
  %v1193 = vadd.f32 %v1126, %v1165
  %v1194 = vadd.f32 %v1127, %v1165
  %v1195 = vadd.f32 %v1128, %v1165
  %v1196 = vadd.f32 %v1129, %v1165
  %v1197 = vadd.f32 %v1130, %v1165
  %v1198 = vadd.f32 %v1131, %v1165
  %v1199 = vadd.f32 %v1132, %v1165
  %v1200 = vadd.f32 %v1133, %v1165
  %v1201 = vadd.f32 %v1134, %v1165
  %v1202 = vadd.f32 %v1135, %v1165
  %v1203 = vadd.f32 %v1136, %v1165
  %v1204 = vadd.f32 %v1137, %v1165
  %v1205 = vadd.f32 %v1138, %v1165
  %v1206 = vadd.f32 %v1139, %v1165
  %v1207 = vadd.f32 %v1140, %v1165
  %v1208 = vadd.f32 %v1141, %v1165
  %v1209 = vadd.f32 %v1142, %v1165
  %v1210 = vadd.f32 %v1143, %v1165
  %v1211 = vadd.f32 %v1144, %v1165
  %v1212 = vadd.f32 %v1145, %v1165
  %v1213 = vadd.f32 %v1146, %v1165
  %v1214 = vadd.f32 %v1147, %v1165
  %v1215 = vadd.f32 %v1148, %v1165
  %v1216 = vadd.f32 %v1149, %v1165
  %v1217 = vadd.f32 %v1150, %v1165
  %v1218 = vadd.f32 %v1151, %v1165
  %v1219 = vadd.f32 %v1152, %v1165
  %v1220 = vadd.f32 %v1153, %v1165
  %v1221 = vadd.f32 %v1154, %v1165
  %v1222 = vadd.f32 %v1155, %v1165
  %v1223 = vadd.f32 %v1156, %v1165
  %v1224 = vadd.f32 %v1157, %v1165
  %v1225 = vadd.f32 %v1158, %v1165
  %v1226 = vadd.f32 %v1159, %v1165
  %v1227 = vadd.f32 %v1160, %v1165
  %v1228 = vadd.f32 %v1161, %v1165
  %v1229 = vadd.f32 %v1162, %v1165
  %v1230 = vadd.f32 %v1163, %v1165
  %v1231 = vmul.f32 %v1167, 0.2
  %v1232 = vmul.f32 %v1168, 0.2
  %v1233 = vmul.f32 %v1169, 0.2
  %v1234 = vmul.f32 %v1170, 0.2
  %v1235 = vmul.f32 %v1171, 0.2
  %v1236 = vmul.f32 %v1172, 0.2
  %v1237 = vmul.f32 %v1173, 0.2
  %v1238 = vmul.f32 %v1174, 0.2
  %v1239 = vmul.f32 %v1175, 0.2
  %v1240 = vmul.f32 %v1176, 0.2
  %v1241 = vmul.f32 %v1177, 0.2
  %v1242 = vmul.f32 %v1178, 0.2
  %v1243 = vmul.f32 %v1179, 0.2
  %v1244 = vmul.f32 %v1180, 0.2
  %v1245 = vmul.f32 %v1181, 0.2
  %v1246 = vmul.f32 %v1182, 0.2
  %v1247 = vmul.f32 %v1183, 0.2
  %v1248 = vmul.f32 %v1184, 0.2
  %v1249 = vmul.f32 %v1185, 0.2
  %v1250 = vmul.f32 %v1186, 0.2
  %v1251 = vmul.f32 %v1187, 0.2
  %v1252 = vmul.f32 %v1188, 0.2
  %v1253 = vmul.f32 %v1189, 0.2
  %v1254 = vmul.f32 %v1190, 0.2
  %v1255 = vmul.f32 %v1191, 0.2
  %v1256 = vmul.f32 %v1192, 0.2
  %v1257 = vmul.f32 %v1193, 0.2
  %v1258 = vmul.f32 %v1194, 0.2
  %v1259 = vmul.f32 %v1195, 0.2
  %v1260 = vmul.f32 %v1196, 0.2
  %v1261 = vmul.f32 %v1197, 0.2
  %v1262 = vmul.f32 %v1198, 0.2
  %v1263 = vmul.f32 %v1199, 0.2
  %v1264 = vmul.f32 %v1200, 0.2
  %v1265 = vmul.f32 %v1201, 0.2
  %v1266 = vmul.f32 %v1202, 0.2
  %v1267 = vmul.f32 %v1203, 0.2
  %v1268 = vmul.f32 %v1204, 0.2
  %v1269 = vmul.f32 %v1205, 0.2
  %v1270 = vmul.f32 %v1206, 0.2
  %v1271 = vmul.f32 %v1207, 0.2
  %v1272 = vmul.f32 %v1208, 0.2
  %v1273 = vmul.f32 %v1209, 0.2
  %v1274 = vmul.f32 %v1210, 0.2
  %v1275 = vmul.f32 %v1211, 0.2
  %v1276 = vmul.f32 %v1212, 0.2
  %v1277 = vmul.f32 %v1213, 0.2
  %v1278 = vmul.f32 %v1214, 0.2
  %v1279 = vmul.f32 %v1215, 0.2
  %v1280 = vmul.f32 %v1216, 0.2
  %v1281 = vmul.f32 %v1217, 0.2
  %v1282 = vmul.f32 %v1218, 0.2
  %v1283 = vmul.f32 %v1219, 0.2
  %v1284 = vmul.f32 %v1220, 0.2
  %v1285 = vmul.f32 %v1221, 0.2
  %v1286 = vmul.f32 %v1222, 0.2
  %v1287 = vmul.f32 %v1223, 0.2
  %v1288 = vmul.f32 %v1224, 0.2
  %v1289 = vmul.f32 %v1225, 0.2
  %v1290 = vmul.f32 %v1226, 0.2
  %v1291 = vmul.f32 %v1227, 0.2
  %v1292 = vmul.f32 %v1228, 0.2
  %v1293 = vmul.f32 %v1229, 0.2
  %v1294 = vmul.f32 %v1230, 0.2
  %v1295 = vmax.f32 %v1167, %v1231
  %v1296 = vmax.f32 %v1168, %v1232
  %v1297 = vmax.f32 %v1169, %v1233
  %v1298 = vmax.f32 %v1170, %v1234
  %v1299 = vmax.f32 %v1171, %v1235
  %v1300 = vmax.f32 %v1172, %v1236
  %v1301 = vmax.f32 %v1173, %v1237
  %v1302 = vmax.f32 %v1174, %v1238
  %v1303 = vmax.f32 %v1175, %v1239
  %v1304 = vmax.f32 %v1176, %v1240
  %v1305 = vmax.f32 %v1177, %v1241
  %v1306 = vmax.f32 %v1178, %v1242
  %v1307 = vmax.f32 %v1179, %v1243
  %v1308 = vmax.f32 %v1180, %v1244
  %v1309 = vmax.f32 %v1181, %v1245
  %v1310 = vmax.f32 %v1182, %v1246
  %v1311 = vmax.f32 %v1183, %v1247
  %v1312 = vmax.f32 %v1184, %v1248
  %v1313 = vmax.f32 %v1185, %v1249
  %v1314 = vmax.f32 %v1186, %v1250
  %v1315 = vmax.f32 %v1187, %v1251
  %v1316 = vmax.f32 %v1188, %v1252
  %v1317 = vmax.f32 %v1189, %v1253
  %v1318 = vmax.f32 %v1190, %v1254
  %v1319 = vmax.f32 %v1191, %v1255
  %v1320 = vmax.f32 %v1192, %v1256
  %v1321 = vmax.f32 %v1193, %v1257
  %v1322 = vmax.f32 %v1194, %v1258
  %v1323 = vmax.f32 %v1195, %v1259
  %v1324 = vmax.f32 %v1196, %v1260
  %v1325 = vmax.f32 %v1197, %v1261
  %v1326 = vmax.f32 %v1198, %v1262
  %v1327 = vmax.f32 %v1199, %v1263
  %v1328 = vmax.f32 %v1200, %v1264
  %v1329 = vmax.f32 %v1201, %v1265
  %v1330 = vmax.f32 %v1202, %v1266
  %v1331 = vmax.f32 %v1203, %v1267
  %v1332 = vmax.f32 %v1204, %v1268
  %v1333 = vmax.f32 %v1205, %v1269
  %v1334 = vmax.f32 %v1206, %v1270
  %v1335 = vmax.f32 %v1207, %v1271
  %v1336 = vmax.f32 %v1208, %v1272
  %v1337 = vmax.f32 %v1209, %v1273
  %v1338 = vmax.f32 %v1210, %v1274
  %v1339 = vmax.f32 %v1211, %v1275
  %v1340 = vmax.f32 %v1212, %v1276
  %v1341 = vmax.f32 %v1213, %v1277
  %v1342 = vmax.f32 %v1214, %v1278
  %v1343 = vmax.f32 %v1215, %v1279
  %v1344 = vmax.f32 %v1216, %v1280
  %v1345 = vmax.f32 %v1217, %v1281
  %v1346 = vmax.f32 %v1218, %v1282
  %v1347 = vmax.f32 %v1219, %v1283
  %v1348 = vmax.f32 %v1220, %v1284
  %v1349 = vmax.f32 %v1221, %v1285
  %v1350 = vmax.f32 %v1222, %v1286
  %v1351 = vmax.f32 %v1223, %v1287
  %v1352 = vmax.f32 %v1224, %v1288
  %v1353 = vmax.f32 %v1225, %v1289
  %v1354 = vmax.f32 %v1226, %v1290
  %v1355 = vmax.f32 %v1227, %v1291
  %v1356 = vmax.f32 %v1228, %v1292
  %v1357 = vmax.f32 %v1229, %v1293
  %v1358 = vmax.f32 %v1230, %v1294
  %v1359 = vpack.c.bf16 %v1295, %v1295
  %v1360 = vpack.c.bf16 %v1296, %v1296
  %v1361 = vpack.c.bf16 %v1297, %v1297
  %v1362 = vpack.c.bf16 %v1298, %v1298
  %v1363 = vpack.c.bf16 %v1299, %v1299
  %v1364 = vpack.c.bf16 %v1300, %v1300
  %v1365 = vpack.c.bf16 %v1301, %v1301
  %v1366 = vpack.c.bf16 %v1302, %v1302
  %v1367 = vpack.c.bf16 %v1303, %v1303
  %v1368 = vpack.c.bf16 %v1304, %v1304
  %v1369 = vpack.c.bf16 %v1305, %v1305
  %v1370 = vpack.c.bf16 %v1306, %v1306
  %v1371 = vpack.c.bf16 %v1307, %v1307
  %v1372 = vpack.c.bf16 %v1308, %v1308
  %v1373 = vpack.c.bf16 %v1309, %v1309
  %v1374 = vpack.c.bf16 %v1310, %v1310
  %v1375 = vpack.c.bf16 %v1311, %v1311
  %v1376 = vpack.c.bf16 %v1312, %v1312
  %v1377 = vpack.c.bf16 %v1313, %v1313
  %v1378 = vpack.c.bf16 %v1314, %v1314
  %v1379 = vpack.c.bf16 %v1315, %v1315
  %v1380 = vpack.c.bf16 %v1316, %v1316
  %v1381 = vpack.c.bf16 %v1317, %v1317
  %v1382 = vpack.c.bf16 %v1318, %v1318
  %v1383 = vpack.c.bf16 %v1319, %v1319
  %v1384 = vpack.c.bf16 %v1320, %v1320
  %v1385 = vpack.c.bf16 %v1321, %v1321
  %v1386 = vpack.c.bf16 %v1322, %v1322
  %v1387 = vpack.c.bf16 %v1323, %v1323
  %v1388 = vpack.c.bf16 %v1324, %v1324
  %v1389 = vpack.c.bf16 %v1325, %v1325
  %v1390 = vpack.c.bf16 %v1326, %v1326
  %v1391 = vpack.c.bf16 %v1327, %v1327
  %v1392 = vpack.c.bf16 %v1328, %v1328
  %v1393 = vpack.c.bf16 %v1329, %v1329
  %v1394 = vpack.c.bf16 %v1330, %v1330
  %v1395 = vpack.c.bf16 %v1331, %v1331
  %v1396 = vpack.c.bf16 %v1332, %v1332
  %v1397 = vpack.c.bf16 %v1333, %v1333
  %v1398 = vpack.c.bf16 %v1334, %v1334
  %v1399 = vpack.c.bf16 %v1335, %v1335
  %v1400 = vpack.c.bf16 %v1336, %v1336
  %v1401 = vpack.c.bf16 %v1337, %v1337
  %v1402 = vpack.c.bf16 %v1338, %v1338
  %v1403 = vpack.c.bf16 %v1339, %v1339
  %v1404 = vpack.c.bf16 %v1340, %v1340
  %v1405 = vpack.c.bf16 %v1341, %v1341
  %v1406 = vpack.c.bf16 %v1342, %v1342
  %v1407 = vpack.c.bf16 %v1343, %v1343
  %v1408 = vpack.c.bf16 %v1344, %v1344
  %v1409 = vpack.c.bf16 %v1345, %v1345
  %v1410 = vpack.c.bf16 %v1346, %v1346
  %v1411 = vpack.c.bf16 %v1347, %v1347
  %v1412 = vpack.c.bf16 %v1348, %v1348
  %v1413 = vpack.c.bf16 %v1349, %v1349
  %v1414 = vpack.c.bf16 %v1350, %v1350
  %v1415 = vpack.c.bf16 %v1351, %v1351
  %v1416 = vpack.c.bf16 %v1352, %v1352
  %v1417 = vpack.c.bf16 %v1353, %v1353
  %v1418 = vpack.c.bf16 %v1354, %v1354
  %v1419 = vpack.c.bf16 %v1355, %v1355
  %v1420 = vpack.c.bf16 %v1356, %v1356
  %v1421 = vpack.c.bf16 %v1357, %v1357
  %v1422 = vpack.c.bf16 %v1358, %v1358
  %1423 = vst [vmem:[%s4] sm:$0xf] %v1359
  %1424 = vst [vmem:[%s4 + $0x4] sm:$0xf] %v1360
  %1425 = vst [vmem:[%s4 + $0x8] sm:$0xf] %v1361
  %1426 = vst [vmem:[%s4 + $0xc] sm:$0xf] %v1362
  %1427 = vst [vmem:[%s4 + $0x10] sm:$0xf] %v1363
  %1428 = vst [vmem:[%s4 + $0x14] sm:$0xf] %v1364
  %1429 = vst [vmem:[%s4 + $0x18] sm:$0xf] %v1365
  %1430 = vst [vmem:[%s4 + $0x1c] sm:$0xf] %v1366
  %1431 = vst [vmem:[%s4 + $0x20] sm:$0xf] %v1367
  %1432 = vst [vmem:[%s4 + $0x24] sm:$0xf] %v1368
  %1433 = vst [vmem:[%s4 + $0x28] sm:$0xf] %v1369
  %1434 = vst [vmem:[%s4 + $0x2c] sm:$0xf] %v1370
  %1435 = vst [vmem:[%s4 + $0x30] sm:$0xf] %v1371
  %1436 = vst [vmem:[%s4 + $0x34] sm:$0xf] %v1372
  %1437 = vst [vmem:[%s4 + $0x38] sm:$0xf] %v1373
  %1438 = vst [vmem:[%s4 + $0x3c] sm:$0xf] %v1374
  %1439 = vst [vmem:[%s4 + $0x40] sm:$0xf] %v1375
  %1440 = vst [vmem:[%s4 + $0x44] sm:$0xf] %v1376
  %1441 = vst [vmem:[%s4 + $0x48] sm:$0xf] %v1377
  %1442 = vst [vmem:[%s4 + $0x4c] sm:$0xf] %v1378
  %1443 = vst [vmem:[%s4 + $0x50] sm:$0xf] %v1379
  %1444 = vst [vmem:[%s4 + $0x54] sm:$0xf] %v1380
  %1445 = vst [vmem:[%s4 + $0x58] sm:$0xf] %v1381
  %1446 = vst [vmem:[%s4 + $0x5c] sm:$0xf] %v1382
  %1447 = vst [vmem:[%s4 + $0x60] sm:$0xf] %v1383
  %1448 = vst [vmem:[%s4 + $0x64] sm:$0xf] %v1384
  %1449 = vst [vmem:[%s4 + $0x68] sm:$0xf] %v1385
  %1450 = vst [vmem:[%s4 + $0x6c] sm:$0xf] %v1386
  %1451 = vst [vmem:[%s4 + $0x70] sm:$0xf] %v1387
  %1452 = vst [vmem:[%s4 + $0x74] sm:$0xf] %v1388
  %1453 = vst [vmem:[%s4 + $0x78] sm:$0xf] %v1389
  %1454 = vst [vmem:[%s4 + $0x7c] sm:$0xf] %v1390
  %1455 = vst [vmem:[%s4 + $0x80] sm:$0xf] %v1391
  %1456 = vst [vmem:[%s4 + $0x84] sm:$0xf] %v1392
  %1457 = vst [vmem:[%s4 + $0x88] sm:$0xf] %v1393
  %1458 = vst [vmem:[%s4 + $0x8c] sm:$0xf] %v1394
  %1459 = vst [vmem:[%s4 + $0x90] sm:$0xf] %v1395
  %1460 = vst [vmem:[%s4 + $0x94] sm:$0xf] %v1396
  %1461 = vst [vmem:[%s4 + $0x98] sm:$0xf] %v1397
  %1462 = vst [vmem:[%s4 + $0x9c] sm:$0xf] %v1398
  %1463 = vst [vmem:[%s4 + $0xa0] sm:$0xf] %v1399
  %1464 = vst [vmem:[%s4 + $0xa4] sm:$0xf] %v1400
  %1465 = vst [vmem:[%s4 + $0xa8] sm:$0xf] %v1401
  %1466 = vst [vmem:[%s4 + $0xac] sm:$0xf] %v1402
  %1467 = vst [vmem:[%s4 + $0xb0] sm:$0xf] %v1403
  %1468 = vst [vmem:[%s4 + $0xb4] sm:$0xf] %v1404
  %1469 = vst [vmem:[%s4 + $0xb8] sm:$0xf] %v1405
  %1470 = vst [vmem:[%s4 + $0xbc] sm:$0xf] %v1406
  %1471 = vst [vmem:[%s4 + $0xc0] sm:$0xf] %v1407
  %1472 = vst [vmem:[%s4 + $0xc4] sm:$0xf] %v1408
  %1473 = vst [vmem:[%s4 + $0xc8] sm:$0xf] %v1409
  %1474 = vst [vmem:[%s4 + $0xcc] sm:$0xf] %v1410
  %1475 = vst [vmem:[%s4 + $0xd0] sm:$0xf] %v1411
  %1476 = vst [vmem:[%s4 + $0xd4] sm:$0xf] %v1412
  %1477 = vst [vmem:[%s4 + $0xd8] sm:$0xf] %v1413
  %1478 = vst [vmem:[%s4 + $0xdc] sm:$0xf] %v1414
  %1479 = vst [vmem:[%s4 + $0xe0] sm:$0xf] %v1415
  %1480 = vst [vmem:[%s4 + $0xe4] sm:$0xf] %v1416
  %1481 = vst [vmem:[%s4 + $0xe8] sm:$0xf] %v1417
  %1482 = vst [vmem:[%s4 + $0xec] sm:$0xf] %v1418
  %1483 = vst [vmem:[%s4 + $0xf0] sm:$0xf] %v1419
  %1484 = vst [vmem:[%s4 + $0xf4] sm:$0xf] %v1420
  %1485 = vst [vmem:[%s4 + $0xf8] sm:$0xf] %v1421
  %1486 = vst [vmem:[%s4 + $0xfc] sm:$0xf] %v1422
  // Predicated region
  $region18: #{_lambda_.7} parent=0 // pred_check
    _
  $region19: #{_lambda_.7} parent=0 // pred_check_branch
    %1488 = sbr.rel (0) target = $region21
  $region20: #{_lambda_.7} parent=0 // pred_region
    _
  $region21: #{_lambda_.7} parent=0 // pred_fallthru
    _
  // Predicated region
  $region22: #{_lambda_.7} parent=0 // pred_check
    _
  $region23: #{_lambda_.7} parent=0 // pred_check_branch
    %1490 = sbr.rel (0) target = $region25
  $region24: #{_lambda_.7} parent=0 // pred_region
    _
  $region25: #{_lambda_.7} parent=0 // pred_fallthru
    _

// kernel: _lambda_.8
$region0: #{_lambda_.8}
  #allocation0 [shape = 'u32[]', space=smem, size = 0x4, offset = 0x4, fixed_abs, tag = 'smem constant byte address 0x4 - core index']
  #allocation1 [shape = 'u32[72,128]{1,0:T(1,128)}', space=vmem, size = 0x9000, scoped, tag = 'internal scratch']
  %s0 = inlined_call_operand.vmem [shape: bf16[128,512], index: 0, kind: input, shape index: {}]
  %s1 = inlined_call_operand.vmem [shape: bf16[512,128], index: 1, kind: input, shape index: {}]
  %s2 = inlined_call_operand.vmem [shape: f32[1,128], index: 2, kind: input, shape index: {}]
  %s3 = inlined_call_operand.vmem [shape: f32[1,128], index: 3, kind: input, shape index: {}]
  %s4 = inlined_call_operand.vmem [shape: bf16[128,128], index: 4, kind: output, shape index: {}]
  %s5 = sld [smem:[#allocation0]]
  $region26: #{_lambda_.8} parent=0
    _
  %s7 = ssub.s32 1, %s5
  %s8 = scalar_select 0, %s7, %s5
  // Predicated region
  $region2: #{_lambda_.8} parent=0 // pred_check
    _
  $region3: #{_lambda_.8} parent=0 // pred_check_branch
    %10 = sbr.rel (0) target = $region5
  $region4: #{_lambda_.8} parent=0 // pred_region
    _
  $region5: #{_lambda_.8} parent=0 // pred_fallthru
    _
  // Predicated region
  $region6: #{_lambda_.8} parent=0 // pred_check
    _
  $region7: #{_lambda_.8} parent=0 // pred_check_branch
    %12 = sbr.rel (0) target = $region9
  $region8: #{_lambda_.8} parent=0 // pred_region
    _
  $region9: #{_lambda_.8} parent=0 // pred_fallthru
    _
  // Predicated region
  $region10: #{_lambda_.8} parent=0 // pred_check
    _
  $region11: #{_lambda_.8} parent=0 // pred_check_branch
    %14 = sbr.rel (0) target = $region13
  $region12: #{_lambda_.8} parent=0 // pred_region
    _
  $region13: #{_lambda_.8} parent=0 // pred_fallthru
    _
  // Predicated region
  $region14: #{_lambda_.8} parent=0 // pred_check
    _
  $region15: #{_lambda_.8} parent=0 // pred_check_branch
    %16 = sbr.rel (0) target = $region17
  $region16: #{_lambda_.8} parent=0 // pred_region
    _
  $region17: #{_lambda_.8} parent=0 // pred_fallthru
    _
  %v17 = vld [vmem:[%s0] sm:$0xff]
  %v18 = vld [vmem:[%s0 + $0x8] sm:$0xff]
  %v19 = vld [vmem:[%s0 + $0x10] sm:$0xff]
  %v20 = vld [vmem:[%s0 + $0x18] sm:$0xff]
  %v21 = vld [vmem:[%s0 + $0x20] sm:$0xff]
  %v22 = vld [vmem:[%s0 + $0x28] sm:$0xff]
  %v23 = vld [vmem:[%s0 + $0x30] sm:$0xff]
  %v24 = vld [vmem:[%s0 + $0x38] sm:$0xff]
  %v25 = vld [vmem:[%s0 + $0x40] sm:$0xff]
  %v26 = vld [vmem:[%s0 + $0x48] sm:$0xff]
  %v27 = vld [vmem:[%s0 + $0x50] sm:$0xff]
  %v28 = vld [vmem:[%s0 + $0x58] sm:$0xff]
  %v29 = vld [vmem:[%s0 + $0x60] sm:$0xff]
  %v30 = vld [vmem:[%s0 + $0x68] sm:$0xff]
  %v31 = vld [vmem:[%s0 + $0x70] sm:$0xff]
  %v32 = vld [vmem:[%s0 + $0x78] sm:$0xff]
  %v33 = vld [vmem:[%s0 + $0x80] sm:$0xff]
  %v34 = vld [vmem:[%s0 + $0x88] sm:$0xff]
  %v35 = vld [vmem:[%s0 + $0x90] sm:$0xff]
  %v36 = vld [vmem:[%s0 + $0x98] sm:$0xff]
  %v37 = vld [vmem:[%s0 + $0xa0] sm:$0xff]
  %v38 = vld [vmem:[%s0 + $0xa8] sm:$0xff]
  %v39 = vld [vmem:[%s0 + $0xb0] sm:$0xff]
  %v40 = vld [vmem:[%s0 + $0xb8] sm:$0xff]
  %v41 = vld [vmem:[%s0 + $0xc0] sm:$0xff]
  %v42 = vld [vmem:[%s0 + $0xc8] sm:$0xff]
  %v43 = vld [vmem:[%s0 + $0xd0] sm:$0xff]
  %v44 = vld [vmem:[%s0 + $0xd8] sm:$0xff]
  %v45 = vld [vmem:[%s0 + $0xe0] sm:$0xff]
  %v46 = vld [vmem:[%s0 + $0xe8] sm:$0xff]
  %v47 = vld [vmem:[%s0 + $0xf0] sm:$0xff]
  %v48 = vld [vmem:[%s0 + $0xf8] sm:$0xff]
  %v49 = vld [vmem:[%s1] sm:$0xf]
  %v50 = vld [vmem:[%s1 + $0x4] sm:$0xf]
  %v51 = vld [vmem:[%s1 + $0x8] sm:$0xf]
  %v52 = vld [vmem:[%s1 + $0xc] sm:$0xf]
  %v53 = vld [vmem:[%s1 + $0x10] sm:$0xf]
  %v54 = vld [vmem:[%s1 + $0x14] sm:$0xf]
  %v55 = vld [vmem:[%s1 + $0x18] sm:$0xf]
  %v56 = vld [vmem:[%s1 + $0x1c] sm:$0xf]
  %v57 = vld [vmem:[%s1 + $0x20] sm:$0xf]
  %v58 = vld [vmem:[%s1 + $0x24] sm:$0xf]
  %v59 = vld [vmem:[%s1 + $0x28] sm:$0xf]
  %v60 = vld [vmem:[%s1 + $0x2c] sm:$0xf]
  %v61 = vld [vmem:[%s1 + $0x30] sm:$0xf]
  %v62 = vld [vmem:[%s1 + $0x34] sm:$0xf]
  %v63 = vld [vmem:[%s1 + $0x38] sm:$0xf]
  %v64 = vld [vmem:[%s1 + $0x3c] sm:$0xf]
  %v65 = vld [vmem:[%s1 + $0x40] sm:$0xf]
  %v66 = vld [vmem:[%s1 + $0x44] sm:$0xf]
  %v67 = vld [vmem:[%s1 + $0x48] sm:$0xf]
  %v68 = vld [vmem:[%s1 + $0x4c] sm:$0xf]
  %v69 = vld [vmem:[%s1 + $0x50] sm:$0xf]
  %v70 = vld [vmem:[%s1 + $0x54] sm:$0xf]
  %v71 = vld [vmem:[%s1 + $0x58] sm:$0xf]
  %v72 = vld [vmem:[%s1 + $0x5c] sm:$0xf]
  %v73 = vld [vmem:[%s1 + $0x60] sm:$0xf]
  %v74 = vld [vmem:[%s1 + $0x64] sm:$0xf]
  %v75 = vld [vmem:[%s1 + $0x68] sm:$0xf]
  %v76 = vld [vmem:[%s1 + $0x6c] sm:$0xf]
  %v77 = vld [vmem:[%s1 + $0x70] sm:$0xf]
  %v78 = vld [vmem:[%s1 + $0x74] sm:$0xf]
  %v79 = vld [vmem:[%s1 + $0x78] sm:$0xf]
  %v80 = vld [vmem:[%s1 + $0x7c] sm:$0xf]
  %v81 = vld [vmem:[%s1 + $0x80] sm:$0xf]
  %v82 = vld [vmem:[%s1 + $0x84] sm:$0xf]
  %v83 = vld [vmem:[%s1 + $0x88] sm:$0xf]
  %v84 = vld [vmem:[%s1 + $0x8c] sm:$0xf]
  %v85 = vld [vmem:[%s1 + $0x90] sm:$0xf]
  %v86 = vld [vmem:[%s1 + $0x94] sm:$0xf]
  %v87 = vld [vmem:[%s1 + $0x98] sm:$0xf]
  %v88 = vld [vmem:[%s1 + $0x9c] sm:$0xf]
  %v89 = vld [vmem:[%s1 + $0xa0] sm:$0xf]
  %v90 = vld [vmem:[%s1 + $0xa4] sm:$0xf]
  %v91 = vld [vmem:[%s1 + $0xa8] sm:$0xf]
  %v92 = vld [vmem:[%s1 + $0xac] sm:$0xf]
  %v93 = vld [vmem:[%s1 + $0xb0] sm:$0xf]
  %v94 = vld [vmem:[%s1 + $0xb4] sm:$0xf]
  %v95 = vld [vmem:[%s1 + $0xb8] sm:$0xf]
  %v96 = vld [vmem:[%s1 + $0xbc] sm:$0xf]
  %v97 = vld [vmem:[%s1 + $0xc0] sm:$0xf]
  %v98 = vld [vmem:[%s1 + $0xc4] sm:$0xf]
  %v99 = vld [vmem:[%s1 + $0xc8] sm:$0xf]
  %v100 = vld [vmem:[%s1 + $0xcc] sm:$0xf]
  %v101 = vld [vmem:[%s1 + $0xd0] sm:$0xf]
  %v102 = vld [vmem:[%s1 + $0xd4] sm:$0xf]
  %v103 = vld [vmem:[%s1 + $0xd8] sm:$0xf]
  %v104 = vld [vmem:[%s1 + $0xdc] sm:$0xf]
  %v105 = vld [vmem:[%s1 + $0xe0] sm:$0xf]
  %v106 = vld [vmem:[%s1 + $0xe4] sm:$0xf]
  %v107 = vld [vmem:[%s1 + $0xe8] sm:$0xf]
  %v108 = vld [vmem:[%s1 + $0xec] sm:$0xf]
  %v109 = vld [vmem:[%s1 + $0xf0] sm:$0xf]
  %v110 = vld [vmem:[%s1 + $0xf4] sm:$0xf]
  %v111 = vld [vmem:[%s1 + $0xf8] sm:$0xf]
  %v112 = vld [vmem:[%s1 + $0xfc] sm:$0xf]
  %v145 = vunpack.c.l.b16 %v17
  %v146 = vunpack.c.h.b16 %v17
  %v147 = vunpack.c.l.b16 %v18
  %v148 = vunpack.c.h.b16 %v18
  %v149 = vunpack.c.l.b16 %v19
  %v150 = vunpack.c.h.b16 %v19
  %v151 = vunpack.c.l.b16 %v20
  %v152 = vunpack.c.h.b16 %v20
  %v153 = vunpack.c.l.b16 %v21
  %v154 = vunpack.c.h.b16 %v21
  %v155 = vunpack.c.l.b16 %v22
  %v156 = vunpack.c.h.b16 %v22
  %v157 = vunpack.c.l.b16 %v23
  %v158 = vunpack.c.h.b16 %v23
  %v159 = vunpack.c.l.b16 %v24
  %v160 = vunpack.c.h.b16 %v24
  %v161 = vunpack.c.l.b16 %v25
  %v162 = vunpack.c.h.b16 %v25
  %v163 = vunpack.c.l.b16 %v26
  %v164 = vunpack.c.h.b16 %v26
  %v165 = vunpack.c.l.b16 %v27
  %v166 = vunpack.c.h.b16 %v27
  %v167 = vunpack.c.l.b16 %v28
  %v168 = vunpack.c.h.b16 %v28
  %v169 = vunpack.c.l.b16 %v29
  %v170 = vunpack.c.h.b16 %v29
  %v171 = vunpack.c.l.b16 %v30
  %v172 = vunpack.c.h.b16 %v30
  %v173 = vunpack.c.l.b16 %v31
  %v174 = vunpack.c.h.b16 %v31
  %v175 = vunpack.c.l.b16 %v32
  %v176 = vunpack.c.h.b16 %v32
  %v177 = vunpack.c.l.b16 %v33
  %v178 = vunpack.c.h.b16 %v33
  %v179 = vunpack.c.l.b16 %v34
  %v180 = vunpack.c.h.b16 %v34
  %v181 = vunpack.c.l.b16 %v35
  %v182 = vunpack.c.h.b16 %v35
  %v183 = vunpack.c.l.b16 %v36
  %v184 = vunpack.c.h.b16 %v36
  %v185 = vunpack.c.l.b16 %v37
  %v186 = vunpack.c.h.b16 %v37
  %v187 = vunpack.c.l.b16 %v38
  %v188 = vunpack.c.h.b16 %v38
  %v189 = vunpack.c.l.b16 %v39
  %v190 = vunpack.c.h.b16 %v39
  %v191 = vunpack.c.l.b16 %v40
  %v192 = vunpack.c.h.b16 %v40
  %v193 = vunpack.c.l.b16 %v41
  %v194 = vunpack.c.h.b16 %v41
  %v195 = vunpack.c.l.b16 %v42
  %v196 = vunpack.c.h.b16 %v42
  %v197 = vunpack.c.l.b16 %v43
  %v198 = vunpack.c.h.b16 %v43
  %v199 = vunpack.c.l.b16 %v44
  %v200 = vunpack.c.h.b16 %v44
  %v201 = vunpack.c.l.b16 %v45
  %v202 = vunpack.c.h.b16 %v45
  %v203 = vunpack.c.l.b16 %v46
  %v204 = vunpack.c.h.b16 %v46
  %v205 = vunpack.c.l.b16 %v47
  %v206 = vunpack.c.h.b16 %v47
  %v207 = vunpack.c.l.b16 %v48
  %v208 = vunpack.c.h.b16 %v48
  %v209 = vpack.c.b16 %v149, %v145
  %v210 = vpack.c.b16 %v150, %v146
  %v211 = vpack.c.b16 %v151, %v147
  %v212 = vpack.c.b16 %v152, %v148
  %v213 = vpack.c.b16 %v157, %v153
  %v214 = vpack.c.b16 %v158, %v154
  %v215 = vpack.c.b16 %v159, %v155
  %v216 = vpack.c.b16 %v160, %v156
  %v217 = vpack.c.b16 %v165, %v161
  %v218 = vpack.c.b16 %v166, %v162
  %v219 = vpack.c.b16 %v167, %v163
  %v220 = vpack.c.b16 %v168, %v164
  %v221 = vpack.c.b16 %v173, %v169
  %v222 = vpack.c.b16 %v174, %v170
  %v223 = vpack.c.b16 %v175, %v171
  %v224 = vpack.c.b16 %v176, %v172
  %v225 = vpack.c.b16 %v181, %v177
  %v226 = vpack.c.b16 %v182, %v178
  %v227 = vpack.c.b16 %v183, %v179
  %v228 = vpack.c.b16 %v184, %v180
  %v229 = vpack.c.b16 %v189, %v185
  %v230 = vpack.c.b16 %v190, %v186
  %v231 = vpack.c.b16 %v191, %v187
  %v232 = vpack.c.b16 %v192, %v188
  %v233 = vpack.c.b16 %v197, %v193
  %v234 = vpack.c.b16 %v198, %v194
  %v235 = vpack.c.b16 %v199, %v195
  %v236 = vpack.c.b16 %v200, %v196
  %v237 = vpack.c.b16 %v205, %v201
  %v238 = vpack.c.b16 %v206, %v202
  %v239 = vpack.c.b16 %v207, %v203
  %v240 = vpack.c.b16 %v208, %v204
  %v337 = vunpack.c.l.b16 %v49
  %v338 = vunpack.c.l.b16 %v50
  %v339 = vunpack.c.l.b16 %v51
  %v340 = vunpack.c.l.b16 %v52
  %v341 = vunpack.c.l.b16 %v53
  %v342 = vunpack.c.l.b16 %v54
  %v343 = vunpack.c.l.b16 %v55
  %v344 = vunpack.c.l.b16 %v56
  %v345 = vunpack.c.l.b16 %v57
  %v346 = vunpack.c.l.b16 %v58
  %v347 = vunpack.c.l.b16 %v59
  %v348 = vunpack.c.l.b16 %v60
  %v349 = vunpack.c.l.b16 %v61
  %v350 = vunpack.c.l.b16 %v62
  %v351 = vunpack.c.l.b16 %v63
  %v352 = vunpack.c.l.b16 %v64
  %v353 = vunpack.c.l.b16 %v65
  %v354 = vunpack.c.l.b16 %v66
  %v355 = vunpack.c.l.b16 %v67
  %v356 = vunpack.c.l.b16 %v68
  %v357 = vunpack.c.l.b16 %v69
  %v358 = vunpack.c.l.b16 %v70
  %v359 = vunpack.c.l.b16 %v71
  %v360 = vunpack.c.l.b16 %v72
  %v361 = vunpack.c.l.b16 %v73
  %v362 = vunpack.c.l.b16 %v74
  %v363 = vunpack.c.l.b16 %v75
  %v364 = vunpack.c.l.b16 %v76
  %v365 = vunpack.c.l.b16 %v77
  %v366 = vunpack.c.l.b16 %v78
  %v367 = vunpack.c.l.b16 %v79
  %v368 = vunpack.c.l.b16 %v80
  %v369 = vunpack.c.l.b16 %v81
  %v370 = vunpack.c.l.b16 %v82
  %v371 = vunpack.c.l.b16 %v83
  %v372 = vunpack.c.l.b16 %v84
  %v373 = vunpack.c.l.b16 %v85
  %v374 = vunpack.c.l.b16 %v86
  %v375 = vunpack.c.l.b16 %v87
  %v376 = vunpack.c.l.b16 %v88
  %v377 = vunpack.c.l.b16 %v89
  %v378 = vunpack.c.l.b16 %v90
  %v379 = vunpack.c.l.b16 %v91
  %v380 = vunpack.c.l.b16 %v92
  %v381 = vunpack.c.l.b16 %v93
  %v382 = vunpack.c.l.b16 %v94
  %v383 = vunpack.c.l.b16 %v95
  %v384 = vunpack.c.l.b16 %v96
  %v385 = vunpack.c.l.b16 %v97
  %v386 = vunpack.c.l.b16 %v98
  %v387 = vunpack.c.l.b16 %v99
  %v388 = vunpack.c.l.b16 %v100
  %v389 = vunpack.c.l.b16 %v101
  %v390 = vunpack.c.l.b16 %v102
  %v391 = vunpack.c.l.b16 %v103
  %v392 = vunpack.c.l.b16 %v104
  %v393 = vunpack.c.l.b16 %v105
  %v394 = vunpack.c.l.b16 %v106
  %v395 = vunpack.c.l.b16 %v107
  %v396 = vunpack.c.l.b16 %v108
  %v397 = vunpack.c.l.b16 %v109
  %v398 = vunpack.c.l.b16 %v110
  %v399 = vunpack.c.l.b16 %v111
  %v400 = vunpack.c.l.b16 %v112
  %v401 = vpack.c.b16 %v338, %v337
  %v402 = vpack.c.b16 %v340, %v339
  %v403 = vpack.c.b16 %v342, %v341
  %v404 = vpack.c.b16 %v344, %v343
  %v405 = vpack.c.b16 %v346, %v345
  %v406 = vpack.c.b16 %v348, %v347
  %v407 = vpack.c.b16 %v350, %v349
  %v408 = vpack.c.b16 %v352, %v351
  %v409 = vpack.c.b16 %v354, %v353
  %v410 = vpack.c.b16 %v356, %v355
  %v411 = vpack.c.b16 %v358, %v357
  %v412 = vpack.c.b16 %v360, %v359
  %v413 = vpack.c.b16 %v362, %v361
  %v414 = vpack.c.b16 %v364, %v363
  %v415 = vpack.c.b16 %v366, %v365
  %v416 = vpack.c.b16 %v368, %v367
  %v417 = vpack.c.b16 %v370, %v369
  %v418 = vpack.c.b16 %v372, %v371
  %v419 = vpack.c.b16 %v374, %v373
  %v420 = vpack.c.b16 %v376, %v375
  %v421 = vpack.c.b16 %v378, %v377
  %v422 = vpack.c.b16 %v380, %v379
  %v423 = vpack.c.b16 %v382, %v381
  %v424 = vpack.c.b16 %v384, %v383
  %v425 = vpack.c.b16 %v386, %v385
  %v426 = vpack.c.b16 %v388, %v387
  %v427 = vpack.c.b16 %v390, %v389
  %v428 = vpack.c.b16 %v392, %v391
  %v429 = vpack.c.b16 %v394, %v393
  %v430 = vpack.c.b16 %v396, %v395
  %v431 = vpack.c.b16 %v398, %v397
  %v432 = vpack.c.b16 %v400, %v399
  %465 = vmatpush.bf16.msra.mxu0 %v408
  %466 = vmatpush.bf16.msra.mxu0 %v407
  %467 = vmatpush.bf16.msra.mxu0 %v406
  %468 = vmatpush.bf16.msra.mxu0 %v405
  %469 = vmatpush.bf16.msra.mxu0 %v404
  %470 = vmatpush.bf16.msra.mxu0 %v403
  %471 = vmatpush.bf16.msra.mxu0 %v402
  %472 = vmatpush.bf16.msra.mxu0 %v401
  %473 = vmatmul.bf16.gmra.mxu0 %v209
  %v474 = vpop.f32.mrf.mxu0
  %v475 = vadd.f32 0.0, %v474
  %v476 = vpop.f32.mrf.mxu0
  %v477 = vadd.f32 0.0, %v476
  %478 = vmatmul.bf16.gmra.mxu0 %v213
  %v479 = vpop.f32.mrf.mxu0
  %v480 = vadd.f32 0.0, %v479
  %v481 = vpop.f32.mrf.mxu0
  %v482 = vadd.f32 0.0, %v481
  %483 = vmatmul.bf16.gmra.mxu0 %v217
  %v484 = vpop.f32.mrf.mxu0
  %v485 = vadd.f32 0.0, %v484
  %v486 = vpop.f32.mrf.mxu0
  %v487 = vadd.f32 0.0, %v486
  %488 = vmatmul.bf16.gmra.mxu0 %v221
  %v489 = vpop.f32.mrf.mxu0
  %v490 = vadd.f32 0.0, %v489
  %v491 = vpop.f32.mrf.mxu0
  %v492 = vadd.f32 0.0, %v491
  %493 = vmatmul.bf16.gmra.mxu0 %v225
  %v494 = vpop.f32.mrf.mxu0
  %v495 = vadd.f32 0.0, %v494
  %v496 = vpop.f32.mrf.mxu0
  %v497 = vadd.f32 0.0, %v496
  %498 = vmatmul.bf16.gmra.mxu0 %v229
  %v499 = vpop.f32.mrf.mxu0
  %v500 = vadd.f32 0.0, %v499
  %v501 = vpop.f32.mrf.mxu0
  %v502 = vadd.f32 0.0, %v501
  %503 = vmatmul.bf16.gmra.mxu0 %v233
  %v504 = vpop.f32.mrf.mxu0
  %v505 = vadd.f32 0.0, %v504
  %v506 = vpop.f32.mrf.mxu0
  %v507 = vadd.f32 0.0, %v506
  %508 = vmatmul.bf16.gmra.mxu0 %v237
  %v509 = vpop.f32.mrf.mxu0
  %v510 = vadd.f32 0.0, %v509
  %v511 = vpop.f32.mrf.mxu0
  %v512 = vadd.f32 0.0, %v511
  %513 = vdwg.mxu0
  %514 = vmatpush.bf16.msra.mxu0 %v416
  %515 = vmatpush.bf16.msra.mxu0 %v415
  %516 = vmatpush.bf16.msra.mxu0 %v414
  %517 = vmatpush.bf16.msra.mxu0 %v413
  %518 = vmatpush.bf16.msra.mxu0 %v412
  %519 = vmatpush.bf16.msra.mxu0 %v411
  %520 = vmatpush.bf16.msra.mxu0 %v410
  %521 = vmatpush.bf16.msra.mxu0 %v409
  %522 = vmatmul.bf16.gmra.mxu0 %v210
  %v523 = vpop.f32.mrf.mxu0
  %v524 = vadd.f32 %v475, %v523
  %v525 = vpop.f32.mrf.mxu0
  %v526 = vadd.f32 %v477, %v525
  %527 = vmatmul.bf16.gmra.mxu0 %v214
  %v528 = vpop.f32.mrf.mxu0
  %v529 = vadd.f32 %v480, %v528
  %v530 = vpop.f32.mrf.mxu0
  %v531 = vadd.f32 %v482, %v530
  %532 = vmatmul.bf16.gmra.mxu0 %v218
  %v533 = vpop.f32.mrf.mxu0
  %v534 = vadd.f32 %v485, %v533
  %v535 = vpop.f32.mrf.mxu0
  %v536 = vadd.f32 %v487, %v535
  %537 = vmatmul.bf16.gmra.mxu0 %v222
  %v538 = vpop.f32.mrf.mxu0
  %v539 = vadd.f32 %v490, %v538
  %v540 = vpop.f32.mrf.mxu0
  %v541 = vadd.f32 %v492, %v540
  %542 = vmatmul.bf16.gmra.mxu0 %v226
  %v543 = vpop.f32.mrf.mxu0
  %v544 = vadd.f32 %v495, %v543
  %v545 = vpop.f32.mrf.mxu0
  %v546 = vadd.f32 %v497, %v545
  %547 = vmatmul.bf16.gmra.mxu0 %v230
  %v548 = vpop.f32.mrf.mxu0
  %v549 = vadd.f32 %v500, %v548
  %v550 = vpop.f32.mrf.mxu0
  %v551 = vadd.f32 %v502, %v550
  %552 = vmatmul.bf16.gmra.mxu0 %v234
  %v553 = vpop.f32.mrf.mxu0
  %v554 = vadd.f32 %v505, %v553
  %v555 = vpop.f32.mrf.mxu0
  %v556 = vadd.f32 %v507, %v555
  %557 = vmatmul.bf16.gmra.mxu0 %v238
  %v558 = vpop.f32.mrf.mxu0
  %v559 = vadd.f32 %v510, %v558
  %v560 = vpop.f32.mrf.mxu0
  %v561 = vadd.f32 %v512, %v560
  %562 = vdwg.mxu0
  %563 = vmatpush.bf16.msra.mxu0 %v424
  %564 = vmatpush.bf16.msra.mxu0 %v423
  %565 = vmatpush.bf16.msra.mxu0 %v422
  %566 = vmatpush.bf16.msra.mxu0 %v421
  %567 = vmatpush.bf16.msra.mxu0 %v420
  %568 = vmatpush.bf16.msra.mxu0 %v419
  %569 = vmatpush.bf16.msra.mxu0 %v418
  %570 = vmatpush.bf16.msra.mxu0 %v417
  %571 = vmatmul.bf16.gmra.mxu0 %v211
  %v572 = vpop.f32.mrf.mxu0
  %v573 = vadd.f32 %v524, %v572
  %v574 = vpop.f32.mrf.mxu0
  %v575 = vadd.f32 %v526, %v574
  %576 = vmatmul.bf16.gmra.mxu0 %v215
  %v577 = vpop.f32.mrf.mxu0
  %v578 = vadd.f32 %v529, %v577
  %v579 = vpop.f32.mrf.mxu0
  %v580 = vadd.f32 %v531, %v579
  %581 = vmatmul.bf16.gmra.mxu0 %v219
  %v582 = vpop.f32.mrf.mxu0
  %v583 = vadd.f32 %v534, %v582
  %v584 = vpop.f32.mrf.mxu0
  %v585 = vadd.f32 %v536, %v584
  %586 = vmatmul.bf16.gmra.mxu0 %v223
  %v587 = vpop.f32.mrf.mxu0
  %v588 = vadd.f32 %v539, %v587
  %v589 = vpop.f32.mrf.mxu0
  %v590 = vadd.f32 %v541, %v589
  %591 = vmatmul.bf16.gmra.mxu0 %v227
  %v592 = vpop.f32.mrf.mxu0
  %v593 = vadd.f32 %v544, %v592
  %v594 = vpop.f32.mrf.mxu0
  %v595 = vadd.f32 %v546, %v594
  %596 = vmatmul.bf16.gmra.mxu0 %v231
  %v597 = vpop.f32.mrf.mxu0
  %v598 = vadd.f32 %v549, %v597
  %v599 = vpop.f32.mrf.mxu0
  %v600 = vadd.f32 %v551, %v599
  %601 = vmatmul.bf16.gmra.mxu0 %v235
  %v602 = vpop.f32.mrf.mxu0
  %v603 = vadd.f32 %v554, %v602
  %v604 = vpop.f32.mrf.mxu0
  %v605 = vadd.f32 %v556, %v604
  %606 = vmatmul.bf16.gmra.mxu0 %v239
  %v607 = vpop.f32.mrf.mxu0
  %v608 = vadd.f32 %v559, %v607
  %v609 = vpop.f32.mrf.mxu0
  %v610 = vadd.f32 %v561, %v609
  %611 = vdwg.mxu0
  %612 = vmatpush.bf16.msra.mxu0 %v432
  %613 = vmatpush.bf16.msra.mxu0 %v431
  %614 = vmatpush.bf16.msra.mxu0 %v430
  %615 = vmatpush.bf16.msra.mxu0 %v429
  %616 = vmatpush.bf16.msra.mxu0 %v428
  %617 = vmatpush.bf16.msra.mxu0 %v427
  %618 = vmatpush.bf16.msra.mxu0 %v426
  %619 = vmatpush.bf16.msra.mxu0 %v425
  %620 = vmatmul.bf16.gmra.mxu0 %v212
  %v621 = vpop.f32.mrf.mxu0
  %v622 = vadd.f32 %v573, %v621
  %v623 = vpop.f32.mrf.mxu0
  %v624 = vadd.f32 %v575, %v623
  %625 = vmatmul.bf16.gmra.mxu0 %v216
  %v626 = vpop.f32.mrf.mxu0
  %v627 = vadd.f32 %v578, %v626
  %v628 = vpop.f32.mrf.mxu0
  %v629 = vadd.f32 %v580, %v628
  %630 = vmatmul.bf16.gmra.mxu0 %v220
  %v631 = vpop.f32.mrf.mxu0
  %v632 = vadd.f32 %v583, %v631
  %v633 = vpop.f32.mrf.mxu0
  %v634 = vadd.f32 %v585, %v633
  %635 = vmatmul.bf16.gmra.mxu0 %v224
  %v636 = vpop.f32.mrf.mxu0
  %v637 = vadd.f32 %v588, %v636
  %v638 = vpop.f32.mrf.mxu0
  %v639 = vadd.f32 %v590, %v638
  %640 = vmatmul.bf16.gmra.mxu0 %v228
  %v641 = vpop.f32.mrf.mxu0
  %v642 = vadd.f32 %v593, %v641
  %v643 = vpop.f32.mrf.mxu0
  %v644 = vadd.f32 %v595, %v643
  %645 = vmatmul.bf16.gmra.mxu0 %v232
  %v646 = vpop.f32.mrf.mxu0
  %v647 = vadd.f32 %v598, %v646
  %v648 = vpop.f32.mrf.mxu0
  %v649 = vadd.f32 %v600, %v648
  %650 = vmatmul.bf16.gmra.mxu0 %v236
  %v651 = vpop.f32.mrf.mxu0
  %v652 = vadd.f32 %v603, %v651
  %v653 = vpop.f32.mrf.mxu0
  %v654 = vadd.f32 %v605, %v653
  %655 = vmatmul.bf16.gmra.mxu0 %v240
  %v656 = vpop.f32.mrf.mxu0
  %v657 = vadd.f32 %v608, %v656
  %v658 = vpop.f32.mrf.mxu0
  %v659 = vadd.f32 %v610, %v658
  %660 = vdwg.mxu0
  %v661 = vld [vmem:[%s2] sm:$0x1]
  %v662 = vld [vmem:[%s3] sm:$0x1]
  %v663 = vadd.f32 %v622, %v624
  %v664 = vadd.f32 %v663, %v627
  %v665 = vadd.f32 %v664, %v629
  %v666 = vadd.f32 %v665, %v632
  %v667 = vadd.f32 %v666, %v634
  %v668 = vadd.f32 %v667, %v637
  %v669 = vadd.f32 %v668, %v639
  %v670 = vadd.f32 %v669, %v642
  %v671 = vadd.f32 %v670, %v644
  %v672 = vadd.f32 %v671, %v647
  %v673 = vadd.f32 %v672, %v649
  %v674 = vadd.f32 %v673, %v652
  %v675 = vadd.f32 %v674, %v654
  %v676 = vadd.f32 %v675, %v657
  %v677 = vadd.f32 %v676, %v659
  %v678 = vrot.slane %v677, 4
  %v679 = vadd.f32 %v677, %v678
  %v680 = vrot.slane %v679, 2
  %v681 = vadd.f32 %v679, %v680
  %v682 = vrot.slane %v681, 1
  %v683 = vadd.f32 %v681, %v682
  %v684 = vrcp.pop 128.0
  %v685 = vmul.f32 128.0, %v684
  %v686 = vsub.f32 1.0, %v685
  %v687 = vmul.f32 %v684, %v686
  %v688 = vadd.f32 %v684, %v687
  %vm689 = vweird.f32 %v684
  %v690 = vsel %vm689, %v684, %v688
  %v691 = vmul.f32 %v683, %v690
  %v692 = vmul.f32 %v622, %v622
  %v693 = vmul.f32 %v624, %v624
  %v694 = vmul.f32 %v627, %v627
  %v695 = vmul.f32 %v629, %v629
  %v696 = vmul.f32 %v632, %v632
  %v697 = vmul.f32 %v634, %v634
  %v698 = vmul.f32 %v637, %v637
  %v699 = vmul.f32 %v639, %v639
  %v700 = vmul.f32 %v642, %v642
  %v701 = vmul.f32 %v644, %v644
  %v702 = vmul.f32 %v647, %v647
  %v703 = vmul.f32 %v649, %v649
  %v704 = vmul.f32 %v652, %v652
  %v705 = vmul.f32 %v654, %v654
  %v706 = vmul.f32 %v657, %v657
  %v707 = vmul.f32 %v659, %v659
  %v708 = vadd.f32 %v692, %v693
  %v709 = vadd.f32 %v708, %v694
  %v710 = vadd.f32 %v709, %v695
  %v711 = vadd.f32 %v710, %v696
  %v712 = vadd.f32 %v711, %v697
  %v713 = vadd.f32 %v712, %v698
  %v714 = vadd.f32 %v713, %v699
  %v715 = vadd.f32 %v714, %v700
  %v716 = vadd.f32 %v715, %v701
  %v717 = vadd.f32 %v716, %v702
  %v718 = vadd.f32 %v717, %v703
  %v719 = vadd.f32 %v718, %v704
  %v720 = vadd.f32 %v719, %v705
  %v721 = vadd.f32 %v720, %v706
  %v722 = vadd.f32 %v721, %v707
  %v723 = vrot.slane %v722, 4
  %v724 = vadd.f32 %v722, %v723
  %v725 = vrot.slane %v724, 2
  %v726 = vadd.f32 %v724, %v725
  %v727 = vrot.slane %v726, 1
  %v728 = vadd.f32 %v726, %v727
  %v729 = vmul.f32 %v728, %v690
  %v730 = vmul.f32 %v691, %v691
  %v731 = vsub.f32 %v729, %v730
  %v732 = vmax.f32 %v731, 0.0
  %v733 = vadd.f32 %v732, 1e-05
  %v734 = vrsqrt.pop %v733
  %v735 = vmul.f32 %v734, %v733
  %v736 = vmul.f32 %v735, %v734
  %v737 = vmul.f32 0.5, %v736
  %v738 = vsub.f32 1.5, %v737
  %v739 = vmul.f32 %v734, %v738
  %vm740 = vweird.f32 %v733
  %vm741 = vweird.f32 %v734
  %vm742 = vmor %vm740, %vm741
  %v743 = vsel %vm742, %v734, %v739
  %v744 = vmul.f32 %v661, %v743
  %v745 = vmul.f32 %v691, %v744
  %v746 = vsub.f32 %v662, %v745
  %v748 = vperm.slane %v744, 0
  %v750 = vmul.f32 %v622, %v748
  %v751 = vmul.f32 %v624, %v748
  %v752 = vmul.f32 %v627, %v748
  %v753 = vmul.f32 %v629, %v748
  %v754 = vmul.f32 %v632, %v748
  %v755 = vmul.f32 %v634, %v748
  %v756 = vmul.f32 %v637, %v748
  %v757 = vmul.f32 %v639, %v748
  %v758 = vmul.f32 %v642, %v748
  %v759 = vmul.f32 %v644, %v748
  %v760 = vmul.f32 %v647, %v748
  %v761 = vmul.f32 %v649, %v748
  %v762 = vmul.f32 %v652, %v748
  %v763 = vmul.f32 %v654, %v748
  %v764 = vmul.f32 %v657, %v748
  %v765 = vmul.f32 %v659, %v748
  %v767 = vperm.slane %v746, 0
  %v769 = vadd.f32 %v750, %v767
  %v770 = vadd.f32 %v751, %v767
  %v771 = vadd.f32 %v752, %v767
  %v772 = vadd.f32 %v753, %v767
  %v773 = vadd.f32 %v754, %v767
  %v774 = vadd.f32 %v755, %v767
  %v775 = vadd.f32 %v756, %v767
  %v776 = vadd.f32 %v757, %v767
  %v777 = vadd.f32 %v758, %v767
  %v778 = vadd.f32 %v759, %v767
  %v779 = vadd.f32 %v760, %v767
  %v780 = vadd.f32 %v761, %v767
  %v781 = vadd.f32 %v762, %v767
  %v782 = vadd.f32 %v763, %v767
  %v783 = vadd.f32 %v764, %v767
  %v784 = vadd.f32 %v765, %v767
  %v785 = vmul.f32 %v769, 0.2
  %v786 = vmul.f32 %v770, 0.2
  %v787 = vmul.f32 %v771, 0.2
  %v788 = vmul.f32 %v772, 0.2
  %v789 = vmul.f32 %v773, 0.2
  %v790 = vmul.f32 %v774, 0.2
  %v791 = vmul.f32 %v775, 0.2
  %v792 = vmul.f32 %v776, 0.2
  %v793 = vmul.f32 %v777, 0.2
  %v794 = vmul.f32 %v778, 0.2
  %v795 = vmul.f32 %v779, 0.2
  %v796 = vmul.f32 %v780, 0.2
  %v797 = vmul.f32 %v781, 0.2
  %v798 = vmul.f32 %v782, 0.2
  %v799 = vmul.f32 %v783, 0.2
  %v800 = vmul.f32 %v784, 0.2
  %v801 = vmax.f32 %v769, %v785
  %v802 = vmax.f32 %v770, %v786
  %v803 = vmax.f32 %v771, %v787
  %v804 = vmax.f32 %v772, %v788
  %v805 = vmax.f32 %v773, %v789
  %v806 = vmax.f32 %v774, %v790
  %v807 = vmax.f32 %v775, %v791
  %v808 = vmax.f32 %v776, %v792
  %v809 = vmax.f32 %v777, %v793
  %v810 = vmax.f32 %v778, %v794
  %v811 = vmax.f32 %v779, %v795
  %v812 = vmax.f32 %v780, %v796
  %v813 = vmax.f32 %v781, %v797
  %v814 = vmax.f32 %v782, %v798
  %v815 = vmax.f32 %v783, %v799
  %v816 = vmax.f32 %v784, %v800
  %v817 = vpack.c.bf16 %v801, %v801
  %v818 = vpack.c.bf16 %v802, %v802
  %v819 = vpack.c.bf16 %v803, %v803
  %v820 = vpack.c.bf16 %v804, %v804
  %v821 = vpack.c.bf16 %v805, %v805
  %v822 = vpack.c.bf16 %v806, %v806
  %v823 = vpack.c.bf16 %v807, %v807
  %v824 = vpack.c.bf16 %v808, %v808
  %v825 = vpack.c.bf16 %v809, %v809
  %v826 = vpack.c.bf16 %v810, %v810
  %v827 = vpack.c.bf16 %v811, %v811
  %v828 = vpack.c.bf16 %v812, %v812
  %v829 = vpack.c.bf16 %v813, %v813
  %v830 = vpack.c.bf16 %v814, %v814
  %v831 = vpack.c.bf16 %v815, %v815
  %v832 = vpack.c.bf16 %v816, %v816
  %833 = vst [vmem:[%s4] sm:$0xf] %v817
  %834 = vst [vmem:[%s4 + $0x4] sm:$0xf] %v818
  %835 = vst [vmem:[%s4 + $0x8] sm:$0xf] %v819
  %836 = vst [vmem:[%s4 + $0xc] sm:$0xf] %v820
  %837 = vst [vmem:[%s4 + $0x10] sm:$0xf] %v821
  %838 = vst [vmem:[%s4 + $0x14] sm:$0xf] %v822
  %839 = vst [vmem:[%s4 + $0x18] sm:$0xf] %v823
  %840 = vst [vmem:[%s4 + $0x1c] sm:$0xf] %v824
  %841 = vst [vmem:[%s4 + $0x20] sm:$0xf] %v825
  %842 = vst [vmem:[%s4 + $0x24] sm:$0xf] %v826
  %843 = vst [vmem:[%s4 + $0x28] sm:$0xf] %v827
  %844 = vst [vmem:[%s4 + $0x2c] sm:$0xf] %v828
  %845 = vst [vmem:[%s4 + $0x30] sm:$0xf] %v829
  %846 = vst [vmem:[%s4 + $0x34] sm:$0xf] %v830
  %847 = vst [vmem:[%s4 + $0x38] sm:$0xf] %v831
  %848 = vst [vmem:[%s4 + $0x3c] sm:$0xf] %v832
  // Predicated region
  $region18: #{_lambda_.8} parent=0 // pred_check
    _
  $region19: #{_lambda_.8} parent=0 // pred_check_branch
    %850 = sbr.rel (0) target = $region21
  $region20: #{_lambda_.8} parent=0 // pred_region
    _
  $region21: #{_lambda_.8} parent=0 // pred_fallthru
    _
  // Predicated region
  $region22: #{_lambda_.8} parent=0 // pred_check
    _
  $region23: #{_lambda_.8} parent=0 // pred_check_branch
    %852 = sbr.rel (0) target = $region25
  $region24: #{_lambda_.8} parent=0 // pred_region
    _
  $region25: #{_lambda_.8} parent=0 // pred_fallthru
    _

// kernel: _lambda_.9
$region0: #{_lambda_.9}
  #allocation0 [shape = 'u32[]', space=smem, size = 0x4, offset = 0x4, fixed_abs, tag = 'smem constant byte address 0x4 - core index']
  #allocation1 [shape = 'u32[72,128]{1,0:T(1,128)}', space=vmem, size = 0x9000, scoped, tag = 'internal scratch']
  %s0 = inlined_call_operand.vmem [shape: bf16[32,1024], index: 0, kind: input, shape index: {}]
  %s1 = inlined_call_operand.vmem [shape: bf16[1024,128], index: 1, kind: input, shape index: {}]
  %s2 = inlined_call_operand.vmem [shape: f32[1,128], index: 2, kind: input, shape index: {}]
  %s3 = inlined_call_operand.vmem [shape: f32[1,128], index: 3, kind: input, shape index: {}]
  %s4 = inlined_call_operand.vmem [shape: f32[32,128], index: 4, kind: input, shape index: {}]
  %s5 = inlined_call_operand.vmem [shape: f32[2,1], index: 5, kind: output, shape index: {}]
  %s6 = sld [smem:[#allocation0]]
  $region30: #{_lambda_.9} parent=0
    _
  %s8 = ssub.s32 1, %s6
  %s9 = scalar_select 0, %s8, %s6
  // Predicated region
  $region2: #{_lambda_.9} parent=0 // pred_check
    _
  $region3: #{_lambda_.9} parent=0 // pred_check_branch
    %11 = sbr.rel (0) target = $region5
  $region4: #{_lambda_.9} parent=0 // pred_region
    _
  $region5: #{_lambda_.9} parent=0 // pred_fallthru
    _
  // Predicated region
  $region6: #{_lambda_.9} parent=0 // pred_check
    _
  $region7: #{_lambda_.9} parent=0 // pred_check_branch
    %13 = sbr.rel (0) target = $region9
  $region8: #{_lambda_.9} parent=0 // pred_region
    _
  $region9: #{_lambda_.9} parent=0 // pred_fallthru
    _
  // Predicated region
  $region10: #{_lambda_.9} parent=0 // pred_check
    _
  $region11: #{_lambda_.9} parent=0 // pred_check_branch
    %15 = sbr.rel (0) target = $region13
  $region12: #{_lambda_.9} parent=0 // pred_region
    _
  $region13: #{_lambda_.9} parent=0 // pred_fallthru
    _
  // Predicated region
  $region14: #{_lambda_.9} parent=0 // pred_check
    _
  $region15: #{_lambda_.9} parent=0 // pred_check_branch
    %17 = sbr.rel (0) target = $region17
  $region16: #{_lambda_.9} parent=0 // pred_region
    _
  $region17: #{_lambda_.9} parent=0 // pred_fallthru
    _
  // Predicated region
  $region18: #{_lambda_.9} parent=0 // pred_check
    _
  $region19: #{_lambda_.9} parent=0 // pred_check_branch
    %19 = sbr.rel (0) target = $region21
  $region20: #{_lambda_.9} parent=0 // pred_region
    _
  $region21: #{_lambda_.9} parent=0 // pred_fallthru
    _
  %v20 = vld [vmem:[%s0] sm:$0xff]
  %v21 = vld [vmem:[%s0 + $0x8] sm:$0xff]
  %v22 = vld [vmem:[%s0 + $0x10] sm:$0xff]
  %v23 = vld [vmem:[%s0 + $0x18] sm:$0xff]
  %v24 = vld [vmem:[%s0 + $0x20] sm:$0xff]
  %v25 = vld [vmem:[%s0 + $0x28] sm:$0xff]
  %v26 = vld [vmem:[%s0 + $0x30] sm:$0xff]
  %v27 = vld [vmem:[%s0 + $0x38] sm:$0xff]
  %v28 = vld [vmem:[%s0 + $0x40] sm:$0xff]
  %v29 = vld [vmem:[%s0 + $0x48] sm:$0xff]
  %v30 = vld [vmem:[%s0 + $0x50] sm:$0xff]
  %v31 = vld [vmem:[%s0 + $0x58] sm:$0xff]
  %v32 = vld [vmem:[%s0 + $0x60] sm:$0xff]
  %v33 = vld [vmem:[%s0 + $0x68] sm:$0xff]
  %v34 = vld [vmem:[%s0 + $0x70] sm:$0xff]
  %v35 = vld [vmem:[%s0 + $0x78] sm:$0xff]
  %v36 = vld [vmem:[%s1] sm:$0xf]
  %v37 = vld [vmem:[%s1 + $0x4] sm:$0xf]
  %v38 = vld [vmem:[%s1 + $0x8] sm:$0xf]
  %v39 = vld [vmem:[%s1 + $0xc] sm:$0xf]
  %v40 = vld [vmem:[%s1 + $0x10] sm:$0xf]
  %v41 = vld [vmem:[%s1 + $0x14] sm:$0xf]
  %v42 = vld [vmem:[%s1 + $0x18] sm:$0xf]
  %v43 = vld [vmem:[%s1 + $0x1c] sm:$0xf]
  %v44 = vld [vmem:[%s1 + $0x20] sm:$0xf]
  %v45 = vld [vmem:[%s1 + $0x24] sm:$0xf]
  %v46 = vld [vmem:[%s1 + $0x28] sm:$0xf]
  %v47 = vld [vmem:[%s1 + $0x2c] sm:$0xf]
  %v48 = vld [vmem:[%s1 + $0x30] sm:$0xf]
  %v49 = vld [vmem:[%s1 + $0x34] sm:$0xf]
  %v50 = vld [vmem:[%s1 + $0x38] sm:$0xf]
  %v51 = vld [vmem:[%s1 + $0x3c] sm:$0xf]
  %v52 = vld [vmem:[%s1 + $0x40] sm:$0xf]
  %v53 = vld [vmem:[%s1 + $0x44] sm:$0xf]
  %v54 = vld [vmem:[%s1 + $0x48] sm:$0xf]
  %v55 = vld [vmem:[%s1 + $0x4c] sm:$0xf]
  %v56 = vld [vmem:[%s1 + $0x50] sm:$0xf]
  %v57 = vld [vmem:[%s1 + $0x54] sm:$0xf]
  %v58 = vld [vmem:[%s1 + $0x58] sm:$0xf]
  %v59 = vld [vmem:[%s1 + $0x5c] sm:$0xf]
  %v60 = vld [vmem:[%s1 + $0x60] sm:$0xf]
  %v61 = vld [vmem:[%s1 + $0x64] sm:$0xf]
  %v62 = vld [vmem:[%s1 + $0x68] sm:$0xf]
  %v63 = vld [vmem:[%s1 + $0x6c] sm:$0xf]
  %v64 = vld [vmem:[%s1 + $0x70] sm:$0xf]
  %v65 = vld [vmem:[%s1 + $0x74] sm:$0xf]
  %v66 = vld [vmem:[%s1 + $0x78] sm:$0xf]
  %v67 = vld [vmem:[%s1 + $0x7c] sm:$0xf]
  %v68 = vld [vmem:[%s1 + $0x80] sm:$0xf]
  %v69 = vld [vmem:[%s1 + $0x84] sm:$0xf]
  %v70 = vld [vmem:[%s1 + $0x88] sm:$0xf]
  %v71 = vld [vmem:[%s1 + $0x8c] sm:$0xf]
  %v72 = vld [vmem:[%s1 + $0x90] sm:$0xf]
  %v73 = vld [vmem:[%s1 + $0x94] sm:$0xf]
  %v74 = vld [vmem:[%s1 + $0x98] sm:$0xf]
  %v75 = vld [vmem:[%s1 + $0x9c] sm:$0xf]
  %v76 = vld [vmem:[%s1 + $0xa0] sm:$0xf]
  %v77 = vld [vmem:[%s1 + $0xa4] sm:$0xf]
  %v78 = vld [vmem:[%s1 + $0xa8] sm:$0xf]
  %v79 = vld [vmem:[%s1 + $0xac] sm:$0xf]
  %v80 = vld [vmem:[%s1 + $0xb0] sm:$0xf]
  %v81 = vld [vmem:[%s1 + $0xb4] sm:$0xf]
  %v82 = vld [vmem:[%s1 + $0xb8] sm:$0xf]
  %v83 = vld [vmem:[%s1 + $0xbc] sm:$0xf]
  %v84 = vld [vmem:[%s1 + $0xc0] sm:$0xf]
  %v85 = vld [vmem:[%s1 + $0xc4] sm:$0xf]
  %v86 = vld [vmem:[%s1 + $0xc8] sm:$0xf]
  %v87 = vld [vmem:[%s1 + $0xcc] sm:$0xf]
  %v88 = vld [vmem:[%s1 + $0xd0] sm:$0xf]
  %v89 = vld [vmem:[%s1 + $0xd4] sm:$0xf]
  %v90 = vld [vmem:[%s1 + $0xd8] sm:$0xf]
  %v91 = vld [vmem:[%s1 + $0xdc] sm:$0xf]
  %v92 = vld [vmem:[%s1 + $0xe0] sm:$0xf]
  %v93 = vld [vmem:[%s1 + $0xe4] sm:$0xf]
  %v94 = vld [vmem:[%s1 + $0xe8] sm:$0xf]
  %v95 = vld [vmem:[%s1 + $0xec] sm:$0xf]
  %v96 = vld [vmem:[%s1 + $0xf0] sm:$0xf]
  %v97 = vld [vmem:[%s1 + $0xf4] sm:$0xf]
  %v98 = vld [vmem:[%s1 + $0xf8] sm:$0xf]
  %v99 = vld [vmem:[%s1 + $0xfc] sm:$0xf]
  %v100 = vld [vmem:[%s1 + $0x100] sm:$0xf]
  %v101 = vld [vmem:[%s1 + $0x104] sm:$0xf]
  %v102 = vld [vmem:[%s1 + $0x108] sm:$0xf]
  %v103 = vld [vmem:[%s1 + $0x10c] sm:$0xf]
  %v104 = vld [vmem:[%s1 + $0x110] sm:$0xf]
  %v105 = vld [vmem:[%s1 + $0x114] sm:$0xf]
  %v106 = vld [vmem:[%s1 + $0x118] sm:$0xf]
  %v107 = vld [vmem:[%s1 + $0x11c] sm:$0xf]
  %v108 = vld [vmem:[%s1 + $0x120] sm:$0xf]
  %v109 = vld [vmem:[%s1 + $0x124] sm:$0xf]
  %v110 = vld [vmem:[%s1 + $0x128] sm:$0xf]
  %v111 = vld [vmem:[%s1 + $0x12c] sm:$0xf]
  %v112 = vld [vmem:[%s1 + $0x130] sm:$0xf]
  %v113 = vld [vmem:[%s1 + $0x134] sm:$0xf]
  %v114 = vld [vmem:[%s1 + $0x138] sm:$0xf]
  %v115 = vld [vmem:[%s1 + $0x13c] sm:$0xf]
  %v116 = vld [vmem:[%s1 + $0x140] sm:$0xf]
  %v117 = vld [vmem:[%s1 + $0x144] sm:$0xf]
  %v118 = vld [vmem:[%s1 + $0x148] sm:$0xf]
  %v119 = vld [vmem:[%s1 + $0x14c] sm:$0xf]
  %v120 = vld [vmem:[%s1 + $0x150] sm:$0xf]
  %v121 = vld [vmem:[%s1 + $0x154] sm:$0xf]
  %v122 = vld [vmem:[%s1 + $0x158] sm:$0xf]
  %v123 = vld [vmem:[%s1 + $0x15c] sm:$0xf]
  %v124 = vld [vmem:[%s1 + $0x160] sm:$0xf]
  %v125 = vld [vmem:[%s1 + $0x164] sm:$0xf]
  %v126 = vld [vmem:[%s1 + $0x168] sm:$0xf]
  %v127 = vld [vmem:[%s1 + $0x16c] sm:$0xf]
  %v128 = vld [vmem:[%s1 + $0x170] sm:$0xf]
  %v129 = vld [vmem:[%s1 + $0x174] sm:$0xf]
  %v130 = vld [vmem:[%s1 + $0x178] sm:$0xf]
  %v131 = vld [vmem:[%s1 + $0x17c] sm:$0xf]
  %v132 = vld [vmem:[%s1 + $0x180] sm:$0xf]
  %v133 = vld [vmem:[%s1 + $0x184] sm:$0xf]
  %v134 = vld [vmem:[%s1 + $0x188] sm:$0xf]
  %v135 = vld [vmem:[%s1 + $0x18c] sm:$0xf]
  %v136 = vld [vmem:[%s1 + $0x190] sm:$0xf]
  %v137 = vld [vmem:[%s1 + $0x194] sm:$0xf]
  %v138 = vld [vmem:[%s1 + $0x198] sm:$0xf]
  %v139 = vld [vmem:[%s1 + $0x19c] sm:$0xf]
  %v140 = vld [vmem:[%s1 + $0x1a0] sm:$0xf]
  %v141 = vld [vmem:[%s1 + $0x1a4] sm:$0xf]
  %v142 = vld [vmem:[%s1 + $0x1a8] sm:$0xf]
  %v143 = vld [vmem:[%s1 + $0x1ac] sm:$0xf]
  %v144 = vld [vmem:[%s1 + $0x1b0] sm:$0xf]
  %v145 = vld [vmem:[%s1 + $0x1b4] sm:$0xf]
  %v146 = vld [vmem:[%s1 + $0x1b8] sm:$0xf]
  %v147 = vld [vmem:[%s1 + $0x1bc] sm:$0xf]
  %v148 = vld [vmem:[%s1 + $0x1c0] sm:$0xf]
  %v149 = vld [vmem:[%s1 + $0x1c4] sm:$0xf]
  %v150 = vld [vmem:[%s1 + $0x1c8] sm:$0xf]
  %v151 = vld [vmem:[%s1 + $0x1cc] sm:$0xf]
  %v152 = vld [vmem:[%s1 + $0x1d0] sm:$0xf]
  %v153 = vld [vmem:[%s1 + $0x1d4] sm:$0xf]
  %v154 = vld [vmem:[%s1 + $0x1d8] sm:$0xf]
  %v155 = vld [vmem:[%s1 + $0x1dc] sm:$0xf]
  %v156 = vld [vmem:[%s1 + $0x1e0] sm:$0xf]
  %v157 = vld [vmem:[%s1 + $0x1e4] sm:$0xf]
  %v158 = vld [vmem:[%s1 + $0x1e8] sm:$0xf]
  %v159 = vld [vmem:[%s1 + $0x1ec] sm:$0xf]
  %v160 = vld [vmem:[%s1 + $0x1f0] sm:$0xf]
  %v161 = vld [vmem:[%s1 + $0x1f4] sm:$0xf]
  %v162 = vld [vmem:[%s1 + $0x1f8] sm:$0xf]
  %v163 = vld [vmem:[%s1 + $0x1fc] sm:$0xf]
  %v180 = vunpack.c.l.b16 %v20
  %v181 = vunpack.c.h.b16 %v20
  %v182 = vunpack.c.l.b16 %v21
  %v183 = vunpack.c.h.b16 %v21
  %v184 = vunpack.c.l.b16 %v22
  %v185 = vunpack.c.h.b16 %v22
  %v186 = vunpack.c.l.b16 %v23
  %v187 = vunpack.c.h.b16 %v23
  %v188 = vunpack.c.l.b16 %v24
  %v189 = vunpack.c.h.b16 %v24
  %v190 = vunpack.c.l.b16 %v25
  %v191 = vunpack.c.h.b16 %v25
  %v192 = vunpack.c.l.b16 %v26
  %v193 = vunpack.c.h.b16 %v26
  %v194 = vunpack.c.l.b16 %v27
  %v195 = vunpack.c.h.b16 %v27
  %v196 = vunpack.c.l.b16 %v28
  %v197 = vunpack.c.h.b16 %v28
  %v198 = vunpack.c.l.b16 %v29
  %v199 = vunpack.c.h.b16 %v29
  %v200 = vunpack.c.l.b16 %v30
  %v201 = vunpack.c.h.b16 %v30
  %v202 = vunpack.c.l.b16 %v31
  %v203 = vunpack.c.h.b16 %v31
  %v204 = vunpack.c.l.b16 %v32
  %v205 = vunpack.c.h.b16 %v32
  %v206 = vunpack.c.l.b16 %v33
  %v207 = vunpack.c.h.b16 %v33
  %v208 = vunpack.c.l.b16 %v34
  %v209 = vunpack.c.h.b16 %v34
  %v210 = vunpack.c.l.b16 %v35
  %v211 = vunpack.c.h.b16 %v35
  %v212 = vpack.c.b16 %v188, %v180
  %v213 = vpack.c.b16 %v189, %v181
  %v214 = vpack.c.b16 %v190, %v182
  %v215 = vpack.c.b16 %v191, %v183
  %v216 = vpack.c.b16 %v192, %v184
  %v217 = vpack.c.b16 %v193, %v185
  %v218 = vpack.c.b16 %v194, %v186
  %v219 = vpack.c.b16 %v195, %v187
  %v220 = vpack.c.b16 %v204, %v196
  %v221 = vpack.c.b16 %v205, %v197
  %v222 = vpack.c.b16 %v206, %v198
  %v223 = vpack.c.b16 %v207, %v199
  %v224 = vpack.c.b16 %v208, %v200
  %v225 = vpack.c.b16 %v209, %v201
  %v226 = vpack.c.b16 %v210, %v202
  %v227 = vpack.c.b16 %v211, %v203
  %v372 = vunpack.c.l.b16 %v36
  %v373 = vunpack.c.l.b16 %v37
  %v374 = vunpack.c.l.b16 %v38
  %v375 = vunpack.c.l.b16 %v39
  %v376 = vunpack.c.l.b16 %v40
  %v377 = vunpack.c.l.b16 %v41
  %v378 = vunpack.c.l.b16 %v42
  %v379 = vunpack.c.l.b16 %v43
  %v380 = vunpack.c.l.b16 %v44
  %v381 = vunpack.c.l.b16 %v45
  %v382 = vunpack.c.l.b16 %v46
  %v383 = vunpack.c.l.b16 %v47
  %v384 = vunpack.c.l.b16 %v48
  %v385 = vunpack.c.l.b16 %v49
  %v386 = vunpack.c.l.b16 %v50
  %v387 = vunpack.c.l.b16 %v51
  %v388 = vunpack.c.l.b16 %v52
  %v389 = vunpack.c.l.b16 %v53
  %v390 = vunpack.c.l.b16 %v54
  %v391 = vunpack.c.l.b16 %v55
  %v392 = vunpack.c.l.b16 %v56
  %v393 = vunpack.c.l.b16 %v57
  %v394 = vunpack.c.l.b16 %v58
  %v395 = vunpack.c.l.b16 %v59
  %v396 = vunpack.c.l.b16 %v60
  %v397 = vunpack.c.l.b16 %v61
  %v398 = vunpack.c.l.b16 %v62
  %v399 = vunpack.c.l.b16 %v63
  %v400 = vunpack.c.l.b16 %v64
  %v401 = vunpack.c.l.b16 %v65
  %v402 = vunpack.c.l.b16 %v66
  %v403 = vunpack.c.l.b16 %v67
  %v404 = vunpack.c.l.b16 %v68
  %v405 = vunpack.c.l.b16 %v69
  %v406 = vunpack.c.l.b16 %v70
  %v407 = vunpack.c.l.b16 %v71
  %v408 = vunpack.c.l.b16 %v72
  %v409 = vunpack.c.l.b16 %v73
  %v410 = vunpack.c.l.b16 %v74
  %v411 = vunpack.c.l.b16 %v75
  %v412 = vunpack.c.l.b16 %v76
  %v413 = vunpack.c.l.b16 %v77
  %v414 = vunpack.c.l.b16 %v78
  %v415 = vunpack.c.l.b16 %v79
  %v416 = vunpack.c.l.b16 %v80
  %v417 = vunpack.c.l.b16 %v81
  %v418 = vunpack.c.l.b16 %v82
  %v419 = vunpack.c.l.b16 %v83
  %v420 = vunpack.c.l.b16 %v84
  %v421 = vunpack.c.l.b16 %v85
  %v422 = vunpack.c.l.b16 %v86
  %v423 = vunpack.c.l.b16 %v87
  %v424 = vunpack.c.l.b16 %v88
  %v425 = vunpack.c.l.b16 %v89
  %v426 = vunpack.c.l.b16 %v90
  %v427 = vunpack.c.l.b16 %v91
  %v428 = vunpack.c.l.b16 %v92
  %v429 = vunpack.c.l.b16 %v93
  %v430 = vunpack.c.l.b16 %v94
  %v431 = vunpack.c.l.b16 %v95
  %v432 = vunpack.c.l.b16 %v96
  %v433 = vunpack.c.l.b16 %v97
  %v434 = vunpack.c.l.b16 %v98
  %v435 = vunpack.c.l.b16 %v99
  %v436 = vunpack.c.l.b16 %v100
  %v437 = vunpack.c.l.b16 %v101
  %v438 = vunpack.c.l.b16 %v102
  %v439 = vunpack.c.l.b16 %v103
  %v440 = vunpack.c.l.b16 %v104
  %v441 = vunpack.c.l.b16 %v105
  %v442 = vunpack.c.l.b16 %v106
  %v443 = vunpack.c.l.b16 %v107
  %v444 = vunpack.c.l.b16 %v108
  %v445 = vunpack.c.l.b16 %v109
  %v446 = vunpack.c.l.b16 %v110
  %v447 = vunpack.c.l.b16 %v111
  %v448 = vunpack.c.l.b16 %v112
  %v449 = vunpack.c.l.b16 %v113
  %v450 = vunpack.c.l.b16 %v114
  %v451 = vunpack.c.l.b16 %v115
  %v452 = vunpack.c.l.b16 %v116
  %v453 = vunpack.c.l.b16 %v117
  %v454 = vunpack.c.l.b16 %v118
  %v455 = vunpack.c.l.b16 %v119
  %v456 = vunpack.c.l.b16 %v120
  %v457 = vunpack.c.l.b16 %v121
  %v458 = vunpack.c.l.b16 %v122
  %v459 = vunpack.c.l.b16 %v123
  %v460 = vunpack.c.l.b16 %v124
  %v461 = vunpack.c.l.b16 %v125
  %v462 = vunpack.c.l.b16 %v126
  %v463 = vunpack.c.l.b16 %v127
  %v464 = vunpack.c.l.b16 %v128
  %v465 = vunpack.c.l.b16 %v129
  %v466 = vunpack.c.l.b16 %v130
  %v467 = vunpack.c.l.b16 %v131
  %v468 = vunpack.c.l.b16 %v132
  %v469 = vunpack.c.l.b16 %v133
  %v470 = vunpack.c.l.b16 %v134
  %v471 = vunpack.c.l.b16 %v135
  %v472 = vunpack.c.l.b16 %v136
  %v473 = vunpack.c.l.b16 %v137
  %v474 = vunpack.c.l.b16 %v138
  %v475 = vunpack.c.l.b16 %v139
  %v476 = vunpack.c.l.b16 %v140
  %v477 = vunpack.c.l.b16 %v141
  %v478 = vunpack.c.l.b16 %v142
  %v479 = vunpack.c.l.b16 %v143
  %v480 = vunpack.c.l.b16 %v144
  %v481 = vunpack.c.l.b16 %v145
  %v482 = vunpack.c.l.b16 %v146
  %v483 = vunpack.c.l.b16 %v147
  %v484 = vunpack.c.l.b16 %v148
  %v485 = vunpack.c.l.b16 %v149
  %v486 = vunpack.c.l.b16 %v150
  %v487 = vunpack.c.l.b16 %v151
  %v488 = vunpack.c.l.b16 %v152
  %v489 = vunpack.c.l.b16 %v153
  %v490 = vunpack.c.l.b16 %v154
  %v491 = vunpack.c.l.b16 %v155
  %v492 = vunpack.c.l.b16 %v156
  %v493 = vunpack.c.l.b16 %v157
  %v494 = vunpack.c.l.b16 %v158
  %v495 = vunpack.c.l.b16 %v159
  %v496 = vunpack.c.l.b16 %v160
  %v497 = vunpack.c.l.b16 %v161
  %v498 = vunpack.c.l.b16 %v162
  %v499 = vunpack.c.l.b16 %v163
  %v500 = vpack.c.b16 %v373, %v372
  %v501 = vpack.c.b16 %v375, %v374
  %v502 = vpack.c.b16 %v377, %v376
  %v503 = vpack.c.b16 %v379, %v378
  %v504 = vpack.c.b16 %v381, %v380
  %v505 = vpack.c.b16 %v383, %v382
  %v506 = vpack.c.b16 %v385, %v384
  %v507 = vpack.c.b16 %v387, %v386
  %v508 = vpack.c.b16 %v389, %v388
  %v509 = vpack.c.b16 %v391, %v390
  %v510 = vpack.c.b16 %v393, %v392
  %v511 = vpack.c.b16 %v395, %v394
  %v512 = vpack.c.b16 %v397, %v396
  %v513 = vpack.c.b16 %v399, %v398
  %v514 = vpack.c.b16 %v401, %v400
  %v515 = vpack.c.b16 %v403, %v402
  %v516 = vpack.c.b16 %v405, %v404
  %v517 = vpack.c.b16 %v407, %v406
  %v518 = vpack.c.b16 %v409, %v408
  %v519 = vpack.c.b16 %v411, %v410
  %v520 = vpack.c.b16 %v413, %v412
  %v521 = vpack.c.b16 %v415, %v414
  %v522 = vpack.c.b16 %v417, %v416
  %v523 = vpack.c.b16 %v419, %v418
  %v524 = vpack.c.b16 %v421, %v420
  %v525 = vpack.c.b16 %v423, %v422
  %v526 = vpack.c.b16 %v425, %v424
  %v527 = vpack.c.b16 %v427, %v426
  %v528 = vpack.c.b16 %v429, %v428
  %v529 = vpack.c.b16 %v431, %v430
  %v530 = vpack.c.b16 %v433, %v432
  %v531 = vpack.c.b16 %v435, %v434
  %v532 = vpack.c.b16 %v437, %v436
  %v533 = vpack.c.b16 %v439, %v438
  %v534 = vpack.c.b16 %v441, %v440
  %v535 = vpack.c.b16 %v443, %v442
  %v536 = vpack.c.b16 %v445, %v444
  %v537 = vpack.c.b16 %v447, %v446
  %v538 = vpack.c.b16 %v449, %v448
  %v539 = vpack.c.b16 %v451, %v450
  %v540 = vpack.c.b16 %v453, %v452
  %v541 = vpack.c.b16 %v455, %v454
  %v542 = vpack.c.b16 %v457, %v456
  %v543 = vpack.c.b16 %v459, %v458
  %v544 = vpack.c.b16 %v461, %v460
  %v545 = vpack.c.b16 %v463, %v462
  %v546 = vpack.c.b16 %v465, %v464
  %v547 = vpack.c.b16 %v467, %v466
  %v548 = vpack.c.b16 %v469, %v468
  %v549 = vpack.c.b16 %v471, %v470
  %v550 = vpack.c.b16 %v473, %v472
  %v551 = vpack.c.b16 %v475, %v474
  %v552 = vpack.c.b16 %v477, %v476
  %v553 = vpack.c.b16 %v479, %v478
  %v554 = vpack.c.b16 %v481, %v480
  %v555 = vpack.c.b16 %v483, %v482
  %v556 = vpack.c.b16 %v485, %v484
  %v557 = vpack.c.b16 %v487, %v486
  %v558 = vpack.c.b16 %v489, %v488
  %v559 = vpack.c.b16 %v491, %v490
  %v560 = vpack.c.b16 %v493, %v492
  %v561 = vpack.c.b16 %v495, %v494
  %v562 = vpack.c.b16 %v497, %v496
  %v563 = vpack.c.b16 %v499, %v498
  %628 = vmatpush.bf16.msra.mxu0 %v507
  %629 = vmatpush.bf16.msra.mxu0 %v506
  %630 = vmatpush.bf16.msra.mxu0 %v505
  %631 = vmatpush.bf16.msra.mxu0 %v504
  %632 = vmatpush.bf16.msra.mxu0 %v503
  %633 = vmatpush.bf16.msra.mxu0 %v502
  %634 = vmatpush.bf16.msra.mxu0 %v501
  %635 = vmatpush.bf16.msra.mxu0 %v500
  %636 = vmatmul.bf16.gmra.mxu0 %v212
  %v637 = vpop.f32.mrf.mxu0
  %v638 = vadd.f32 0.0, %v637
  %v639 = vpop.f32.mrf.mxu0
  %v640 = vadd.f32 0.0, %v639
  %641 = vmatmul.bf16.gmra.mxu0 %v220
  %v642 = vpop.f32.mrf.mxu0
  %v643 = vadd.f32 0.0, %v642
  %v644 = vpop.f32.mrf.mxu0
  %v645 = vadd.f32 0.0, %v644
  %646 = vdwg.mxu0
  %647 = vmatpush.bf16.msra.mxu0 %v515
  %648 = vmatpush.bf16.msra.mxu0 %v514
  %649 = vmatpush.bf16.msra.mxu0 %v513
  %650 = vmatpush.bf16.msra.mxu0 %v512
  %651 = vmatpush.bf16.msra.mxu0 %v511
  %652 = vmatpush.bf16.msra.mxu0 %v510
  %653 = vmatpush.bf16.msra.mxu0 %v509
  %654 = vmatpush.bf16.msra.mxu0 %v508
  %655 = vmatmul.bf16.gmra.mxu0 %v213
  %v656 = vpop.f32.mrf.mxu0
  %v657 = vadd.f32 %v638, %v656
  %v658 = vpop.f32.mrf.mxu0
  %v659 = vadd.f32 %v640, %v658
  %660 = vmatmul.bf16.gmra.mxu0 %v221
  %v661 = vpop.f32.mrf.mxu0
  %v662 = vadd.f32 %v643, %v661
  %v663 = vpop.f32.mrf.mxu0
  %v664 = vadd.f32 %v645, %v663
  %665 = vdwg.mxu0
  %666 = vmatpush.bf16.msra.mxu0 %v523
  %667 = vmatpush.bf16.msra.mxu0 %v522
  %668 = vmatpush.bf16.msra.mxu0 %v521
  %669 = vmatpush.bf16.msra.mxu0 %v520
  %670 = vmatpush.bf16.msra.mxu0 %v519
  %671 = vmatpush.bf16.msra.mxu0 %v518
  %672 = vmatpush.bf16.msra.mxu0 %v517
  %673 = vmatpush.bf16.msra.mxu0 %v516
  %674 = vmatmul.bf16.gmra.mxu0 %v214
  %v675 = vpop.f32.mrf.mxu0
  %v676 = vadd.f32 %v657, %v675
  %v677 = vpop.f32.mrf.mxu0
  %v678 = vadd.f32 %v659, %v677
  %679 = vmatmul.bf16.gmra.mxu0 %v222
  %v680 = vpop.f32.mrf.mxu0
  %v681 = vadd.f32 %v662, %v680
  %v682 = vpop.f32.mrf.mxu0
  %v683 = vadd.f32 %v664, %v682
  %684 = vdwg.mxu0
  %685 = vmatpush.bf16.msra.mxu0 %v531
  %686 = vmatpush.bf16.msra.mxu0 %v530
  %687 = vmatpush.bf16.msra.mxu0 %v529
  %688 = vmatpush.bf16.msra.mxu0 %v528
  %689 = vmatpush.bf16.msra.mxu0 %v527
  %690 = vmatpush.bf16.msra.mxu0 %v526
  %691 = vmatpush.bf16.msra.mxu0 %v525
  %692 = vmatpush.bf16.msra.mxu0 %v524
  %693 = vmatmul.bf16.gmra.mxu0 %v215
  %v694 = vpop.f32.mrf.mxu0
  %v695 = vadd.f32 %v676, %v694
  %v696 = vpop.f32.mrf.mxu0
  %v697 = vadd.f32 %v678, %v696
  %698 = vmatmul.bf16.gmra.mxu0 %v223
  %v699 = vpop.f32.mrf.mxu0
  %v700 = vadd.f32 %v681, %v699
  %v701 = vpop.f32.mrf.mxu0
  %v702 = vadd.f32 %v683, %v701
  %703 = vdwg.mxu0
  %704 = vmatpush.bf16.msra.mxu0 %v539
  %705 = vmatpush.bf16.msra.mxu0 %v538
  %706 = vmatpush.bf16.msra.mxu0 %v537
  %707 = vmatpush.bf16.msra.mxu0 %v536
  %708 = vmatpush.bf16.msra.mxu0 %v535
  %709 = vmatpush.bf16.msra.mxu0 %v534
  %710 = vmatpush.bf16.msra.mxu0 %v533
  %711 = vmatpush.bf16.msra.mxu0 %v532
  %712 = vmatmul.bf16.gmra.mxu0 %v216
  %v713 = vpop.f32.mrf.mxu0
  %v714 = vadd.f32 %v695, %v713
  %v715 = vpop.f32.mrf.mxu0
  %v716 = vadd.f32 %v697, %v715
  %717 = vmatmul.bf16.gmra.mxu0 %v224
  %v718 = vpop.f32.mrf.mxu0
  %v719 = vadd.f32 %v700, %v718
  %v720 = vpop.f32.mrf.mxu0
  %v721 = vadd.f32 %v702, %v720
  %722 = vdwg.mxu0
  %723 = vmatpush.bf16.msra.mxu0 %v547
  %724 = vmatpush.bf16.msra.mxu0 %v546
  %725 = vmatpush.bf16.msra.mxu0 %v545
  %726 = vmatpush.bf16.msra.mxu0 %v544
  %727 = vmatpush.bf16.msra.mxu0 %v543
  %728 = vmatpush.bf16.msra.mxu0 %v542
  %729 = vmatpush.bf16.msra.mxu0 %v541
  %730 = vmatpush.bf16.msra.mxu0 %v540
  %731 = vmatmul.bf16.gmra.mxu0 %v217
  %v732 = vpop.f32.mrf.mxu0
  %v733 = vadd.f32 %v714, %v732
  %v734 = vpop.f32.mrf.mxu0
  %v735 = vadd.f32 %v716, %v734
  %736 = vmatmul.bf16.gmra.mxu0 %v225
  %v737 = vpop.f32.mrf.mxu0
  %v738 = vadd.f32 %v719, %v737
  %v739 = vpop.f32.mrf.mxu0
  %v740 = vadd.f32 %v721, %v739
  %741 = vdwg.mxu0
  %742 = vmatpush.bf16.msra.mxu0 %v555
  %743 = vmatpush.bf16.msra.mxu0 %v554
  %744 = vmatpush.bf16.msra.mxu0 %v553
  %745 = vmatpush.bf16.msra.mxu0 %v552
  %746 = vmatpush.bf16.msra.mxu0 %v551
  %747 = vmatpush.bf16.msra.mxu0 %v550
  %748 = vmatpush.bf16.msra.mxu0 %v549
  %749 = vmatpush.bf16.msra.mxu0 %v548
  %750 = vmatmul.bf16.gmra.mxu0 %v218
  %v751 = vpop.f32.mrf.mxu0
  %v752 = vadd.f32 %v733, %v751
  %v753 = vpop.f32.mrf.mxu0
  %v754 = vadd.f32 %v735, %v753
  %755 = vmatmul.bf16.gmra.mxu0 %v226
  %v756 = vpop.f32.mrf.mxu0
  %v757 = vadd.f32 %v738, %v756
  %v758 = vpop.f32.mrf.mxu0
  %v759 = vadd.f32 %v740, %v758
  %760 = vdwg.mxu0
  %761 = vmatpush.bf16.msra.mxu0 %v563
  %762 = vmatpush.bf16.msra.mxu0 %v562
  %763 = vmatpush.bf16.msra.mxu0 %v561
  %764 = vmatpush.bf16.msra.mxu0 %v560
  %765 = vmatpush.bf16.msra.mxu0 %v559
  %766 = vmatpush.bf16.msra.mxu0 %v558
  %767 = vmatpush.bf16.msra.mxu0 %v557
  %768 = vmatpush.bf16.msra.mxu0 %v556
  %769 = vmatmul.bf16.gmra.mxu0 %v219
  %v770 = vpop.f32.mrf.mxu0
  %v771 = vadd.f32 %v752, %v770
  %v772 = vpop.f32.mrf.mxu0
  %v773 = vadd.f32 %v754, %v772
  %774 = vmatmul.bf16.gmra.mxu0 %v227
  %v775 = vpop.f32.mrf.mxu0
  %v776 = vadd.f32 %v757, %v775
  %v777 = vpop.f32.mrf.mxu0
  %v778 = vadd.f32 %v759, %v777
  %779 = vdwg.mxu0
  %v780 = vld [vmem:[%s2] sm:$0x1]
  %v781 = vld [vmem:[%s3] sm:$0x1]
  %v782 = vadd.f32 %v771, %v773
  %v783 = vadd.f32 %v782, %v776
  %v784 = vadd.f32 %v783, %v778
  %v785 = vrot.slane %v784, 4
  %v786 = vadd.f32 %v784, %v785
  %v787 = vrot.slane %v786, 2
  %v788 = vadd.f32 %v786, %v787
  %v789 = vrot.slane %v788, 1
  %v790 = vadd.f32 %v788, %v789
  %v791 = vrcp.pop 32.0
  %v792 = vmul.f32 32.0, %v791
  %v793 = vsub.f32 1.0, %v792
  %v794 = vmul.f32 %v791, %v793
  %v795 = vadd.f32 %v791, %v794
  %vm796 = vweird.f32 %v791
  %v797 = vsel %vm796, %v791, %v795
  %v798 = vmul.f32 %v790, %v797
  %v799 = vmul.f32 %v771, %v771
  %v800 = vmul.f32 %v773, %v773
  %v801 = vmul.f32 %v776, %v776
  %v802 = vmul.f32 %v778, %v778
  %v803 = vadd.f32 %v799, %v800
  %v804 = vadd.f32 %v803, %v801
  %v805 = vadd.f32 %v804, %v802
  %v806 = vrot.slane %v805, 4
  %v807 = vadd.f32 %v805, %v806
  %v808 = vrot.slane %v807, 2
  %v809 = vadd.f32 %v807, %v808
  %v810 = vrot.slane %v809, 1
  %v811 = vadd.f32 %v809, %v810
  %v812 = vmul.f32 %v811, %v797
  %v813 = vmul.f32 %v798, %v798
  %v814 = vsub.f32 %v812, %v813
  %v815 = vmax.f32 %v814, 0.0
  %v816 = vadd.f32 %v815, 1e-05
  %v817 = vrsqrt.pop %v816
  %v818 = vmul.f32 %v817, %v816
  %v819 = vmul.f32 %v818, %v817
  %v820 = vmul.f32 0.5, %v819
  %v821 = vsub.f32 1.5, %v820
  %v822 = vmul.f32 %v817, %v821
  %vm823 = vweird.f32 %v816
  %vm824 = vweird.f32 %v817
  %vm825 = vmor %vm823, %vm824
  %v826 = vsel %vm825, %v817, %v822
  %v827 = vmul.f32 %v780, %v826
  %v828 = vmul.f32 %v798, %v827
  %v829 = vsub.f32 %v781, %v828
  %v831 = vperm.slane %v827, 0
  %v833 = vmul.f32 %v771, %v831
  %v834 = vmul.f32 %v773, %v831
  %v835 = vmul.f32 %v776, %v831
  %v836 = vmul.f32 %v778, %v831
  %v838 = vperm.slane %v829, 0
  %v840 = vadd.f32 %v833, %v838
  %v841 = vadd.f32 %v834, %v838
  %v842 = vadd.f32 %v835, %v838
  %v843 = vadd.f32 %v836, %v838
  %v844 = vmul.f32 %v840, 0.2
  %v845 = vmul.f32 %v841, 0.2
  %v846 = vmul.f32 %v842, 0.2
  %v847 = vmul.f32 %v843, 0.2
  %v848 = vmax.f32 %v840, %v844
  %v849 = vmax.f32 %v841, %v845
  %v850 = vmax.f32 %v842, %v846
  %v851 = vmax.f32 %v843, %v847
  %v852 = vld [vmem:[%s4] sm:$0xff]
  %v853 = vld [vmem:[%s4 + $0x8] sm:$0xff]
  %v854 = vld [vmem:[%s4 + $0x10] sm:$0xff]
  %v855 = vld [vmem:[%s4 + $0x18] sm:$0xff]
  %v856 = vmul.f32 %v848, %v852
  %v857 = vmul.f32 %v849, %v853
  %v858 = vmul.f32 %v850, %v854
  %v859 = vmul.f32 %v851, %v855
  %860 = vadd.xlane.f32.xlu0 %v856
  %v861 = vpop.xlane.xlu0 %860
  %862 = vadd.xlane.f32.xlu0 %v857
  %v863 = vpop.xlane.xlu0 %862
  %v864 = vadd.f32 %v861, %v863
  %v865 = vrot.slane %v864, 4
  %v866 = vadd.f32 %v864, %v865
  %v867 = vrot.slane %v866, 2
  %v868 = vadd.f32 %v866, %v867
  %v869 = vrot.slane %v868, 1
  %v870 = vadd.f32 %v868, %v869
  %v871 = vsub.f32 0.0, %v870
  %v872 = vmul.f32 %v871, 1.442695
  %v873 = vpow.pop %v872
  %v874 = vadd.f32 %v873, 1.0
  %v875 = vrcp.pop %v874
  %vm876 = vcmask 0
  %877 = vst.msk [vmem:[%s5] sm:$0x1] %vm876, %v875
  %878 = vadd.xlane.f32.xlu0 %v858
  %v879 = vpop.xlane.xlu0 %878
  %880 = vadd.xlane.f32.xlu0 %v859
  %v881 = vpop.xlane.xlu0 %880
  %v882 = vadd.f32 %v879, %v881
  %v883 = vrot.slane %v882, 4
  %v884 = vadd.f32 %v882, %v883
  %v885 = vrot.slane %v884, 2
  %v886 = vadd.f32 %v884, %v885
  %v887 = vrot.slane %v886, 1
  %v888 = vadd.f32 %v886, %v887
  %v889 = vsub.f32 0.0, %v888
  %v890 = vmul.f32 %v889, 1.442695
  %v891 = vpow.pop %v890
  %v892 = vadd.f32 %v891, 1.0
  %v893 = vrcp.pop %v892
  %894 = vst.msk [vmem:[%s5 + $0x1] sm:$0x1] %vm876, %v893
  // Predicated region
  $region22: #{_lambda_.9} parent=0 // pred_check
    _
  $region23: #{_lambda_.9} parent=0 // pred_check_branch
    %896 = sbr.rel (0) target = $region25
  $region24: #{_lambda_.9} parent=0 // pred_region
    _
  $region25: #{_lambda_.9} parent=0 // pred_fallthru
    _
  // Predicated region
  $region26: #{_lambda_.9} parent=0 // pred_check
    _
  $region27: #{_lambda_.9} parent=0 // pred_check_branch
    %898 = sbr.rel (0) target = $region29
  $region28: #{_lambda_.9} parent=0 // pred_region
    _
  $region29: #{_lambda_.9} parent=0 // pred_fallthru
    _

</llo_original>
